<compile_context>
chip_gen: v5e
topology: v5e:2x2
jax: 0.10.0
libtpu: 0.0.40
codegen_flags: <defaults>
</compile_context>

<pallas_src>
import functools
import math

import jax
import jax.numpy as jnp
from jax.experimental import pallas as pl
from jax.experimental.pallas import tpu as pltpu


# MXU operand dtype: bf16 feeds the native MXU path on v6e/v7x and halves
# weight DMA bytes; accumulation stays f32.  Use jnp.float32 for bit-level
# parity with an f32 PyTorch reference.
MXU_DTYPE = jnp.bfloat16
LN_EPS = 1e-5            # PyTorch nn.LayerNorm default
NEG_INF = -1e9


# ----------------------------------------------------------------------------
# In-kernel helpers (all elementwise math in f32; only dot operands are bf16)
# ----------------------------------------------------------------------------
def _mxu_dot(a, b):
    return jnp.dot(a.astype(MXU_DTYPE), b.astype(MXU_DTYPE),
                   preferred_element_type=jnp.float32)


def _layernorm(x, g, b, eps):
    mean = jnp.mean(x, axis=-1, keepdims=True)
    var = jnp.mean(jnp.square(x - mean), axis=-1, keepdims=True)
    return (x - mean) * jax.lax.rsqrt(var + eps) * g + b


def _mha(q_all, k_all, v_all, mask_add, num_heads):
    """q_all:(Tq,D) already scaled by 1/sqrt(depth); k_all/v_all:(Tk,D);
    mask_add broadcastable to (Tq,Tk), additive (-1e9 at masked positions).

    Heads are static lane slices of the fused projections.  Returns
    (ctx:(Tq,D)  -- heads concatenated back into lane order, ready for one
     Wo matmul across all rows --, probs:(Tq, H*Tk) lane-dense).
    """
    tq, d_model = q_all.shape
    depth = d_model // num_heads
    ctxs, probs = [], []
    for h in range(num_heads):
        lo, hi = h * depth, (h + 1) * depth
        s = _mxu_dot(q_all[:, lo:hi], k_all[:, lo:hi].T)       # (Tq, Tk) f32
        s = s + mask_add
        m = jnp.max(s, axis=-1, keepdims=True)
        e = jnp.exp(s - m)
        p = e * pl.reciprocal(jnp.sum(e, axis=-1, keepdims=True), approx=True)
        probs.append(p)
        ctxs.append(_mxu_dot(p, v_all[:, lo:hi]))              # (Tq, depth)
    return jnp.concatenate(ctxs, axis=-1), jnp.concatenate(probs, axis=-1)


# ----------------------------------------------------------------------------
# Single fused kernel: encoder stack + decoder stack + final projection
# ----------------------------------------------------------------------------
def _transformer_kernel(
        # activations / additive padding-mask rows
        xe_ref, xd_ref, enc_pad_ref, tar_pad_ref,
        # encoder stacked params (leading dim = num_layers)
        e_wqkv, e_bqkv, e_wo, e_bo, e_wf1, e_bf1, e_wf2, e_bf2,
        e_g1, e_be1, e_g2, e_be2,
        # decoder stacked params
        d_wqkv, d_bqkv, d_wo1, d_bo1, d_wq2, d_bq2, d_wkv2, d_bkv2,
        d_wo2, d_bo2, d_wf1, d_bf1, d_wf2, d_bf2,
        d_g1, d_be1, d_g2, d_be2, d_g3, d_be3,
        # final linear
        f_w, f_b,
        # outputs
        enc_out_ref, logits_ref, attn1_ref, attn2_ref,
        *, B, T_in, T_tar, num_heads, eps):
    num_layers = e_wqkv.shape[0]
    D = xe_ref.shape[-1]
    depth = D // num_heads
    scale = 1.0 / math.sqrt(depth)

    enc_pad = enc_pad_ref[...]           # (B, T_in)  additive (-1e9 at pad)
    tar_pad = tar_pad_ref[...]           # (B, T_tar) additive

    # Causal additive mask, built once and shared by both decoder layers.
    row = jax.lax.broadcasted_iota(jnp.int32, (T_tar, T_tar), 0)
    col = jax.lax.broadcasted_iota(jnp.int32, (T_tar, T_tar), 1)
    causal_add = jnp.where(col > row, NEG_INF, 0.0).astype(jnp.float32)

    # -------------------------- encoder stack --------------------------
    x = xe_ref[...].astype(jnp.float32)                       # (B*T_in, D)
    for l in range(num_layers):
        qkv = _mxu_dot(x, e_wqkv[l]) + e_bqkv[l]               # (B*T_in, 3D)
        q = qkv[:, :D] * scale                                 # scale hoisted
        k = qkv[:, D:2 * D]
        v = qkv[:, 2 * D:]
        ctx_rows = []
        for b in range(B):
            sl = slice(b * T_in, (b + 1) * T_in)
            ctx, _ = _mha(q[sl], k[sl], v[sl], enc_pad[b:b + 1, :], num_heads)
            ctx_rows.append(ctx)
        ctx_all = jnp.concatenate(ctx_rows, axis=0)            # (B*T_in, D)
        attn_out = _mxu_dot(ctx_all, e_wo[l]) + e_bo[l]        # one Wo matmul
        out1 = _layernorm(x + attn_out, e_g1[l], e_be1[l], eps)
        h = jnp.maximum(_mxu_dot(out1, e_wf1[l]) + e_bf1[l], 0.0)
        ff = _mxu_dot(h, e_wf2[l]) + e_bf2[l]
        x = _layernorm(out1 + ff, e_g2[l], e_be2[l], eps)
    enc = x                                                    # stays in VMEM
    enc_out_ref[...] = enc.astype(enc_out_ref.dtype)

    # -------------------------- decoder stack --------------------------
    y = xd_ref[...].astype(jnp.float32)                        # (B*T_tar, D)
    for l in range(num_layers):
        # block 1: masked self-attention (fused QKV matmul over all rows)
        qkv = _mxu_dot(y, d_wqkv[l]) + d_bqkv[l]
        q = qkv[:, :D] * scale
        k = qkv[:, D:2 * D]
        v = qkv[:, 2 * D:]
        ctx_rows = []
        for b in range(B):
            sl = slice(b * T_tar, (b + 1) * T_tar)
            mask_add = causal_add + tar_pad[b:b + 1, :]        # additive combine
            ctx, probs = _mha(q[sl], k[sl], v[sl], mask_add, num_heads)
            ctx_rows.append(ctx)
            attn1_ref[l, b] = probs.astype(attn1_ref.dtype)    # one lane-dense store
        ctx_all = jnp.concatenate(ctx_rows, axis=0)
        attn1 = _mxu_dot(ctx_all, d_wo1[l]) + d_bo1[l]
        out1 = _layernorm(y + attn1, d_g1[l], d_be1[l], eps)

        # block 2: cross-attention with the (VMEM-resident) encoder output
        q2 = (_mxu_dot(out1, d_wq2[l]) + d_bq2[l]) * scale
        kv2 = _mxu_dot(enc, d_wkv2[l]) + d_bkv2[l]             # (B*T_in, 2D)
        k2 = kv2[:, :D]
        v2 = kv2[:, D:]
        ctx_rows = []
        for b in range(B):
            sq = slice(b * T_tar, (b + 1) * T_tar)
            sk = slice(b * T_in, (b + 1) * T_in)
            ctx, probs = _mha(q2[sq], k2[sk], v2[sk],
                              enc_pad[b:b + 1, :], num_heads)
            ctx_rows.append(ctx)
            attn2_ref[l, b] = probs.astype(attn2_ref.dtype)
        ctx_all = jnp.concatenate(ctx_rows, axis=0)
        attn2 = _mxu_dot(ctx_all, d_wo2[l]) + d_bo2[l]
        out2 = _layernorm(out1 + attn2, d_g2[l], d_be2[l], eps)

        # feed-forward
        h = jnp.maximum(_mxu_dot(out2, d_wf1[l]) + d_bf1[l], 0.0)
        ff = _mxu_dot(h, d_wf2[l]) + d_bf2[l]
        y = _layernorm(out2 + ff, d_g3[l], d_be3[l], eps)

    # fused final projection (no extra launch)
    logits_ref[...] = (_mxu_dot(y, f_w[...]) + f_b[...]).astype(logits_ref.dtype)


# ----------------------------------------------------------------------------
# pallas_call wrapper
# ----------------------------------------------------------------------------
def _full_spec(shape):
    ndim = len(shape)
    return pl.BlockSpec(tuple(shape), lambda i: (0,) * ndim)


_ENC_KEYS = ["wqkv", "bqkv", "wo", "bo", "wf1", "bf1", "wf2", "bf2",
             "g1", "be1", "g2", "be2"]
_DEC_KEYS = ["wqkv", "bqkv", "wo1", "bo1", "wq2", "bq2", "wkv2", "bkv2",
             "wo2", "bo2", "wf1", "bf1", "wf2", "bf2",
             "g1", "be1", "g2", "be2", "g3", "be3"]


def _transformer_stack(xe, xd, enc_pad_add, tar_pad_add, enc_p, dec_p, fin, *,
                       num_heads, B, T_in, T_tar):
    D = xe.shape[-1]
    L = enc_p["wqkv"].shape[0]
    V = fin["w"].shape[-1]
    H = num_heads

    operands = ([xe, xd, enc_pad_add, tar_pad_add]
                + [enc_p[k] for k in _ENC_KEYS]
                + [dec_p[k] for k in _DEC_KEYS]
                + [fin["w"], fin["b"]])

    out_shapes = (
        jax.ShapeDtypeStruct((B * T_in, D), jnp.float32),             # enc out
        jax.ShapeDtypeStruct((B * T_tar, V), jnp.float32),            # logits
        jax.ShapeDtypeStruct((L, B, T_tar, H * T_tar), jnp.float32),  # block1 p
        jax.ShapeDtypeStruct((L, B, T_tar, H * T_in), jnp.float32),   # block2 p
    )

    kernel = functools.partial(_transformer_kernel, B=B, T_in=T_in,
                               T_tar=T_tar, num_heads=num_heads, eps=LN_EPS)

    return pl.pallas_call(
        kernel,
        out_shape=out_shapes,
        grid=(1,),
        in_specs=[_full_spec(a.shape) for a in operands],
        out_specs=tuple(_full_spec(s.shape) for s in out_shapes),
        compiler_params=pltpu.CompilerParams(
            dimension_semantics=("arbitrary",)),
    )(*operands)


# ----------------------------------------------------------------------------
# Plain-JAX glue (embedding, positional encoding, mask rows, param init)
# ----------------------------------------------------------------------------
def positional_encoding(position, d_model):
    pos = jnp.arange(position, dtype=jnp.float32)[:, None]
    i = jnp.arange(d_model, dtype=jnp.float32)[None, :]
    angle_rates = 1.0 / jnp.power(10000.0, (2.0 * jnp.floor(i / 2.0)) / d_model)
    angle_rads = pos * angle_rates
    even = (jnp.arange(d_model)[None, :] % 2) == 0
    pe = jnp.where(even, jnp.sin(angle_rads), jnp.cos(angle_rads))
    return pe[None, ...].astype(jnp.float32)                  # (1, P, D)


def _norm(key, shape):
    return jax.random.normal(key, shape, jnp.float32) * 0.02


def init_transformer(key, num_layers, d_model, dff, input_vocab_size,
                     target_vocab_size, pe_input, pe_target):
    L, D = num_layers, d_model
    ks = iter(jax.random.split(key, 16))
    z = lambda *s: jnp.zeros(s, jnp.float32)
    o = lambda *s: jnp.ones(s, jnp.float32)
    enc = {
        "emb": _norm(next(ks), (input_vocab_size, D)),
        "pos": positional_encoding(pe_input, D),
        "wqkv": _norm(next(ks), (L, D, 3 * D)), "bqkv": z(L, 1, 3 * D),
        "wo": _norm(next(ks), (L, D, D)), "bo": z(L, 1, D),
        "wf1": _norm(next(ks), (L, D, dff)), "bf1": z(L, 1, dff),
        "wf2": _norm(next(ks), (L, dff, D)), "bf2": z(L, 1, D),
        "g1": o(L, 1, D), "be1": z(L, 1, D),
        "g2": o(L, 1, D), "be2": z(L, 1, D),
    }
    dec = {
        "emb": _norm(next(ks), (target_vocab_size, D)),
        "pos": positional_encoding(pe_target, D),
        "wqkv": _norm(next(ks), (L, D, 3 * D)), "bqkv": z(L, 1, 3 * D),
        "wo1": _norm(next(ks), (L, D, D)), "bo1": z(L, 1, D),
        "wq2": _norm(next(ks), (L, D, D)), "bq2": z(L, 1, D),
        "wkv2": _norm(next(ks), (L, D, 2 * D)), "bkv2": z(L, 1, 2 * D),
        "wo2": _norm(next(ks), (L, D, D)), "bo2": z(L, 1, D),
        "wf1": _norm(next(ks), (L, D, dff)), "bf1": z(L, 1, dff),
        "wf2": _norm(next(ks), (L, dff, D)), "bf2": z(L, 1, D),
        "g1": o(L, 1, D), "be1": z(L, 1, D),
        "g2": o(L, 1, D), "be2": z(L, 1, D),
        "g3": o(L, 1, D), "be3": z(L, 1, D),
    }
    final = {"w": _norm(next(ks), (D, target_vocab_size)),
             "b": z(1, target_vocab_size)}
    return {"encoder": enc, "decoder": dec, "final": final}


def transformer_forward(params, inp, tar, enc_output_in, *, num_heads, d_model):
    B, T_in = inp.shape
    _, T_tar = tar.shape
    enc_p, dec_p, fin = params["encoder"], params["decoder"], params["final"]

    # Embedding gather + positional encoding stay in plain JAX (XLA handles
    # the gather); everything downstream runs in the single fused kernel.
    sqrt_d = jnp.sqrt(jnp.float32(d_model))
    xe = enc_p["emb"][inp] * sqrt_d + enc_p["pos"][:, :T_in, :]
    xd = dec_p["emb"][tar] * sqrt_d + dec_p["pos"][:, :T_tar, :]

    # Additive padding-mask rows (create_padding_mask folded with the -1e9
    # scale); the causal/look-ahead component is rebuilt once in-kernel.
    enc_pad_add = jnp.where(inp == 0, NEG_INF, 0.0).astype(jnp.float32)  # (B,T_in)
    tar_pad_add = jnp.where(tar == 0, NEG_INF, 0.0).astype(jnp.float32)  # (B,T_tar)

    # TODO(synk): the original forward also receives a cached `enc_output`
    # whose producer is not part of the module; the encoder output is
    # recomputed from `inp` here.
    del enc_output_in

    enc_flat, logits_flat, attn1, attn2 = _transformer_stack(
        xe.reshape(B * T_in, d_model).astype(jnp.float32),
        xd.reshape(B * T_tar, d_model).astype(jnp.float32),
        enc_pad_add, tar_pad_add, enc_p, dec_p, fin,
        num_heads=num_heads, B=B, T_in=T_in, T_tar=T_tar)

    enc_output = enc_flat.reshape(B, T_in, d_model)
    final_output = logits_flat.reshape(B, T_tar, -1)

    # Lane-dense (L, B, Tq, H*Tk) kernel layout -> PyTorch (B, H, Tq, Tk) dict.
    L, H = attn1.shape[0], num_heads
    attn1 = attn1.reshape(L, B, T_tar, H, T_tar).transpose(0, 1, 3, 2, 4)
    attn2 = attn2.reshape(L, B, T_tar, H, T_in).transpose(0, 1, 3, 2, 4)
    attention_weights = {}
    for i in range(L):
        attention_weights[f"decoder_layer{i + 1}_block1"] = attn1[i]
        attention_weights[f"decoder_layer{i + 1}_block2"] = attn2[i]
    return final_output, attention_weights, enc_output


# ----------------------------------------------------------------------------
# Driver
# ----------------------------------------------------------------------------
if __name__ == "__main__":
    num_layers = 2
    d_model = 32
    num_heads = 4
    dff = 64
    input_vocab_size = 50
    target_vocab_size = 60
    pe_input = 16
    pe_target = 16
    B, T_in, T_tar = 2, 8, 8

    key = jax.random.PRNGKey(0)
    k_params, k_inp, k_tar = jax.random.split(key, 3)
    params = init_transformer(k_params, num_layers, d_model, dff,
                              input_vocab_size, target_vocab_size,
                              pe_input, pe_target)

    inp = jax.random.randint(k_inp, (B, T_in), 1, input_vocab_size, jnp.int32)
    tar = jax.random.randint(k_tar, (B, T_tar), 1, target_vocab_size, jnp.int32)
    # add some padding (token id 0) to exercise the masks
    inp = inp.at[:, -2:].set(0)
    tar = tar.at[:, -1:].set(0)
    enc_output_in = jnp.zeros((B, T_in, d_model), jnp.float32)

    fwd = jax.jit(functools.partial(transformer_forward,
                                    num_heads=num_heads, d_model=d_model))
    final_output, attention_weights, enc_output = fwd(params, inp, tar,
                                                      enc_output_in)
    jax.block_until_ready((final_output, attention_weights, enc_output))

    assert final_output.shape == (B, T_tar, target_vocab_size)
    assert enc_output.shape == (B, T_in, d_model)
    assert attention_weights["decoder_layer1_block1"].shape == (B, num_heads,
                                                                T_tar, T_tar)
    assert attention_weights["decoder_layer2_block2"].shape == (B, num_heads,
                                                                T_tar, T_in)
    assert bool(jnp.all(jnp.isfinite(final_output)))
    assert bool(jnp.all(jnp.isfinite(attention_weights["decoder_layer1_block1"])))
    print("KERNEL_OK")
</pallas_src>

<mosaic_0001>
module attributes {stable_mosaic.version = 11 : i64} {
  func.func @_transformer_kernel(%arg0: i32, %arg1: memref<16x32xf32, #tpu.memory_space<vmem>>, %arg2: memref<16x32xf32, #tpu.memory_space<vmem>>, %arg3: memref<2x8xf32, #tpu.memory_space<vmem>>, %arg4: memref<2x8xf32, #tpu.memory_space<vmem>>, %arg5: memref<2x32x96xf32, #tpu.memory_space<vmem>>, %arg6: memref<2x1x96xf32, #tpu.memory_space<vmem>>, %arg7: memref<2x32x32xf32, #tpu.memory_space<vmem>>, %arg8: memref<2x1x32xf32, #tpu.memory_space<vmem>>, %arg9: memref<2x32x64xf32, #tpu.memory_space<vmem>>, %arg10: memref<2x1x64xf32, #tpu.memory_space<vmem>>, %arg11: memref<2x64x32xf32, #tpu.memory_space<vmem>>, %arg12: memref<2x1x32xf32, #tpu.memory_space<vmem>>, %arg13: memref<2x1x32xf32, #tpu.memory_space<vmem>>, %arg14: memref<2x1x32xf32, #tpu.memory_space<vmem>>, %arg15: memref<2x1x32xf32, #tpu.memory_space<vmem>>, %arg16: memref<2x1x32xf32, #tpu.memory_space<vmem>>, %arg17: memref<2x32x96xf32, #tpu.memory_space<vmem>>, %arg18: memref<2x1x96xf32, #tpu.memory_space<vmem>>, %arg19: memref<2x32x32xf32, #tpu.memory_space<vmem>>, %arg20: memref<2x1x32xf32, #tpu.memory_space<vmem>>, %arg21: memref<2x32x32xf32, #tpu.memory_space<vmem>>, %arg22: memref<2x1x32xf32, #tpu.memory_space<vmem>>, %arg23: memref<2x32x64xf32, #tpu.memory_space<vmem>>, %arg24: memref<2x1x64xf32, #tpu.memory_space<vmem>>, %arg25: memref<2x32x32xf32, #tpu.memory_space<vmem>>, %arg26: memref<2x1x32xf32, #tpu.memory_space<vmem>>, %arg27: memref<2x32x64xf32, #tpu.memory_space<vmem>>, %arg28: memref<2x1x64xf32, #tpu.memory_space<vmem>>, %arg29: memref<2x64x32xf32, #tpu.memory_space<vmem>>, %arg30: memref<2x1x32xf32, #tpu.memory_space<vmem>>, %arg31: memref<2x1x32xf32, #tpu.memory_space<vmem>>, %arg32: memref<2x1x32xf32, #tpu.memory_space<vmem>>, %arg33: memref<2x1x32xf32, #tpu.memory_space<vmem>>, %arg34: memref<2x1x32xf32, #tpu.memory_space<vmem>>, %arg35: memref<2x1x32xf32, #tpu.memory_space<vmem>>, %arg36: memref<2x1x32xf32, #tpu.memory_space<vmem>>, %arg37: memref<32x60xf32, #tpu.memory_space<vmem>>, %arg38: memref<1x60xf32, #tpu.memory_space<vmem>>, %arg39: memref<16x32xf32, #tpu.memory_space<vmem>>, %arg40: memref<16x60xf32, #tpu.memory_space<vmem>>, %arg41: memref<2x2x8x32xf32, #tpu.memory_space<vmem>>, %arg42: memref<2x2x8x32xf32, #tpu.memory_space<vmem>>) attributes {dimension_semantics = [#tpu.dimension_semantics<arbitrary>], iteration_bounds = array<i64: 1>, scalar_prefetch = 0 : i64, scratch_operands = 0 : i64, tpu.core_type = #tpu.core_type<tc>, window_params = [{pipeline_mode = #tpu.pipeline_mode<synchronous>, transform_indices = @transform_0, window_bounds = array<i64: 16, 32>}, {pipeline_mode = #tpu.pipeline_mode<synchronous>, transform_indices = @transform_1, window_bounds = array<i64: 16, 32>}, {pipeline_mode = #tpu.pipeline_mode<synchronous>, transform_indices = @transform_2, window_bounds = array<i64: 2, 8>}, {pipeline_mode = #tpu.pipeline_mode<synchronous>, transform_indices = @transform_3, window_bounds = array<i64: 2, 8>}, {pipeline_mode = #tpu.pipeline_mode<synchronous>, transform_indices = @transform_4, window_bounds = array<i64: 2, 32, 96>}, {pipeline_mode = #tpu.pipeline_mode<synchronous>, transform_indices = @transform_5, window_bounds = array<i64: 2, 1, 96>}, {pipeline_mode = #tpu.pipeline_mode<synchronous>, transform_indices = @transform_6, window_bounds = array<i64: 2, 32, 32>}, {pipeline_mode = #tpu.pipeline_mode<synchronous>, transform_indices = @transform_7, window_bounds = array<i64: 2, 1, 32>}, {pipeline_mode = #tpu.pipeline_mode<synchronous>, transform_indices = @transform_8, window_bounds = array<i64: 2, 32, 64>}, {pipeline_mode = #tpu.pipeline_mode<synchronous>, transform_indices = @transform_9, window_bounds = array<i64: 2, 1, 64>}, {pipeline_mode = #tpu.pipeline_mode<synchronous>, transform_indices = @transform_10, window_bounds = array<i64: 2, 64, 32>}, {pipeline_mode = #tpu.pipeline_mode<synchronous>, transform_indices = @transform_11, window_bounds = array<i64: 2, 1, 32>}, {pipeline_mode = #tpu.pipeline_mode<synchronous>, transform_indices = @transform_12, window_bounds = array<i64: 2, 1, 32>}, {pipeline_mode = #tpu.pipeline_mode<synchronous>, transform_indices = @transform_13, window_bounds = array<i64: 2, 1, 32>}, {pipeline_mode = #tpu.pipeline_mode<synchronous>, transform_indices = @transform_14, window_bounds = array<i64: 2, 1, 32>}, {pipeline_mode = #tpu.pipeline_mode<synchronous>, transform_indices = @transform_15, window_bounds = array<i64: 2, 1, 32>}, {pipeline_mode = #tpu.pipeline_mode<synchronous>, transform_indices = @transform_16, window_bounds = array<i64: 2, 32, 96>}, {pipeline_mode = #tpu.pipeline_mode<synchronous>, transform_indices = @transform_17, window_bounds = array<i64: 2, 1, 96>}, {pipeline_mode = #tpu.pipeline_mode<synchronous>, transform_indices = @transform_18, window_bounds = array<i64: 2, 32, 32>}, {pipeline_mode = #tpu.pipeline_mode<synchronous>, transform_indices = @transform_19, window_bounds = array<i64: 2, 1, 32>}, {pipeline_mode = #tpu.pipeline_mode<synchronous>, transform_indices = @transform_20, window_bounds = array<i64: 2, 32, 32>}, {pipeline_mode = #tpu.pipeline_mode<synchronous>, transform_indices = @transform_21, window_bounds = array<i64: 2, 1, 32>}, {pipeline_mode = #tpu.pipeline_mode<synchronous>, transform_indices = @transform_22, window_bounds = array<i64: 2, 32, 64>}, {pipeline_mode = #tpu.pipeline_mode<synchronous>, transform_indices = @transform_23, window_bounds = array<i64: 2, 1, 64>}, {pipeline_mode = #tpu.pipeline_mode<synchronous>, transform_indices = @transform_24, window_bounds = array<i64: 2, 32, 32>}, {pipeline_mode = #tpu.pipeline_mode<synchronous>, transform_indices = @transform_25, window_bounds = array<i64: 2, 1, 32>}, {pipeline_mode = #tpu.pipeline_mode<synchronous>, transform_indices = @transform_26, window_bounds = array<i64: 2, 32, 64>}, {pipeline_mode = #tpu.pipeline_mode<synchronous>, transform_indices = @transform_27, window_bounds = array<i64: 2, 1, 64>}, {pipeline_mode = #tpu.pipeline_mode<synchronous>, transform_indices = @transform_28, window_bounds = array<i64: 2, 64, 32>}, {pipeline_mode = #tpu.pipeline_mode<synchronous>, transform_indices = @transform_29, window_bounds = array<i64: 2, 1, 32>}, {pipeline_mode = #tpu.pipeline_mode<synchronous>, transform_indices = @transform_30, window_bounds = array<i64: 2, 1, 32>}, {pipeline_mode = #tpu.pipeline_mode<synchronous>, transform_indices = @transform_31, window_bounds = array<i64: 2, 1, 32>}, {pipeline_mode = #tpu.pipeline_mode<synchronous>, transform_indices = @transform_32, window_bounds = array<i64: 2, 1, 32>}, {pipeline_mode = #tpu.pipeline_mode<synchronous>, transform_indices = @transform_33, window_bounds = array<i64: 2, 1, 32>}, {pipeline_mode = #tpu.pipeline_mode<synchronous>, transform_indices = @transform_34, window_bounds = array<i64: 2, 1, 32>}, {pipeline_mode = #tpu.pipeline_mode<synchronous>, transform_indices = @transform_35, window_bounds = array<i64: 2, 1, 32>}, {pipeline_mode = #tpu.pipeline_mode<synchronous>, transform_indices = @transform_36, window_bounds = array<i64: 32, 60>}, {pipeline_mode = #tpu.pipeline_mode<synchronous>, transform_indices = @transform_37, window_bounds = array<i64: 1, 60>}, {pipeline_mode = #tpu.pipeline_mode<synchronous>, transform_indices = @transform_38, window_bounds = array<i64: 16, 32>}, {pipeline_mode = #tpu.pipeline_mode<synchronous>, transform_indices = @transform_39, window_bounds = array<i64: 16, 60>}, {pipeline_mode = #tpu.pipeline_mode<synchronous>, transform_indices = @transform_40, window_bounds = array<i64: 2, 2, 8, 32>}, {pipeline_mode = #tpu.pipeline_mode<synchronous>, transform_indices = @transform_41, window_bounds = array<i64: 2, 2, 8, 32>}]} {
    %c0 = arith.constant 0 : index
    %c0_0 = arith.constant 0 : index
    %0 = vector.load %arg3[%c0, %c0_0] : memref<2x8xf32, #tpu.memory_space<vmem>>, vector<2x8xf32>
    %c0_1 = arith.constant 0 : index
    %c0_2 = arith.constant 0 : index
    %1 = vector.load %arg4[%c0_1, %c0_2] : memref<2x8xf32, #tpu.memory_space<vmem>>, vector<2x8xf32>
    %2 = tpu.iota {dimensions = array<i32: 0>} : vector<8x8xi32>
    %3 = tpu.iota {dimensions = array<i32: 1>} : vector<8x8xi32>
    %4 = arith.cmpi sgt, %3, %2 : vector<8x8xi32>
    %cst = arith.constant -1.000000e+09 : f32
    %cst_3 = arith.constant 0.000000e+00 : f32
    %5 = vector.broadcast %cst : f32 to vector<8x8xf32>
    %6 = vector.broadcast %cst_3 : f32 to vector<8x8xf32>
    %7 = arith.select %4, %5, %6 : vector<8x8xi1>, vector<8x8xf32>
    %c0_4 = arith.constant 0 : index
    %c0_5 = arith.constant 0 : index
    %8 = vector.load %arg1[%c0_4, %c0_5] : memref<16x32xf32, #tpu.memory_space<vmem>>, vector<16x32xf32>
    %c0_6 = arith.constant 0 : index
    %c0_7 = arith.constant 0 : index
    %c0_8 = arith.constant 0 : index
    %9 = vector.load %arg5[%c0_6, %c0_7, %c0_8] : memref<2x32x96xf32, #tpu.memory_space<vmem>>, vector<1x32x96xf32>
    %10 = vector.shape_cast %9 : vector<1x32x96xf32> to vector<32x96xf32>
    %11 = arith.truncf %8 : vector<16x32xf32> to vector<16x32xbf16>
    %12 = arith.truncf %10 : vector<32x96xf32> to vector<32x96xbf16>
    %cst_9 = arith.constant dense<0.000000e+00> : vector<16x96xf32>
    %13 = tpu.matmul %11, %12, %cst_9 {dimension_numbers = #tpu.dot_dimension_numbers<[1], [0], [0], [1], [0, 0, 1, 1], [], []>} : vector<16x32xbf16>, vector<32x96xbf16>, vector<16x96xf32> -> vector<16x96xf32>
    %c0_10 = arith.constant 0 : index
    %c0_11 = arith.constant 0 : index
    %c0_12 = arith.constant 0 : index
    %14 = vector.load %arg6[%c0_10, %c0_11, %c0_12] : memref<2x1x96xf32, #tpu.memory_space<vmem>>, vector<1x1x96xf32>
    %15 = vector.shape_cast %14 : vector<1x1x96xf32> to vector<1x96xf32>
    %16 = vector.broadcast %15 : vector<1x96xf32> to vector<16x96xf32>
    %17 = arith.addf %13, %16 : vector<16x96xf32>
    %18 = vector.extract_strided_slice %17 {offsets = [0, 0], sizes = [16, 32], strides = [1, 1]} : vector<16x96xf32> to vector<16x32xf32>
    %cst_13 = arith.constant 0.353553385 : f32
    %19 = vector.broadcast %cst_13 : f32 to vector<16x32xf32>
    %20 = arith.mulf %18, %19 : vector<16x32xf32>
    %21 = vector.extract_strided_slice %17 {offsets = [0, 32], sizes = [16, 32], strides = [1, 1]} : vector<16x96xf32> to vector<16x32xf32>
    %22 = vector.extract_strided_slice %17 {offsets = [0, 64], sizes = [16, 32], strides = [1, 1]} : vector<16x96xf32> to vector<16x32xf32>
    %23 = vector.extract_strided_slice %20 {offsets = [0, 0], sizes = [8, 32], strides = [1, 1]} : vector<16x32xf32> to vector<8x32xf32>
    %24 = vector.extract_strided_slice %21 {offsets = [0, 0], sizes = [8, 32], strides = [1, 1]} : vector<16x32xf32> to vector<8x32xf32>
    %25 = vector.extract_strided_slice %22 {offsets = [0, 0], sizes = [8, 32], strides = [1, 1]} : vector<16x32xf32> to vector<8x32xf32>
    %26 = vector.extract_strided_slice %0 {offsets = [0, 0], sizes = [1, 8], strides = [1, 1]} : vector<2x8xf32> to vector<1x8xf32>
    %27 = vector.extract_strided_slice %23 {offsets = [0, 0], sizes = [8, 8], strides = [1, 1]} : vector<8x32xf32> to vector<8x8xf32>
    %28 = vector.extract_strided_slice %24 {offsets = [0, 0], sizes = [8, 8], strides = [1, 1]} : vector<8x32xf32> to vector<8x8xf32>
    %29 = tpu.transpose %28, [1, 0] : vector<8x8xf32> -> vector<8x8xf32>
    %30 = arith.truncf %27 : vector<8x8xf32> to vector<8x8xbf16>
    %31 = arith.truncf %29 : vector<8x8xf32> to vector<8x8xbf16>
    %cst_14 = arith.constant dense<0.000000e+00> : vector<8x8xf32>
    %32 = tpu.matmul %30, %31, %cst_14 {dimension_numbers = #tpu.dot_dimension_numbers<[1], [0], [0], [1], [0, 0, 1, 1], [], []>} : vector<8x8xbf16>, vector<8x8xbf16>, vector<8x8xf32> -> vector<8x8xf32>
    %33 = vector.broadcast %26 : vector<1x8xf32> to vector<8x8xf32>
    %34 = arith.addf %32, %33 : vector<8x8xf32>
    %cst_15 = arith.constant dense<0xFF800000> : vector<8xf32>
    %35 = vector.multi_reduction <maximumf>, %34, %cst_15 [1] : vector<8x8xf32> to vector<8xf32>
    %36 = vector.shape_cast %35 : vector<8xf32> to vector<8x1xf32>
    %37 = vector.broadcast %36 : vector<8x1xf32> to vector<8x8xf32>
    %38 = arith.subf %34, %37 : vector<8x8xf32>
    %39 = math.exp %38 : vector<8x8xf32>
    %cst_16 = arith.constant dense<0.000000e+00> : vector<8xf32>
    %40 = vector.multi_reduction <add>, %39, %cst_16 [1] : vector<8x8xf32> to vector<8xf32>
    %41 = vector.shape_cast %40 : vector<8xf32> to vector<8x1xf32>
    %42 = tpu.reciprocal %41 {approx = true} : vector<8x1xf32> -> vector<8x1xf32>
    %43 = vector.broadcast %42 : vector<8x1xf32> to vector<8x8xf32>
    %44 = arith.mulf %39, %43 : vector<8x8xf32>
    %45 = vector.extract_strided_slice %25 {offsets = [0, 0], sizes = [8, 8], strides = [1, 1]} : vector<8x32xf32> to vector<8x8xf32>
    %46 = arith.truncf %44 : vector<8x8xf32> to vector<8x8xbf16>
    %47 = arith.truncf %45 : vector<8x8xf32> to vector<8x8xbf16>
    %cst_17 = arith.constant dense<0.000000e+00> : vector<8x8xf32>
    %48 = tpu.matmul %46, %47, %cst_17 {dimension_numbers = #tpu.dot_dimension_numbers<[1], [0], [0], [1], [0, 0, 1, 1], [], []>} : vector<8x8xbf16>, vector<8x8xbf16>, vector<8x8xf32> -> vector<8x8xf32>
    %49 = vector.extract_strided_slice %23 {offsets = [0, 8], sizes = [8, 8], strides = [1, 1]} : vector<8x32xf32> to vector<8x8xf32>
    %50 = vector.extract_strided_slice %24 {offsets = [0, 8], sizes = [8, 8], strides = [1, 1]} : vector<8x32xf32> to vector<8x8xf32>
    %51 = tpu.transpose %50, [1, 0] : vector<8x8xf32> -> vector<8x8xf32>
    %52 = arith.truncf %49 : vector<8x8xf32> to vector<8x8xbf16>
    %53 = arith.truncf %51 : vector<8x8xf32> to vector<8x8xbf16>
    %cst_18 = arith.constant dense<0.000000e+00> : vector<8x8xf32>
    %54 = tpu.matmul %52, %53, %cst_18 {dimension_numbers = #tpu.dot_dimension_numbers<[1], [0], [0], [1], [0, 0, 1, 1], [], []>} : vector<8x8xbf16>, vector<8x8xbf16>, vector<8x8xf32> -> vector<8x8xf32>
    %55 = vector.broadcast %26 : vector<1x8xf32> to vector<8x8xf32>
    %56 = arith.addf %54, %55 : vector<8x8xf32>
    %cst_19 = arith.constant dense<0xFF800000> : vector<8xf32>
    %57 = vector.multi_reduction <maximumf>, %56, %cst_19 [1] : vector<8x8xf32> to vector<8xf32>
    %58 = vector.shape_cast %57 : vector<8xf32> to vector<8x1xf32>
    %59 = vector.broadcast %58 : vector<8x1xf32> to vector<8x8xf32>
    %60 = arith.subf %56, %59 : vector<8x8xf32>
    %61 = math.exp %60 : vector<8x8xf32>
    %cst_20 = arith.constant dense<0.000000e+00> : vector<8xf32>
    %62 = vector.multi_reduction <add>, %61, %cst_20 [1] : vector<8x8xf32> to vector<8xf32>
    %63 = vector.shape_cast %62 : vector<8xf32> to vector<8x1xf32>
    %64 = tpu.reciprocal %63 {approx = true} : vector<8x1xf32> -> vector<8x1xf32>
    %65 = vector.broadcast %64 : vector<8x1xf32> to vector<8x8xf32>
    %66 = arith.mulf %61, %65 : vector<8x8xf32>
    %67 = vector.extract_strided_slice %25 {offsets = [0, 8], sizes = [8, 8], strides = [1, 1]} : vector<8x32xf32> to vector<8x8xf32>
    %68 = arith.truncf %66 : vector<8x8xf32> to vector<8x8xbf16>
    %69 = arith.truncf %67 : vector<8x8xf32> to vector<8x8xbf16>
    %cst_21 = arith.constant dense<0.000000e+00> : vector<8x8xf32>
    %70 = tpu.matmul %68, %69, %cst_21 {dimension_numbers = #tpu.dot_dimension_numbers<[1], [0], [0], [1], [0, 0, 1, 1], [], []>} : vector<8x8xbf16>, vector<8x8xbf16>, vector<8x8xf32> -> vector<8x8xf32>
    %71 = vector.extract_strided_slice %23 {offsets = [0, 16], sizes = [8, 8], strides = [1, 1]} : vector<8x32xf32> to vector<8x8xf32>
    %72 = vector.extract_strided_slice %24 {offsets = [0, 16], sizes = [8, 8], strides = [1, 1]} : vector<8x32xf32> to vector<8x8xf32>
    %73 = tpu.transpose %72, [1, 0] : vector<8x8xf32> -> vector<8x8xf32>
    %74 = arith.truncf %71 : vector<8x8xf32> to vector<8x8xbf16>
    %75 = arith.truncf %73 : vector<8x8xf32> to vector<8x8xbf16>
    %cst_22 = arith.constant dense<0.000000e+00> : vector<8x8xf32>
    %76 = tpu.matmul %74, %75, %cst_22 {dimension_numbers = #tpu.dot_dimension_numbers<[1], [0], [0], [1], [0, 0, 1, 1], [], []>} : vector<8x8xbf16>, vector<8x8xbf16>, vector<8x8xf32> -> vector<8x8xf32>
    %77 = vector.broadcast %26 : vector<1x8xf32> to vector<8x8xf32>
    %78 = arith.addf %76, %77 : vector<8x8xf32>
    %cst_23 = arith.constant dense<0xFF800000> : vector<8xf32>
    %79 = vector.multi_reduction <maximumf>, %78, %cst_23 [1] : vector<8x8xf32> to vector<8xf32>
    %80 = vector.shape_cast %79 : vector<8xf32> to vector<8x1xf32>
    %81 = vector.broadcast %80 : vector<8x1xf32> to vector<8x8xf32>
    %82 = arith.subf %78, %81 : vector<8x8xf32>
    %83 = math.exp %82 : vector<8x8xf32>
    %cst_24 = arith.constant dense<0.000000e+00> : vector<8xf32>
    %84 = vector.multi_reduction <add>, %83, %cst_24 [1] : vector<8x8xf32> to vector<8xf32>
    %85 = vector.shape_cast %84 : vector<8xf32> to vector<8x1xf32>
    %86 = tpu.reciprocal %85 {approx = true} : vector<8x1xf32> -> vector<8x1xf32>
    %87 = vector.broadcast %86 : vector<8x1xf32> to vector<8x8xf32>
    %88 = arith.mulf %83, %87 : vector<8x8xf32>
    %89 = vector.extract_strided_slice %25 {offsets = [0, 16], sizes = [8, 8], strides = [1, 1]} : vector<8x32xf32> to vector<8x8xf32>
    %90 = arith.truncf %88 : vector<8x8xf32> to vector<8x8xbf16>
    %91 = arith.truncf %89 : vector<8x8xf32> to vector<8x8xbf16>
    %cst_25 = arith.constant dense<0.000000e+00> : vector<8x8xf32>
    %92 = tpu.matmul %90, %91, %cst_25 {dimension_numbers = #tpu.dot_dimension_numbers<[1], [0], [0], [1], [0, 0, 1, 1], [], []>} : vector<8x8xbf16>, vector<8x8xbf16>, vector<8x8xf32> -> vector<8x8xf32>
    %93 = vector.extract_strided_slice %23 {offsets = [0, 24], sizes = [8, 8], strides = [1, 1]} : vector<8x32xf32> to vector<8x8xf32>
    %94 = vector.extract_strided_slice %24 {offsets = [0, 24], sizes = [8, 8], strides = [1, 1]} : vector<8x32xf32> to vector<8x8xf32>
    %95 = tpu.transpose %94, [1, 0] : vector<8x8xf32> -> vector<8x8xf32>
    %96 = arith.truncf %93 : vector<8x8xf32> to vector<8x8xbf16>
    %97 = arith.truncf %95 : vector<8x8xf32> to vector<8x8xbf16>
    %cst_26 = arith.constant dense<0.000000e+00> : vector<8x8xf32>
    %98 = tpu.matmul %96, %97, %cst_26 {dimension_numbers = #tpu.dot_dimension_numbers<[1], [0], [0], [1], [0, 0, 1, 1], [], []>} : vector<8x8xbf16>, vector<8x8xbf16>, vector<8x8xf32> -> vector<8x8xf32>
    %99 = vector.broadcast %26 : vector<1x8xf32> to vector<8x8xf32>
    %100 = arith.addf %98, %99 : vector<8x8xf32>
    %cst_27 = arith.constant dense<0xFF800000> : vector<8xf32>
    %101 = vector.multi_reduction <maximumf>, %100, %cst_27 [1] : vector<8x8xf32> to vector<8xf32>
    %102 = vector.shape_cast %101 : vector<8xf32> to vector<8x1xf32>
    %103 = vector.broadcast %102 : vector<8x1xf32> to vector<8x8xf32>
    %104 = arith.subf %100, %103 : vector<8x8xf32>
    %105 = math.exp %104 : vector<8x8xf32>
    %cst_28 = arith.constant dense<0.000000e+00> : vector<8xf32>
    %106 = vector.multi_reduction <add>, %105, %cst_28 [1] : vector<8x8xf32> to vector<8xf32>
    %107 = vector.shape_cast %106 : vector<8xf32> to vector<8x1xf32>
    %108 = tpu.reciprocal %107 {approx = true} : vector<8x1xf32> -> vector<8x1xf32>
    %109 = vector.broadcast %108 : vector<8x1xf32> to vector<8x8xf32>
    %110 = arith.mulf %105, %109 : vector<8x8xf32>
    %111 = vector.extract_strided_slice %25 {offsets = [0, 24], sizes = [8, 8], strides = [1, 1]} : vector<8x32xf32> to vector<8x8xf32>
    %112 = arith.truncf %110 : vector<8x8xf32> to vector<8x8xbf16>
    %113 = arith.truncf %111 : vector<8x8xf32> to vector<8x8xbf16>
    %cst_29 = arith.constant dense<0.000000e+00> : vector<8x8xf32>
    %114 = tpu.matmul %112, %113, %cst_29 {dimension_numbers = #tpu.dot_dimension_numbers<[1], [0], [0], [1], [0, 0, 1, 1], [], []>} : vector<8x8xbf16>, vector<8x8xbf16>, vector<8x8xf32> -> vector<8x8xf32>
    %115 = tpu.concatenate %48, %70, %92, %114 in 1 : vector<8x8xf32>, vector<8x8xf32>, vector<8x8xf32>, vector<8x8xf32> -> vector<8x32xf32>
    %116 = vector.extract_strided_slice %20 {offsets = [8, 0], sizes = [8, 32], strides = [1, 1]} : vector<16x32xf32> to vector<8x32xf32>
    %117 = vector.extract_strided_slice %21 {offsets = [8, 0], sizes = [8, 32], strides = [1, 1]} : vector<16x32xf32> to vector<8x32xf32>
    %118 = vector.extract_strided_slice %22 {offsets = [8, 0], sizes = [8, 32], strides = [1, 1]} : vector<16x32xf32> to vector<8x32xf32>
    %119 = vector.extract_strided_slice %0 {offsets = [1, 0], sizes = [1, 8], strides = [1, 1]} : vector<2x8xf32> to vector<1x8xf32>
    %120 = vector.extract_strided_slice %116 {offsets = [0, 0], sizes = [8, 8], strides = [1, 1]} : vector<8x32xf32> to vector<8x8xf32>
    %121 = vector.extract_strided_slice %117 {offsets = [0, 0], sizes = [8, 8], strides = [1, 1]} : vector<8x32xf32> to vector<8x8xf32>
    %122 = tpu.transpose %121, [1, 0] : vector<8x8xf32> -> vector<8x8xf32>
    %123 = arith.truncf %120 : vector<8x8xf32> to vector<8x8xbf16>
    %124 = arith.truncf %122 : vector<8x8xf32> to vector<8x8xbf16>
    %cst_30 = arith.constant dense<0.000000e+00> : vector<8x8xf32>
    %125 = tpu.matmul %123, %124, %cst_30 {dimension_numbers = #tpu.dot_dimension_numbers<[1], [0], [0], [1], [0, 0, 1, 1], [], []>} : vector<8x8xbf16>, vector<8x8xbf16>, vector<8x8xf32> -> vector<8x8xf32>
    %126 = vector.broadcast %119 : vector<1x8xf32> to vector<8x8xf32>
    %127 = arith.addf %125, %126 : vector<8x8xf32>
    %cst_31 = arith.constant dense<0xFF800000> : vector<8xf32>
    %128 = vector.multi_reduction <maximumf>, %127, %cst_31 [1] : vector<8x8xf32> to vector<8xf32>
    %129 = vector.shape_cast %128 : vector<8xf32> to vector<8x1xf32>
    %130 = vector.broadcast %129 : vector<8x1xf32> to vector<8x8xf32>
    %131 = arith.subf %127, %130 : vector<8x8xf32>
    %132 = math.exp %131 : vector<8x8xf32>
    %cst_32 = arith.constant dense<0.000000e+00> : vector<8xf32>
    %133 = vector.multi_reduction <add>, %132, %cst_32 [1] : vector<8x8xf32> to vector<8xf32>
    %134 = vector.shape_cast %133 : vector<8xf32> to vector<8x1xf32>
    %135 = tpu.reciprocal %134 {approx = true} : vector<8x1xf32> -> vector<8x1xf32>
    %136 = vector.broadcast %135 : vector<8x1xf32> to vector<8x8xf32>
    %137 = arith.mulf %132, %136 : vector<8x8xf32>
    %138 = vector.extract_strided_slice %118 {offsets = [0, 0], sizes = [8, 8], strides = [1, 1]} : vector<8x32xf32> to vector<8x8xf32>
    %139 = arith.truncf %137 : vector<8x8xf32> to vector<8x8xbf16>
    %140 = arith.truncf %138 : vector<8x8xf32> to vector<8x8xbf16>
    %cst_33 = arith.constant dense<0.000000e+00> : vector<8x8xf32>
    %141 = tpu.matmul %139, %140, %cst_33 {dimension_numbers = #tpu.dot_dimension_numbers<[1], [0], [0], [1], [0, 0, 1, 1], [], []>} : vector<8x8xbf16>, vector<8x8xbf16>, vector<8x8xf32> -> vector<8x8xf32>
    %142 = vector.extract_strided_slice %116 {offsets = [0, 8], sizes = [8, 8], strides = [1, 1]} : vector<8x32xf32> to vector<8x8xf32>
    %143 = vector.extract_strided_slice %117 {offsets = [0, 8], sizes = [8, 8], strides = [1, 1]} : vector<8x32xf32> to vector<8x8xf32>
    %144 = tpu.transpose %143, [1, 0] : vector<8x8xf32> -> vector<8x8xf32>
    %145 = arith.truncf %142 : vector<8x8xf32> to vector<8x8xbf16>
    %146 = arith.truncf %144 : vector<8x8xf32> to vector<8x8xbf16>
    %cst_34 = arith.constant dense<0.000000e+00> : vector<8x8xf32>
    %147 = tpu.matmul %145, %146, %cst_34 {dimension_numbers = #tpu.dot_dimension_numbers<[1], [0], [0], [1], [0, 0, 1, 1], [], []>} : vector<8x8xbf16>, vector<8x8xbf16>, vector<8x8xf32> -> vector<8x8xf32>
    %148 = vector.broadcast %119 : vector<1x8xf32> to vector<8x8xf32>
    %149 = arith.addf %147, %148 : vector<8x8xf32>
    %cst_35 = arith.constant dense<0xFF800000> : vector<8xf32>
    %150 = vector.multi_reduction <maximumf>, %149, %cst_35 [1] : vector<8x8xf32> to vector<8xf32>
    %151 = vector.shape_cast %150 : vector<8xf32> to vector<8x1xf32>
    %152 = vector.broadcast %151 : vector<8x1xf32> to vector<8x8xf32>
    %153 = arith.subf %149, %152 : vector<8x8xf32>
    %154 = math.exp %153 : vector<8x8xf32>
    %cst_36 = arith.constant dense<0.000000e+00> : vector<8xf32>
    %155 = vector.multi_reduction <add>, %154, %cst_36 [1] : vector<8x8xf32> to vector<8xf32>
    %156 = vector.shape_cast %155 : vector<8xf32> to vector<8x1xf32>
    %157 = tpu.reciprocal %156 {approx = true} : vector<8x1xf32> -> vector<8x1xf32>
    %158 = vector.broadcast %157 : vector<8x1xf32> to vector<8x8xf32>
    %159 = arith.mulf %154, %158 : vector<8x8xf32>
    %160 = vector.extract_strided_slice %118 {offsets = [0, 8], sizes = [8, 8], strides = [1, 1]} : vector<8x32xf32> to vector<8x8xf32>
    %161 = arith.truncf %159 : vector<8x8xf32> to vector<8x8xbf16>
    %162 = arith.truncf %160 : vector<8x8xf32> to vector<8x8xbf16>
    %cst_37 = arith.constant dense<0.000000e+00> : vector<8x8xf32>
    %163 = tpu.matmul %161, %162, %cst_37 {dimension_numbers = #tpu.dot_dimension_numbers<[1], [0], [0], [1], [0, 0, 1, 1], [], []>} : vector<8x8xbf16>, vector<8x8xbf16>, vector<8x8xf32> -> vector<8x8xf32>
    %164 = vector.extract_strided_slice %116 {offsets = [0, 16], sizes = [8, 8], strides = [1, 1]} : vector<8x32xf32> to vector<8x8xf32>
    %165 = vector.extract_strided_slice %117 {offsets = [0, 16], sizes = [8, 8], strides = [1, 1]} : vector<8x32xf32> to vector<8x8xf32>
    %166 = tpu.transpose %165, [1, 0] : vector<8x8xf32> -> vector<8x8xf32>
    %167 = arith.truncf %164 : vector<8x8xf32> to vector<8x8xbf16>
    %168 = arith.truncf %166 : vector<8x8xf32> to vector<8x8xbf16>
    %cst_38 = arith.constant dense<0.000000e+00> : vector<8x8xf32>
    %169 = tpu.matmul %167, %168, %cst_38 {dimension_numbers = #tpu.dot_dimension_numbers<[1], [0], [0], [1], [0, 0, 1, 1], [], []>} : vector<8x8xbf16>, vector<8x8xbf16>, vector<8x8xf32> -> vector<8x8xf32>
    %170 = vector.broadcast %119 : vector<1x8xf32> to vector<8x8xf32>
    %171 = arith.addf %169, %170 : vector<8x8xf32>
    %cst_39 = arith.constant dense<0xFF800000> : vector<8xf32>
    %172 = vector.multi_reduction <maximumf>, %171, %cst_39 [1] : vector<8x8xf32> to vector<8xf32>
    %173 = vector.shape_cast %172 : vector<8xf32> to vector<8x1xf32>
    %174 = vector.broadcast %173 : vector<8x1xf32> to vector<8x8xf32>
    %175 = arith.subf %171, %174 : vector<8x8xf32>
    %176 = math.exp %175 : vector<8x8xf32>
    %cst_40 = arith.constant dense<0.000000e+00> : vector<8xf32>
    %177 = vector.multi_reduction <add>, %176, %cst_40 [1] : vector<8x8xf32> to vector<8xf32>
    %178 = vector.shape_cast %177 : vector<8xf32> to vector<8x1xf32>
    %179 = tpu.reciprocal %178 {approx = true} : vector<8x1xf32> -> vector<8x1xf32>
    %180 = vector.broadcast %179 : vector<8x1xf32> to vector<8x8xf32>
    %181 = arith.mulf %176, %180 : vector<8x8xf32>
    %182 = vector.extract_strided_slice %118 {offsets = [0, 16], sizes = [8, 8], strides = [1, 1]} : vector<8x32xf32> to vector<8x8xf32>
    %183 = arith.truncf %181 : vector<8x8xf32> to vector<8x8xbf16>
    %184 = arith.truncf %182 : vector<8x8xf32> to vector<8x8xbf16>
    %cst_41 = arith.constant dense<0.000000e+00> : vector<8x8xf32>
    %185 = tpu.matmul %183, %184, %cst_41 {dimension_numbers = #tpu.dot_dimension_numbers<[1], [0], [0], [1], [0, 0, 1, 1], [], []>} : vector<8x8xbf16>, vector<8x8xbf16>, vector<8x8xf32> -> vector<8x8xf32>
    %186 = vector.extract_strided_slice %116 {offsets = [0, 24], sizes = [8, 8], strides = [1, 1]} : vector<8x32xf32> to vector<8x8xf32>
    %187 = vector.extract_strided_slice %117 {offsets = [0, 24], sizes = [8, 8], strides = [1, 1]} : vector<8x32xf32> to vector<8x8xf32>
    %188 = tpu.transpose %187, [1, 0] : vector<8x8xf32> -> vector<8x8xf32>
    %189 = arith.truncf %186 : vector<8x8xf32> to vector<8x8xbf16>
    %190 = arith.truncf %188 : vector<8x8xf32> to vector<8x8xbf16>
    %cst_42 = arith.constant dense<0.000000e+00> : vector<8x8xf32>
    %191 = tpu.matmul %189, %190, %cst_42 {dimension_numbers = #tpu.dot_dimension_numbers<[1], [0], [0], [1], [0, 0, 1, 1], [], []>} : vector<8x8xbf16>, vector<8x8xbf16>, vector<8x8xf32> -> vector<8x8xf32>
    %192 = vector.broadcast %119 : vector<1x8xf32> to vector<8x8xf32>
    %193 = arith.addf %191, %192 : vector<8x8xf32>
    %cst_43 = arith.constant dense<0xFF800000> : vector<8xf32>
    %194 = vector.multi_reduction <maximumf>, %193, %cst_43 [1] : vector<8x8xf32> to vector<8xf32>
    %195 = vector.shape_cast %194 : vector<8xf32> to vector<8x1xf32>
    %196 = vector.broadcast %195 : vector<8x1xf32> to vector<8x8xf32>
    %197 = arith.subf %193, %196 : vector<8x8xf32>
    %198 = math.exp %197 : vector<8x8xf32>
    %cst_44 = arith.constant dense<0.000000e+00> : vector<8xf32>
    %199 = vector.multi_reduction <add>, %198, %cst_44 [1] : vector<8x8xf32> to vector<8xf32>
    %200 = vector.shape_cast %199 : vector<8xf32> to vector<8x1xf32>
    %201 = tpu.reciprocal %200 {approx = true} : vector<8x1xf32> -> vector<8x1xf32>
    %202 = vector.broadcast %201 : vector<8x1xf32> to vector<8x8xf32>
    %203 = arith.mulf %198, %202 : vector<8x8xf32>
    %204 = vector.extract_strided_slice %118 {offsets = [0, 24], sizes = [8, 8], strides = [1, 1]} : vector<8x32xf32> to vector<8x8xf32>
    %205 = arith.truncf %203 : vector<8x8xf32> to vector<8x8xbf16>
    %206 = arith.truncf %204 : vector<8x8xf32> to vector<8x8xbf16>
    %cst_45 = arith.constant dense<0.000000e+00> : vector<8x8xf32>
    %207 = tpu.matmul %205, %206, %cst_45 {dimension_numbers = #tpu.dot_dimension_numbers<[1], [0], [0], [1], [0, 0, 1, 1], [], []>} : vector<8x8xbf16>, vector<8x8xbf16>, vector<8x8xf32> -> vector<8x8xf32>
    %208 = tpu.concatenate %141, %163, %185, %207 in 1 : vector<8x8xf32>, vector<8x8xf32>, vector<8x8xf32>, vector<8x8xf32> -> vector<8x32xf32>
    %209 = tpu.concatenate %115, %208 in 0 : vector<8x32xf32>, vector<8x32xf32> -> vector<16x32xf32>
    %c0_46 = arith.constant 0 : index
    %c0_47 = arith.constant 0 : index
    %c0_48 = arith.constant 0 : index
    %210 = vector.load %arg7[%c0_46, %c0_47, %c0_48] : memref<2x32x32xf32, #tpu.memory_space<vmem>>, vector<1x32x32xf32>
    %211 = vector.shape_cast %210 : vector<1x32x32xf32> to vector<32x32xf32>
    %212 = arith.truncf %209 : vector<16x32xf32> to vector<16x32xbf16>
    %213 = arith.truncf %211 : vector<32x32xf32> to vector<32x32xbf16>
    %cst_49 = arith.constant dense<0.000000e+00> : vector<16x32xf32>
    %214 = tpu.matmul %212, %213, %cst_49 {dimension_numbers = #tpu.dot_dimension_numbers<[1], [0], [0], [1], [0, 0, 1, 1], [], []>} : vector<16x32xbf16>, vector<32x32xbf16>, vector<16x32xf32> -> vector<16x32xf32>
    %c0_50 = arith.constant 0 : index
    %c0_51 = arith.constant 0 : index
    %c0_52 = arith.constant 0 : index
    %215 = vector.load %arg8[%c0_50, %c0_51, %c0_52] : memref<2x1x32xf32, #tpu.memory_space<vmem>>, vector<1x1x32xf32>
    %216 = vector.shape_cast %215 : vector<1x1x32xf32> to vector<1x32xf32>
    %217 = vector.broadcast %216 : vector<1x32xf32> to vector<16x32xf32>
    %218 = arith.addf %214, %217 : vector<16x32xf32>
    %219 = arith.addf %8, %218 : vector<16x32xf32>
    %c0_53 = arith.constant 0 : index
    %c0_54 = arith.constant 0 : index
    %c0_55 = arith.constant 0 : index
    %220 = vector.load %arg13[%c0_53, %c0_54, %c0_55] : memref<2x1x32xf32, #tpu.memory_space<vmem>>, vector<1x1x32xf32>
    %221 = vector.shape_cast %220 : vector<1x1x32xf32> to vector<1x32xf32>
    %c0_56 = arith.constant 0 : index
    %c0_57 = arith.constant 0 : index
    %c0_58 = arith.constant 0 : index
    %222 = vector.load %arg14[%c0_56, %c0_57, %c0_58] : memref<2x1x32xf32, #tpu.memory_space<vmem>>, vector<1x1x32xf32>
    %223 = vector.shape_cast %222 : vector<1x1x32xf32> to vector<1x32xf32>
    %cst_59 = arith.constant dense<0.000000e+00> : vector<16xf32>
    %224 = vector.multi_reduction <add>, %219, %cst_59 [1] : vector<16x32xf32> to vector<16xf32>
    %225 = vector.shape_cast %224 : vector<16xf32> to vector<16x1xf32>
    %cst_60 = arith.constant 3.200000e+01 : f32
    %226 = vector.broadcast %cst_60 : f32 to vector<16x1xf32>
    %227 = arith.divf %225, %226 : vector<16x1xf32>
    %228 = vector.broadcast %227 : vector<16x1xf32> to vector<16x32xf32>
    %229 = arith.subf %219, %228 : vector<16x32xf32>
    %230 = arith.mulf %229, %229 : vector<16x32xf32>
    %cst_61 = arith.constant dense<0.000000e+00> : vector<16xf32>
    %231 = vector.multi_reduction <add>, %230, %cst_61 [1] : vector<16x32xf32> to vector<16xf32>
    %232 = vector.shape_cast %231 : vector<16xf32> to vector<16x1xf32>
    %cst_62 = arith.constant 3.200000e+01 : f32
    %233 = vector.broadcast %cst_62 : f32 to vector<16x1xf32>
    %234 = arith.divf %232, %233 : vector<16x1xf32>
    %235 = vector.broadcast %227 : vector<16x1xf32> to vector<16x32xf32>
    %236 = arith.subf %219, %235 : vector<16x32xf32>
    %cst_63 = arith.constant 9.99999974E-6 : f32
    %237 = vector.broadcast %cst_63 : f32 to vector<16x1xf32>
    %238 = arith.addf %234, %237 : vector<16x1xf32>
    %239 = math.rsqrt %238 : vector<16x1xf32>
    %240 = vector.broadcast %239 : vector<16x1xf32> to vector<16x32xf32>
    %241 = arith.mulf %236, %240 : vector<16x32xf32>
    %242 = vector.broadcast %221 : vector<1x32xf32> to vector<16x32xf32>
    %243 = arith.mulf %241, %242 : vector<16x32xf32>
    %244 = vector.broadcast %223 : vector<1x32xf32> to vector<16x32xf32>
    %245 = arith.addf %243, %244 : vector<16x32xf32>
    %c0_64 = arith.constant 0 : index
    %c0_65 = arith.constant 0 : index
    %c0_66 = arith.constant 0 : index
    %246 = vector.load %arg9[%c0_64, %c0_65, %c0_66] : memref<2x32x64xf32, #tpu.memory_space<vmem>>, vector<1x32x64xf32>
    %247 = vector.shape_cast %246 : vector<1x32x64xf32> to vector<32x64xf32>
    %248 = arith.truncf %245 : vector<16x32xf32> to vector<16x32xbf16>
    %249 = arith.truncf %247 : vector<32x64xf32> to vector<32x64xbf16>
    %cst_67 = arith.constant dense<0.000000e+00> : vector<16x64xf32>
    %250 = tpu.matmul %248, %249, %cst_67 {dimension_numbers = #tpu.dot_dimension_numbers<[1], [0], [0], [1], [0, 0, 1, 1], [], []>} : vector<16x32xbf16>, vector<32x64xbf16>, vector<16x64xf32> -> vector<16x64xf32>
    %c0_68 = arith.constant 0 : index
    %c0_69 = arith.constant 0 : index
    %c0_70 = arith.constant 0 : index
    %251 = vector.load %arg10[%c0_68, %c0_69, %c0_70] : memref<2x1x64xf32, #tpu.memory_space<vmem>>, vector<1x1x64xf32>
    %252 = vector.shape_cast %251 : vector<1x1x64xf32> to vector<1x64xf32>
    %253 = vector.broadcast %252 : vector<1x64xf32> to vector<16x64xf32>
    %254 = arith.addf %250, %253 : vector<16x64xf32>
    %cst_71 = arith.constant 0.000000e+00 : f32
    %255 = vector.broadcast %cst_71 : f32 to vector<16x64xf32>
    %256 = arith.maximumf %254, %255 : vector<16x64xf32>
    %c0_72 = arith.constant 0 : index
    %c0_73 = arith.constant 0 : index
    %c0_74 = arith.constant 0 : index
    %257 = vector.load %arg11[%c0_72, %c0_73, %c0_74] : memref<2x64x32xf32, #tpu.memory_space<vmem>>, vector<1x64x32xf32>
    %258 = vector.shape_cast %257 : vector<1x64x32xf32> to vector<64x32xf32>
    %259 = arith.truncf %256 : vector<16x64xf32> to vector<16x64xbf16>
    %260 = arith.truncf %258 : vector<64x32xf32> to vector<64x32xbf16>
    %cst_75 = arith.constant dense<0.000000e+00> : vector<16x32xf32>
    %261 = tpu.matmul %259, %260, %cst_75 {dimension_numbers = #tpu.dot_dimension_numbers<[1], [0], [0], [1], [0, 0, 1, 1], [], []>} : vector<16x64xbf16>, vector<64x32xbf16>, vector<16x32xf32> -> vector<16x32xf32>
    %c0_76 = arith.constant 0 : index
    %c0_77 = arith.constant 0 : index
    %c0_78 = arith.constant 0 : index
    %262 = vector.load %arg12[%c0_76, %c0_77, %c0_78] : memref<2x1x32xf32, #tpu.memory_space<vmem>>, vector<1x1x32xf32>
    %263 = vector.shape_cast %262 : vector<1x1x32xf32> to vector<1x32xf32>
    %264 = vector.broadcast %263 : vector<1x32xf32> to vector<16x32xf32>
    %265 = arith.addf %261, %264 : vector<16x32xf32>
    %266 = arith.addf %245, %265 : vector<16x32xf32>
    %c0_79 = arith.constant 0 : index
    %c0_80 = arith.constant 0 : index
    %c0_81 = arith.constant 0 : index
    %267 = vector.load %arg15[%c0_79, %c0_80, %c0_81] : memref<2x1x32xf32, #tpu.memory_space<vmem>>, vector<1x1x32xf32>
    %268 = vector.shape_cast %267 : vector<1x1x32xf32> to vector<1x32xf32>
    %c0_82 = arith.constant 0 : index
    %c0_83 = arith.constant 0 : index
    %c0_84 = arith.constant 0 : index
    %269 = vector.load %arg16[%c0_82, %c0_83, %c0_84] : memref<2x1x32xf32, #tpu.memory_space<vmem>>, vector<1x1x32xf32>
    %270 = vector.shape_cast %269 : vector<1x1x32xf32> to vector<1x32xf32>
    %cst_85 = arith.constant dense<0.000000e+00> : vector<16xf32>
    %271 = vector.multi_reduction <add>, %266, %cst_85 [1] : vector<16x32xf32> to vector<16xf32>
    %272 = vector.shape_cast %271 : vector<16xf32> to vector<16x1xf32>
    %cst_86 = arith.constant 3.200000e+01 : f32
    %273 = vector.broadcast %cst_86 : f32 to vector<16x1xf32>
    %274 = arith.divf %272, %273 : vector<16x1xf32>
    %275 = vector.broadcast %274 : vector<16x1xf32> to vector<16x32xf32>
    %276 = arith.subf %266, %275 : vector<16x32xf32>
    %277 = arith.mulf %276, %276 : vector<16x32xf32>
    %cst_87 = arith.constant dense<0.000000e+00> : vector<16xf32>
    %278 = vector.multi_reduction <add>, %277, %cst_87 [1] : vector<16x32xf32> to vector<16xf32>
    %279 = vector.shape_cast %278 : vector<16xf32> to vector<16x1xf32>
    %cst_88 = arith.constant 3.200000e+01 : f32
    %280 = vector.broadcast %cst_88 : f32 to vector<16x1xf32>
    %281 = arith.divf %279, %280 : vector<16x1xf32>
    %282 = vector.broadcast %274 : vector<16x1xf32> to vector<16x32xf32>
    %283 = arith.subf %266, %282 : vector<16x32xf32>
    %cst_89 = arith.constant 9.99999974E-6 : f32
    %284 = vector.broadcast %cst_89 : f32 to vector<16x1xf32>
    %285 = arith.addf %281, %284 : vector<16x1xf32>
    %286 = math.rsqrt %285 : vector<16x1xf32>
    %287 = vector.broadcast %286 : vector<16x1xf32> to vector<16x32xf32>
    %288 = arith.mulf %283, %287 : vector<16x32xf32>
    %289 = vector.broadcast %268 : vector<1x32xf32> to vector<16x32xf32>
    %290 = arith.mulf %288, %289 : vector<16x32xf32>
    %291 = vector.broadcast %270 : vector<1x32xf32> to vector<16x32xf32>
    %292 = arith.addf %290, %291 : vector<16x32xf32>
    %c1 = arith.constant 1 : index
    %c0_90 = arith.constant 0 : index
    %c0_91 = arith.constant 0 : index
    %293 = vector.load %arg5[%c1, %c0_90, %c0_91] : memref<2x32x96xf32, #tpu.memory_space<vmem>>, vector<1x32x96xf32>
    %294 = vector.shape_cast %293 : vector<1x32x96xf32> to vector<32x96xf32>
    %295 = arith.truncf %292 : vector<16x32xf32> to vector<16x32xbf16>
    %296 = arith.truncf %294 : vector<32x96xf32> to vector<32x96xbf16>
    %cst_92 = arith.constant dense<0.000000e+00> : vector<16x96xf32>
    %297 = tpu.matmul %295, %296, %cst_92 {dimension_numbers = #tpu.dot_dimension_numbers<[1], [0], [0], [1], [0, 0, 1, 1], [], []>} : vector<16x32xbf16>, vector<32x96xbf16>, vector<16x96xf32> -> vector<16x96xf32>
    %c1_93 = arith.constant 1 : index
    %c0_94 = arith.constant 0 : index
    %c0_95 = arith.constant 0 : index
    %298 = vector.load %arg6[%c1_93, %c0_94, %c0_95] : memref<2x1x96xf32, #tpu.memory_space<vmem>>, vector<1x1x96xf32>
    %299 = vector.shape_cast %298 : vector<1x1x96xf32> to vector<1x96xf32>
    %300 = vector.broadcast %299 : vector<1x96xf32> to vector<16x96xf32>
    %301 = arith.addf %297, %300 : vector<16x96xf32>
    %302 = vector.extract_strided_slice %301 {offsets = [0, 0], sizes = [16, 32], strides = [1, 1]} : vector<16x96xf32> to vector<16x32xf32>
    %cst_96 = arith.constant 0.353553385 : f32
    %303 = vector.broadcast %cst_96 : f32 to vector<16x32xf32>
    %304 = arith.mulf %302, %303 : vector<16x32xf32>
    %305 = vector.extract_strided_slice %301 {offsets = [0, 32], sizes = [16, 32], strides = [1, 1]} : vector<16x96xf32> to vector<16x32xf32>
    %306 = vector.extract_strided_slice %301 {offsets = [0, 64], sizes = [16, 32], strides = [1, 1]} : vector<16x96xf32> to vector<16x32xf32>
    %307 = vector.extract_strided_slice %304 {offsets = [0, 0], sizes = [8, 32], strides = [1, 1]} : vector<16x32xf32> to vector<8x32xf32>
    %308 = vector.extract_strided_slice %305 {offsets = [0, 0], sizes = [8, 32], strides = [1, 1]} : vector<16x32xf32> to vector<8x32xf32>
    %309 = vector.extract_strided_slice %306 {offsets = [0, 0], sizes = [8, 32], strides = [1, 1]} : vector<16x32xf32> to vector<8x32xf32>
    %310 = vector.extract_strided_slice %0 {offsets = [0, 0], sizes = [1, 8], strides = [1, 1]} : vector<2x8xf32> to vector<1x8xf32>
    %311 = vector.extract_strided_slice %307 {offsets = [0, 0], sizes = [8, 8], strides = [1, 1]} : vector<8x32xf32> to vector<8x8xf32>
    %312 = vector.extract_strided_slice %308 {offsets = [0, 0], sizes = [8, 8], strides = [1, 1]} : vector<8x32xf32> to vector<8x8xf32>
    %313 = tpu.transpose %312, [1, 0] : vector<8x8xf32> -> vector<8x8xf32>
    %314 = arith.truncf %311 : vector<8x8xf32> to vector<8x8xbf16>
    %315 = arith.truncf %313 : vector<8x8xf32> to vector<8x8xbf16>
    %cst_97 = arith.constant dense<0.000000e+00> : vector<8x8xf32>
    %316 = tpu.matmul %314, %315, %cst_97 {dimension_numbers = #tpu.dot_dimension_numbers<[1], [0], [0], [1], [0, 0, 1, 1], [], []>} : vector<8x8xbf16>, vector<8x8xbf16>, vector<8x8xf32> -> vector<8x8xf32>
    %317 = vector.broadcast %310 : vector<1x8xf32> to vector<8x8xf32>
    %318 = arith.addf %316, %317 : vector<8x8xf32>
    %cst_98 = arith.constant dense<0xFF800000> : vector<8xf32>
    %319 = vector.multi_reduction <maximumf>, %318, %cst_98 [1] : vector<8x8xf32> to vector<8xf32>
    %320 = vector.shape_cast %319 : vector<8xf32> to vector<8x1xf32>
    %321 = vector.broadcast %320 : vector<8x1xf32> to vector<8x8xf32>
    %322 = arith.subf %318, %321 : vector<8x8xf32>
    %323 = math.exp %322 : vector<8x8xf32>
    %cst_99 = arith.constant dense<0.000000e+00> : vector<8xf32>
    %324 = vector.multi_reduction <add>, %323, %cst_99 [1] : vector<8x8xf32> to vector<8xf32>
    %325 = vector.shape_cast %324 : vector<8xf32> to vector<8x1xf32>
    %326 = tpu.reciprocal %325 {approx = true} : vector<8x1xf32> -> vector<8x1xf32>
    %327 = vector.broadcast %326 : vector<8x1xf32> to vector<8x8xf32>
    %328 = arith.mulf %323, %327 : vector<8x8xf32>
    %329 = vector.extract_strided_slice %309 {offsets = [0, 0], sizes = [8, 8], strides = [1, 1]} : vector<8x32xf32> to vector<8x8xf32>
    %330 = arith.truncf %328 : vector<8x8xf32> to vector<8x8xbf16>
    %331 = arith.truncf %329 : vector<8x8xf32> to vector<8x8xbf16>
    %cst_100 = arith.constant dense<0.000000e+00> : vector<8x8xf32>
    %332 = tpu.matmul %330, %331, %cst_100 {dimension_numbers = #tpu.dot_dimension_numbers<[1], [0], [0], [1], [0, 0, 1, 1], [], []>} : vector<8x8xbf16>, vector<8x8xbf16>, vector<8x8xf32> -> vector<8x8xf32>
    %333 = vector.extract_strided_slice %307 {offsets = [0, 8], sizes = [8, 8], strides = [1, 1]} : vector<8x32xf32> to vector<8x8xf32>
    %334 = vector.extract_strided_slice %308 {offsets = [0, 8], sizes = [8, 8], strides = [1, 1]} : vector<8x32xf32> to vector<8x8xf32>
    %335 = tpu.transpose %334, [1, 0] : vector<8x8xf32> -> vector<8x8xf32>
    %336 = arith.truncf %333 : vector<8x8xf32> to vector<8x8xbf16>
    %337 = arith.truncf %335 : vector<8x8xf32> to vector<8x8xbf16>
    %cst_101 = arith.constant dense<0.000000e+00> : vector<8x8xf32>
    %338 = tpu.matmul %336, %337, %cst_101 {dimension_numbers = #tpu.dot_dimension_numbers<[1], [0], [0], [1], [0, 0, 1, 1], [], []>} : vector<8x8xbf16>, vector<8x8xbf16>, vector<8x8xf32> -> vector<8x8xf32>
    %339 = vector.broadcast %310 : vector<1x8xf32> to vector<8x8xf32>
    %340 = arith.addf %338, %339 : vector<8x8xf32>
    %cst_102 = arith.constant dense<0xFF800000> : vector<8xf32>
    %341 = vector.multi_reduction <maximumf>, %340, %cst_102 [1] : vector<8x8xf32> to vector<8xf32>
    %342 = vector.shape_cast %341 : vector<8xf32> to vector<8x1xf32>
    %343 = vector.broadcast %342 : vector<8x1xf32> to vector<8x8xf32>
    %344 = arith.subf %340, %343 : vector<8x8xf32>
    %345 = math.exp %344 : vector<8x8xf32>
    %cst_103 = arith.constant dense<0.000000e+00> : vector<8xf32>
    %346 = vector.multi_reduction <add>, %345, %cst_103 [1] : vector<8x8xf32> to vector<8xf32>
    %347 = vector.shape_cast %346 : vector<8xf32> to vector<8x1xf32>
    %348 = tpu.reciprocal %347 {approx = true} : vector<8x1xf32> -> vector<8x1xf32>
    %349 = vector.broadcast %348 : vector<8x1xf32> to vector<8x8xf32>
    %350 = arith.mulf %345, %349 : vector<8x8xf32>
    %351 = vector.extract_strided_slice %309 {offsets = [0, 8], sizes = [8, 8], strides = [1, 1]} : vector<8x32xf32> to vector<8x8xf32>
    %352 = arith.truncf %350 : vector<8x8xf32> to vector<8x8xbf16>
    %353 = arith.truncf %351 : vector<8x8xf32> to vector<8x8xbf16>
    %cst_104 = arith.constant dense<0.000000e+00> : vector<8x8xf32>
    %354 = tpu.matmul %352, %353, %cst_104 {dimension_numbers = #tpu.dot_dimension_numbers<[1], [0], [0], [1], [0, 0, 1, 1], [], []>} : vector<8x8xbf16>, vector<8x8xbf16>, vector<8x8xf32> -> vector<8x8xf32>
    %355 = vector.extract_strided_slice %307 {offsets = [0, 16], sizes = [8, 8], strides = [1, 1]} : vector<8x32xf32> to vector<8x8xf32>
    %356 = vector.extract_strided_slice %308 {offsets = [0, 16], sizes = [8, 8], strides = [1, 1]} : vector<8x32xf32> to vector<8x8xf32>
    %357 = tpu.transpose %356, [1, 0] : vector<8x8xf32> -> vector<8x8xf32>
    %358 = arith.truncf %355 : vector<8x8xf32> to vector<8x8xbf16>
    %359 = arith.truncf %357 : vector<8x8xf32> to vector<8x8xbf16>
    %cst_105 = arith.constant dense<0.000000e+00> : vector<8x8xf32>
    %360 = tpu.matmul %358, %359, %cst_105 {dimension_numbers = #tpu.dot_dimension_numbers<[1], [0], [0], [1], [0, 0, 1, 1], [], []>} : vector<8x8xbf16>, vector<8x8xbf16>, vector<8x8xf32> -> vector<8x8xf32>
    %361 = vector.broadcast %310 : vector<1x8xf32> to vector<8x8xf32>
    %362 = arith.addf %360, %361 : vector<8x8xf32>
    %cst_106 = arith.constant dense<0xFF800000> : vector<8xf32>
    %363 = vector.multi_reduction <maximumf>, %362, %cst_106 [1] : vector<8x8xf32> to vector<8xf32>
    %364 = vector.shape_cast %363 : vector<8xf32> to vector<8x1xf32>
    %365 = vector.broadcast %364 : vector<8x1xf32> to vector<8x8xf32>
    %366 = arith.subf %362, %365 : vector<8x8xf32>
    %367 = math.exp %366 : vector<8x8xf32>
    %cst_107 = arith.constant dense<0.000000e+00> : vector<8xf32>
    %368 = vector.multi_reduction <add>, %367, %cst_107 [1] : vector<8x8xf32> to vector<8xf32>
    %369 = vector.shape_cast %368 : vector<8xf32> to vector<8x1xf32>
    %370 = tpu.reciprocal %369 {approx = true} : vector<8x1xf32> -> vector<8x1xf32>
    %371 = vector.broadcast %370 : vector<8x1xf32> to vector<8x8xf32>
    %372 = arith.mulf %367, %371 : vector<8x8xf32>
    %373 = vector.extract_strided_slice %309 {offsets = [0, 16], sizes = [8, 8], strides = [1, 1]} : vector<8x32xf32> to vector<8x8xf32>
    %374 = arith.truncf %372 : vector<8x8xf32> to vector<8x8xbf16>
    %375 = arith.truncf %373 : vector<8x8xf32> to vector<8x8xbf16>
    %cst_108 = arith.constant dense<0.000000e+00> : vector<8x8xf32>
    %376 = tpu.matmul %374, %375, %cst_108 {dimension_numbers = #tpu.dot_dimension_numbers<[1], [0], [0], [1], [0, 0, 1, 1], [], []>} : vector<8x8xbf16>, vector<8x8xbf16>, vector<8x8xf32> -> vector<8x8xf32>
    %377 = vector.extract_strided_slice %307 {offsets = [0, 24], sizes = [8, 8], strides = [1, 1]} : vector<8x32xf32> to vector<8x8xf32>
    %378 = vector.extract_strided_slice %308 {offsets = [0, 24], sizes = [8, 8], strides = [1, 1]} : vector<8x32xf32> to vector<8x8xf32>
    %379 = tpu.transpose %378, [1, 0] : vector<8x8xf32> -> vector<8x8xf32>
    %380 = arith.truncf %377 : vector<8x8xf32> to vector<8x8xbf16>
    %381 = arith.truncf %379 : vector<8x8xf32> to vector<8x8xbf16>
    %cst_109 = arith.constant dense<0.000000e+00> : vector<8x8xf32>
    %382 = tpu.matmul %380, %381, %cst_109 {dimension_numbers = #tpu.dot_dimension_numbers<[1], [0], [0], [1], [0, 0, 1, 1], [], []>} : vector<8x8xbf16>, vector<8x8xbf16>, vector<8x8xf32> -> vector<8x8xf32>
    %383 = vector.broadcast %310 : vector<1x8xf32> to vector<8x8xf32>
    %384 = arith.addf %382, %383 : vector<8x8xf32>
    %cst_110 = arith.constant dense<0xFF800000> : vector<8xf32>
    %385 = vector.multi_reduction <maximumf>, %384, %cst_110 [1] : vector<8x8xf32> to vector<8xf32>
    %386 = vector.shape_cast %385 : vector<8xf32> to vector<8x1xf32>
    %387 = vector.broadcast %386 : vector<8x1xf32> to vector<8x8xf32>
    %388 = arith.subf %384, %387 : vector<8x8xf32>
    %389 = math.exp %388 : vector<8x8xf32>
    %cst_111 = arith.constant dense<0.000000e+00> : vector<8xf32>
    %390 = vector.multi_reduction <add>, %389, %cst_111 [1] : vector<8x8xf32> to vector<8xf32>
    %391 = vector.shape_cast %390 : vector<8xf32> to vector<8x1xf32>
    %392 = tpu.reciprocal %391 {approx = true} : vector<8x1xf32> -> vector<8x1xf32>
    %393 = vector.broadcast %392 : vector<8x1xf32> to vector<8x8xf32>
    %394 = arith.mulf %389, %393 : vector<8x8xf32>
    %395 = vector.extract_strided_slice %309 {offsets = [0, 24], sizes = [8, 8], strides = [1, 1]} : vector<8x32xf32> to vector<8x8xf32>
    %396 = arith.truncf %394 : vector<8x8xf32> to vector<8x8xbf16>
    %397 = arith.truncf %395 : vector<8x8xf32> to vector<8x8xbf16>
    %cst_112 = arith.constant dense<0.000000e+00> : vector<8x8xf32>
    %398 = tpu.matmul %396, %397, %cst_112 {dimension_numbers = #tpu.dot_dimension_numbers<[1], [0], [0], [1], [0, 0, 1, 1], [], []>} : vector<8x8xbf16>, vector<8x8xbf16>, vector<8x8xf32> -> vector<8x8xf32>
    %399 = tpu.concatenate %332, %354, %376, %398 in 1 : vector<8x8xf32>, vector<8x8xf32>, vector<8x8xf32>, vector<8x8xf32> -> vector<8x32xf32>
    %400 = vector.extract_strided_slice %304 {offsets = [8, 0], sizes = [8, 32], strides = [1, 1]} : vector<16x32xf32> to vector<8x32xf32>
    %401 = vector.extract_strided_slice %305 {offsets = [8, 0], sizes = [8, 32], strides = [1, 1]} : vector<16x32xf32> to vector<8x32xf32>
    %402 = vector.extract_strided_slice %306 {offsets = [8, 0], sizes = [8, 32], strides = [1, 1]} : vector<16x32xf32> to vector<8x32xf32>
    %403 = vector.extract_strided_slice %0 {offsets = [1, 0], sizes = [1, 8], strides = [1, 1]} : vector<2x8xf32> to vector<1x8xf32>
    %404 = vector.extract_strided_slice %400 {offsets = [0, 0], sizes = [8, 8], strides = [1, 1]} : vector<8x32xf32> to vector<8x8xf32>
    %405 = vector.extract_strided_slice %401 {offsets = [0, 0], sizes = [8, 8], strides = [1, 1]} : vector<8x32xf32> to vector<8x8xf32>
    %406 = tpu.transpose %405, [1, 0] : vector<8x8xf32> -> vector<8x8xf32>
    %407 = arith.truncf %404 : vector<8x8xf32> to vector<8x8xbf16>
    %408 = arith.truncf %406 : vector<8x8xf32> to vector<8x8xbf16>
    %cst_113 = arith.constant dense<0.000000e+00> : vector<8x8xf32>
    %409 = tpu.matmul %407, %408, %cst_113 {dimension_numbers = #tpu.dot_dimension_numbers<[1], [0], [0], [1], [0, 0, 1, 1], [], []>} : vector<8x8xbf16>, vector<8x8xbf16>, vector<8x8xf32> -> vector<8x8xf32>
    %410 = vector.broadcast %403 : vector<1x8xf32> to vector<8x8xf32>
    %411 = arith.addf %409, %410 : vector<8x8xf32>
    %cst_114 = arith.constant dense<0xFF800000> : vector<8xf32>
    %412 = vector.multi_reduction <maximumf>, %411, %cst_114 [1] : vector<8x8xf32> to vector<8xf32>
    %413 = vector.shape_cast %412 : vector<8xf32> to vector<8x1xf32>
    %414 = vector.broadcast %413 : vector<8x1xf32> to vector<8x8xf32>
    %415 = arith.subf %411, %414 : vector<8x8xf32>
    %416 = math.exp %415 : vector<8x8xf32>
    %cst_115 = arith.constant dense<0.000000e+00> : vector<8xf32>
    %417 = vector.multi_reduction <add>, %416, %cst_115 [1] : vector<8x8xf32> to vector<8xf32>
    %418 = vector.shape_cast %417 : vector<8xf32> to vector<8x1xf32>
    %419 = tpu.reciprocal %418 {approx = true} : vector<8x1xf32> -> vector<8x1xf32>
    %420 = vector.broadcast %419 : vector<8x1xf32> to vector<8x8xf32>
    %421 = arith.mulf %416, %420 : vector<8x8xf32>
    %422 = vector.extract_strided_slice %402 {offsets = [0, 0], sizes = [8, 8], strides = [1, 1]} : vector<8x32xf32> to vector<8x8xf32>
    %423 = arith.truncf %421 : vector<8x8xf32> to vector<8x8xbf16>
    %424 = arith.truncf %422 : vector<8x8xf32> to vector<8x8xbf16>
    %cst_116 = arith.constant dense<0.000000e+00> : vector<8x8xf32>
    %425 = tpu.matmul %423, %424, %cst_116 {dimension_numbers = #tpu.dot_dimension_numbers<[1], [0], [0], [1], [0, 0, 1, 1], [], []>} : vector<8x8xbf16>, vector<8x8xbf16>, vector<8x8xf32> -> vector<8x8xf32>
    %426 = vector.extract_strided_slice %400 {offsets = [0, 8], sizes = [8, 8], strides = [1, 1]} : vector<8x32xf32> to vector<8x8xf32>
    %427 = vector.extract_strided_slice %401 {offsets = [0, 8], sizes = [8, 8], strides = [1, 1]} : vector<8x32xf32> to vector<8x8xf32>
    %428 = tpu.transpose %427, [1, 0] : vector<8x8xf32> -> vector<8x8xf32>
    %429 = arith.truncf %426 : vector<8x8xf32> to vector<8x8xbf16>
    %430 = arith.truncf %428 : vector<8x8xf32> to vector<8x8xbf16>
    %cst_117 = arith.constant dense<0.000000e+00> : vector<8x8xf32>
    %431 = tpu.matmul %429, %430, %cst_117 {dimension_numbers = #tpu.dot_dimension_numbers<[1], [0], [0], [1], [0, 0, 1, 1], [], []>} : vector<8x8xbf16>, vector<8x8xbf16>, vector<8x8xf32> -> vector<8x8xf32>
    %432 = vector.broadcast %403 : vector<1x8xf32> to vector<8x8xf32>
    %433 = arith.addf %431, %432 : vector<8x8xf32>
    %cst_118 = arith.constant dense<0xFF800000> : vector<8xf32>
    %434 = vector.multi_reduction <maximumf>, %433, %cst_118 [1] : vector<8x8xf32> to vector<8xf32>
    %435 = vector.shape_cast %434 : vector<8xf32> to vector<8x1xf32>
    %436 = vector.broadcast %435 : vector<8x1xf32> to vector<8x8xf32>
    %437 = arith.subf %433, %436 : vector<8x8xf32>
    %438 = math.exp %437 : vector<8x8xf32>
    %cst_119 = arith.constant dense<0.000000e+00> : vector<8xf32>
    %439 = vector.multi_reduction <add>, %438, %cst_119 [1] : vector<8x8xf32> to vector<8xf32>
    %440 = vector.shape_cast %439 : vector<8xf32> to vector<8x1xf32>
    %441 = tpu.reciprocal %440 {approx = true} : vector<8x1xf32> -> vector<8x1xf32>
    %442 = vector.broadcast %441 : vector<8x1xf32> to vector<8x8xf32>
    %443 = arith.mulf %438, %442 : vector<8x8xf32>
    %444 = vector.extract_strided_slice %402 {offsets = [0, 8], sizes = [8, 8], strides = [1, 1]} : vector<8x32xf32> to vector<8x8xf32>
    %445 = arith.truncf %443 : vector<8x8xf32> to vector<8x8xbf16>
    %446 = arith.truncf %444 : vector<8x8xf32> to vector<8x8xbf16>
    %cst_120 = arith.constant dense<0.000000e+00> : vector<8x8xf32>
    %447 = tpu.matmul %445, %446, %cst_120 {dimension_numbers = #tpu.dot_dimension_numbers<[1], [0], [0], [1], [0, 0, 1, 1], [], []>} : vector<8x8xbf16>, vector<8x8xbf16>, vector<8x8xf32> -> vector<8x8xf32>
    %448 = vector.extract_strided_slice %400 {offsets = [0, 16], sizes = [8, 8], strides = [1, 1]} : vector<8x32xf32> to vector<8x8xf32>
    %449 = vector.extract_strided_slice %401 {offsets = [0, 16], sizes = [8, 8], strides = [1, 1]} : vector<8x32xf32> to vector<8x8xf32>
    %450 = tpu.transpose %449, [1, 0] : vector<8x8xf32> -> vector<8x8xf32>
    %451 = arith.truncf %448 : vector<8x8xf32> to vector<8x8xbf16>
    %452 = arith.truncf %450 : vector<8x8xf32> to vector<8x8xbf16>
    %cst_121 = arith.constant dense<0.000000e+00> : vector<8x8xf32>
    %453 = tpu.matmul %451, %452, %cst_121 {dimension_numbers = #tpu.dot_dimension_numbers<[1], [0], [0], [1], [0, 0, 1, 1], [], []>} : vector<8x8xbf16>, vector<8x8xbf16>, vector<8x8xf32> -> vector<8x8xf32>
    %454 = vector.broadcast %403 : vector<1x8xf32> to vector<8x8xf32>
    %455 = arith.addf %453, %454 : vector<8x8xf32>
    %cst_122 = arith.constant dense<0xFF800000> : vector<8xf32>
    %456 = vector.multi_reduction <maximumf>, %455, %cst_122 [1] : vector<8x8xf32> to vector<8xf32>
    %457 = vector.shape_cast %456 : vector<8xf32> to vector<8x1xf32>
    %458 = vector.broadcast %457 : vector<8x1xf32> to vector<8x8xf32>
    %459 = arith.subf %455, %458 : vector<8x8xf32>
    %460 = math.exp %459 : vector<8x8xf32>
    %cst_123 = arith.constant dense<0.000000e+00> : vector<8xf32>
    %461 = vector.multi_reduction <add>, %460, %cst_123 [1] : vector<8x8xf32> to vector<8xf32>
    %462 = vector.shape_cast %461 : vector<8xf32> to vector<8x1xf32>
    %463 = tpu.reciprocal %462 {approx = true} : vector<8x1xf32> -> vector<8x1xf32>
    %464 = vector.broadcast %463 : vector<8x1xf32> to vector<8x8xf32>
    %465 = arith.mulf %460, %464 : vector<8x8xf32>
    %466 = vector.extract_strided_slice %402 {offsets = [0, 16], sizes = [8, 8], strides = [1, 1]} : vector<8x32xf32> to vector<8x8xf32>
    %467 = arith.truncf %465 : vector<8x8xf32> to vector<8x8xbf16>
    %468 = arith.truncf %466 : vector<8x8xf32> to vector<8x8xbf16>
    %cst_124 = arith.constant dense<0.000000e+00> : vector<8x8xf32>
    %469 = tpu.matmul %467, %468, %cst_124 {dimension_numbers = #tpu.dot_dimension_numbers<[1], [0], [0], [1], [0, 0, 1, 1], [], []>} : vector<8x8xbf16>, vector<8x8xbf16>, vector<8x8xf32> -> vector<8x8xf32>
    %470 = vector.extract_strided_slice %400 {offsets = [0, 24], sizes = [8, 8], strides = [1, 1]} : vector<8x32xf32> to vector<8x8xf32>
    %471 = vector.extract_strided_slice %401 {offsets = [0, 24], sizes = [8, 8], strides = [1, 1]} : vector<8x32xf32> to vector<8x8xf32>
    %472 = tpu.transpose %471, [1, 0] : vector<8x8xf32> -> vector<8x8xf32>
    %473 = arith.truncf %470 : vector<8x8xf32> to vector<8x8xbf16>
    %474 = arith.truncf %472 : vector<8x8xf32> to vector<8x8xbf16>
    %cst_125 = arith.constant dense<0.000000e+00> : vector<8x8xf32>
    %475 = tpu.matmul %473, %474, %cst_125 {dimension_numbers = #tpu.dot_dimension_numbers<[1], [0], [0], [1], [0, 0, 1, 1], [], []>} : vector<8x8xbf16>, vector<8x8xbf16>, vector<8x8xf32> -> vector<8x8xf32>
    %476 = vector.broadcast %403 : vector<1x8xf32> to vector<8x8xf32>
    %477 = arith.addf %475, %476 : vector<8x8xf32>
    %cst_126 = arith.constant dense<0xFF800000> : vector<8xf32>
    %478 = vector.multi_reduction <maximumf>, %477, %cst_126 [1] : vector<8x8xf32> to vector<8xf32>
    %479 = vector.shape_cast %478 : vector<8xf32> to vector<8x1xf32>
    %480 = vector.broadcast %479 : vector<8x1xf32> to vector<8x8xf32>
    %481 = arith.subf %477, %480 : vector<8x8xf32>
    %482 = math.exp %481 : vector<8x8xf32>
    %cst_127 = arith.constant dense<0.000000e+00> : vector<8xf32>
    %483 = vector.multi_reduction <add>, %482, %cst_127 [1] : vector<8x8xf32> to vector<8xf32>
    %484 = vector.shape_cast %483 : vector<8xf32> to vector<8x1xf32>
    %485 = tpu.reciprocal %484 {approx = true} : vector<8x1xf32> -> vector<8x1xf32>
    %486 = vector.broadcast %485 : vector<8x1xf32> to vector<8x8xf32>
    %487 = arith.mulf %482, %486 : vector<8x8xf32>
    %488 = vector.extract_strided_slice %402 {offsets = [0, 24], sizes = [8, 8], strides = [1, 1]} : vector<8x32xf32> to vector<8x8xf32>
    %489 = arith.truncf %487 : vector<8x8xf32> to vector<8x8xbf16>
    %490 = arith.truncf %488 : vector<8x8xf32> to vector<8x8xbf16>
    %cst_128 = arith.constant dense<0.000000e+00> : vector<8x8xf32>
    %491 = tpu.matmul %489, %490, %cst_128 {dimension_numbers = #tpu.dot_dimension_numbers<[1], [0], [0], [1], [0, 0, 1, 1], [], []>} : vector<8x8xbf16>, vector<8x8xbf16>, vector<8x8xf32> -> vector<8x8xf32>
    %492 = tpu.concatenate %425, %447, %469, %491 in 1 : vector<8x8xf32>, vector<8x8xf32>, vector<8x8xf32>, vector<8x8xf32> -> vector<8x32xf32>
    %493 = tpu.concatenate %399, %492 in 0 : vector<8x32xf32>, vector<8x32xf32> -> vector<16x32xf32>
    %c1_129 = arith.constant 1 : index
    %c0_130 = arith.constant 0 : index
    %c0_131 = arith.constant 0 : index
    %494 = vector.load %arg7[%c1_129, %c0_130, %c0_131] : memref<2x32x32xf32, #tpu.memory_space<vmem>>, vector<1x32x32xf32>
    %495 = vector.shape_cast %494 : vector<1x32x32xf32> to vector<32x32xf32>
    %496 = arith.truncf %493 : vector<16x32xf32> to vector<16x32xbf16>
    %497 = arith.truncf %495 : vector<32x32xf32> to vector<32x32xbf16>
    %cst_132 = arith.constant dense<0.000000e+00> : vector<16x32xf32>
    %498 = tpu.matmul %496, %497, %cst_132 {dimension_numbers = #tpu.dot_dimension_numbers<[1], [0], [0], [1], [0, 0, 1, 1], [], []>} : vector<16x32xbf16>, vector<32x32xbf16>, vector<16x32xf32> -> vector<16x32xf32>
    %c1_133 = arith.constant 1 : index
    %c0_134 = arith.constant 0 : index
    %c0_135 = arith.constant 0 : index
    %499 = vector.load %arg8[%c1_133, %c0_134, %c0_135] : memref<2x1x32xf32, #tpu.memory_space<vmem>>, vector<1x1x32xf32>
    %500 = vector.shape_cast %499 : vector<1x1x32xf32> to vector<1x32xf32>
    %501 = vector.broadcast %500 : vector<1x32xf32> to vector<16x32xf32>
    %502 = arith.addf %498, %501 : vector<16x32xf32>
    %503 = arith.addf %292, %502 : vector<16x32xf32>
    %c1_136 = arith.constant 1 : index
    %c0_137 = arith.constant 0 : index
    %c0_138 = arith.constant 0 : index
    %504 = vector.load %arg13[%c1_136, %c0_137, %c0_138] : memref<2x1x32xf32, #tpu.memory_space<vmem>>, vector<1x1x32xf32>
    %505 = vector.shape_cast %504 : vector<1x1x32xf32> to vector<1x32xf32>
    %c1_139 = arith.constant 1 : index
    %c0_140 = arith.constant 0 : index
    %c0_141 = arith.constant 0 : index
    %506 = vector.load %arg14[%c1_139, %c0_140, %c0_141] : memref<2x1x32xf32, #tpu.memory_space<vmem>>, vector<1x1x32xf32>
    %507 = vector.shape_cast %506 : vector<1x1x32xf32> to vector<1x32xf32>
    %cst_142 = arith.constant dense<0.000000e+00> : vector<16xf32>
    %508 = vector.multi_reduction <add>, %503, %cst_142 [1] : vector<16x32xf32> to vector<16xf32>
    %509 = vector.shape_cast %508 : vector<16xf32> to vector<16x1xf32>
    %cst_143 = arith.constant 3.200000e+01 : f32
    %510 = vector.broadcast %cst_143 : f32 to vector<16x1xf32>
    %511 = arith.divf %509, %510 : vector<16x1xf32>
    %512 = vector.broadcast %511 : vector<16x1xf32> to vector<16x32xf32>
    %513 = arith.subf %503, %512 : vector<16x32xf32>
    %514 = arith.mulf %513, %513 : vector<16x32xf32>
    %cst_144 = arith.constant dense<0.000000e+00> : vector<16xf32>
    %515 = vector.multi_reduction <add>, %514, %cst_144 [1] : vector<16x32xf32> to vector<16xf32>
    %516 = vector.shape_cast %515 : vector<16xf32> to vector<16x1xf32>
    %cst_145 = arith.constant 3.200000e+01 : f32
    %517 = vector.broadcast %cst_145 : f32 to vector<16x1xf32>
    %518 = arith.divf %516, %517 : vector<16x1xf32>
    %519 = vector.broadcast %511 : vector<16x1xf32> to vector<16x32xf32>
    %520 = arith.subf %503, %519 : vector<16x32xf32>
    %cst_146 = arith.constant 9.99999974E-6 : f32
    %521 = vector.broadcast %cst_146 : f32 to vector<16x1xf32>
    %522 = arith.addf %518, %521 : vector<16x1xf32>
    %523 = math.rsqrt %522 : vector<16x1xf32>
    %524 = vector.broadcast %523 : vector<16x1xf32> to vector<16x32xf32>
    %525 = arith.mulf %520, %524 : vector<16x32xf32>
    %526 = vector.broadcast %505 : vector<1x32xf32> to vector<16x32xf32>
    %527 = arith.mulf %525, %526 : vector<16x32xf32>
    %528 = vector.broadcast %507 : vector<1x32xf32> to vector<16x32xf32>
    %529 = arith.addf %527, %528 : vector<16x32xf32>
    %c1_147 = arith.constant 1 : index
    %c0_148 = arith.constant 0 : index
    %c0_149 = arith.constant 0 : index
    %530 = vector.load %arg9[%c1_147, %c0_148, %c0_149] : memref<2x32x64xf32, #tpu.memory_space<vmem>>, vector<1x32x64xf32>
    %531 = vector.shape_cast %530 : vector<1x32x64xf32> to vector<32x64xf32>
    %532 = arith.truncf %529 : vector<16x32xf32> to vector<16x32xbf16>
    %533 = arith.truncf %531 : vector<32x64xf32> to vector<32x64xbf16>
    %cst_150 = arith.constant dense<0.000000e+00> : vector<16x64xf32>
    %534 = tpu.matmul %532, %533, %cst_150 {dimension_numbers = #tpu.dot_dimension_numbers<[1], [0], [0], [1], [0, 0, 1, 1], [], []>} : vector<16x32xbf16>, vector<32x64xbf16>, vector<16x64xf32> -> vector<16x64xf32>
    %c1_151 = arith.constant 1 : index
    %c0_152 = arith.constant 0 : index
    %c0_153 = arith.constant 0 : index
    %535 = vector.load %arg10[%c1_151, %c0_152, %c0_153] : memref<2x1x64xf32, #tpu.memory_space<vmem>>, vector<1x1x64xf32>
    %536 = vector.shape_cast %535 : vector<1x1x64xf32> to vector<1x64xf32>
    %537 = vector.broadcast %536 : vector<1x64xf32> to vector<16x64xf32>
    %538 = arith.addf %534, %537 : vector<16x64xf32>
    %cst_154 = arith.constant 0.000000e+00 : f32
    %539 = vector.broadcast %cst_154 : f32 to vector<16x64xf32>
    %540 = arith.maximumf %538, %539 : vector<16x64xf32>
    %c1_155 = arith.constant 1 : index
    %c0_156 = arith.constant 0 : index
    %c0_157 = arith.constant 0 : index
    %541 = vector.load %arg11[%c1_155, %c0_156, %c0_157] : memref<2x64x32xf32, #tpu.memory_space<vmem>>, vector<1x64x32xf32>
    %542 = vector.shape_cast %541 : vector<1x64x32xf32> to vector<64x32xf32>
    %543 = arith.truncf %540 : vector<16x64xf32> to vector<16x64xbf16>
    %544 = arith.truncf %542 : vector<64x32xf32> to vector<64x32xbf16>
    %cst_158 = arith.constant dense<0.000000e+00> : vector<16x32xf32>
    %545 = tpu.matmul %543, %544, %cst_158 {dimension_numbers = #tpu.dot_dimension_numbers<[1], [0], [0], [1], [0, 0, 1, 1], [], []>} : vector<16x64xbf16>, vector<64x32xbf16>, vector<16x32xf32> -> vector<16x32xf32>
    %c1_159 = arith.constant 1 : index
    %c0_160 = arith.constant 0 : index
    %c0_161 = arith.constant 0 : index
    %546 = vector.load %arg12[%c1_159, %c0_160, %c0_161] : memref<2x1x32xf32, #tpu.memory_space<vmem>>, vector<1x1x32xf32>
    %547 = vector.shape_cast %546 : vector<1x1x32xf32> to vector<1x32xf32>
    %548 = vector.broadcast %547 : vector<1x32xf32> to vector<16x32xf32>
    %549 = arith.addf %545, %548 : vector<16x32xf32>
    %550 = arith.addf %529, %549 : vector<16x32xf32>
    %c1_162 = arith.constant 1 : index
    %c0_163 = arith.constant 0 : index
    %c0_164 = arith.constant 0 : index
    %551 = vector.load %arg15[%c1_162, %c0_163, %c0_164] : memref<2x1x32xf32, #tpu.memory_space<vmem>>, vector<1x1x32xf32>
    %552 = vector.shape_cast %551 : vector<1x1x32xf32> to vector<1x32xf32>
    %c1_165 = arith.constant 1 : index
    %c0_166 = arith.constant 0 : index
    %c0_167 = arith.constant 0 : index
    %553 = vector.load %arg16[%c1_165, %c0_166, %c0_167] : memref<2x1x32xf32, #tpu.memory_space<vmem>>, vector<1x1x32xf32>
    %554 = vector.shape_cast %553 : vector<1x1x32xf32> to vector<1x32xf32>
    %cst_168 = arith.constant dense<0.000000e+00> : vector<16xf32>
    %555 = vector.multi_reduction <add>, %550, %cst_168 [1] : vector<16x32xf32> to vector<16xf32>
    %556 = vector.shape_cast %555 : vector<16xf32> to vector<16x1xf32>
    %cst_169 = arith.constant 3.200000e+01 : f32
    %557 = vector.broadcast %cst_169 : f32 to vector<16x1xf32>
    %558 = arith.divf %556, %557 : vector<16x1xf32>
    %559 = vector.broadcast %558 : vector<16x1xf32> to vector<16x32xf32>
    %560 = arith.subf %550, %559 : vector<16x32xf32>
    %561 = arith.mulf %560, %560 : vector<16x32xf32>
    %cst_170 = arith.constant dense<0.000000e+00> : vector<16xf32>
    %562 = vector.multi_reduction <add>, %561, %cst_170 [1] : vector<16x32xf32> to vector<16xf32>
    %563 = vector.shape_cast %562 : vector<16xf32> to vector<16x1xf32>
    %cst_171 = arith.constant 3.200000e+01 : f32
    %564 = vector.broadcast %cst_171 : f32 to vector<16x1xf32>
    %565 = arith.divf %563, %564 : vector<16x1xf32>
    %566 = vector.broadcast %558 : vector<16x1xf32> to vector<16x32xf32>
    %567 = arith.subf %550, %566 : vector<16x32xf32>
    %cst_172 = arith.constant 9.99999974E-6 : f32
    %568 = vector.broadcast %cst_172 : f32 to vector<16x1xf32>
    %569 = arith.addf %565, %568 : vector<16x1xf32>
    %570 = math.rsqrt %569 : vector<16x1xf32>
    %571 = vector.broadcast %570 : vector<16x1xf32> to vector<16x32xf32>
    %572 = arith.mulf %567, %571 : vector<16x32xf32>
    %573 = vector.broadcast %552 : vector<1x32xf32> to vector<16x32xf32>
    %574 = arith.mulf %572, %573 : vector<16x32xf32>
    %575 = vector.broadcast %554 : vector<1x32xf32> to vector<16x32xf32>
    %576 = arith.addf %574, %575 : vector<16x32xf32>
    %c0_173 = arith.constant 0 : index
    %c0_174 = arith.constant 0 : index
    %577 = vector.load %arg39[%c0_173, %c0_174] : memref<16x32xf32, #tpu.memory_space<vmem>>, vector<16x32xf32>
    tpu.vector_store %arg39[%c0_173, %c0_174], %576 {strides = array<i32>} : memref<16x32xf32, #tpu.memory_space<vmem>>, vector<16x32xf32>,
    %c0_175 = arith.constant 0 : index
    %c0_176 = arith.constant 0 : index
    %578 = vector.load %arg2[%c0_175, %c0_176] : memref<16x32xf32, #tpu.memory_space<vmem>>, vector<16x32xf32>
    %c0_177 = arith.constant 0 : index
    %c0_178 = arith.constant 0 : index
    %c0_179 = arith.constant 0 : index
    %579 = vector.load %arg17[%c0_177, %c0_178, %c0_179] : memref<2x32x96xf32, #tpu.memory_space<vmem>>, vector<1x32x96xf32>
    %580 = vector.shape_cast %579 : vector<1x32x96xf32> to vector<32x96xf32>
    %581 = arith.truncf %578 : vector<16x32xf32> to vector<16x32xbf16>
    %582 = arith.truncf %580 : vector<32x96xf32> to vector<32x96xbf16>
    %cst_180 = arith.constant dense<0.000000e+00> : vector<16x96xf32>
    %583 = tpu.matmul %581, %582, %cst_180 {dimension_numbers = #tpu.dot_dimension_numbers<[1], [0], [0], [1], [0, 0, 1, 1], [], []>} : vector<16x32xbf16>, vector<32x96xbf16>, vector<16x96xf32> -> vector<16x96xf32>
    %c0_181 = arith.constant 0 : index
    %c0_182 = arith.constant 0 : index
    %c0_183 = arith.constant 0 : index
    %584 = vector.load %arg18[%c0_181, %c0_182, %c0_183] : memref<2x1x96xf32, #tpu.memory_space<vmem>>, vector<1x1x96xf32>
    %585 = vector.shape_cast %584 : vector<1x1x96xf32> to vector<1x96xf32>
    %586 = vector.broadcast %585 : vector<1x96xf32> to vector<16x96xf32>
    %587 = arith.addf %583, %586 : vector<16x96xf32>
    %588 = vector.extract_strided_slice %587 {offsets = [0, 0], sizes = [16, 32], strides = [1, 1]} : vector<16x96xf32> to vector<16x32xf32>
    %cst_184 = arith.constant 0.353553385 : f32
    %589 = vector.broadcast %cst_184 : f32 to vector<16x32xf32>
    %590 = arith.mulf %588, %589 : vector<16x32xf32>
    %591 = vector.extract_strided_slice %587 {offsets = [0, 32], sizes = [16, 32], strides = [1, 1]} : vector<16x96xf32> to vector<16x32xf32>
    %592 = vector.extract_strided_slice %587 {offsets = [0, 64], sizes = [16, 32], strides = [1, 1]} : vector<16x96xf32> to vector<16x32xf32>
    %593 = vector.extract_strided_slice %1 {offsets = [0, 0], sizes = [1, 8], strides = [1, 1]} : vector<2x8xf32> to vector<1x8xf32>
    %594 = vector.broadcast %593 : vector<1x8xf32> to vector<8x8xf32>
    %595 = arith.addf %7, %594 : vector<8x8xf32>
    %596 = vector.extract_strided_slice %590 {offsets = [0, 0], sizes = [8, 32], strides = [1, 1]} : vector<16x32xf32> to vector<8x32xf32>
    %597 = vector.extract_strided_slice %591 {offsets = [0, 0], sizes = [8, 32], strides = [1, 1]} : vector<16x32xf32> to vector<8x32xf32>
    %598 = vector.extract_strided_slice %592 {offsets = [0, 0], sizes = [8, 32], strides = [1, 1]} : vector<16x32xf32> to vector<8x32xf32>
    %599 = vector.extract_strided_slice %596 {offsets = [0, 0], sizes = [8, 8], strides = [1, 1]} : vector<8x32xf32> to vector<8x8xf32>
    %600 = vector.extract_strided_slice %597 {offsets = [0, 0], sizes = [8, 8], strides = [1, 1]} : vector<8x32xf32> to vector<8x8xf32>
    %601 = tpu.transpose %600, [1, 0] : vector<8x8xf32> -> vector<8x8xf32>
    %602 = arith.truncf %599 : vector<8x8xf32> to vector<8x8xbf16>
    %603 = arith.truncf %601 : vector<8x8xf32> to vector<8x8xbf16>
    %cst_185 = arith.constant dense<0.000000e+00> : vector<8x8xf32>
    %604 = tpu.matmul %602, %603, %cst_185 {dimension_numbers = #tpu.dot_dimension_numbers<[1], [0], [0], [1], [0, 0, 1, 1], [], []>} : vector<8x8xbf16>, vector<8x8xbf16>, vector<8x8xf32> -> vector<8x8xf32>
    %605 = arith.addf %604, %595 : vector<8x8xf32>
    %cst_186 = arith.constant dense<0xFF800000> : vector<8xf32>
    %606 = vector.multi_reduction <maximumf>, %605, %cst_186 [1] : vector<8x8xf32> to vector<8xf32>
    %607 = vector.shape_cast %606 : vector<8xf32> to vector<8x1xf32>
    %608 = vector.broadcast %607 : vector<8x1xf32> to vector<8x8xf32>
    %609 = arith.subf %605, %608 : vector<8x8xf32>
    %610 = math.exp %609 : vector<8x8xf32>
    %cst_187 = arith.constant dense<0.000000e+00> : vector<8xf32>
    %611 = vector.multi_reduction <add>, %610, %cst_187 [1] : vector<8x8xf32> to vector<8xf32>
    %612 = vector.shape_cast %611 : vector<8xf32> to vector<8x1xf32>
    %613 = tpu.reciprocal %612 {approx = true} : vector<8x1xf32> -> vector<8x1xf32>
    %614 = vector.broadcast %613 : vector<8x1xf32> to vector<8x8xf32>
    %615 = arith.mulf %610, %614 : vector<8x8xf32>
    %616 = vector.extract_strided_slice %598 {offsets = [0, 0], sizes = [8, 8], strides = [1, 1]} : vector<8x32xf32> to vector<8x8xf32>
    %617 = arith.truncf %615 : vector<8x8xf32> to vector<8x8xbf16>
    %618 = arith.truncf %616 : vector<8x8xf32> to vector<8x8xbf16>
    %cst_188 = arith.constant dense<0.000000e+00> : vector<8x8xf32>
    %619 = tpu.matmul %617, %618, %cst_188 {dimension_numbers = #tpu.dot_dimension_numbers<[1], [0], [0], [1], [0, 0, 1, 1], [], []>} : vector<8x8xbf16>, vector<8x8xbf16>, vector<8x8xf32> -> vector<8x8xf32>
    %620 = vector.extract_strided_slice %596 {offsets = [0, 8], sizes = [8, 8], strides = [1, 1]} : vector<8x32xf32> to vector<8x8xf32>
    %621 = vector.extract_strided_slice %597 {offsets = [0, 8], sizes = [8, 8], strides = [1, 1]} : vector<8x32xf32> to vector<8x8xf32>
    %622 = tpu.transpose %621, [1, 0] : vector<8x8xf32> -> vector<8x8xf32>
    %623 = arith.truncf %620 : vector<8x8xf32> to vector<8x8xbf16>
    %624 = arith.truncf %622 : vector<8x8xf32> to vector<8x8xbf16>
    %cst_189 = arith.constant dense<0.000000e+00> : vector<8x8xf32>
    %625 = tpu.matmul %623, %624, %cst_189 {dimension_numbers = #tpu.dot_dimension_numbers<[1], [0], [0], [1], [0, 0, 1, 1], [], []>} : vector<8x8xbf16>, vector<8x8xbf16>, vector<8x8xf32> -> vector<8x8xf32>
    %626 = arith.addf %625, %595 : vector<8x8xf32>
    %cst_190 = arith.constant dense<0xFF800000> : vector<8xf32>
    %627 = vector.multi_reduction <maximumf>, %626, %cst_190 [1] : vector<8x8xf32> to vector<8xf32>
    %628 = vector.shape_cast %627 : vector<8xf32> to vector<8x1xf32>
    %629 = vector.broadcast %628 : vector<8x1xf32> to vector<8x8xf32>
    %630 = arith.subf %626, %629 : vector<8x8xf32>
    %631 = math.exp %630 : vector<8x8xf32>
    %cst_191 = arith.constant dense<0.000000e+00> : vector<8xf32>
    %632 = vector.multi_reduction <add>, %631, %cst_191 [1] : vector<8x8xf32> to vector<8xf32>
    %633 = vector.shape_cast %632 : vector<8xf32> to vector<8x1xf32>
    %634 = tpu.reciprocal %633 {approx = true} : vector<8x1xf32> -> vector<8x1xf32>
    %635 = vector.broadcast %634 : vector<8x1xf32> to vector<8x8xf32>
    %636 = arith.mulf %631, %635 : vector<8x8xf32>
    %637 = vector.extract_strided_slice %598 {offsets = [0, 8], sizes = [8, 8], strides = [1, 1]} : vector<8x32xf32> to vector<8x8xf32>
    %638 = arith.truncf %636 : vector<8x8xf32> to vector<8x8xbf16>
    %639 = arith.truncf %637 : vector<8x8xf32> to vector<8x8xbf16>
    %cst_192 = arith.constant dense<0.000000e+00> : vector<8x8xf32>
    %640 = tpu.matmul %638, %639, %cst_192 {dimension_numbers = #tpu.dot_dimension_numbers<[1], [0], [0], [1], [0, 0, 1, 1], [], []>} : vector<8x8xbf16>, vector<8x8xbf16>, vector<8x8xf32> -> vector<8x8xf32>
    %641 = vector.extract_strided_slice %596 {offsets = [0, 16], sizes = [8, 8], strides = [1, 1]} : vector<8x32xf32> to vector<8x8xf32>
    %642 = vector.extract_strided_slice %597 {offsets = [0, 16], sizes = [8, 8], strides = [1, 1]} : vector<8x32xf32> to vector<8x8xf32>
    %643 = tpu.transpose %642, [1, 0] : vector<8x8xf32> -> vector<8x8xf32>
    %644 = arith.truncf %641 : vector<8x8xf32> to vector<8x8xbf16>
    %645 = arith.truncf %643 : vector<8x8xf32> to vector<8x8xbf16>
    %cst_193 = arith.constant dense<0.000000e+00> : vector<8x8xf32>
    %646 = tpu.matmul %644, %645, %cst_193 {dimension_numbers = #tpu.dot_dimension_numbers<[1], [0], [0], [1], [0, 0, 1, 1], [], []>} : vector<8x8xbf16>, vector<8x8xbf16>, vector<8x8xf32> -> vector<8x8xf32>
    %647 = arith.addf %646, %595 : vector<8x8xf32>
    %cst_194 = arith.constant dense<0xFF800000> : vector<8xf32>
    %648 = vector.multi_reduction <maximumf>, %647, %cst_194 [1] : vector<8x8xf32> to vector<8xf32>
    %649 = vector.shape_cast %648 : vector<8xf32> to vector<8x1xf32>
    %650 = vector.broadcast %649 : vector<8x1xf32> to vector<8x8xf32>
    %651 = arith.subf %647, %650 : vector<8x8xf32>
    %652 = math.exp %651 : vector<8x8xf32>
    %cst_195 = arith.constant dense<0.000000e+00> : vector<8xf32>
    %653 = vector.multi_reduction <add>, %652, %cst_195 [1] : vector<8x8xf32> to vector<8xf32>
    %654 = vector.shape_cast %653 : vector<8xf32> to vector<8x1xf32>
    %655 = tpu.reciprocal %654 {approx = true} : vector<8x1xf32> -> vector<8x1xf32>
    %656 = vector.broadcast %655 : vector<8x1xf32> to vector<8x8xf32>
    %657 = arith.mulf %652, %656 : vector<8x8xf32>
    %658 = vector.extract_strided_slice %598 {offsets = [0, 16], sizes = [8, 8], strides = [1, 1]} : vector<8x32xf32> to vector<8x8xf32>
    %659 = arith.truncf %657 : vector<8x8xf32> to vector<8x8xbf16>
    %660 = arith.truncf %658 : vector<8x8xf32> to vector<8x8xbf16>
    %cst_196 = arith.constant dense<0.000000e+00> : vector<8x8xf32>
    %661 = tpu.matmul %659, %660, %cst_196 {dimension_numbers = #tpu.dot_dimension_numbers<[1], [0], [0], [1], [0, 0, 1, 1], [], []>} : vector<8x8xbf16>, vector<8x8xbf16>, vector<8x8xf32> -> vector<8x8xf32>
    %662 = vector.extract_strided_slice %596 {offsets = [0, 24], sizes = [8, 8], strides = [1, 1]} : vector<8x32xf32> to vector<8x8xf32>
    %663 = vector.extract_strided_slice %597 {offsets = [0, 24], sizes = [8, 8], strides = [1, 1]} : vector<8x32xf32> to vector<8x8xf32>
    %664 = tpu.transpose %663, [1, 0] : vector<8x8xf32> -> vector<8x8xf32>
    %665 = arith.truncf %662 : vector<8x8xf32> to vector<8x8xbf16>
    %666 = arith.truncf %664 : vector<8x8xf32> to vector<8x8xbf16>
    %cst_197 = arith.constant dense<0.000000e+00> : vector<8x8xf32>
    %667 = tpu.matmul %665, %666, %cst_197 {dimension_numbers = #tpu.dot_dimension_numbers<[1], [0], [0], [1], [0, 0, 1, 1], [], []>} : vector<8x8xbf16>, vector<8x8xbf16>, vector<8x8xf32> -> vector<8x8xf32>
    %668 = arith.addf %667, %595 : vector<8x8xf32>
    %cst_198 = arith.constant dense<0xFF800000> : vector<8xf32>
    %669 = vector.multi_reduction <maximumf>, %668, %cst_198 [1] : vector<8x8xf32> to vector<8xf32>
    %670 = vector.shape_cast %669 : vector<8xf32> to vector<8x1xf32>
    %671 = vector.broadcast %670 : vector<8x1xf32> to vector<8x8xf32>
    %672 = arith.subf %668, %671 : vector<8x8xf32>
    %673 = math.exp %672 : vector<8x8xf32>
    %cst_199 = arith.constant dense<0.000000e+00> : vector<8xf32>
    %674 = vector.multi_reduction <add>, %673, %cst_199 [1] : vector<8x8xf32> to vector<8xf32>
    %675 = vector.shape_cast %674 : vector<8xf32> to vector<8x1xf32>
    %676 = tpu.reciprocal %675 {approx = true} : vector<8x1xf32> -> vector<8x1xf32>
    %677 = vector.broadcast %676 : vector<8x1xf32> to vector<8x8xf32>
    %678 = arith.mulf %673, %677 : vector<8x8xf32>
    %679 = vector.extract_strided_slice %598 {offsets = [0, 24], sizes = [8, 8], strides = [1, 1]} : vector<8x32xf32> to vector<8x8xf32>
    %680 = arith.truncf %678 : vector<8x8xf32> to vector<8x8xbf16>
    %681 = arith.truncf %679 : vector<8x8xf32> to vector<8x8xbf16>
    %cst_200 = arith.constant dense<0.000000e+00> : vector<8x8xf32>
    %682 = tpu.matmul %680, %681, %cst_200 {dimension_numbers = #tpu.dot_dimension_numbers<[1], [0], [0], [1], [0, 0, 1, 1], [], []>} : vector<8x8xbf16>, vector<8x8xbf16>, vector<8x8xf32> -> vector<8x8xf32>
    %683 = tpu.concatenate %619, %640, %661, %682 in 1 : vector<8x8xf32>, vector<8x8xf32>, vector<8x8xf32>, vector<8x8xf32> -> vector<8x32xf32>
    %684 = tpu.concatenate %615, %636, %657, %678 in 1 : vector<8x8xf32>, vector<8x8xf32>, vector<8x8xf32>, vector<8x8xf32> -> vector<8x32xf32>
    %c0_201 = arith.constant 0 : index
    %c0_202 = arith.constant 0 : index
    %c0_203 = arith.constant 0 : index
    %c0_204 = arith.constant 0 : index
    %685 = vector.load %arg41[%c0_201, %c0_202, %c0_203, %c0_204] : memref<2x2x8x32xf32, #tpu.memory_space<vmem>>, vector<1x1x8x32xf32>
    %686 = vector.shape_cast %685 : vector<1x1x8x32xf32> to vector<8x32xf32>
    %687 = vector.shape_cast %684 : vector<8x32xf32> to vector<1x1x8x32xf32>
    tpu.vector_store %arg41[%c0_201, %c0_202, %c0_203, %c0_204], %687 {strides = array<i32>} : memref<2x2x8x32xf32, #tpu.memory_space<vmem>>, vector<1x1x8x32xf32>,
    %688 = vector.extract_strided_slice %1 {offsets = [1, 0], sizes = [1, 8], strides = [1, 1]} : vector<2x8xf32> to vector<1x8xf32>
    %689 = vector.broadcast %688 : vector<1x8xf32> to vector<8x8xf32>
    %690 = arith.addf %7, %689 : vector<8x8xf32>
    %691 = vector.extract_strided_slice %590 {offsets = [8, 0], sizes = [8, 32], strides = [1, 1]} : vector<16x32xf32> to vector<8x32xf32>
    %692 = vector.extract_strided_slice %591 {offsets = [8, 0], sizes = [8, 32], strides = [1, 1]} : vector<16x32xf32> to vector<8x32xf32>
    %693 = vector.extract_strided_slice %592 {offsets = [8, 0], sizes = [8, 32], strides = [1, 1]} : vector<16x32xf32> to vector<8x32xf32>
    %694 = vector.extract_strided_slice %691 {offsets = [0, 0], sizes = [8, 8], strides = [1, 1]} : vector<8x32xf32> to vector<8x8xf32>
    %695 = vector.extract_strided_slice %692 {offsets = [0, 0], sizes = [8, 8], strides = [1, 1]} : vector<8x32xf32> to vector<8x8xf32>
    %696 = tpu.transpose %695, [1, 0] : vector<8x8xf32> -> vector<8x8xf32>
    %697 = arith.truncf %694 : vector<8x8xf32> to vector<8x8xbf16>
    %698 = arith.truncf %696 : vector<8x8xf32> to vector<8x8xbf16>
    %cst_205 = arith.constant dense<0.000000e+00> : vector<8x8xf32>
    %699 = tpu.matmul %697, %698, %cst_205 {dimension_numbers = #tpu.dot_dimension_numbers<[1], [0], [0], [1], [0, 0, 1, 1], [], []>} : vector<8x8xbf16>, vector<8x8xbf16>, vector<8x8xf32> -> vector<8x8xf32>
    %700 = arith.addf %699, %690 : vector<8x8xf32>
    %cst_206 = arith.constant dense<0xFF800000> : vector<8xf32>
    %701 = vector.multi_reduction <maximumf>, %700, %cst_206 [1] : vector<8x8xf32> to vector<8xf32>
    %702 = vector.shape_cast %701 : vector<8xf32> to vector<8x1xf32>
    %703 = vector.broadcast %702 : vector<8x1xf32> to vector<8x8xf32>
    %704 = arith.subf %700, %703 : vector<8x8xf32>
    %705 = math.exp %704 : vector<8x8xf32>
    %cst_207 = arith.constant dense<0.000000e+00> : vector<8xf32>
    %706 = vector.multi_reduction <add>, %705, %cst_207 [1] : vector<8x8xf32> to vector<8xf32>
    %707 = vector.shape_cast %706 : vector<8xf32> to vector<8x1xf32>
    %708 = tpu.reciprocal %707 {approx = true} : vector<8x1xf32> -> vector<8x1xf32>
    %709 = vector.broadcast %708 : vector<8x1xf32> to vector<8x8xf32>
    %710 = arith.mulf %705, %709 : vector<8x8xf32>
    %711 = vector.extract_strided_slice %693 {offsets = [0, 0], sizes = [8, 8], strides = [1, 1]} : vector<8x32xf32> to vector<8x8xf32>
    %712 = arith.truncf %710 : vector<8x8xf32> to vector<8x8xbf16>
    %713 = arith.truncf %711 : vector<8x8xf32> to vector<8x8xbf16>
    %cst_208 = arith.constant dense<0.000000e+00> : vector<8x8xf32>
    %714 = tpu.matmul %712, %713, %cst_208 {dimension_numbers = #tpu.dot_dimension_numbers<[1], [0], [0], [1], [0, 0, 1, 1], [], []>} : vector<8x8xbf16>, vector<8x8xbf16>, vector<8x8xf32> -> vector<8x8xf32>
    %715 = vector.extract_strided_slice %691 {offsets = [0, 8], sizes = [8, 8], strides = [1, 1]} : vector<8x32xf32> to vector<8x8xf32>
    %716 = vector.extract_strided_slice %692 {offsets = [0, 8], sizes = [8, 8], strides = [1, 1]} : vector<8x32xf32> to vector<8x8xf32>
    %717 = tpu.transpose %716, [1, 0] : vector<8x8xf32> -> vector<8x8xf32>
    %718 = arith.truncf %715 : vector<8x8xf32> to vector<8x8xbf16>
    %719 = arith.truncf %717 : vector<8x8xf32> to vector<8x8xbf16>
    %cst_209 = arith.constant dense<0.000000e+00> : vector<8x8xf32>
    %720 = tpu.matmul %718, %719, %cst_209 {dimension_numbers = #tpu.dot_dimension_numbers<[1], [0], [0], [1], [0, 0, 1, 1], [], []>} : vector<8x8xbf16>, vector<8x8xbf16>, vector<8x8xf32> -> vector<8x8xf32>
    %721 = arith.addf %720, %690 : vector<8x8xf32>
    %cst_210 = arith.constant dense<0xFF800000> : vector<8xf32>
    %722 = vector.multi_reduction <maximumf>, %721, %cst_210 [1] : vector<8x8xf32> to vector<8xf32>
    %723 = vector.shape_cast %722 : vector<8xf32> to vector<8x1xf32>
    %724 = vector.broadcast %723 : vector<8x1xf32> to vector<8x8xf32>
    %725 = arith.subf %721, %724 : vector<8x8xf32>
    %726 = math.exp %725 : vector<8x8xf32>
    %cst_211 = arith.constant dense<0.000000e+00> : vector<8xf32>
    %727 = vector.multi_reduction <add>, %726, %cst_211 [1] : vector<8x8xf32> to vector<8xf32>
    %728 = vector.shape_cast %727 : vector<8xf32> to vector<8x1xf32>
    %729 = tpu.reciprocal %728 {approx = true} : vector<8x1xf32> -> vector<8x1xf32>
    %730 = vector.broadcast %729 : vector<8x1xf32> to vector<8x8xf32>
    %731 = arith.mulf %726, %730 : vector<8x8xf32>
    %732 = vector.extract_strided_slice %693 {offsets = [0, 8], sizes = [8, 8], strides = [1, 1]} : vector<8x32xf32> to vector<8x8xf32>
    %733 = arith.truncf %731 : vector<8x8xf32> to vector<8x8xbf16>
    %734 = arith.truncf %732 : vector<8x8xf32> to vector<8x8xbf16>
    %cst_212 = arith.constant dense<0.000000e+00> : vector<8x8xf32>
    %735 = tpu.matmul %733, %734, %cst_212 {dimension_numbers = #tpu.dot_dimension_numbers<[1], [0], [0], [1], [0, 0, 1, 1], [], []>} : vector<8x8xbf16>, vector<8x8xbf16>, vector<8x8xf32> -> vector<8x8xf32>
    %736 = vector.extract_strided_slice %691 {offsets = [0, 16], sizes = [8, 8], strides = [1, 1]} : vector<8x32xf32> to vector<8x8xf32>
    %737 = vector.extract_strided_slice %692 {offsets = [0, 16], sizes = [8, 8], strides = [1, 1]} : vector<8x32xf32> to vector<8x8xf32>
    %738 = tpu.transpose %737, [1, 0] : vector<8x8xf32> -> vector<8x8xf32>
    %739 = arith.truncf %736 : vector<8x8xf32> to vector<8x8xbf16>
    %740 = arith.truncf %738 : vector<8x8xf32> to vector<8x8xbf16>
    %cst_213 = arith.constant dense<0.000000e+00> : vector<8x8xf32>
    %741 = tpu.matmul %739, %740, %cst_213 {dimension_numbers = #tpu.dot_dimension_numbers<[1], [0], [0], [1], [0, 0, 1, 1], [], []>} : vector<8x8xbf16>, vector<8x8xbf16>, vector<8x8xf32> -> vector<8x8xf32>
    %742 = arith.addf %741, %690 : vector<8x8xf32>
    %cst_214 = arith.constant dense<0xFF800000> : vector<8xf32>
    %743 = vector.multi_reduction <maximumf>, %742, %cst_214 [1] : vector<8x8xf32> to vector<8xf32>
    %744 = vector.shape_cast %743 : vector<8xf32> to vector<8x1xf32>
    %745 = vector.broadcast %744 : vector<8x1xf32> to vector<8x8xf32>
    %746 = arith.subf %742, %745 : vector<8x8xf32>
    %747 = math.exp %746 : vector<8x8xf32>
    %cst_215 = arith.constant dense<0.000000e+00> : vector<8xf32>
    %748 = vector.multi_reduction <add>, %747, %cst_215 [1] : vector<8x8xf32> to vector<8xf32>
    %749 = vector.shape_cast %748 : vector<8xf32> to vector<8x1xf32>
    %750 = tpu.reciprocal %749 {approx = true} : vector<8x1xf32> -> vector<8x1xf32>
    %751 = vector.broadcast %750 : vector<8x1xf32> to vector<8x8xf32>
    %752 = arith.mulf %747, %751 : vector<8x8xf32>
    %753 = vector.extract_strided_slice %693 {offsets = [0, 16], sizes = [8, 8], strides = [1, 1]} : vector<8x32xf32> to vector<8x8xf32>
    %754 = arith.truncf %752 : vector<8x8xf32> to vector<8x8xbf16>
    %755 = arith.truncf %753 : vector<8x8xf32> to vector<8x8xbf16>
    %cst_216 = arith.constant dense<0.000000e+00> : vector<8x8xf32>
    %756 = tpu.matmul %754, %755, %cst_216 {dimension_numbers = #tpu.dot_dimension_numbers<[1], [0], [0], [1], [0, 0, 1, 1], [], []>} : vector<8x8xbf16>, vector<8x8xbf16>, vector<8x8xf32> -> vector<8x8xf32>
    %757 = vector.extract_strided_slice %691 {offsets = [0, 24], sizes = [8, 8], strides = [1, 1]} : vector<8x32xf32> to vector<8x8xf32>
    %758 = vector.extract_strided_slice %692 {offsets = [0, 24], sizes = [8, 8], strides = [1, 1]} : vector<8x32xf32> to vector<8x8xf32>
    %759 = tpu.transpose %758, [1, 0] : vector<8x8xf32> -> vector<8x8xf32>
    %760 = arith.truncf %757 : vector<8x8xf32> to vector<8x8xbf16>
    %761 = arith.truncf %759 : vector<8x8xf32> to vector<8x8xbf16>
    %cst_217 = arith.constant dense<0.000000e+00> : vector<8x8xf32>
    %762 = tpu.matmul %760, %761, %cst_217 {dimension_numbers = #tpu.dot_dimension_numbers<[1], [0], [0], [1], [0, 0, 1, 1], [], []>} : vector<8x8xbf16>, vector<8x8xbf16>, vector<8x8xf32> -> vector<8x8xf32>
    %763 = arith.addf %762, %690 : vector<8x8xf32>
    %cst_218 = arith.constant dense<0xFF800000> : vector<8xf32>
    %764 = vector.multi_reduction <maximumf>, %763, %cst_218 [1] : vector<8x8xf32> to vector<8xf32>
    %765 = vector.shape_cast %764 : vector<8xf32> to vector<8x1xf32>
    %766 = vector.broadcast %765 : vector<8x1xf32> to vector<8x8xf32>
    %767 = arith.subf %763, %766 : vector<8x8xf32>
    %768 = math.exp %767 : vector<8x8xf32>
    %cst_219 = arith.constant dense<0.000000e+00> : vector<8xf32>
    %769 = vector.multi_reduction <add>, %768, %cst_219 [1] : vector<8x8xf32> to vector<8xf32>
    %770 = vector.shape_cast %769 : vector<8xf32> to vector<8x1xf32>
    %771 = tpu.reciprocal %770 {approx = true} : vector<8x1xf32> -> vector<8x1xf32>
    %772 = vector.broadcast %771 : vector<8x1xf32> to vector<8x8xf32>
    %773 = arith.mulf %768, %772 : vector<8x8xf32>
    %774 = vector.extract_strided_slice %693 {offsets = [0, 24], sizes = [8, 8], strides = [1, 1]} : vector<8x32xf32> to vector<8x8xf32>
    %775 = arith.truncf %773 : vector<8x8xf32> to vector<8x8xbf16>
    %776 = arith.truncf %774 : vector<8x8xf32> to vector<8x8xbf16>
    %cst_220 = arith.constant dense<0.000000e+00> : vector<8x8xf32>
    %777 = tpu.matmul %775, %776, %cst_220 {dimension_numbers = #tpu.dot_dimension_numbers<[1], [0], [0], [1], [0, 0, 1, 1], [], []>} : vector<8x8xbf16>, vector<8x8xbf16>, vector<8x8xf32> -> vector<8x8xf32>
    %778 = tpu.concatenate %714, %735, %756, %777 in 1 : vector<8x8xf32>, vector<8x8xf32>, vector<8x8xf32>, vector<8x8xf32> -> vector<8x32xf32>
    %779 = tpu.concatenate %710, %731, %752, %773 in 1 : vector<8x8xf32>, vector<8x8xf32>, vector<8x8xf32>, vector<8x8xf32> -> vector<8x32xf32>
    %c0_221 = arith.constant 0 : index
    %c1_222 = arith.constant 1 : index
    %c0_223 = arith.constant 0 : index
    %c0_224 = arith.constant 0 : index
    %780 = vector.load %arg41[%c0_221, %c1_222, %c0_223, %c0_224] : memref<2x2x8x32xf32, #tpu.memory_space<vmem>>, vector<1x1x8x32xf32>
    %781 = vector.shape_cast %780 : vector<1x1x8x32xf32> to vector<8x32xf32>
    %782 = vector.shape_cast %779 : vector<8x32xf32> to vector<1x1x8x32xf32>
    tpu.vector_store %arg41[%c0_221, %c1_222, %c0_223, %c0_224], %782 {strides = array<i32>} : memref<2x2x8x32xf32, #tpu.memory_space<vmem>>, vector<1x1x8x32xf32>,
    %783 = tpu.concatenate %683, %778 in 0 : vector<8x32xf32>, vector<8x32xf32> -> vector<16x32xf32>
    %c0_225 = arith.constant 0 : index
    %c0_226 = arith.constant 0 : index
    %c0_227 = arith.constant 0 : index
    %784 = vector.load %arg19[%c0_225, %c0_226, %c0_227] : memref<2x32x32xf32, #tpu.memory_space<vmem>>, vector<1x32x32xf32>
    %785 = vector.shape_cast %784 : vector<1x32x32xf32> to vector<32x32xf32>
    %786 = arith.truncf %783 : vector<16x32xf32> to vector<16x32xbf16>
    %787 = arith.truncf %785 : vector<32x32xf32> to vector<32x32xbf16>
    %cst_228 = arith.constant dense<0.000000e+00> : vector<16x32xf32>
    %788 = tpu.matmul %786, %787, %cst_228 {dimension_numbers = #tpu.dot_dimension_numbers<[1], [0], [0], [1], [0, 0, 1, 1], [], []>} : vector<16x32xbf16>, vector<32x32xbf16>, vector<16x32xf32> -> vector<16x32xf32>
    %c0_229 = arith.constant 0 : index
    %c0_230 = arith.constant 0 : index
    %c0_231 = arith.constant 0 : index
    %789 = vector.load %arg20[%c0_229, %c0_230, %c0_231] : memref<2x1x32xf32, #tpu.memory_space<vmem>>, vector<1x1x32xf32>
    %790 = vector.shape_cast %789 : vector<1x1x32xf32> to vector<1x32xf32>
    %791 = vector.broadcast %790 : vector<1x32xf32> to vector<16x32xf32>
    %792 = arith.addf %788, %791 : vector<16x32xf32>
    %793 = arith.addf %578, %792 : vector<16x32xf32>
    %c0_232 = arith.constant 0 : index
    %c0_233 = arith.constant 0 : index
    %c0_234 = arith.constant 0 : index
    %794 = vector.load %arg31[%c0_232, %c0_233, %c0_234] : memref<2x1x32xf32, #tpu.memory_space<vmem>>, vector<1x1x32xf32>
    %795 = vector.shape_cast %794 : vector<1x1x32xf32> to vector<1x32xf32>
    %c0_235 = arith.constant 0 : index
    %c0_236 = arith.constant 0 : index
    %c0_237 = arith.constant 0 : index
    %796 = vector.load %arg32[%c0_235, %c0_236, %c0_237] : memref<2x1x32xf32, #tpu.memory_space<vmem>>, vector<1x1x32xf32>
    %797 = vector.shape_cast %796 : vector<1x1x32xf32> to vector<1x32xf32>
    %cst_238 = arith.constant dense<0.000000e+00> : vector<16xf32>
    %798 = vector.multi_reduction <add>, %793, %cst_238 [1] : vector<16x32xf32> to vector<16xf32>
    %799 = vector.shape_cast %798 : vector<16xf32> to vector<16x1xf32>
    %cst_239 = arith.constant 3.200000e+01 : f32
    %800 = vector.broadcast %cst_239 : f32 to vector<16x1xf32>
    %801 = arith.divf %799, %800 : vector<16x1xf32>
    %802 = vector.broadcast %801 : vector<16x1xf32> to vector<16x32xf32>
    %803 = arith.subf %793, %802 : vector<16x32xf32>
    %804 = arith.mulf %803, %803 : vector<16x32xf32>
    %cst_240 = arith.constant dense<0.000000e+00> : vector<16xf32>
    %805 = vector.multi_reduction <add>, %804, %cst_240 [1] : vector<16x32xf32> to vector<16xf32>
    %806 = vector.shape_cast %805 : vector<16xf32> to vector<16x1xf32>
    %cst_241 = arith.constant 3.200000e+01 : f32
    %807 = vector.broadcast %cst_241 : f32 to vector<16x1xf32>
    %808 = arith.divf %806, %807 : vector<16x1xf32>
    %809 = vector.broadcast %801 : vector<16x1xf32> to vector<16x32xf32>
    %810 = arith.subf %793, %809 : vector<16x32xf32>
    %cst_242 = arith.constant 9.99999974E-6 : f32
    %811 = vector.broadcast %cst_242 : f32 to vector<16x1xf32>
    %812 = arith.addf %808, %811 : vector<16x1xf32>
    %813 = math.rsqrt %812 : vector<16x1xf32>
    %814 = vector.broadcast %813 : vector<16x1xf32> to vector<16x32xf32>
    %815 = arith.mulf %810, %814 : vector<16x32xf32>
    %816 = vector.broadcast %795 : vector<1x32xf32> to vector<16x32xf32>
    %817 = arith.mulf %815, %816 : vector<16x32xf32>
    %818 = vector.broadcast %797 : vector<1x32xf32> to vector<16x32xf32>
    %819 = arith.addf %817, %818 : vector<16x32xf32>
    %c0_243 = arith.constant 0 : index
    %c0_244 = arith.constant 0 : index
    %c0_245 = arith.constant 0 : index
    %820 = vector.load %arg21[%c0_243, %c0_244, %c0_245] : memref<2x32x32xf32, #tpu.memory_space<vmem>>, vector<1x32x32xf32>
    %821 = vector.shape_cast %820 : vector<1x32x32xf32> to vector<32x32xf32>
    %822 = arith.truncf %819 : vector<16x32xf32> to vector<16x32xbf16>
    %823 = arith.truncf %821 : vector<32x32xf32> to vector<32x32xbf16>
    %cst_246 = arith.constant dense<0.000000e+00> : vector<16x32xf32>
    %824 = tpu.matmul %822, %823, %cst_246 {dimension_numbers = #tpu.dot_dimension_numbers<[1], [0], [0], [1], [0, 0, 1, 1], [], []>} : vector<16x32xbf16>, vector<32x32xbf16>, vector<16x32xf32> -> vector<16x32xf32>
    %c0_247 = arith.constant 0 : index
    %c0_248 = arith.constant 0 : index
    %c0_249 = arith.constant 0 : index
    %825 = vector.load %arg22[%c0_247, %c0_248, %c0_249] : memref<2x1x32xf32, #tpu.memory_space<vmem>>, vector<1x1x32xf32>
    %826 = vector.shape_cast %825 : vector<1x1x32xf32> to vector<1x32xf32>
    %827 = vector.broadcast %826 : vector<1x32xf32> to vector<16x32xf32>
    %828 = arith.addf %824, %827 : vector<16x32xf32>
    %cst_250 = arith.constant 0.353553385 : f32
    %829 = vector.broadcast %cst_250 : f32 to vector<16x32xf32>
    %830 = arith.mulf %828, %829 : vector<16x32xf32>
    %c0_251 = arith.constant 0 : index
    %c0_252 = arith.constant 0 : index
    %c0_253 = arith.constant 0 : index
    %831 = vector.load %arg23[%c0_251, %c0_252, %c0_253] : memref<2x32x64xf32, #tpu.memory_space<vmem>>, vector<1x32x64xf32>
    %832 = vector.shape_cast %831 : vector<1x32x64xf32> to vector<32x64xf32>
    %833 = arith.truncf %576 : vector<16x32xf32> to vector<16x32xbf16>
    %834 = arith.truncf %832 : vector<32x64xf32> to vector<32x64xbf16>
    %cst_254 = arith.constant dense<0.000000e+00> : vector<16x64xf32>
    %835 = tpu.matmul %833, %834, %cst_254 {dimension_numbers = #tpu.dot_dimension_numbers<[1], [0], [0], [1], [0, 0, 1, 1], [], []>} : vector<16x32xbf16>, vector<32x64xbf16>, vector<16x64xf32> -> vector<16x64xf32>
    %c0_255 = arith.constant 0 : index
    %c0_256 = arith.constant 0 : index
    %c0_257 = arith.constant 0 : index
    %836 = vector.load %arg24[%c0_255, %c0_256, %c0_257] : memref<2x1x64xf32, #tpu.memory_space<vmem>>, vector<1x1x64xf32>
    %837 = vector.shape_cast %836 : vector<1x1x64xf32> to vector<1x64xf32>
    %838 = vector.broadcast %837 : vector<1x64xf32> to vector<16x64xf32>
    %839 = arith.addf %835, %838 : vector<16x64xf32>
    %840 = vector.extract_strided_slice %839 {offsets = [0, 0], sizes = [16, 32], strides = [1, 1]} : vector<16x64xf32> to vector<16x32xf32>
    %841 = vector.extract_strided_slice %839 {offsets = [0, 32], sizes = [16, 32], strides = [1, 1]} : vector<16x64xf32> to vector<16x32xf32>
    %842 = vector.extract_strided_slice %830 {offsets = [0, 0], sizes = [8, 32], strides = [1, 1]} : vector<16x32xf32> to vector<8x32xf32>
    %843 = vector.extract_strided_slice %840 {offsets = [0, 0], sizes = [8, 32], strides = [1, 1]} : vector<16x32xf32> to vector<8x32xf32>
    %844 = vector.extract_strided_slice %841 {offsets = [0, 0], sizes = [8, 32], strides = [1, 1]} : vector<16x32xf32> to vector<8x32xf32>
    %845 = vector.extract_strided_slice %0 {offsets = [0, 0], sizes = [1, 8], strides = [1, 1]} : vector<2x8xf32> to vector<1x8xf32>
    %846 = vector.extract_strided_slice %842 {offsets = [0, 0], sizes = [8, 8], strides = [1, 1]} : vector<8x32xf32> to vector<8x8xf32>
    %847 = vector.extract_strided_slice %843 {offsets = [0, 0], sizes = [8, 8], strides = [1, 1]} : vector<8x32xf32> to vector<8x8xf32>
    %848 = tpu.transpose %847, [1, 0] : vector<8x8xf32> -> vector<8x8xf32>
    %849 = arith.truncf %846 : vector<8x8xf32> to vector<8x8xbf16>
    %850 = arith.truncf %848 : vector<8x8xf32> to vector<8x8xbf16>
    %cst_258 = arith.constant dense<0.000000e+00> : vector<8x8xf32>
    %851 = tpu.matmul %849, %850, %cst_258 {dimension_numbers = #tpu.dot_dimension_numbers<[1], [0], [0], [1], [0, 0, 1, 1], [], []>} : vector<8x8xbf16>, vector<8x8xbf16>, vector<8x8xf32> -> vector<8x8xf32>
    %852 = vector.broadcast %845 : vector<1x8xf32> to vector<8x8xf32>
    %853 = arith.addf %851, %852 : vector<8x8xf32>
    %cst_259 = arith.constant dense<0xFF800000> : vector<8xf32>
    %854 = vector.multi_reduction <maximumf>, %853, %cst_259 [1] : vector<8x8xf32> to vector<8xf32>
    %855 = vector.shape_cast %854 : vector<8xf32> to vector<8x1xf32>
    %856 = vector.broadcast %855 : vector<8x1xf32> to vector<8x8xf32>
    %857 = arith.subf %853, %856 : vector<8x8xf32>
    %858 = math.exp %857 : vector<8x8xf32>
    %cst_260 = arith.constant dense<0.000000e+00> : vector<8xf32>
    %859 = vector.multi_reduction <add>, %858, %cst_260 [1] : vector<8x8xf32> to vector<8xf32>
    %860 = vector.shape_cast %859 : vector<8xf32> to vector<8x1xf32>
    %861 = tpu.reciprocal %860 {approx = true} : vector<8x1xf32> -> vector<8x1xf32>
    %862 = vector.broadcast %861 : vector<8x1xf32> to vector<8x8xf32>
    %863 = arith.mulf %858, %862 : vector<8x8xf32>
    %864 = vector.extract_strided_slice %844 {offsets = [0, 0], sizes = [8, 8], strides = [1, 1]} : vector<8x32xf32> to vector<8x8xf32>
    %865 = arith.truncf %863 : vector<8x8xf32> to vector<8x8xbf16>
    %866 = arith.truncf %864 : vector<8x8xf32> to vector<8x8xbf16>
    %cst_261 = arith.constant dense<0.000000e+00> : vector<8x8xf32>
    %867 = tpu.matmul %865, %866, %cst_261 {dimension_numbers = #tpu.dot_dimension_numbers<[1], [0], [0], [1], [0, 0, 1, 1], [], []>} : vector<8x8xbf16>, vector<8x8xbf16>, vector<8x8xf32> -> vector<8x8xf32>
    %868 = vector.extract_strided_slice %842 {offsets = [0, 8], sizes = [8, 8], strides = [1, 1]} : vector<8x32xf32> to vector<8x8xf32>
    %869 = vector.extract_strided_slice %843 {offsets = [0, 8], sizes = [8, 8], strides = [1, 1]} : vector<8x32xf32> to vector<8x8xf32>
    %870 = tpu.transpose %869, [1, 0] : vector<8x8xf32> -> vector<8x8xf32>
    %871 = arith.truncf %868 : vector<8x8xf32> to vector<8x8xbf16>
    %872 = arith.truncf %870 : vector<8x8xf32> to vector<8x8xbf16>
    %cst_262 = arith.constant dense<0.000000e+00> : vector<8x8xf32>
    %873 = tpu.matmul %871, %872, %cst_262 {dimension_numbers = #tpu.dot_dimension_numbers<[1], [0], [0], [1], [0, 0, 1, 1], [], []>} : vector<8x8xbf16>, vector<8x8xbf16>, vector<8x8xf32> -> vector<8x8xf32>
    %874 = vector.broadcast %845 : vector<1x8xf32> to vector<8x8xf32>
    %875 = arith.addf %873, %874 : vector<8x8xf32>
    %cst_263 = arith.constant dense<0xFF800000> : vector<8xf32>
    %876 = vector.multi_reduction <maximumf>, %875, %cst_263 [1] : vector<8x8xf32> to vector<8xf32>
    %877 = vector.shape_cast %876 : vector<8xf32> to vector<8x1xf32>
    %878 = vector.broadcast %877 : vector<8x1xf32> to vector<8x8xf32>
    %879 = arith.subf %875, %878 : vector<8x8xf32>
    %880 = math.exp %879 : vector<8x8xf32>
    %cst_264 = arith.constant dense<0.000000e+00> : vector<8xf32>
    %881 = vector.multi_reduction <add>, %880, %cst_264 [1] : vector<8x8xf32> to vector<8xf32>
    %882 = vector.shape_cast %881 : vector<8xf32> to vector<8x1xf32>
    %883 = tpu.reciprocal %882 {approx = true} : vector<8x1xf32> -> vector<8x1xf32>
    %884 = vector.broadcast %883 : vector<8x1xf32> to vector<8x8xf32>
    %885 = arith.mulf %880, %884 : vector<8x8xf32>
    %886 = vector.extract_strided_slice %844 {offsets = [0, 8], sizes = [8, 8], strides = [1, 1]} : vector<8x32xf32> to vector<8x8xf32>
    %887 = arith.truncf %885 : vector<8x8xf32> to vector<8x8xbf16>
    %888 = arith.truncf %886 : vector<8x8xf32> to vector<8x8xbf16>
    %cst_265 = arith.constant dense<0.000000e+00> : vector<8x8xf32>
    %889 = tpu.matmul %887, %888, %cst_265 {dimension_numbers = #tpu.dot_dimension_numbers<[1], [0], [0], [1], [0, 0, 1, 1], [], []>} : vector<8x8xbf16>, vector<8x8xbf16>, vector<8x8xf32> -> vector<8x8xf32>
    %890 = vector.extract_strided_slice %842 {offsets = [0, 16], sizes = [8, 8], strides = [1, 1]} : vector<8x32xf32> to vector<8x8xf32>
    %891 = vector.extract_strided_slice %843 {offsets = [0, 16], sizes = [8, 8], strides = [1, 1]} : vector<8x32xf32> to vector<8x8xf32>
    %892 = tpu.transpose %891, [1, 0] : vector<8x8xf32> -> vector<8x8xf32>
    %893 = arith.truncf %890 : vector<8x8xf32> to vector<8x8xbf16>
    %894 = arith.truncf %892 : vector<8x8xf32> to vector<8x8xbf16>
    %cst_266 = arith.constant dense<0.000000e+00> : vector<8x8xf32>
    %895 = tpu.matmul %893, %894, %cst_266 {dimension_numbers = #tpu.dot_dimension_numbers<[1], [0], [0], [1], [0, 0, 1, 1], [], []>} : vector<8x8xbf16>, vector<8x8xbf16>, vector<8x8xf32> -> vector<8x8xf32>
    %896 = vector.broadcast %845 : vector<1x8xf32> to vector<8x8xf32>
    %897 = arith.addf %895, %896 : vector<8x8xf32>
    %cst_267 = arith.constant dense<0xFF800000> : vector<8xf32>
    %898 = vector.multi_reduction <maximumf>, %897, %cst_267 [1] : vector<8x8xf32> to vector<8xf32>
    %899 = vector.shape_cast %898 : vector<8xf32> to vector<8x1xf32>
    %900 = vector.broadcast %899 : vector<8x1xf32> to vector<8x8xf32>
    %901 = arith.subf %897, %900 : vector<8x8xf32>
    %902 = math.exp %901 : vector<8x8xf32>
    %cst_268 = arith.constant dense<0.000000e+00> : vector<8xf32>
    %903 = vector.multi_reduction <add>, %902, %cst_268 [1] : vector<8x8xf32> to vector<8xf32>
    %904 = vector.shape_cast %903 : vector<8xf32> to vector<8x1xf32>
    %905 = tpu.reciprocal %904 {approx = true} : vector<8x1xf32> -> vector<8x1xf32>
    %906 = vector.broadcast %905 : vector<8x1xf32> to vector<8x8xf32>
    %907 = arith.mulf %902, %906 : vector<8x8xf32>
    %908 = vector.extract_strided_slice %844 {offsets = [0, 16], sizes = [8, 8], strides = [1, 1]} : vector<8x32xf32> to vector<8x8xf32>
    %909 = arith.truncf %907 : vector<8x8xf32> to vector<8x8xbf16>
    %910 = arith.truncf %908 : vector<8x8xf32> to vector<8x8xbf16>
    %cst_269 = arith.constant dense<0.000000e+00> : vector<8x8xf32>
    %911 = tpu.matmul %909, %910, %cst_269 {dimension_numbers = #tpu.dot_dimension_numbers<[1], [0], [0], [1], [0, 0, 1, 1], [], []>} : vector<8x8xbf16>, vector<8x8xbf16>, vector<8x8xf32> -> vector<8x8xf32>
    %912 = vector.extract_strided_slice %842 {offsets = [0, 24], sizes = [8, 8], strides = [1, 1]} : vector<8x32xf32> to vector<8x8xf32>
    %913 = vector.extract_strided_slice %843 {offsets = [0, 24], sizes = [8, 8], strides = [1, 1]} : vector<8x32xf32> to vector<8x8xf32>
    %914 = tpu.transpose %913, [1, 0] : vector<8x8xf32> -> vector<8x8xf32>
    %915 = arith.truncf %912 : vector<8x8xf32> to vector<8x8xbf16>
    %916 = arith.truncf %914 : vector<8x8xf32> to vector<8x8xbf16>
    %cst_270 = arith.constant dense<0.000000e+00> : vector<8x8xf32>
    %917 = tpu.matmul %915, %916, %cst_270 {dimension_numbers = #tpu.dot_dimension_numbers<[1], [0], [0], [1], [0, 0, 1, 1], [], []>} : vector<8x8xbf16>, vector<8x8xbf16>, vector<8x8xf32> -> vector<8x8xf32>
    %918 = vector.broadcast %845 : vector<1x8xf32> to vector<8x8xf32>
    %919 = arith.addf %917, %918 : vector<8x8xf32>
    %cst_271 = arith.constant dense<0xFF800000> : vector<8xf32>
    %920 = vector.multi_reduction <maximumf>, %919, %cst_271 [1] : vector<8x8xf32> to vector<8xf32>
    %921 = vector.shape_cast %920 : vector<8xf32> to vector<8x1xf32>
    %922 = vector.broadcast %921 : vector<8x1xf32> to vector<8x8xf32>
    %923 = arith.subf %919, %922 : vector<8x8xf32>
    %924 = math.exp %923 : vector<8x8xf32>
    %cst_272 = arith.constant dense<0.000000e+00> : vector<8xf32>
    %925 = vector.multi_reduction <add>, %924, %cst_272 [1] : vector<8x8xf32> to vector<8xf32>
    %926 = vector.shape_cast %925 : vector<8xf32> to vector<8x1xf32>
    %927 = tpu.reciprocal %926 {approx = true} : vector<8x1xf32> -> vector<8x1xf32>
    %928 = vector.broadcast %927 : vector<8x1xf32> to vector<8x8xf32>
    %929 = arith.mulf %924, %928 : vector<8x8xf32>
    %930 = vector.extract_strided_slice %844 {offsets = [0, 24], sizes = [8, 8], strides = [1, 1]} : vector<8x32xf32> to vector<8x8xf32>
    %931 = arith.truncf %929 : vector<8x8xf32> to vector<8x8xbf16>
    %932 = arith.truncf %930 : vector<8x8xf32> to vector<8x8xbf16>
    %cst_273 = arith.constant dense<0.000000e+00> : vector<8x8xf32>
    %933 = tpu.matmul %931, %932, %cst_273 {dimension_numbers = #tpu.dot_dimension_numbers<[1], [0], [0], [1], [0, 0, 1, 1], [], []>} : vector<8x8xbf16>, vector<8x8xbf16>, vector<8x8xf32> -> vector<8x8xf32>
    %934 = tpu.concatenate %867, %889, %911, %933 in 1 : vector<8x8xf32>, vector<8x8xf32>, vector<8x8xf32>, vector<8x8xf32> -> vector<8x32xf32>
    %935 = tpu.concatenate %863, %885, %907, %929 in 1 : vector<8x8xf32>, vector<8x8xf32>, vector<8x8xf32>, vector<8x8xf32> -> vector<8x32xf32>
    %c0_274 = arith.constant 0 : index
    %c0_275 = arith.constant 0 : index
    %c0_276 = arith.constant 0 : index
    %c0_277 = arith.constant 0 : index
    %936 = vector.load %arg42[%c0_274, %c0_275, %c0_276, %c0_277] : memref<2x2x8x32xf32, #tpu.memory_space<vmem>>, vector<1x1x8x32xf32>
    %937 = vector.shape_cast %936 : vector<1x1x8x32xf32> to vector<8x32xf32>
    %938 = vector.shape_cast %935 : vector<8x32xf32> to vector<1x1x8x32xf32>
    tpu.vector_store %arg42[%c0_274, %c0_275, %c0_276, %c0_277], %938 {strides = array<i32>} : memref<2x2x8x32xf32, #tpu.memory_space<vmem>>, vector<1x1x8x32xf32>,
    %939 = vector.extract_strided_slice %830 {offsets = [8, 0], sizes = [8, 32], strides = [1, 1]} : vector<16x32xf32> to vector<8x32xf32>
    %940 = vector.extract_strided_slice %840 {offsets = [8, 0], sizes = [8, 32], strides = [1, 1]} : vector<16x32xf32> to vector<8x32xf32>
    %941 = vector.extract_strided_slice %841 {offsets = [8, 0], sizes = [8, 32], strides = [1, 1]} : vector<16x32xf32> to vector<8x32xf32>
    %942 = vector.extract_strided_slice %0 {offsets = [1, 0], sizes = [1, 8], strides = [1, 1]} : vector<2x8xf32> to vector<1x8xf32>
    %943 = vector.extract_strided_slice %939 {offsets = [0, 0], sizes = [8, 8], strides = [1, 1]} : vector<8x32xf32> to vector<8x8xf32>
    %944 = vector.extract_strided_slice %940 {offsets = [0, 0], sizes = [8, 8], strides = [1, 1]} : vector<8x32xf32> to vector<8x8xf32>
    %945 = tpu.transpose %944, [1, 0] : vector<8x8xf32> -> vector<8x8xf32>
    %946 = arith.truncf %943 : vector<8x8xf32> to vector<8x8xbf16>
    %947 = arith.truncf %945 : vector<8x8xf32> to vector<8x8xbf16>
    %cst_278 = arith.constant dense<0.000000e+00> : vector<8x8xf32>
    %948 = tpu.matmul %946, %947, %cst_278 {dimension_numbers = #tpu.dot_dimension_numbers<[1], [0], [0], [1], [0, 0, 1, 1], [], []>} : vector<8x8xbf16>, vector<8x8xbf16>, vector<8x8xf32> -> vector<8x8xf32>
    %949 = vector.broadcast %942 : vector<1x8xf32> to vector<8x8xf32>
    %950 = arith.addf %948, %949 : vector<8x8xf32>
    %cst_279 = arith.constant dense<0xFF800000> : vector<8xf32>
    %951 = vector.multi_reduction <maximumf>, %950, %cst_279 [1] : vector<8x8xf32> to vector<8xf32>
    %952 = vector.shape_cast %951 : vector<8xf32> to vector<8x1xf32>
    %953 = vector.broadcast %952 : vector<8x1xf32> to vector<8x8xf32>
    %954 = arith.subf %950, %953 : vector<8x8xf32>
    %955 = math.exp %954 : vector<8x8xf32>
    %cst_280 = arith.constant dense<0.000000e+00> : vector<8xf32>
    %956 = vector.multi_reduction <add>, %955, %cst_280 [1] : vector<8x8xf32> to vector<8xf32>
    %957 = vector.shape_cast %956 : vector<8xf32> to vector<8x1xf32>
    %958 = tpu.reciprocal %957 {approx = true} : vector<8x1xf32> -> vector<8x1xf32>
    %959 = vector.broadcast %958 : vector<8x1xf32> to vector<8x8xf32>
    %960 = arith.mulf %955, %959 : vector<8x8xf32>
    %961 = vector.extract_strided_slice %941 {offsets = [0, 0], sizes = [8, 8], strides = [1, 1]} : vector<8x32xf32> to vector<8x8xf32>
    %962 = arith.truncf %960 : vector<8x8xf32> to vector<8x8xbf16>
    %963 = arith.truncf %961 : vector<8x8xf32> to vector<8x8xbf16>
    %cst_281 = arith.constant dense<0.000000e+00> : vector<8x8xf32>
    %964 = tpu.matmul %962, %963, %cst_281 {dimension_numbers = #tpu.dot_dimension_numbers<[1], [0], [0], [1], [0, 0, 1, 1], [], []>} : vector<8x8xbf16>, vector<8x8xbf16>, vector<8x8xf32> -> vector<8x8xf32>
    %965 = vector.extract_strided_slice %939 {offsets = [0, 8], sizes = [8, 8], strides = [1, 1]} : vector<8x32xf32> to vector<8x8xf32>
    %966 = vector.extract_strided_slice %940 {offsets = [0, 8], sizes = [8, 8], strides = [1, 1]} : vector<8x32xf32> to vector<8x8xf32>
    %967 = tpu.transpose %966, [1, 0] : vector<8x8xf32> -> vector<8x8xf32>
    %968 = arith.truncf %965 : vector<8x8xf32> to vector<8x8xbf16>
    %969 = arith.truncf %967 : vector<8x8xf32> to vector<8x8xbf16>
    %cst_282 = arith.constant dense<0.000000e+00> : vector<8x8xf32>
    %970 = tpu.matmul %968, %969, %cst_282 {dimension_numbers = #tpu.dot_dimension_numbers<[1], [0], [0], [1], [0, 0, 1, 1], [], []>} : vector<8x8xbf16>, vector<8x8xbf16>, vector<8x8xf32> -> vector<8x8xf32>
    %971 = vector.broadcast %942 : vector<1x8xf32> to vector<8x8xf32>
    %972 = arith.addf %970, %971 : vector<8x8xf32>
    %cst_283 = arith.constant dense<0xFF800000> : vector<8xf32>
    %973 = vector.multi_reduction <maximumf>, %972, %cst_283 [1] : vector<8x8xf32> to vector<8xf32>
    %974 = vector.shape_cast %973 : vector<8xf32> to vector<8x1xf32>
    %975 = vector.broadcast %974 : vector<8x1xf32> to vector<8x8xf32>
    %976 = arith.subf %972, %975 : vector<8x8xf32>
    %977 = math.exp %976 : vector<8x8xf32>
    %cst_284 = arith.constant dense<0.000000e+00> : vector<8xf32>
    %978 = vector.multi_reduction <add>, %977, %cst_284 [1] : vector<8x8xf32> to vector<8xf32>
    %979 = vector.shape_cast %978 : vector<8xf32> to vector<8x1xf32>
    %980 = tpu.reciprocal %979 {approx = true} : vector<8x1xf32> -> vector<8x1xf32>
    %981 = vector.broadcast %980 : vector<8x1xf32> to vector<8x8xf32>
    %982 = arith.mulf %977, %981 : vector<8x8xf32>
    %983 = vector.extract_strided_slice %941 {offsets = [0, 8], sizes = [8, 8], strides = [1, 1]} : vector<8x32xf32> to vector<8x8xf32>
    %984 = arith.truncf %982 : vector<8x8xf32> to vector<8x8xbf16>
    %985 = arith.truncf %983 : vector<8x8xf32> to vector<8x8xbf16>
    %cst_285 = arith.constant dense<0.000000e+00> : vector<8x8xf32>
    %986 = tpu.matmul %984, %985, %cst_285 {dimension_numbers = #tpu.dot_dimension_numbers<[1], [0], [0], [1], [0, 0, 1, 1], [], []>} : vector<8x8xbf16>, vector<8x8xbf16>, vector<8x8xf32> -> vector<8x8xf32>
    %987 = vector.extract_strided_slice %939 {offsets = [0, 16], sizes = [8, 8], strides = [1, 1]} : vector<8x32xf32> to vector<8x8xf32>
    %988 = vector.extract_strided_slice %940 {offsets = [0, 16], sizes = [8, 8], strides = [1, 1]} : vector<8x32xf32> to vector<8x8xf32>
    %989 = tpu.transpose %988, [1, 0] : vector<8x8xf32> -> vector<8x8xf32>
    %990 = arith.truncf %987 : vector<8x8xf32> to vector<8x8xbf16>
    %991 = arith.truncf %989 : vector<8x8xf32> to vector<8x8xbf16>
    %cst_286 = arith.constant dense<0.000000e+00> : vector<8x8xf32>
    %992 = tpu.matmul %990, %991, %cst_286 {dimension_numbers = #tpu.dot_dimension_numbers<[1], [0], [0], [1], [0, 0, 1, 1], [], []>} : vector<8x8xbf16>, vector<8x8xbf16>, vector<8x8xf32> -> vector<8x8xf32>
    %993 = vector.broadcast %942 : vector<1x8xf32> to vector<8x8xf32>
    %994 = arith.addf %992, %993 : vector<8x8xf32>
    %cst_287 = arith.constant dense<0xFF800000> : vector<8xf32>
    %995 = vector.multi_reduction <maximumf>, %994, %cst_287 [1] : vector<8x8xf32> to vector<8xf32>
    %996 = vector.shape_cast %995 : vector<8xf32> to vector<8x1xf32>
    %997 = vector.broadcast %996 : vector<8x1xf32> to vector<8x8xf32>
    %998 = arith.subf %994, %997 : vector<8x8xf32>
    %999 = math.exp %998 : vector<8x8xf32>
    %cst_288 = arith.constant dense<0.000000e+00> : vector<8xf32>
    %1000 = vector.multi_reduction <add>, %999, %cst_288 [1] : vector<8x8xf32> to vector<8xf32>
    %1001 = vector.shape_cast %1000 : vector<8xf32> to vector<8x1xf32>
    %1002 = tpu.reciprocal %1001 {approx = true} : vector<8x1xf32> -> vector<8x1xf32>
    %1003 = vector.broadcast %1002 : vector<8x1xf32> to vector<8x8xf32>
    %1004 = arith.mulf %999, %1003 : vector<8x8xf32>
    %1005 = vector.extract_strided_slice %941 {offsets = [0, 16], sizes = [8, 8], strides = [1, 1]} : vector<8x32xf32> to vector<8x8xf32>
    %1006 = arith.truncf %1004 : vector<8x8xf32> to vector<8x8xbf16>
    %1007 = arith.truncf %1005 : vector<8x8xf32> to vector<8x8xbf16>
    %cst_289 = arith.constant dense<0.000000e+00> : vector<8x8xf32>
    %1008 = tpu.matmul %1006, %1007, %cst_289 {dimension_numbers = #tpu.dot_dimension_numbers<[1], [0], [0], [1], [0, 0, 1, 1], [], []>} : vector<8x8xbf16>, vector<8x8xbf16>, vector<8x8xf32> -> vector<8x8xf32>
    %1009 = vector.extract_strided_slice %939 {offsets = [0, 24], sizes = [8, 8], strides = [1, 1]} : vector<8x32xf32> to vector<8x8xf32>
    %1010 = vector.extract_strided_slice %940 {offsets = [0, 24], sizes = [8, 8], strides = [1, 1]} : vector<8x32xf32> to vector<8x8xf32>
    %1011 = tpu.transpose %1010, [1, 0] : vector<8x8xf32> -> vector<8x8xf32>
    %1012 = arith.truncf %1009 : vector<8x8xf32> to vector<8x8xbf16>
    %1013 = arith.truncf %1011 : vector<8x8xf32> to vector<8x8xbf16>
    %cst_290 = arith.constant dense<0.000000e+00> : vector<8x8xf32>
    %1014 = tpu.matmul %1012, %1013, %cst_290 {dimension_numbers = #tpu.dot_dimension_numbers<[1], [0], [0], [1], [0, 0, 1, 1], [], []>} : vector<8x8xbf16>, vector<8x8xbf16>, vector<8x8xf32> -> vector<8x8xf32>
    %1015 = vector.broadcast %942 : vector<1x8xf32> to vector<8x8xf32>
    %1016 = arith.addf %1014, %1015 : vector<8x8xf32>
    %cst_291 = arith.constant dense<0xFF800000> : vector<8xf32>
    %1017 = vector.multi_reduction <maximumf>, %1016, %cst_291 [1] : vector<8x8xf32> to vector<8xf32>
    %1018 = vector.shape_cast %1017 : vector<8xf32> to vector<8x1xf32>
    %1019 = vector.broadcast %1018 : vector<8x1xf32> to vector<8x8xf32>
    %1020 = arith.subf %1016, %1019 : vector<8x8xf32>
    %1021 = math.exp %1020 : vector<8x8xf32>
    %cst_292 = arith.constant dense<0.000000e+00> : vector<8xf32>
    %1022 = vector.multi_reduction <add>, %1021, %cst_292 [1] : vector<8x8xf32> to vector<8xf32>
    %1023 = vector.shape_cast %1022 : vector<8xf32> to vector<8x1xf32>
    %1024 = tpu.reciprocal %1023 {approx = true} : vector<8x1xf32> -> vector<8x1xf32>
    %1025 = vector.broadcast %1024 : vector<8x1xf32> to vector<8x8xf32>
    %1026 = arith.mulf %1021, %1025 : vector<8x8xf32>
    %1027 = vector.extract_strided_slice %941 {offsets = [0, 24], sizes = [8, 8], strides = [1, 1]} : vector<8x32xf32> to vector<8x8xf32>
    %1028 = arith.truncf %1026 : vector<8x8xf32> to vector<8x8xbf16>
    %1029 = arith.truncf %1027 : vector<8x8xf32> to vector<8x8xbf16>
    %cst_293 = arith.constant dense<0.000000e+00> : vector<8x8xf32>
    %1030 = tpu.matmul %1028, %1029, %cst_293 {dimension_numbers = #tpu.dot_dimension_numbers<[1], [0], [0], [1], [0, 0, 1, 1], [], []>} : vector<8x8xbf16>, vector<8x8xbf16>, vector<8x8xf32> -> vector<8x8xf32>
    %1031 = tpu.concatenate %964, %986, %1008, %1030 in 1 : vector<8x8xf32>, vector<8x8xf32>, vector<8x8xf32>, vector<8x8xf32> -> vector<8x32xf32>
    %1032 = tpu.concatenate %960, %982, %1004, %1026 in 1 : vector<8x8xf32>, vector<8x8xf32>, vector<8x8xf32>, vector<8x8xf32> -> vector<8x32xf32>
    %c0_294 = arith.constant 0 : index
    %c1_295 = arith.constant 1 : index
    %c0_296 = arith.constant 0 : index
    %c0_297 = arith.constant 0 : index
    %1033 = vector.load %arg42[%c0_294, %c1_295, %c0_296, %c0_297] : memref<2x2x8x32xf32, #tpu.memory_space<vmem>>, vector<1x1x8x32xf32>
    %1034 = vector.shape_cast %1033 : vector<1x1x8x32xf32> to vector<8x32xf32>
    %1035 = vector.shape_cast %1032 : vector<8x32xf32> to vector<1x1x8x32xf32>
    tpu.vector_store %arg42[%c0_294, %c1_295, %c0_296, %c0_297], %1035 {strides = array<i32>} : memref<2x2x8x32xf32, #tpu.memory_space<vmem>>, vector<1x1x8x32xf32>,
    %1036 = tpu.concatenate %934, %1031 in 0 : vector<8x32xf32>, vector<8x32xf32> -> vector<16x32xf32>
    %c0_298 = arith.constant 0 : index
    %c0_299 = arith.constant 0 : index
    %c0_300 = arith.constant 0 : index
    %1037 = vector.load %arg25[%c0_298, %c0_299, %c0_300] : memref<2x32x32xf32, #tpu.memory_space<vmem>>, vector<1x32x32xf32>
    %1038 = vector.shape_cast %1037 : vector<1x32x32xf32> to vector<32x32xf32>
    %1039 = arith.truncf %1036 : vector<16x32xf32> to vector<16x32xbf16>
    %1040 = arith.truncf %1038 : vector<32x32xf32> to vector<32x32xbf16>
    %cst_301 = arith.constant dense<0.000000e+00> : vector<16x32xf32>
    %1041 = tpu.matmul %1039, %1040, %cst_301 {dimension_numbers = #tpu.dot_dimension_numbers<[1], [0], [0], [1], [0, 0, 1, 1], [], []>} : vector<16x32xbf16>, vector<32x32xbf16>, vector<16x32xf32> -> vector<16x32xf32>
    %c0_302 = arith.constant 0 : index
    %c0_303 = arith.constant 0 : index
    %c0_304 = arith.constant 0 : index
    %1042 = vector.load %arg26[%c0_302, %c0_303, %c0_304] : memref<2x1x32xf32, #tpu.memory_space<vmem>>, vector<1x1x32xf32>
    %1043 = vector.shape_cast %1042 : vector<1x1x32xf32> to vector<1x32xf32>
    %1044 = vector.broadcast %1043 : vector<1x32xf32> to vector<16x32xf32>
    %1045 = arith.addf %1041, %1044 : vector<16x32xf32>
    %1046 = arith.addf %819, %1045 : vector<16x32xf32>
    %c0_305 = arith.constant 0 : index
    %c0_306 = arith.constant 0 : index
    %c0_307 = arith.constant 0 : index
    %1047 = vector.load %arg33[%c0_305, %c0_306, %c0_307] : memref<2x1x32xf32, #tpu.memory_space<vmem>>, vector<1x1x32xf32>
    %1048 = vector.shape_cast %1047 : vector<1x1x32xf32> to vector<1x32xf32>
    %c0_308 = arith.constant 0 : index
    %c0_309 = arith.constant 0 : index
    %c0_310 = arith.constant 0 : index
    %1049 = vector.load %arg34[%c0_308, %c0_309, %c0_310] : memref<2x1x32xf32, #tpu.memory_space<vmem>>, vector<1x1x32xf32>
    %1050 = vector.shape_cast %1049 : vector<1x1x32xf32> to vector<1x32xf32>
    %cst_311 = arith.constant dense<0.000000e+00> : vector<16xf32>
    %1051 = vector.multi_reduction <add>, %1046, %cst_311 [1] : vector<16x32xf32> to vector<16xf32>
    %1052 = vector.shape_cast %1051 : vector<16xf32> to vector<16x1xf32>
    %cst_312 = arith.constant 3.200000e+01 : f32
    %1053 = vector.broadcast %cst_312 : f32 to vector<16x1xf32>
    %1054 = arith.divf %1052, %1053 : vector<16x1xf32>
    %1055 = vector.broadcast %1054 : vector<16x1xf32> to vector<16x32xf32>
    %1056 = arith.subf %1046, %1055 : vector<16x32xf32>
    %1057 = arith.mulf %1056, %1056 : vector<16x32xf32>
    %cst_313 = arith.constant dense<0.000000e+00> : vector<16xf32>
    %1058 = vector.multi_reduction <add>, %1057, %cst_313 [1] : vector<16x32xf32> to vector<16xf32>
    %1059 = vector.shape_cast %1058 : vector<16xf32> to vector<16x1xf32>
    %cst_314 = arith.constant 3.200000e+01 : f32
    %1060 = vector.broadcast %cst_314 : f32 to vector<16x1xf32>
    %1061 = arith.divf %1059, %1060 : vector<16x1xf32>
    %1062 = vector.broadcast %1054 : vector<16x1xf32> to vector<16x32xf32>
    %1063 = arith.subf %1046, %1062 : vector<16x32xf32>
    %cst_315 = arith.constant 9.99999974E-6 : f32
    %1064 = vector.broadcast %cst_315 : f32 to vector<16x1xf32>
    %1065 = arith.addf %1061, %1064 : vector<16x1xf32>
    %1066 = math.rsqrt %1065 : vector<16x1xf32>
    %1067 = vector.broadcast %1066 : vector<16x1xf32> to vector<16x32xf32>
    %1068 = arith.mulf %1063, %1067 : vector<16x32xf32>
    %1069 = vector.broadcast %1048 : vector<1x32xf32> to vector<16x32xf32>
    %1070 = arith.mulf %1068, %1069 : vector<16x32xf32>
    %1071 = vector.broadcast %1050 : vector<1x32xf32> to vector<16x32xf32>
    %1072 = arith.addf %1070, %1071 : vector<16x32xf32>
    %c0_316 = arith.constant 0 : index
    %c0_317 = arith.constant 0 : index
    %c0_318 = arith.constant 0 : index
    %1073 = vector.load %arg27[%c0_316, %c0_317, %c0_318] : memref<2x32x64xf32, #tpu.memory_space<vmem>>, vector<1x32x64xf32>
    %1074 = vector.shape_cast %1073 : vector<1x32x64xf32> to vector<32x64xf32>
    %1075 = arith.truncf %1072 : vector<16x32xf32> to vector<16x32xbf16>
    %1076 = arith.truncf %1074 : vector<32x64xf32> to vector<32x64xbf16>
    %cst_319 = arith.constant dense<0.000000e+00> : vector<16x64xf32>
    %1077 = tpu.matmul %1075, %1076, %cst_319 {dimension_numbers = #tpu.dot_dimension_numbers<[1], [0], [0], [1], [0, 0, 1, 1], [], []>} : vector<16x32xbf16>, vector<32x64xbf16>, vector<16x64xf32> -> vector<16x64xf32>
    %c0_320 = arith.constant 0 : index
    %c0_321 = arith.constant 0 : index
    %c0_322 = arith.constant 0 : index
    %1078 = vector.load %arg28[%c0_320, %c0_321, %c0_322] : memref<2x1x64xf32, #tpu.memory_space<vmem>>, vector<1x1x64xf32>
    %1079 = vector.shape_cast %1078 : vector<1x1x64xf32> to vector<1x64xf32>
    %1080 = vector.broadcast %1079 : vector<1x64xf32> to vector<16x64xf32>
    %1081 = arith.addf %1077, %1080 : vector<16x64xf32>
    %cst_323 = arith.constant 0.000000e+00 : f32
    %1082 = vector.broadcast %cst_323 : f32 to vector<16x64xf32>
    %1083 = arith.maximumf %1081, %1082 : vector<16x64xf32>
    %c0_324 = arith.constant 0 : index
    %c0_325 = arith.constant 0 : index
    %c0_326 = arith.constant 0 : index
    %1084 = vector.load %arg29[%c0_324, %c0_325, %c0_326] : memref<2x64x32xf32, #tpu.memory_space<vmem>>, vector<1x64x32xf32>
    %1085 = vector.shape_cast %1084 : vector<1x64x32xf32> to vector<64x32xf32>
    %1086 = arith.truncf %1083 : vector<16x64xf32> to vector<16x64xbf16>
    %1087 = arith.truncf %1085 : vector<64x32xf32> to vector<64x32xbf16>
    %cst_327 = arith.constant dense<0.000000e+00> : vector<16x32xf32>
    %1088 = tpu.matmul %1086, %1087, %cst_327 {dimension_numbers = #tpu.dot_dimension_numbers<[1], [0], [0], [1], [0, 0, 1, 1], [], []>} : vector<16x64xbf16>, vector<64x32xbf16>, vector<16x32xf32> -> vector<16x32xf32>
    %c0_328 = arith.constant 0 : index
    %c0_329 = arith.constant 0 : index
    %c0_330 = arith.constant 0 : index
    %1089 = vector.load %arg30[%c0_328, %c0_329, %c0_330] : memref<2x1x32xf32, #tpu.memory_space<vmem>>, vector<1x1x32xf32>
    %1090 = vector.shape_cast %1089 : vector<1x1x32xf32> to vector<1x32xf32>
    %1091 = vector.broadcast %1090 : vector<1x32xf32> to vector<16x32xf32>
    %1092 = arith.addf %1088, %1091 : vector<16x32xf32>
    %1093 = arith.addf %1072, %1092 : vector<16x32xf32>
    %c0_331 = arith.constant 0 : index
    %c0_332 = arith.constant 0 : index
    %c0_333 = arith.constant 0 : index
    %1094 = vector.load %arg35[%c0_331, %c0_332, %c0_333] : memref<2x1x32xf32, #tpu.memory_space<vmem>>, vector<1x1x32xf32>
    %1095 = vector.shape_cast %1094 : vector<1x1x32xf32> to vector<1x32xf32>
    %c0_334 = arith.constant 0 : index
    %c0_335 = arith.constant 0 : index
    %c0_336 = arith.constant 0 : index
    %1096 = vector.load %arg36[%c0_334, %c0_335, %c0_336] : memref<2x1x32xf32, #tpu.memory_space<vmem>>, vector<1x1x32xf32>
    %1097 = vector.shape_cast %1096 : vector<1x1x32xf32> to vector<1x32xf32>
    %cst_337 = arith.constant dense<0.000000e+00> : vector<16xf32>
    %1098 = vector.multi_reduction <add>, %1093, %cst_337 [1] : vector<16x32xf32> to vector<16xf32>
    %1099 = vector.shape_cast %1098 : vector<16xf32> to vector<16x1xf32>
    %cst_338 = arith.constant 3.200000e+01 : f32
    %1100 = vector.broadcast %cst_338 : f32 to vector<16x1xf32>
    %1101 = arith.divf %1099, %1100 : vector<16x1xf32>
    %1102 = vector.broadcast %1101 : vector<16x1xf32> to vector<16x32xf32>
    %1103 = arith.subf %1093, %1102 : vector<16x32xf32>
    %1104 = arith.mulf %1103, %1103 : vector<16x32xf32>
    %cst_339 = arith.constant dense<0.000000e+00> : vector<16xf32>
    %1105 = vector.multi_reduction <add>, %1104, %cst_339 [1] : vector<16x32xf32> to vector<16xf32>
    %1106 = vector.shape_cast %1105 : vector<16xf32> to vector<16x1xf32>
    %cst_340 = arith.constant 3.200000e+01 : f32
    %1107 = vector.broadcast %cst_340 : f32 to vector<16x1xf32>
    %1108 = arith.divf %1106, %1107 : vector<16x1xf32>
    %1109 = vector.broadcast %1101 : vector<16x1xf32> to vector<16x32xf32>
    %1110 = arith.subf %1093, %1109 : vector<16x32xf32>
    %cst_341 = arith.constant 9.99999974E-6 : f32
    %1111 = vector.broadcast %cst_341 : f32 to vector<16x1xf32>
    %1112 = arith.addf %1108, %1111 : vector<16x1xf32>
    %1113 = math.rsqrt %1112 : vector<16x1xf32>
    %1114 = vector.broadcast %1113 : vector<16x1xf32> to vector<16x32xf32>
    %1115 = arith.mulf %1110, %1114 : vector<16x32xf32>
    %1116 = vector.broadcast %1095 : vector<1x32xf32> to vector<16x32xf32>
    %1117 = arith.mulf %1115, %1116 : vector<16x32xf32>
    %1118 = vector.broadcast %1097 : vector<1x32xf32> to vector<16x32xf32>
    %1119 = arith.addf %1117, %1118 : vector<16x32xf32>
    %c1_342 = arith.constant 1 : index
    %c0_343 = arith.constant 0 : index
    %c0_344 = arith.constant 0 : index
    %1120 = vector.load %arg17[%c1_342, %c0_343, %c0_344] : memref<2x32x96xf32, #tpu.memory_space<vmem>>, vector<1x32x96xf32>
    %1121 = vector.shape_cast %1120 : vector<1x32x96xf32> to vector<32x96xf32>
    %1122 = arith.truncf %1119 : vector<16x32xf32> to vector<16x32xbf16>
    %1123 = arith.truncf %1121 : vector<32x96xf32> to vector<32x96xbf16>
    %cst_345 = arith.constant dense<0.000000e+00> : vector<16x96xf32>
    %1124 = tpu.matmul %1122, %1123, %cst_345 {dimension_numbers = #tpu.dot_dimension_numbers<[1], [0], [0], [1], [0, 0, 1, 1], [], []>} : vector<16x32xbf16>, vector<32x96xbf16>, vector<16x96xf32> -> vector<16x96xf32>
    %c1_346 = arith.constant 1 : index
    %c0_347 = arith.constant 0 : index
    %c0_348 = arith.constant 0 : index
    %1125 = vector.load %arg18[%c1_346, %c0_347, %c0_348] : memref<2x1x96xf32, #tpu.memory_space<vmem>>, vector<1x1x96xf32>
    %1126 = vector.shape_cast %1125 : vector<1x1x96xf32> to vector<1x96xf32>
    %1127 = vector.broadcast %1126 : vector<1x96xf32> to vector<16x96xf32>
    %1128 = arith.addf %1124, %1127 : vector<16x96xf32>
    %1129 = vector.extract_strided_slice %1128 {offsets = [0, 0], sizes = [16, 32], strides = [1, 1]} : vector<16x96xf32> to vector<16x32xf32>
    %cst_349 = arith.constant 0.353553385 : f32
    %1130 = vector.broadcast %cst_349 : f32 to vector<16x32xf32>
    %1131 = arith.mulf %1129, %1130 : vector<16x32xf32>
    %1132 = vector.extract_strided_slice %1128 {offsets = [0, 32], sizes = [16, 32], strides = [1, 1]} : vector<16x96xf32> to vector<16x32xf32>
    %1133 = vector.extract_strided_slice %1128 {offsets = [0, 64], sizes = [16, 32], strides = [1, 1]} : vector<16x96xf32> to vector<16x32xf32>
    %1134 = vector.extract_strided_slice %1 {offsets = [0, 0], sizes = [1, 8], strides = [1, 1]} : vector<2x8xf32> to vector<1x8xf32>
    %1135 = vector.broadcast %1134 : vector<1x8xf32> to vector<8x8xf32>
    %1136 = arith.addf %7, %1135 : vector<8x8xf32>
    %1137 = vector.extract_strided_slice %1131 {offsets = [0, 0], sizes = [8, 32], strides = [1, 1]} : vector<16x32xf32> to vector<8x32xf32>
    %1138 = vector.extract_strided_slice %1132 {offsets = [0, 0], sizes = [8, 32], strides = [1, 1]} : vector<16x32xf32> to vector<8x32xf32>
    %1139 = vector.extract_strided_slice %1133 {offsets = [0, 0], sizes = [8, 32], strides = [1, 1]} : vector<16x32xf32> to vector<8x32xf32>
    %1140 = vector.extract_strided_slice %1137 {offsets = [0, 0], sizes = [8, 8], strides = [1, 1]} : vector<8x32xf32> to vector<8x8xf32>
    %1141 = vector.extract_strided_slice %1138 {offsets = [0, 0], sizes = [8, 8], strides = [1, 1]} : vector<8x32xf32> to vector<8x8xf32>
    %1142 = tpu.transpose %1141, [1, 0] : vector<8x8xf32> -> vector<8x8xf32>
    %1143 = arith.truncf %1140 : vector<8x8xf32> to vector<8x8xbf16>
    %1144 = arith.truncf %1142 : vector<8x8xf32> to vector<8x8xbf16>
    %cst_350 = arith.constant dense<0.000000e+00> : vector<8x8xf32>
    %1145 = tpu.matmul %1143, %1144, %cst_350 {dimension_numbers = #tpu.dot_dimension_numbers<[1], [0], [0], [1], [0, 0, 1, 1], [], []>} : vector<8x8xbf16>, vector<8x8xbf16>, vector<8x8xf32> -> vector<8x8xf32>
    %1146 = arith.addf %1145, %1136 : vector<8x8xf32>
    %cst_351 = arith.constant dense<0xFF800000> : vector<8xf32>
    %1147 = vector.multi_reduction <maximumf>, %1146, %cst_351 [1] : vector<8x8xf32> to vector<8xf32>
    %1148 = vector.shape_cast %1147 : vector<8xf32> to vector<8x1xf32>
    %1149 = vector.broadcast %1148 : vector<8x1xf32> to vector<8x8xf32>
    %1150 = arith.subf %1146, %1149 : vector<8x8xf32>
    %1151 = math.exp %1150 : vector<8x8xf32>
    %cst_352 = arith.constant dense<0.000000e+00> : vector<8xf32>
    %1152 = vector.multi_reduction <add>, %1151, %cst_352 [1] : vector<8x8xf32> to vector<8xf32>
    %1153 = vector.shape_cast %1152 : vector<8xf32> to vector<8x1xf32>
    %1154 = tpu.reciprocal %1153 {approx = true} : vector<8x1xf32> -> vector<8x1xf32>
    %1155 = vector.broadcast %1154 : vector<8x1xf32> to vector<8x8xf32>
    %1156 = arith.mulf %1151, %1155 : vector<8x8xf32>
    %1157 = vector.extract_strided_slice %1139 {offsets = [0, 0], sizes = [8, 8], strides = [1, 1]} : vector<8x32xf32> to vector<8x8xf32>
    %1158 = arith.truncf %1156 : vector<8x8xf32> to vector<8x8xbf16>
    %1159 = arith.truncf %1157 : vector<8x8xf32> to vector<8x8xbf16>
    %cst_353 = arith.constant dense<0.000000e+00> : vector<8x8xf32>
    %1160 = tpu.matmul %1158, %1159, %cst_353 {dimension_numbers = #tpu.dot_dimension_numbers<[1], [0], [0], [1], [0, 0, 1, 1], [], []>} : vector<8x8xbf16>, vector<8x8xbf16>, vector<8x8xf32> -> vector<8x8xf32>
    %1161 = vector.extract_strided_slice %1137 {offsets = [0, 8], sizes = [8, 8], strides = [1, 1]} : vector<8x32xf32> to vector<8x8xf32>
    %1162 = vector.extract_strided_slice %1138 {offsets = [0, 8], sizes = [8, 8], strides = [1, 1]} : vector<8x32xf32> to vector<8x8xf32>
    %1163 = tpu.transpose %1162, [1, 0] : vector<8x8xf32> -> vector<8x8xf32>
    %1164 = arith.truncf %1161 : vector<8x8xf32> to vector<8x8xbf16>
    %1165 = arith.truncf %1163 : vector<8x8xf32> to vector<8x8xbf16>
    %cst_354 = arith.constant dense<0.000000e+00> : vector<8x8xf32>
    %1166 = tpu.matmul %1164, %1165, %cst_354 {dimension_numbers = #tpu.dot_dimension_numbers<[1], [0], [0], [1], [0, 0, 1, 1], [], []>} : vector<8x8xbf16>, vector<8x8xbf16>, vector<8x8xf32> -> vector<8x8xf32>
    %1167 = arith.addf %1166, %1136 : vector<8x8xf32>
    %cst_355 = arith.constant dense<0xFF800000> : vector<8xf32>
    %1168 = vector.multi_reduction <maximumf>, %1167, %cst_355 [1] : vector<8x8xf32> to vector<8xf32>
    %1169 = vector.shape_cast %1168 : vector<8xf32> to vector<8x1xf32>
    %1170 = vector.broadcast %1169 : vector<8x1xf32> to vector<8x8xf32>
    %1171 = arith.subf %1167, %1170 : vector<8x8xf32>
    %1172 = math.exp %1171 : vector<8x8xf32>
    %cst_356 = arith.constant dense<0.000000e+00> : vector<8xf32>
    %1173 = vector.multi_reduction <add>, %1172, %cst_356 [1] : vector<8x8xf32> to vector<8xf32>
    %1174 = vector.shape_cast %1173 : vector<8xf32> to vector<8x1xf32>
    %1175 = tpu.reciprocal %1174 {approx = true} : vector<8x1xf32> -> vector<8x1xf32>
    %1176 = vector.broadcast %1175 : vector<8x1xf32> to vector<8x8xf32>
    %1177 = arith.mulf %1172, %1176 : vector<8x8xf32>
    %1178 = vector.extract_strided_slice %1139 {offsets = [0, 8], sizes = [8, 8], strides = [1, 1]} : vector<8x32xf32> to vector<8x8xf32>
    %1179 = arith.truncf %1177 : vector<8x8xf32> to vector<8x8xbf16>
    %1180 = arith.truncf %1178 : vector<8x8xf32> to vector<8x8xbf16>
    %cst_357 = arith.constant dense<0.000000e+00> : vector<8x8xf32>
    %1181 = tpu.matmul %1179, %1180, %cst_357 {dimension_numbers = #tpu.dot_dimension_numbers<[1], [0], [0], [1], [0, 0, 1, 1], [], []>} : vector<8x8xbf16>, vector<8x8xbf16>, vector<8x8xf32> -> vector<8x8xf32>
    %1182 = vector.extract_strided_slice %1137 {offsets = [0, 16], sizes = [8, 8], strides = [1, 1]} : vector<8x32xf32> to vector<8x8xf32>
    %1183 = vector.extract_strided_slice %1138 {offsets = [0, 16], sizes = [8, 8], strides = [1, 1]} : vector<8x32xf32> to vector<8x8xf32>
    %1184 = tpu.transpose %1183, [1, 0] : vector<8x8xf32> -> vector<8x8xf32>
    %1185 = arith.truncf %1182 : vector<8x8xf32> to vector<8x8xbf16>
    %1186 = arith.truncf %1184 : vector<8x8xf32> to vector<8x8xbf16>
    %cst_358 = arith.constant dense<0.000000e+00> : vector<8x8xf32>
    %1187 = tpu.matmul %1185, %1186, %cst_358 {dimension_numbers = #tpu.dot_dimension_numbers<[1], [0], [0], [1], [0, 0, 1, 1], [], []>} : vector<8x8xbf16>, vector<8x8xbf16>, vector<8x8xf32> -> vector<8x8xf32>
    %1188 = arith.addf %1187, %1136 : vector<8x8xf32>
    %cst_359 = arith.constant dense<0xFF800000> : vector<8xf32>
    %1189 = vector.multi_reduction <maximumf>, %1188, %cst_359 [1] : vector<8x8xf32> to vector<8xf32>
    %1190 = vector.shape_cast %1189 : vector<8xf32> to vector<8x1xf32>
    %1191 = vector.broadcast %1190 : vector<8x1xf32> to vector<8x8xf32>
    %1192 = arith.subf %1188, %1191 : vector<8x8xf32>
    %1193 = math.exp %1192 : vector<8x8xf32>
    %cst_360 = arith.constant dense<0.000000e+00> : vector<8xf32>
    %1194 = vector.multi_reduction <add>, %1193, %cst_360 [1] : vector<8x8xf32> to vector<8xf32>
    %1195 = vector.shape_cast %1194 : vector<8xf32> to vector<8x1xf32>
    %1196 = tpu.reciprocal %1195 {approx = true} : vector<8x1xf32> -> vector<8x1xf32>
    %1197 = vector.broadcast %1196 : vector<8x1xf32> to vector<8x8xf32>
    %1198 = arith.mulf %1193, %1197 : vector<8x8xf32>
    %1199 = vector.extract_strided_slice %1139 {offsets = [0, 16], sizes = [8, 8], strides = [1, 1]} : vector<8x32xf32> to vector<8x8xf32>
    %1200 = arith.truncf %1198 : vector<8x8xf32> to vector<8x8xbf16>
    %1201 = arith.truncf %1199 : vector<8x8xf32> to vector<8x8xbf16>
    %cst_361 = arith.constant dense<0.000000e+00> : vector<8x8xf32>
    %1202 = tpu.matmul %1200, %1201, %cst_361 {dimension_numbers = #tpu.dot_dimension_numbers<[1], [0], [0], [1], [0, 0, 1, 1], [], []>} : vector<8x8xbf16>, vector<8x8xbf16>, vector<8x8xf32> -> vector<8x8xf32>
    %1203 = vector.extract_strided_slice %1137 {offsets = [0, 24], sizes = [8, 8], strides = [1, 1]} : vector<8x32xf32> to vector<8x8xf32>
    %1204 = vector.extract_strided_slice %1138 {offsets = [0, 24], sizes = [8, 8], strides = [1, 1]} : vector<8x32xf32> to vector<8x8xf32>
    %1205 = tpu.transpose %1204, [1, 0] : vector<8x8xf32> -> vector<8x8xf32>
    %1206 = arith.truncf %1203 : vector<8x8xf32> to vector<8x8xbf16>
    %1207 = arith.truncf %1205 : vector<8x8xf32> to vector<8x8xbf16>
    %cst_362 = arith.constant dense<0.000000e+00> : vector<8x8xf32>
    %1208 = tpu.matmul %1206, %1207, %cst_362 {dimension_numbers = #tpu.dot_dimension_numbers<[1], [0], [0], [1], [0, 0, 1, 1], [], []>} : vector<8x8xbf16>, vector<8x8xbf16>, vector<8x8xf32> -> vector<8x8xf32>
    %1209 = arith.addf %1208, %1136 : vector<8x8xf32>
    %cst_363 = arith.constant dense<0xFF800000> : vector<8xf32>
    %1210 = vector.multi_reduction <maximumf>, %1209, %cst_363 [1] : vector<8x8xf32> to vector<8xf32>
    %1211 = vector.shape_cast %1210 : vector<8xf32> to vector<8x1xf32>
    %1212 = vector.broadcast %1211 : vector<8x1xf32> to vector<8x8xf32>
    %1213 = arith.subf %1209, %1212 : vector<8x8xf32>
    %1214 = math.exp %1213 : vector<8x8xf32>
    %cst_364 = arith.constant dense<0.000000e+00> : vector<8xf32>
    %1215 = vector.multi_reduction <add>, %1214, %cst_364 [1] : vector<8x8xf32> to vector<8xf32>
    %1216 = vector.shape_cast %1215 : vector<8xf32> to vector<8x1xf32>
    %1217 = tpu.reciprocal %1216 {approx = true} : vector<8x1xf32> -> vector<8x1xf32>
    %1218 = vector.broadcast %1217 : vector<8x1xf32> to vector<8x8xf32>
    %1219 = arith.mulf %1214, %1218 : vector<8x8xf32>
    %1220 = vector.extract_strided_slice %1139 {offsets = [0, 24], sizes = [8, 8], strides = [1, 1]} : vector<8x32xf32> to vector<8x8xf32>
    %1221 = arith.truncf %1219 : vector<8x8xf32> to vector<8x8xbf16>
    %1222 = arith.truncf %1220 : vector<8x8xf32> to vector<8x8xbf16>
    %cst_365 = arith.constant dense<0.000000e+00> : vector<8x8xf32>
    %1223 = tpu.matmul %1221, %1222, %cst_365 {dimension_numbers = #tpu.dot_dimension_numbers<[1], [0], [0], [1], [0, 0, 1, 1], [], []>} : vector<8x8xbf16>, vector<8x8xbf16>, vector<8x8xf32> -> vector<8x8xf32>
    %1224 = tpu.concatenate %1160, %1181, %1202, %1223 in 1 : vector<8x8xf32>, vector<8x8xf32>, vector<8x8xf32>, vector<8x8xf32> -> vector<8x32xf32>
    %1225 = tpu.concatenate %1156, %1177, %1198, %1219 in 1 : vector<8x8xf32>, vector<8x8xf32>, vector<8x8xf32>, vector<8x8xf32> -> vector<8x32xf32>
    %c1_366 = arith.constant 1 : index
    %c0_367 = arith.constant 0 : index
    %c0_368 = arith.constant 0 : index
    %c0_369 = arith.constant 0 : index
    %1226 = vector.load %arg41[%c1_366, %c0_367, %c0_368, %c0_369] : memref<2x2x8x32xf32, #tpu.memory_space<vmem>>, vector<1x1x8x32xf32>
    %1227 = vector.shape_cast %1226 : vector<1x1x8x32xf32> to vector<8x32xf32>
    %1228 = vector.shape_cast %1225 : vector<8x32xf32> to vector<1x1x8x32xf32>
    tpu.vector_store %arg41[%c1_366, %c0_367, %c0_368, %c0_369], %1228 {strides = array<i32>} : memref<2x2x8x32xf32, #tpu.memory_space<vmem>>, vector<1x1x8x32xf32>,
    %1229 = vector.extract_strided_slice %1 {offsets = [1, 0], sizes = [1, 8], strides = [1, 1]} : vector<2x8xf32> to vector<1x8xf32>
    %1230 = vector.broadcast %1229 : vector<1x8xf32> to vector<8x8xf32>
    %1231 = arith.addf %7, %1230 : vector<8x8xf32>
    %1232 = vector.extract_strided_slice %1131 {offsets = [8, 0], sizes = [8, 32], strides = [1, 1]} : vector<16x32xf32> to vector<8x32xf32>
    %1233 = vector.extract_strided_slice %1132 {offsets = [8, 0], sizes = [8, 32], strides = [1, 1]} : vector<16x32xf32> to vector<8x32xf32>
    %1234 = vector.extract_strided_slice %1133 {offsets = [8, 0], sizes = [8, 32], strides = [1, 1]} : vector<16x32xf32> to vector<8x32xf32>
    %1235 = vector.extract_strided_slice %1232 {offsets = [0, 0], sizes = [8, 8], strides = [1, 1]} : vector<8x32xf32> to vector<8x8xf32>
    %1236 = vector.extract_strided_slice %1233 {offsets = [0, 0], sizes = [8, 8], strides = [1, 1]} : vector<8x32xf32> to vector<8x8xf32>
    %1237 = tpu.transpose %1236, [1, 0] : vector<8x8xf32> -> vector<8x8xf32>
    %1238 = arith.truncf %1235 : vector<8x8xf32> to vector<8x8xbf16>
    %1239 = arith.truncf %1237 : vector<8x8xf32> to vector<8x8xbf16>
    %cst_370 = arith.constant dense<0.000000e+00> : vector<8x8xf32>
    %1240 = tpu.matmul %1238, %1239, %cst_370 {dimension_numbers = #tpu.dot_dimension_numbers<[1], [0], [0], [1], [0, 0, 1, 1], [], []>} : vector<8x8xbf16>, vector<8x8xbf16>, vector<8x8xf32> -> vector<8x8xf32>
    %1241 = arith.addf %1240, %1231 : vector<8x8xf32>
    %cst_371 = arith.constant dense<0xFF800000> : vector<8xf32>
    %1242 = vector.multi_reduction <maximumf>, %1241, %cst_371 [1] : vector<8x8xf32> to vector<8xf32>
    %1243 = vector.shape_cast %1242 : vector<8xf32> to vector<8x1xf32>
    %1244 = vector.broadcast %1243 : vector<8x1xf32> to vector<8x8xf32>
    %1245 = arith.subf %1241, %1244 : vector<8x8xf32>
    %1246 = math.exp %1245 : vector<8x8xf32>
    %cst_372 = arith.constant dense<0.000000e+00> : vector<8xf32>
    %1247 = vector.multi_reduction <add>, %1246, %cst_372 [1] : vector<8x8xf32> to vector<8xf32>
    %1248 = vector.shape_cast %1247 : vector<8xf32> to vector<8x1xf32>
    %1249 = tpu.reciprocal %1248 {approx = true} : vector<8x1xf32> -> vector<8x1xf32>
    %1250 = vector.broadcast %1249 : vector<8x1xf32> to vector<8x8xf32>
    %1251 = arith.mulf %1246, %1250 : vector<8x8xf32>
    %1252 = vector.extract_strided_slice %1234 {offsets = [0, 0], sizes = [8, 8], strides = [1, 1]} : vector<8x32xf32> to vector<8x8xf32>
    %1253 = arith.truncf %1251 : vector<8x8xf32> to vector<8x8xbf16>
    %1254 = arith.truncf %1252 : vector<8x8xf32> to vector<8x8xbf16>
    %cst_373 = arith.constant dense<0.000000e+00> : vector<8x8xf32>
    %1255 = tpu.matmul %1253, %1254, %cst_373 {dimension_numbers = #tpu.dot_dimension_numbers<[1], [0], [0], [1], [0, 0, 1, 1], [], []>} : vector<8x8xbf16>, vector<8x8xbf16>, vector<8x8xf32> -> vector<8x8xf32>
    %1256 = vector.extract_strided_slice %1232 {offsets = [0, 8], sizes = [8, 8], strides = [1, 1]} : vector<8x32xf32> to vector<8x8xf32>
    %1257 = vector.extract_strided_slice %1233 {offsets = [0, 8], sizes = [8, 8], strides = [1, 1]} : vector<8x32xf32> to vector<8x8xf32>
    %1258 = tpu.transpose %1257, [1, 0] : vector<8x8xf32> -> vector<8x8xf32>
    %1259 = arith.truncf %1256 : vector<8x8xf32> to vector<8x8xbf16>
    %1260 = arith.truncf %1258 : vector<8x8xf32> to vector<8x8xbf16>
    %cst_374 = arith.constant dense<0.000000e+00> : vector<8x8xf32>
    %1261 = tpu.matmul %1259, %1260, %cst_374 {dimension_numbers = #tpu.dot_dimension_numbers<[1], [0], [0], [1], [0, 0, 1, 1], [], []>} : vector<8x8xbf16>, vector<8x8xbf16>, vector<8x8xf32> -> vector<8x8xf32>
    %1262 = arith.addf %1261, %1231 : vector<8x8xf32>
    %cst_375 = arith.constant dense<0xFF800000> : vector<8xf32>
    %1263 = vector.multi_reduction <maximumf>, %1262, %cst_375 [1] : vector<8x8xf32> to vector<8xf32>
    %1264 = vector.shape_cast %1263 : vector<8xf32> to vector<8x1xf32>
    %1265 = vector.broadcast %1264 : vector<8x1xf32> to vector<8x8xf32>
    %1266 = arith.subf %1262, %1265 : vector<8x8xf32>
    %1267 = math.exp %1266 : vector<8x8xf32>
    %cst_376 = arith.constant dense<0.000000e+00> : vector<8xf32>
    %1268 = vector.multi_reduction <add>, %1267, %cst_376 [1] : vector<8x8xf32> to vector<8xf32>
    %1269 = vector.shape_cast %1268 : vector<8xf32> to vector<8x1xf32>
    %1270 = tpu.reciprocal %1269 {approx = true} : vector<8x1xf32> -> vector<8x1xf32>
    %1271 = vector.broadcast %1270 : vector<8x1xf32> to vector<8x8xf32>
    %1272 = arith.mulf %1267, %1271 : vector<8x8xf32>
    %1273 = vector.extract_strided_slice %1234 {offsets = [0, 8], sizes = [8, 8], strides = [1, 1]} : vector<8x32xf32> to vector<8x8xf32>
    %1274 = arith.truncf %1272 : vector<8x8xf32> to vector<8x8xbf16>
    %1275 = arith.truncf %1273 : vector<8x8xf32> to vector<8x8xbf16>
    %cst_377 = arith.constant dense<0.000000e+00> : vector<8x8xf32>
    %1276 = tpu.matmul %1274, %1275, %cst_377 {dimension_numbers = #tpu.dot_dimension_numbers<[1], [0], [0], [1], [0, 0, 1, 1], [], []>} : vector<8x8xbf16>, vector<8x8xbf16>, vector<8x8xf32> -> vector<8x8xf32>
    %1277 = vector.extract_strided_slice %1232 {offsets = [0, 16], sizes = [8, 8], strides = [1, 1]} : vector<8x32xf32> to vector<8x8xf32>
    %1278 = vector.extract_strided_slice %1233 {offsets = [0, 16], sizes = [8, 8], strides = [1, 1]} : vector<8x32xf32> to vector<8x8xf32>
    %1279 = tpu.transpose %1278, [1, 0] : vector<8x8xf32> -> vector<8x8xf32>
    %1280 = arith.truncf %1277 : vector<8x8xf32> to vector<8x8xbf16>
    %1281 = arith.truncf %1279 : vector<8x8xf32> to vector<8x8xbf16>
    %cst_378 = arith.constant dense<0.000000e+00> : vector<8x8xf32>
    %1282 = tpu.matmul %1280, %1281, %cst_378 {dimension_numbers = #tpu.dot_dimension_numbers<[1], [0], [0], [1], [0, 0, 1, 1], [], []>} : vector<8x8xbf16>, vector<8x8xbf16>, vector<8x8xf32> -> vector<8x8xf32>
    %1283 = arith.addf %1282, %1231 : vector<8x8xf32>
    %cst_379 = arith.constant dense<0xFF800000> : vector<8xf32>
    %1284 = vector.multi_reduction <maximumf>, %1283, %cst_379 [1] : vector<8x8xf32> to vector<8xf32>
    %1285 = vector.shape_cast %1284 : vector<8xf32> to vector<8x1xf32>
    %1286 = vector.broadcast %1285 : vector<8x1xf32> to vector<8x8xf32>
    %1287 = arith.subf %1283, %1286 : vector<8x8xf32>
    %1288 = math.exp %1287 : vector<8x8xf32>
    %cst_380 = arith.constant dense<0.000000e+00> : vector<8xf32>
    %1289 = vector.multi_reduction <add>, %1288, %cst_380 [1] : vector<8x8xf32> to vector<8xf32>
    %1290 = vector.shape_cast %1289 : vector<8xf32> to vector<8x1xf32>
    %1291 = tpu.reciprocal %1290 {approx = true} : vector<8x1xf32> -> vector<8x1xf32>
    %1292 = vector.broadcast %1291 : vector<8x1xf32> to vector<8x8xf32>
    %1293 = arith.mulf %1288, %1292 : vector<8x8xf32>
    %1294 = vector.extract_strided_slice %1234 {offsets = [0, 16], sizes = [8, 8], strides = [1, 1]} : vector<8x32xf32> to vector<8x8xf32>
    %1295 = arith.truncf %1293 : vector<8x8xf32> to vector<8x8xbf16>
    %1296 = arith.truncf %1294 : vector<8x8xf32> to vector<8x8xbf16>
    %cst_381 = arith.constant dense<0.000000e+00> : vector<8x8xf32>
    %1297 = tpu.matmul %1295, %1296, %cst_381 {dimension_numbers = #tpu.dot_dimension_numbers<[1], [0], [0], [1], [0, 0, 1, 1], [], []>} : vector<8x8xbf16>, vector<8x8xbf16>, vector<8x8xf32> -> vector<8x8xf32>
    %1298 = vector.extract_strided_slice %1232 {offsets = [0, 24], sizes = [8, 8], strides = [1, 1]} : vector<8x32xf32> to vector<8x8xf32>
    %1299 = vector.extract_strided_slice %1233 {offsets = [0, 24], sizes = [8, 8], strides = [1, 1]} : vector<8x32xf32> to vector<8x8xf32>
    %1300 = tpu.transpose %1299, [1, 0] : vector<8x8xf32> -> vector<8x8xf32>
    %1301 = arith.truncf %1298 : vector<8x8xf32> to vector<8x8xbf16>
    %1302 = arith.truncf %1300 : vector<8x8xf32> to vector<8x8xbf16>
    %cst_382 = arith.constant dense<0.000000e+00> : vector<8x8xf32>
    %1303 = tpu.matmul %1301, %1302, %cst_382 {dimension_numbers = #tpu.dot_dimension_numbers<[1], [0], [0], [1], [0, 0, 1, 1], [], []>} : vector<8x8xbf16>, vector<8x8xbf16>, vector<8x8xf32> -> vector<8x8xf32>
    %1304 = arith.addf %1303, %1231 : vector<8x8xf32>
    %cst_383 = arith.constant dense<0xFF800000> : vector<8xf32>
    %1305 = vector.multi_reduction <maximumf>, %1304, %cst_383 [1] : vector<8x8xf32> to vector<8xf32>
    %1306 = vector.shape_cast %1305 : vector<8xf32> to vector<8x1xf32>
    %1307 = vector.broadcast %1306 : vector<8x1xf32> to vector<8x8xf32>
    %1308 = arith.subf %1304, %1307 : vector<8x8xf32>
    %1309 = math.exp %1308 : vector<8x8xf32>
    %cst_384 = arith.constant dense<0.000000e+00> : vector<8xf32>
    %1310 = vector.multi_reduction <add>, %1309, %cst_384 [1] : vector<8x8xf32> to vector<8xf32>
    %1311 = vector.shape_cast %1310 : vector<8xf32> to vector<8x1xf32>
    %1312 = tpu.reciprocal %1311 {approx = true} : vector<8x1xf32> -> vector<8x1xf32>
    %1313 = vector.broadcast %1312 : vector<8x1xf32> to vector<8x8xf32>
    %1314 = arith.mulf %1309, %1313 : vector<8x8xf32>
    %1315 = vector.extract_strided_slice %1234 {offsets = [0, 24], sizes = [8, 8], strides = [1, 1]} : vector<8x32xf32> to vector<8x8xf32>
    %1316 = arith.truncf %1314 : vector<8x8xf32> to vector<8x8xbf16>
    %1317 = arith.truncf %1315 : vector<8x8xf32> to vector<8x8xbf16>
    %cst_385 = arith.constant dense<0.000000e+00> : vector<8x8xf32>
    %1318 = tpu.matmul %1316, %1317, %cst_385 {dimension_numbers = #tpu.dot_dimension_numbers<[1], [0], [0], [1], [0, 0, 1, 1], [], []>} : vector<8x8xbf16>, vector<8x8xbf16>, vector<8x8xf32> -> vector<8x8xf32>
    %1319 = tpu.concatenate %1255, %1276, %1297, %1318 in 1 : vector<8x8xf32>, vector<8x8xf32>, vector<8x8xf32>, vector<8x8xf32> -> vector<8x32xf32>
    %1320 = tpu.concatenate %1251, %1272, %1293, %1314 in 1 : vector<8x8xf32>, vector<8x8xf32>, vector<8x8xf32>, vector<8x8xf32> -> vector<8x32xf32>
    %c1_386 = arith.constant 1 : index
    %c1_387 = arith.constant 1 : index
    %c0_388 = arith.constant 0 : index
    %c0_389 = arith.constant 0 : index
    %1321 = vector.load %arg41[%c1_386, %c1_387, %c0_388, %c0_389] : memref<2x2x8x32xf32, #tpu.memory_space<vmem>>, vector<1x1x8x32xf32>
    %1322 = vector.shape_cast %1321 : vector<1x1x8x32xf32> to vector<8x32xf32>
    %1323 = vector.shape_cast %1320 : vector<8x32xf32> to vector<1x1x8x32xf32>
    tpu.vector_store %arg41[%c1_386, %c1_387, %c0_388, %c0_389], %1323 {strides = array<i32>} : memref<2x2x8x32xf32, #tpu.memory_space<vmem>>, vector<1x1x8x32xf32>,
    %1324 = tpu.concatenate %1224, %1319 in 0 : vector<8x32xf32>, vector<8x32xf32> -> vector<16x32xf32>
    %c1_390 = arith.constant 1 : index
    %c0_391 = arith.constant 0 : index
    %c0_392 = arith.constant 0 : index
    %1325 = vector.load %arg19[%c1_390, %c0_391, %c0_392] : memref<2x32x32xf32, #tpu.memory_space<vmem>>, vector<1x32x32xf32>
    %1326 = vector.shape_cast %1325 : vector<1x32x32xf32> to vector<32x32xf32>
    %1327 = arith.truncf %1324 : vector<16x32xf32> to vector<16x32xbf16>
    %1328 = arith.truncf %1326 : vector<32x32xf32> to vector<32x32xbf16>
    %cst_393 = arith.constant dense<0.000000e+00> : vector<16x32xf32>
    %1329 = tpu.matmul %1327, %1328, %cst_393 {dimension_numbers = #tpu.dot_dimension_numbers<[1], [0], [0], [1], [0, 0, 1, 1], [], []>} : vector<16x32xbf16>, vector<32x32xbf16>, vector<16x32xf32> -> vector<16x32xf32>
    %c1_394 = arith.constant 1 : index
    %c0_395 = arith.constant 0 : index
    %c0_396 = arith.constant 0 : index
    %1330 = vector.load %arg20[%c1_394, %c0_395, %c0_396] : memref<2x1x32xf32, #tpu.memory_space<vmem>>, vector<1x1x32xf32>
    %1331 = vector.shape_cast %1330 : vector<1x1x32xf32> to vector<1x32xf32>
    %1332 = vector.broadcast %1331 : vector<1x32xf32> to vector<16x32xf32>
    %1333 = arith.addf %1329, %1332 : vector<16x32xf32>
    %1334 = arith.addf %1119, %1333 : vector<16x32xf32>
    %c1_397 = arith.constant 1 : index
    %c0_398 = arith.constant 0 : index
    %c0_399 = arith.constant 0 : index
    %1335 = vector.load %arg31[%c1_397, %c0_398, %c0_399] : memref<2x1x32xf32, #tpu.memory_space<vmem>>, vector<1x1x32xf32>
    %1336 = vector.shape_cast %1335 : vector<1x1x32xf32> to vector<1x32xf32>
    %c1_400 = arith.constant 1 : index
    %c0_401 = arith.constant 0 : index
    %c0_402 = arith.constant 0 : index
    %1337 = vector.load %arg32[%c1_400, %c0_401, %c0_402] : memref<2x1x32xf32, #tpu.memory_space<vmem>>, vector<1x1x32xf32>
    %1338 = vector.shape_cast %1337 : vector<1x1x32xf32> to vector<1x32xf32>
    %cst_403 = arith.constant dense<0.000000e+00> : vector<16xf32>
    %1339 = vector.multi_reduction <add>, %1334, %cst_403 [1] : vector<16x32xf32> to vector<16xf32>
    %1340 = vector.shape_cast %1339 : vector<16xf32> to vector<16x1xf32>
    %cst_404 = arith.constant 3.200000e+01 : f32
    %1341 = vector.broadcast %cst_404 : f32 to vector<16x1xf32>
    %1342 = arith.divf %1340, %1341 : vector<16x1xf32>
    %1343 = vector.broadcast %1342 : vector<16x1xf32> to vector<16x32xf32>
    %1344 = arith.subf %1334, %1343 : vector<16x32xf32>
    %1345 = arith.mulf %1344, %1344 : vector<16x32xf32>
    %cst_405 = arith.constant dense<0.000000e+00> : vector<16xf32>
    %1346 = vector.multi_reduction <add>, %1345, %cst_405 [1] : vector<16x32xf32> to vector<16xf32>
    %1347 = vector.shape_cast %1346 : vector<16xf32> to vector<16x1xf32>
    %cst_406 = arith.constant 3.200000e+01 : f32
    %1348 = vector.broadcast %cst_406 : f32 to vector<16x1xf32>
    %1349 = arith.divf %1347, %1348 : vector<16x1xf32>
    %1350 = vector.broadcast %1342 : vector<16x1xf32> to vector<16x32xf32>
    %1351 = arith.subf %1334, %1350 : vector<16x32xf32>
    %cst_407 = arith.constant 9.99999974E-6 : f32
    %1352 = vector.broadcast %cst_407 : f32 to vector<16x1xf32>
    %1353 = arith.addf %1349, %1352 : vector<16x1xf32>
    %1354 = math.rsqrt %1353 : vector<16x1xf32>
    %1355 = vector.broadcast %1354 : vector<16x1xf32> to vector<16x32xf32>
    %1356 = arith.mulf %1351, %1355 : vector<16x32xf32>
    %1357 = vector.broadcast %1336 : vector<1x32xf32> to vector<16x32xf32>
    %1358 = arith.mulf %1356, %1357 : vector<16x32xf32>
    %1359 = vector.broadcast %1338 : vector<1x32xf32> to vector<16x32xf32>
    %1360 = arith.addf %1358, %1359 : vector<16x32xf32>
    %c1_408 = arith.constant 1 : index
    %c0_409 = arith.constant 0 : index
    %c0_410 = arith.constant 0 : index
    %1361 = vector.load %arg21[%c1_408, %c0_409, %c0_410] : memref<2x32x32xf32, #tpu.memory_space<vmem>>, vector<1x32x32xf32>
    %1362 = vector.shape_cast %1361 : vector<1x32x32xf32> to vector<32x32xf32>
    %1363 = arith.truncf %1360 : vector<16x32xf32> to vector<16x32xbf16>
    %1364 = arith.truncf %1362 : vector<32x32xf32> to vector<32x32xbf16>
    %cst_411 = arith.constant dense<0.000000e+00> : vector<16x32xf32>
    %1365 = tpu.matmul %1363, %1364, %cst_411 {dimension_numbers = #tpu.dot_dimension_numbers<[1], [0], [0], [1], [0, 0, 1, 1], [], []>} : vector<16x32xbf16>, vector<32x32xbf16>, vector<16x32xf32> -> vector<16x32xf32>
    %c1_412 = arith.constant 1 : index
    %c0_413 = arith.constant 0 : index
    %c0_414 = arith.constant 0 : index
    %1366 = vector.load %arg22[%c1_412, %c0_413, %c0_414] : memref<2x1x32xf32, #tpu.memory_space<vmem>>, vector<1x1x32xf32>
    %1367 = vector.shape_cast %1366 : vector<1x1x32xf32> to vector<1x32xf32>
    %1368 = vector.broadcast %1367 : vector<1x32xf32> to vector<16x32xf32>
    %1369 = arith.addf %1365, %1368 : vector<16x32xf32>
    %cst_415 = arith.constant 0.353553385 : f32
    %1370 = vector.broadcast %cst_415 : f32 to vector<16x32xf32>
    %1371 = arith.mulf %1369, %1370 : vector<16x32xf32>
    %c1_416 = arith.constant 1 : index
    %c0_417 = arith.constant 0 : index
    %c0_418 = arith.constant 0 : index
    %1372 = vector.load %arg23[%c1_416, %c0_417, %c0_418] : memref<2x32x64xf32, #tpu.memory_space<vmem>>, vector<1x32x64xf32>
    %1373 = vector.shape_cast %1372 : vector<1x32x64xf32> to vector<32x64xf32>
    %1374 = arith.truncf %576 : vector<16x32xf32> to vector<16x32xbf16>
    %1375 = arith.truncf %1373 : vector<32x64xf32> to vector<32x64xbf16>
    %cst_419 = arith.constant dense<0.000000e+00> : vector<16x64xf32>
    %1376 = tpu.matmul %1374, %1375, %cst_419 {dimension_numbers = #tpu.dot_dimension_numbers<[1], [0], [0], [1], [0, 0, 1, 1], [], []>} : vector<16x32xbf16>, vector<32x64xbf16>, vector<16x64xf32> -> vector<16x64xf32>
    %c1_420 = arith.constant 1 : index
    %c0_421 = arith.constant 0 : index
    %c0_422 = arith.constant 0 : index
    %1377 = vector.load %arg24[%c1_420, %c0_421, %c0_422] : memref<2x1x64xf32, #tpu.memory_space<vmem>>, vector<1x1x64xf32>
    %1378 = vector.shape_cast %1377 : vector<1x1x64xf32> to vector<1x64xf32>
    %1379 = vector.broadcast %1378 : vector<1x64xf32> to vector<16x64xf32>
    %1380 = arith.addf %1376, %1379 : vector<16x64xf32>
    %1381 = vector.extract_strided_slice %1380 {offsets = [0, 0], sizes = [16, 32], strides = [1, 1]} : vector<16x64xf32> to vector<16x32xf32>
    %1382 = vector.extract_strided_slice %1380 {offsets = [0, 32], sizes = [16, 32], strides = [1, 1]} : vector<16x64xf32> to vector<16x32xf32>
    %1383 = vector.extract_strided_slice %1371 {offsets = [0, 0], sizes = [8, 32], strides = [1, 1]} : vector<16x32xf32> to vector<8x32xf32>
    %1384 = vector.extract_strided_slice %1381 {offsets = [0, 0], sizes = [8, 32], strides = [1, 1]} : vector<16x32xf32> to vector<8x32xf32>
    %1385 = vector.extract_strided_slice %1382 {offsets = [0, 0], sizes = [8, 32], strides = [1, 1]} : vector<16x32xf32> to vector<8x32xf32>
    %1386 = vector.extract_strided_slice %0 {offsets = [0, 0], sizes = [1, 8], strides = [1, 1]} : vector<2x8xf32> to vector<1x8xf32>
    %1387 = vector.extract_strided_slice %1383 {offsets = [0, 0], sizes = [8, 8], strides = [1, 1]} : vector<8x32xf32> to vector<8x8xf32>
    %1388 = vector.extract_strided_slice %1384 {offsets = [0, 0], sizes = [8, 8], strides = [1, 1]} : vector<8x32xf32> to vector<8x8xf32>
    %1389 = tpu.transpose %1388, [1, 0] : vector<8x8xf32> -> vector<8x8xf32>
    %1390 = arith.truncf %1387 : vector<8x8xf32> to vector<8x8xbf16>
    %1391 = arith.truncf %1389 : vector<8x8xf32> to vector<8x8xbf16>
    %cst_423 = arith.constant dense<0.000000e+00> : vector<8x8xf32>
    %1392 = tpu.matmul %1390, %1391, %cst_423 {dimension_numbers = #tpu.dot_dimension_numbers<[1], [0], [0], [1], [0, 0, 1, 1], [], []>} : vector<8x8xbf16>, vector<8x8xbf16>, vector<8x8xf32> -> vector<8x8xf32>
    %1393 = vector.broadcast %1386 : vector<1x8xf32> to vector<8x8xf32>
    %1394 = arith.addf %1392, %1393 : vector<8x8xf32>
    %cst_424 = arith.constant dense<0xFF800000> : vector<8xf32>
    %1395 = vector.multi_reduction <maximumf>, %1394, %cst_424 [1] : vector<8x8xf32> to vector<8xf32>
    %1396 = vector.shape_cast %1395 : vector<8xf32> to vector<8x1xf32>
    %1397 = vector.broadcast %1396 : vector<8x1xf32> to vector<8x8xf32>
    %1398 = arith.subf %1394, %1397 : vector<8x8xf32>
    %1399 = math.exp %1398 : vector<8x8xf32>
    %cst_425 = arith.constant dense<0.000000e+00> : vector<8xf32>
    %1400 = vector.multi_reduction <add>, %1399, %cst_425 [1] : vector<8x8xf32> to vector<8xf32>
    %1401 = vector.shape_cast %1400 : vector<8xf32> to vector<8x1xf32>
    %1402 = tpu.reciprocal %1401 {approx = true} : vector<8x1xf32> -> vector<8x1xf32>
    %1403 = vector.broadcast %1402 : vector<8x1xf32> to vector<8x8xf32>
    %1404 = arith.mulf %1399, %1403 : vector<8x8xf32>
    %1405 = vector.extract_strided_slice %1385 {offsets = [0, 0], sizes = [8, 8], strides = [1, 1]} : vector<8x32xf32> to vector<8x8xf32>
    %1406 = arith.truncf %1404 : vector<8x8xf32> to vector<8x8xbf16>
    %1407 = arith.truncf %1405 : vector<8x8xf32> to vector<8x8xbf16>
    %cst_426 = arith.constant dense<0.000000e+00> : vector<8x8xf32>
    %1408 = tpu.matmul %1406, %1407, %cst_426 {dimension_numbers = #tpu.dot_dimension_numbers<[1], [0], [0], [1], [0, 0, 1, 1], [], []>} : vector<8x8xbf16>, vector<8x8xbf16>, vector<8x8xf32> -> vector<8x8xf32>
    %1409 = vector.extract_strided_slice %1383 {offsets = [0, 8], sizes = [8, 8], strides = [1, 1]} : vector<8x32xf32> to vector<8x8xf32>
    %1410 = vector.extract_strided_slice %1384 {offsets = [0, 8], sizes = [8, 8], strides = [1, 1]} : vector<8x32xf32> to vector<8x8xf32>
    %1411 = tpu.transpose %1410, [1, 0] : vector<8x8xf32> -> vector<8x8xf32>
    %1412 = arith.truncf %1409 : vector<8x8xf32> to vector<8x8xbf16>
    %1413 = arith.truncf %1411 : vector<8x8xf32> to vector<8x8xbf16>
    %cst_427 = arith.constant dense<0.000000e+00> : vector<8x8xf32>
    %1414 = tpu.matmul %1412, %1413, %cst_427 {dimension_numbers = #tpu.dot_dimension_numbers<[1], [0], [0], [1], [0, 0, 1, 1], [], []>} : vector<8x8xbf16>, vector<8x8xbf16>, vector<8x8xf32> -> vector<8x8xf32>
    %1415 = vector.broadcast %1386 : vector<1x8xf32> to vector<8x8xf32>
    %1416 = arith.addf %1414, %1415 : vector<8x8xf32>
    %cst_428 = arith.constant dense<0xFF800000> : vector<8xf32>
    %1417 = vector.multi_reduction <maximumf>, %1416, %cst_428 [1] : vector<8x8xf32> to vector<8xf32>
    %1418 = vector.shape_cast %1417 : vector<8xf32> to vector<8x1xf32>
    %1419 = vector.broadcast %1418 : vector<8x1xf32> to vector<8x8xf32>
    %1420 = arith.subf %1416, %1419 : vector<8x8xf32>
    %1421 = math.exp %1420 : vector<8x8xf32>
    %cst_429 = arith.constant dense<0.000000e+00> : vector<8xf32>
    %1422 = vector.multi_reduction <add>, %1421, %cst_429 [1] : vector<8x8xf32> to vector<8xf32>
    %1423 = vector.shape_cast %1422 : vector<8xf32> to vector<8x1xf32>
    %1424 = tpu.reciprocal %1423 {approx = true} : vector<8x1xf32> -> vector<8x1xf32>
    %1425 = vector.broadcast %1424 : vector<8x1xf32> to vector<8x8xf32>
    %1426 = arith.mulf %1421, %1425 : vector<8x8xf32>
    %1427 = vector.extract_strided_slice %1385 {offsets = [0, 8], sizes = [8, 8], strides = [1, 1]} : vector<8x32xf32> to vector<8x8xf32>
    %1428 = arith.truncf %1426 : vector<8x8xf32> to vector<8x8xbf16>
    %1429 = arith.truncf %1427 : vector<8x8xf32> to vector<8x8xbf16>
    %cst_430 = arith.constant dense<0.000000e+00> : vector<8x8xf32>
    %1430 = tpu.matmul %1428, %1429, %cst_430 {dimension_numbers = #tpu.dot_dimension_numbers<[1], [0], [0], [1], [0, 0, 1, 1], [], []>} : vector<8x8xbf16>, vector<8x8xbf16>, vector<8x8xf32> -> vector<8x8xf32>
    %1431 = vector.extract_strided_slice %1383 {offsets = [0, 16], sizes = [8, 8], strides = [1, 1]} : vector<8x32xf32> to vector<8x8xf32>
    %1432 = vector.extract_strided_slice %1384 {offsets = [0, 16], sizes = [8, 8], strides = [1, 1]} : vector<8x32xf32> to vector<8x8xf32>
    %1433 = tpu.transpose %1432, [1, 0] : vector<8x8xf32> -> vector<8x8xf32>
    %1434 = arith.truncf %1431 : vector<8x8xf32> to vector<8x8xbf16>
    %1435 = arith.truncf %1433 : vector<8x8xf32> to vector<8x8xbf16>
    %cst_431 = arith.constant dense<0.000000e+00> : vector<8x8xf32>
    %1436 = tpu.matmul %1434, %1435, %cst_431 {dimension_numbers = #tpu.dot_dimension_numbers<[1], [0], [0], [1], [0, 0, 1, 1], [], []>} : vector<8x8xbf16>, vector<8x8xbf16>, vector<8x8xf32> -> vector<8x8xf32>
    %1437 = vector.broadcast %1386 : vector<1x8xf32> to vector<8x8xf32>
    %1438 = arith.addf %1436, %1437 : vector<8x8xf32>
    %cst_432 = arith.constant dense<0xFF800000> : vector<8xf32>
    %1439 = vector.multi_reduction <maximumf>, %1438, %cst_432 [1] : vector<8x8xf32> to vector<8xf32>
    %1440 = vector.shape_cast %1439 : vector<8xf32> to vector<8x1xf32>
    %1441 = vector.broadcast %1440 : vector<8x1xf32> to vector<8x8xf32>
    %1442 = arith.subf %1438, %1441 : vector<8x8xf32>
    %1443 = math.exp %1442 : vector<8x8xf32>
    %cst_433 = arith.constant dense<0.000000e+00> : vector<8xf32>
    %1444 = vector.multi_reduction <add>, %1443, %cst_433 [1] : vector<8x8xf32> to vector<8xf32>
    %1445 = vector.shape_cast %1444 : vector<8xf32> to vector<8x1xf32>
    %1446 = tpu.reciprocal %1445 {approx = true} : vector<8x1xf32> -> vector<8x1xf32>
    %1447 = vector.broadcast %1446 : vector<8x1xf32> to vector<8x8xf32>
    %1448 = arith.mulf %1443, %1447 : vector<8x8xf32>
    %1449 = vector.extract_strided_slice %1385 {offsets = [0, 16], sizes = [8, 8], strides = [1, 1]} : vector<8x32xf32> to vector<8x8xf32>
    %1450 = arith.truncf %1448 : vector<8x8xf32> to vector<8x8xbf16>
    %1451 = arith.truncf %1449 : vector<8x8xf32> to vector<8x8xbf16>
    %cst_434 = arith.constant dense<0.000000e+00> : vector<8x8xf32>
    %1452 = tpu.matmul %1450, %1451, %cst_434 {dimension_numbers = #tpu.dot_dimension_numbers<[1], [0], [0], [1], [0, 0, 1, 1], [], []>} : vector<8x8xbf16>, vector<8x8xbf16>, vector<8x8xf32> -> vector<8x8xf32>
    %1453 = vector.extract_strided_slice %1383 {offsets = [0, 24], sizes = [8, 8], strides = [1, 1]} : vector<8x32xf32> to vector<8x8xf32>
    %1454 = vector.extract_strided_slice %1384 {offsets = [0, 24], sizes = [8, 8], strides = [1, 1]} : vector<8x32xf32> to vector<8x8xf32>
    %1455 = tpu.transpose %1454, [1, 0] : vector<8x8xf32> -> vector<8x8xf32>
    %1456 = arith.truncf %1453 : vector<8x8xf32> to vector<8x8xbf16>
    %1457 = arith.truncf %1455 : vector<8x8xf32> to vector<8x8xbf16>
    %cst_435 = arith.constant dense<0.000000e+00> : vector<8x8xf32>
    %1458 = tpu.matmul %1456, %1457, %cst_435 {dimension_numbers = #tpu.dot_dimension_numbers<[1], [0], [0], [1], [0, 0, 1, 1], [], []>} : vector<8x8xbf16>, vector<8x8xbf16>, vector<8x8xf32> -> vector<8x8xf32>
    %1459 = vector.broadcast %1386 : vector<1x8xf32> to vector<8x8xf32>
    %1460 = arith.addf %1458, %1459 : vector<8x8xf32>
    %cst_436 = arith.constant dense<0xFF800000> : vector<8xf32>
    %1461 = vector.multi_reduction <maximumf>, %1460, %cst_436 [1] : vector<8x8xf32> to vector<8xf32>
    %1462 = vector.shape_cast %1461 : vector<8xf32> to vector<8x1xf32>
    %1463 = vector.broadcast %1462 : vector<8x1xf32> to vector<8x8xf32>
    %1464 = arith.subf %1460, %1463 : vector<8x8xf32>
    %1465 = math.exp %1464 : vector<8x8xf32>
    %cst_437 = arith.constant dense<0.000000e+00> : vector<8xf32>
    %1466 = vector.multi_reduction <add>, %1465, %cst_437 [1] : vector<8x8xf32> to vector<8xf32>
    %1467 = vector.shape_cast %1466 : vector<8xf32> to vector<8x1xf32>
    %1468 = tpu.reciprocal %1467 {approx = true} : vector<8x1xf32> -> vector<8x1xf32>
    %1469 = vector.broadcast %1468 : vector<8x1xf32> to vector<8x8xf32>
    %1470 = arith.mulf %1465, %1469 : vector<8x8xf32>
    %1471 = vector.extract_strided_slice %1385 {offsets = [0, 24], sizes = [8, 8], strides = [1, 1]} : vector<8x32xf32> to vector<8x8xf32>
    %1472 = arith.truncf %1470 : vector<8x8xf32> to vector<8x8xbf16>
    %1473 = arith.truncf %1471 : vector<8x8xf32> to vector<8x8xbf16>
    %cst_438 = arith.constant dense<0.000000e+00> : vector<8x8xf32>
    %1474 = tpu.matmul %1472, %1473, %cst_438 {dimension_numbers = #tpu.dot_dimension_numbers<[1], [0], [0], [1], [0, 0, 1, 1], [], []>} : vector<8x8xbf16>, vector<8x8xbf16>, vector<8x8xf32> -> vector<8x8xf32>
    %1475 = tpu.concatenate %1408, %1430, %1452, %1474 in 1 : vector<8x8xf32>, vector<8x8xf32>, vector<8x8xf32>, vector<8x8xf32> -> vector<8x32xf32>
    %1476 = tpu.concatenate %1404, %1426, %1448, %1470 in 1 : vector<8x8xf32>, vector<8x8xf32>, vector<8x8xf32>, vector<8x8xf32> -> vector<8x32xf32>
    %c1_439 = arith.constant 1 : index
    %c0_440 = arith.constant 0 : index
    %c0_441 = arith.constant 0 : index
    %c0_442 = arith.constant 0 : index
    %1477 = vector.load %arg42[%c1_439, %c0_440, %c0_441, %c0_442] : memref<2x2x8x32xf32, #tpu.memory_space<vmem>>, vector<1x1x8x32xf32>
    %1478 = vector.shape_cast %1477 : vector<1x1x8x32xf32> to vector<8x32xf32>
    %1479 = vector.shape_cast %1476 : vector<8x32xf32> to vector<1x1x8x32xf32>
    tpu.vector_store %arg42[%c1_439, %c0_440, %c0_441, %c0_442], %1479 {strides = array<i32>} : memref<2x2x8x32xf32, #tpu.memory_space<vmem>>, vector<1x1x8x32xf32>,
    %1480 = vector.extract_strided_slice %1371 {offsets = [8, 0], sizes = [8, 32], strides = [1, 1]} : vector<16x32xf32> to vector<8x32xf32>
    %1481 = vector.extract_strided_slice %1381 {offsets = [8, 0], sizes = [8, 32], strides = [1, 1]} : vector<16x32xf32> to vector<8x32xf32>
    %1482 = vector.extract_strided_slice %1382 {offsets = [8, 0], sizes = [8, 32], strides = [1, 1]} : vector<16x32xf32> to vector<8x32xf32>
    %1483 = vector.extract_strided_slice %0 {offsets = [1, 0], sizes = [1, 8], strides = [1, 1]} : vector<2x8xf32> to vector<1x8xf32>
    %1484 = vector.extract_strided_slice %1480 {offsets = [0, 0], sizes = [8, 8], strides = [1, 1]} : vector<8x32xf32> to vector<8x8xf32>
    %1485 = vector.extract_strided_slice %1481 {offsets = [0, 0], sizes = [8, 8], strides = [1, 1]} : vector<8x32xf32> to vector<8x8xf32>
    %1486 = tpu.transpose %1485, [1, 0] : vector<8x8xf32> -> vector<8x8xf32>
    %1487 = arith.truncf %1484 : vector<8x8xf32> to vector<8x8xbf16>
    %1488 = arith.truncf %1486 : vector<8x8xf32> to vector<8x8xbf16>
    %cst_443 = arith.constant dense<0.000000e+00> : vector<8x8xf32>
    %1489 = tpu.matmul %1487, %1488, %cst_443 {dimension_numbers = #tpu.dot_dimension_numbers<[1], [0], [0], [1], [0, 0, 1, 1], [], []>} : vector<8x8xbf16>, vector<8x8xbf16>, vector<8x8xf32> -> vector<8x8xf32>
    %1490 = vector.broadcast %1483 : vector<1x8xf32> to vector<8x8xf32>
    %1491 = arith.addf %1489, %1490 : vector<8x8xf32>
    %cst_444 = arith.constant dense<0xFF800000> : vector<8xf32>
    %1492 = vector.multi_reduction <maximumf>, %1491, %cst_444 [1] : vector<8x8xf32> to vector<8xf32>
    %1493 = vector.shape_cast %1492 : vector<8xf32> to vector<8x1xf32>
    %1494 = vector.broadcast %1493 : vector<8x1xf32> to vector<8x8xf32>
    %1495 = arith.subf %1491, %1494 : vector<8x8xf32>
    %1496 = math.exp %1495 : vector<8x8xf32>
    %cst_445 = arith.constant dense<0.000000e+00> : vector<8xf32>
    %1497 = vector.multi_reduction <add>, %1496, %cst_445 [1] : vector<8x8xf32> to vector<8xf32>
    %1498 = vector.shape_cast %1497 : vector<8xf32> to vector<8x1xf32>
    %1499 = tpu.reciprocal %1498 {approx = true} : vector<8x1xf32> -> vector<8x1xf32>
    %1500 = vector.broadcast %1499 : vector<8x1xf32> to vector<8x8xf32>
    %1501 = arith.mulf %1496, %1500 : vector<8x8xf32>
    %1502 = vector.extract_strided_slice %1482 {offsets = [0, 0], sizes = [8, 8], strides = [1, 1]} : vector<8x32xf32> to vector<8x8xf32>
    %1503 = arith.truncf %1501 : vector<8x8xf32> to vector<8x8xbf16>
    %1504 = arith.truncf %1502 : vector<8x8xf32> to vector<8x8xbf16>
    %cst_446 = arith.constant dense<0.000000e+00> : vector<8x8xf32>
    %1505 = tpu.matmul %1503, %1504, %cst_446 {dimension_numbers = #tpu.dot_dimension_numbers<[1], [0], [0], [1], [0, 0, 1, 1], [], []>} : vector<8x8xbf16>, vector<8x8xbf16>, vector<8x8xf32> -> vector<8x8xf32>
    %1506 = vector.extract_strided_slice %1480 {offsets = [0, 8], sizes = [8, 8], strides = [1, 1]} : vector<8x32xf32> to vector<8x8xf32>
    %1507 = vector.extract_strided_slice %1481 {offsets = [0, 8], sizes = [8, 8], strides = [1, 1]} : vector<8x32xf32> to vector<8x8xf32>
    %1508 = tpu.transpose %1507, [1, 0] : vector<8x8xf32> -> vector<8x8xf32>
    %1509 = arith.truncf %1506 : vector<8x8xf32> to vector<8x8xbf16>
    %1510 = arith.truncf %1508 : vector<8x8xf32> to vector<8x8xbf16>
    %cst_447 = arith.constant dense<0.000000e+00> : vector<8x8xf32>
    %1511 = tpu.matmul %1509, %1510, %cst_447 {dimension_numbers = #tpu.dot_dimension_numbers<[1], [0], [0], [1], [0, 0, 1, 1], [], []>} : vector<8x8xbf16>, vector<8x8xbf16>, vector<8x8xf32> -> vector<8x8xf32>
    %1512 = vector.broadcast %1483 : vector<1x8xf32> to vector<8x8xf32>
    %1513 = arith.addf %1511, %1512 : vector<8x8xf32>
    %cst_448 = arith.constant dense<0xFF800000> : vector<8xf32>
    %1514 = vector.multi_reduction <maximumf>, %1513, %cst_448 [1] : vector<8x8xf32> to vector<8xf32>
    %1515 = vector.shape_cast %1514 : vector<8xf32> to vector<8x1xf32>
    %1516 = vector.broadcast %1515 : vector<8x1xf32> to vector<8x8xf32>
    %1517 = arith.subf %1513, %1516 : vector<8x8xf32>
    %1518 = math.exp %1517 : vector<8x8xf32>
    %cst_449 = arith.constant dense<0.000000e+00> : vector<8xf32>
    %1519 = vector.multi_reduction <add>, %1518, %cst_449 [1] : vector<8x8xf32> to vector<8xf32>
    %1520 = vector.shape_cast %1519 : vector<8xf32> to vector<8x1xf32>
    %1521 = tpu.reciprocal %1520 {approx = true} : vector<8x1xf32> -> vector<8x1xf32>
    %1522 = vector.broadcast %1521 : vector<8x1xf32> to vector<8x8xf32>
    %1523 = arith.mulf %1518, %1522 : vector<8x8xf32>
    %1524 = vector.extract_strided_slice %1482 {offsets = [0, 8], sizes = [8, 8], strides = [1, 1]} : vector<8x32xf32> to vector<8x8xf32>
    %1525 = arith.truncf %1523 : vector<8x8xf32> to vector<8x8xbf16>
    %1526 = arith.truncf %1524 : vector<8x8xf32> to vector<8x8xbf16>
    %cst_450 = arith.constant dense<0.000000e+00> : vector<8x8xf32>
    %1527 = tpu.matmul %1525, %1526, %cst_450 {dimension_numbers = #tpu.dot_dimension_numbers<[1], [0], [0], [1], [0, 0, 1, 1], [], []>} : vector<8x8xbf16>, vector<8x8xbf16>, vector<8x8xf32> -> vector<8x8xf32>
    %1528 = vector.extract_strided_slice %1480 {offsets = [0, 16], sizes = [8, 8], strides = [1, 1]} : vector<8x32xf32> to vector<8x8xf32>
    %1529 = vector.extract_strided_slice %1481 {offsets = [0, 16], sizes = [8, 8], strides = [1, 1]} : vector<8x32xf32> to vector<8x8xf32>
    %1530 = tpu.transpose %1529, [1, 0] : vector<8x8xf32> -> vector<8x8xf32>
    %1531 = arith.truncf %1528 : vector<8x8xf32> to vector<8x8xbf16>
    %1532 = arith.truncf %1530 : vector<8x8xf32> to vector<8x8xbf16>
    %cst_451 = arith.constant dense<0.000000e+00> : vector<8x8xf32>
    %1533 = tpu.matmul %1531, %1532, %cst_451 {dimension_numbers = #tpu.dot_dimension_numbers<[1], [0], [0], [1], [0, 0, 1, 1], [], []>} : vector<8x8xbf16>, vector<8x8xbf16>, vector<8x8xf32> -> vector<8x8xf32>
    %1534 = vector.broadcast %1483 : vector<1x8xf32> to vector<8x8xf32>
    %1535 = arith.addf %1533, %1534 : vector<8x8xf32>
    %cst_452 = arith.constant dense<0xFF800000> : vector<8xf32>
    %1536 = vector.multi_reduction <maximumf>, %1535, %cst_452 [1] : vector<8x8xf32> to vector<8xf32>
    %1537 = vector.shape_cast %1536 : vector<8xf32> to vector<8x1xf32>
    %1538 = vector.broadcast %1537 : vector<8x1xf32> to vector<8x8xf32>
    %1539 = arith.subf %1535, %1538 : vector<8x8xf32>
    %1540 = math.exp %1539 : vector<8x8xf32>
    %cst_453 = arith.constant dense<0.000000e+00> : vector<8xf32>
    %1541 = vector.multi_reduction <add>, %1540, %cst_453 [1] : vector<8x8xf32> to vector<8xf32>
    %1542 = vector.shape_cast %1541 : vector<8xf32> to vector<8x1xf32>
    %1543 = tpu.reciprocal %1542 {approx = true} : vector<8x1xf32> -> vector<8x1xf32>
    %1544 = vector.broadcast %1543 : vector<8x1xf32> to vector<8x8xf32>
    %1545 = arith.mulf %1540, %1544 : vector<8x8xf32>
    %1546 = vector.extract_strided_slice %1482 {offsets = [0, 16], sizes = [8, 8], strides = [1, 1]} : vector<8x32xf32> to vector<8x8xf32>
    %1547 = arith.truncf %1545 : vector<8x8xf32> to vector<8x8xbf16>
    %1548 = arith.truncf %1546 : vector<8x8xf32> to vector<8x8xbf16>
    %cst_454 = arith.constant dense<0.000000e+00> : vector<8x8xf32>
    %1549 = tpu.matmul %1547, %1548, %cst_454 {dimension_numbers = #tpu.dot_dimension_numbers<[1], [0], [0], [1], [0, 0, 1, 1], [], []>} : vector<8x8xbf16>, vector<8x8xbf16>, vector<8x8xf32> -> vector<8x8xf32>
    %1550 = vector.extract_strided_slice %1480 {offsets = [0, 24], sizes = [8, 8], strides = [1, 1]} : vector<8x32xf32> to vector<8x8xf32>
    %1551 = vector.extract_strided_slice %1481 {offsets = [0, 24], sizes = [8, 8], strides = [1, 1]} : vector<8x32xf32> to vector<8x8xf32>
    %1552 = tpu.transpose %1551, [1, 0] : vector<8x8xf32> -> vector<8x8xf32>
    %1553 = arith.truncf %1550 : vector<8x8xf32> to vector<8x8xbf16>
    %1554 = arith.truncf %1552 : vector<8x8xf32> to vector<8x8xbf16>
    %cst_455 = arith.constant dense<0.000000e+00> : vector<8x8xf32>
    %1555 = tpu.matmul %1553, %1554, %cst_455 {dimension_numbers = #tpu.dot_dimension_numbers<[1], [0], [0], [1], [0, 0, 1, 1], [], []>} : vector<8x8xbf16>, vector<8x8xbf16>, vector<8x8xf32> -> vector<8x8xf32>
    %1556 = vector.broadcast %1483 : vector<1x8xf32> to vector<8x8xf32>
    %1557 = arith.addf %1555, %1556 : vector<8x8xf32>
    %cst_456 = arith.constant dense<0xFF800000> : vector<8xf32>
    %1558 = vector.multi_reduction <maximumf>, %1557, %cst_456 [1] : vector<8x8xf32> to vector<8xf32>
    %1559 = vector.shape_cast %1558 : vector<8xf32> to vector<8x1xf32>
    %1560 = vector.broadcast %1559 : vector<8x1xf32> to vector<8x8xf32>
    %1561 = arith.subf %1557, %1560 : vector<8x8xf32>
    %1562 = math.exp %1561 : vector<8x8xf32>
    %cst_457 = arith.constant dense<0.000000e+00> : vector<8xf32>
    %1563 = vector.multi_reduction <add>, %1562, %cst_457 [1] : vector<8x8xf32> to vector<8xf32>
    %1564 = vector.shape_cast %1563 : vector<8xf32> to vector<8x1xf32>
    %1565 = tpu.reciprocal %1564 {approx = true} : vector<8x1xf32> -> vector<8x1xf32>
    %1566 = vector.broadcast %1565 : vector<8x1xf32> to vector<8x8xf32>
    %1567 = arith.mulf %1562, %1566 : vector<8x8xf32>
    %1568 = vector.extract_strided_slice %1482 {offsets = [0, 24], sizes = [8, 8], strides = [1, 1]} : vector<8x32xf32> to vector<8x8xf32>
    %1569 = arith.truncf %1567 : vector<8x8xf32> to vector<8x8xbf16>
    %1570 = arith.truncf %1568 : vector<8x8xf32> to vector<8x8xbf16>
    %cst_458 = arith.constant dense<0.000000e+00> : vector<8x8xf32>
    %1571 = tpu.matmul %1569, %1570, %cst_458 {dimension_numbers = #tpu.dot_dimension_numbers<[1], [0], [0], [1], [0, 0, 1, 1], [], []>} : vector<8x8xbf16>, vector<8x8xbf16>, vector<8x8xf32> -> vector<8x8xf32>
    %1572 = tpu.concatenate %1505, %1527, %1549, %1571 in 1 : vector<8x8xf32>, vector<8x8xf32>, vector<8x8xf32>, vector<8x8xf32> -> vector<8x32xf32>
    %1573 = tpu.concatenate %1501, %1523, %1545, %1567 in 1 : vector<8x8xf32>, vector<8x8xf32>, vector<8x8xf32>, vector<8x8xf32> -> vector<8x32xf32>
    %c1_459 = arith.constant 1 : index
    %c1_460 = arith.constant 1 : index
    %c0_461 = arith.constant 0 : index
    %c0_462 = arith.constant 0 : index
    %1574 = vector.load %arg42[%c1_459, %c1_460, %c0_461, %c0_462] : memref<2x2x8x32xf32, #tpu.memory_space<vmem>>, vector<1x1x8x32xf32>
    %1575 = vector.shape_cast %1574 : vector<1x1x8x32xf32> to vector<8x32xf32>
    %1576 = vector.shape_cast %1573 : vector<8x32xf32> to vector<1x1x8x32xf32>
    tpu.vector_store %arg42[%c1_459, %c1_460, %c0_461, %c0_462], %1576 {strides = array<i32>} : memref<2x2x8x32xf32, #tpu.memory_space<vmem>>, vector<1x1x8x32xf32>,
    %1577 = tpu.concatenate %1475, %1572 in 0 : vector<8x32xf32>, vector<8x32xf32> -> vector<16x32xf32>
    %c1_463 = arith.constant 1 : index
    %c0_464 = arith.constant 0 : index
    %c0_465 = arith.constant 0 : index
    %1578 = vector.load %arg25[%c1_463, %c0_464, %c0_465] : memref<2x32x32xf32, #tpu.memory_space<vmem>>, vector<1x32x32xf32>
    %1579 = vector.shape_cast %1578 : vector<1x32x32xf32> to vector<32x32xf32>
    %1580 = arith.truncf %1577 : vector<16x32xf32> to vector<16x32xbf16>
    %1581 = arith.truncf %1579 : vector<32x32xf32> to vector<32x32xbf16>
    %cst_466 = arith.constant dense<0.000000e+00> : vector<16x32xf32>
    %1582 = tpu.matmul %1580, %1581, %cst_466 {dimension_numbers = #tpu.dot_dimension_numbers<[1], [0], [0], [1], [0, 0, 1, 1], [], []>} : vector<16x32xbf16>, vector<32x32xbf16>, vector<16x32xf32> -> vector<16x32xf32>
    %c1_467 = arith.constant 1 : index
    %c0_468 = arith.constant 0 : index
    %c0_469 = arith.constant 0 : index
    %1583 = vector.load %arg26[%c1_467, %c0_468, %c0_469] : memref<2x1x32xf32, #tpu.memory_space<vmem>>, vector<1x1x32xf32>
    %1584 = vector.shape_cast %1583 : vector<1x1x32xf32> to vector<1x32xf32>
    %1585 = vector.broadcast %1584 : vector<1x32xf32> to vector<16x32xf32>
    %1586 = arith.addf %1582, %1585 : vector<16x32xf32>
    %1587 = arith.addf %1360, %1586 : vector<16x32xf32>
    %c1_470 = arith.constant 1 : index
    %c0_471 = arith.constant 0 : index
    %c0_472 = arith.constant 0 : index
    %1588 = vector.load %arg33[%c1_470, %c0_471, %c0_472] : memref<2x1x32xf32, #tpu.memory_space<vmem>>, vector<1x1x32xf32>
    %1589 = vector.shape_cast %1588 : vector<1x1x32xf32> to vector<1x32xf32>
    %c1_473 = arith.constant 1 : index
    %c0_474 = arith.constant 0 : index
    %c0_475 = arith.constant 0 : index
    %1590 = vector.load %arg34[%c1_473, %c0_474, %c0_475] : memref<2x1x32xf32, #tpu.memory_space<vmem>>, vector<1x1x32xf32>
    %1591 = vector.shape_cast %1590 : vector<1x1x32xf32> to vector<1x32xf32>
    %cst_476 = arith.constant dense<0.000000e+00> : vector<16xf32>
    %1592 = vector.multi_reduction <add>, %1587, %cst_476 [1] : vector<16x32xf32> to vector<16xf32>
    %1593 = vector.shape_cast %1592 : vector<16xf32> to vector<16x1xf32>
    %cst_477 = arith.constant 3.200000e+01 : f32
    %1594 = vector.broadcast %cst_477 : f32 to vector<16x1xf32>
    %1595 = arith.divf %1593, %1594 : vector<16x1xf32>
    %1596 = vector.broadcast %1595 : vector<16x1xf32> to vector<16x32xf32>
    %1597 = arith.subf %1587, %1596 : vector<16x32xf32>
    %1598 = arith.mulf %1597, %1597 : vector<16x32xf32>
    %cst_478 = arith.constant dense<0.000000e+00> : vector<16xf32>
    %1599 = vector.multi_reduction <add>, %1598, %cst_478 [1] : vector<16x32xf32> to vector<16xf32>
    %1600 = vector.shape_cast %1599 : vector<16xf32> to vector<16x1xf32>
    %cst_479 = arith.constant 3.200000e+01 : f32
    %1601 = vector.broadcast %cst_479 : f32 to vector<16x1xf32>
    %1602 = arith.divf %1600, %1601 : vector<16x1xf32>
    %1603 = vector.broadcast %1595 : vector<16x1xf32> to vector<16x32xf32>
    %1604 = arith.subf %1587, %1603 : vector<16x32xf32>
    %cst_480 = arith.constant 9.99999974E-6 : f32
    %1605 = vector.broadcast %cst_480 : f32 to vector<16x1xf32>
    %1606 = arith.addf %1602, %1605 : vector<16x1xf32>
    %1607 = math.rsqrt %1606 : vector<16x1xf32>
    %1608 = vector.broadcast %1607 : vector<16x1xf32> to vector<16x32xf32>
    %1609 = arith.mulf %1604, %1608 : vector<16x32xf32>
    %1610 = vector.broadcast %1589 : vector<1x32xf32> to vector<16x32xf32>
    %1611 = arith.mulf %1609, %1610 : vector<16x32xf32>
    %1612 = vector.broadcast %1591 : vector<1x32xf32> to vector<16x32xf32>
    %1613 = arith.addf %1611, %1612 : vector<16x32xf32>
    %c1_481 = arith.constant 1 : index
    %c0_482 = arith.constant 0 : index
    %c0_483 = arith.constant 0 : index
    %1614 = vector.load %arg27[%c1_481, %c0_482, %c0_483] : memref<2x32x64xf32, #tpu.memory_space<vmem>>, vector<1x32x64xf32>
    %1615 = vector.shape_cast %1614 : vector<1x32x64xf32> to vector<32x64xf32>
    %1616 = arith.truncf %1613 : vector<16x32xf32> to vector<16x32xbf16>
    %1617 = arith.truncf %1615 : vector<32x64xf32> to vector<32x64xbf16>
    %cst_484 = arith.constant dense<0.000000e+00> : vector<16x64xf32>
    %1618 = tpu.matmul %1616, %1617, %cst_484 {dimension_numbers = #tpu.dot_dimension_numbers<[1], [0], [0], [1], [0, 0, 1, 1], [], []>} : vector<16x32xbf16>, vector<32x64xbf16>, vector<16x64xf32> -> vector<16x64xf32>
    %c1_485 = arith.constant 1 : index
    %c0_486 = arith.constant 0 : index
    %c0_487 = arith.constant 0 : index
    %1619 = vector.load %arg28[%c1_485, %c0_486, %c0_487] : memref<2x1x64xf32, #tpu.memory_space<vmem>>, vector<1x1x64xf32>
    %1620 = vector.shape_cast %1619 : vector<1x1x64xf32> to vector<1x64xf32>
    %1621 = vector.broadcast %1620 : vector<1x64xf32> to vector<16x64xf32>
    %1622 = arith.addf %1618, %1621 : vector<16x64xf32>
    %cst_488 = arith.constant 0.000000e+00 : f32
    %1623 = vector.broadcast %cst_488 : f32 to vector<16x64xf32>
    %1624 = arith.maximumf %1622, %1623 : vector<16x64xf32>
    %c1_489 = arith.constant 1 : index
    %c0_490 = arith.constant 0 : index
    %c0_491 = arith.constant 0 : index
    %1625 = vector.load %arg29[%c1_489, %c0_490, %c0_491] : memref<2x64x32xf32, #tpu.memory_space<vmem>>, vector<1x64x32xf32>
    %1626 = vector.shape_cast %1625 : vector<1x64x32xf32> to vector<64x32xf32>
    %1627 = arith.truncf %1624 : vector<16x64xf32> to vector<16x64xbf16>
    %1628 = arith.truncf %1626 : vector<64x32xf32> to vector<64x32xbf16>
    %cst_492 = arith.constant dense<0.000000e+00> : vector<16x32xf32>
    %1629 = tpu.matmul %1627, %1628, %cst_492 {dimension_numbers = #tpu.dot_dimension_numbers<[1], [0], [0], [1], [0, 0, 1, 1], [], []>} : vector<16x64xbf16>, vector<64x32xbf16>, vector<16x32xf32> -> vector<16x32xf32>
    %c1_493 = arith.constant 1 : index
    %c0_494 = arith.constant 0 : index
    %c0_495 = arith.constant 0 : index
    %1630 = vector.load %arg30[%c1_493, %c0_494, %c0_495] : memref<2x1x32xf32, #tpu.memory_space<vmem>>, vector<1x1x32xf32>
    %1631 = vector.shape_cast %1630 : vector<1x1x32xf32> to vector<1x32xf32>
    %1632 = vector.broadcast %1631 : vector<1x32xf32> to vector<16x32xf32>
    %1633 = arith.addf %1629, %1632 : vector<16x32xf32>
    %1634 = arith.addf %1613, %1633 : vector<16x32xf32>
    %c1_496 = arith.constant 1 : index
    %c0_497 = arith.constant 0 : index
    %c0_498 = arith.constant 0 : index
    %1635 = vector.load %arg35[%c1_496, %c0_497, %c0_498] : memref<2x1x32xf32, #tpu.memory_space<vmem>>, vector<1x1x32xf32>
    %1636 = vector.shape_cast %1635 : vector<1x1x32xf32> to vector<1x32xf32>
    %c1_499 = arith.constant 1 : index
    %c0_500 = arith.constant 0 : index
    %c0_501 = arith.constant 0 : index
    %1637 = vector.load %arg36[%c1_499, %c0_500, %c0_501] : memref<2x1x32xf32, #tpu.memory_space<vmem>>, vector<1x1x32xf32>
    %1638 = vector.shape_cast %1637 : vector<1x1x32xf32> to vector<1x32xf32>
    %cst_502 = arith.constant dense<0.000000e+00> : vector<16xf32>
    %1639 = vector.multi_reduction <add>, %1634, %cst_502 [1] : vector<16x32xf32> to vector<16xf32>
    %1640 = vector.shape_cast %1639 : vector<16xf32> to vector<16x1xf32>
    %cst_503 = arith.constant 3.200000e+01 : f32
    %1641 = vector.broadcast %cst_503 : f32 to vector<16x1xf32>
    %1642 = arith.divf %1640, %1641 : vector<16x1xf32>
    %1643 = vector.broadcast %1642 : vector<16x1xf32> to vector<16x32xf32>
    %1644 = arith.subf %1634, %1643 : vector<16x32xf32>
    %1645 = arith.mulf %1644, %1644 : vector<16x32xf32>
    %cst_504 = arith.constant dense<0.000000e+00> : vector<16xf32>
    %1646 = vector.multi_reduction <add>, %1645, %cst_504 [1] : vector<16x32xf32> to vector<16xf32>
    %1647 = vector.shape_cast %1646 : vector<16xf32> to vector<16x1xf32>
    %cst_505 = arith.constant 3.200000e+01 : f32
    %1648 = vector.broadcast %cst_505 : f32 to vector<16x1xf32>
    %1649 = arith.divf %1647, %1648 : vector<16x1xf32>
    %1650 = vector.broadcast %1642 : vector<16x1xf32> to vector<16x32xf32>
    %1651 = arith.subf %1634, %1650 : vector<16x32xf32>
    %cst_506 = arith.constant 9.99999974E-6 : f32
    %1652 = vector.broadcast %cst_506 : f32 to vector<16x1xf32>
    %1653 = arith.addf %1649, %1652 : vector<16x1xf32>
    %1654 = math.rsqrt %1653 : vector<16x1xf32>
    %1655 = vector.broadcast %1654 : vector<16x1xf32> to vector<16x32xf32>
    %1656 = arith.mulf %1651, %1655 : vector<16x32xf32>
    %1657 = vector.broadcast %1636 : vector<1x32xf32> to vector<16x32xf32>
    %1658 = arith.mulf %1656, %1657 : vector<16x32xf32>
    %1659 = vector.broadcast %1638 : vector<1x32xf32> to vector<16x32xf32>
    %1660 = arith.addf %1658, %1659 : vector<16x32xf32>
    %c0_507 = arith.constant 0 : index
    %c0_508 = arith.constant 0 : index
    %1661 = vector.load %arg37[%c0_507, %c0_508] : memref<32x60xf32, #tpu.memory_space<vmem>>, vector<32x60xf32>
    %1662 = arith.truncf %1660 : vector<16x32xf32> to vector<16x32xbf16>
    %1663 = arith.truncf %1661 : vector<32x60xf32> to vector<32x60xbf16>
    %cst_509 = arith.constant dense<0.000000e+00> : vector<16x60xf32>
    %1664 = tpu.matmul %1662, %1663, %cst_509 {dimension_numbers = #tpu.dot_dimension_numbers<[1], [0], [0], [1], [0, 0, 1, 1], [], []>} : vector<16x32xbf16>, vector<32x60xbf16>, vector<16x60xf32> -> vector<16x60xf32>
    %c0_510 = arith.constant 0 : index
    %c0_511 = arith.constant 0 : index
    %1665 = vector.load %arg38[%c0_510, %c0_511] : memref<1x60xf32, #tpu.memory_space<vmem>>, vector<1x60xf32>
    %1666 = vector.broadcast %1665 : vector<1x60xf32> to vector<16x60xf32>
    %1667 = arith.addf %1664, %1666 : vector<16x60xf32>
    %c0_512 = arith.constant 0 : index
    %c0_513 = arith.constant 0 : index
    %1668 = vector.load %arg40[%c0_512, %c0_513] : memref<16x60xf32, #tpu.memory_space<vmem>>, vector<16x60xf32>
    tpu.vector_store %arg40[%c0_512, %c0_513], %1667 {strides = array<i32>} : memref<16x60xf32, #tpu.memory_space<vmem>>, vector<16x60xf32>,
    return
  }
  func.func @transform_0(%arg0: i32) -> (i32, i32) {
    %c0_i32 = arith.constant 0 : i32
    %c0_i32_0 = arith.constant 0 : i32
    %c0_i32_1 = arith.constant 0 : i32
    return %c0_i32, %c0_i32_0 : i32, i32
  }
  func.func @transform_1(%arg0: i32) -> (i32, i32) {
    %c0_i32 = arith.constant 0 : i32
    %c0_i32_0 = arith.constant 0 : i32
    %c0_i32_1 = arith.constant 0 : i32
    return %c0_i32, %c0_i32_0 : i32, i32
  }
  func.func @transform_2(%arg0: i32) -> (i32, i32) {
    %c0_i32 = arith.constant 0 : i32
    %c0_i32_0 = arith.constant 0 : i32
    %c0_i32_1 = arith.constant 0 : i32
    return %c0_i32, %c0_i32_0 : i32, i32
  }
  func.func @transform_3(%arg0: i32) -> (i32, i32) {
    %c0_i32 = arith.constant 0 : i32
    %c0_i32_0 = arith.constant 0 : i32
    %c0_i32_1 = arith.constant 0 : i32
    return %c0_i32, %c0_i32_0 : i32, i32
  }
  func.func @transform_4(%arg0: i32) -> (i32, i32, i32) {
    %c0_i32 = arith.constant 0 : i32
    %c0_i32_0 = arith.constant 0 : i32
    %c0_i32_1 = arith.constant 0 : i32
    %c0_i32_2 = arith.constant 0 : i32
    return %c0_i32, %c0_i32_0, %c0_i32_1 : i32, i32, i32
  }
  func.func @transform_5(%arg0: i32) -> (i32, i32, i32) {
    %c0_i32 = arith.constant 0 : i32
    %c0_i32_0 = arith.constant 0 : i32
    %c0_i32_1 = arith.constant 0 : i32
    %c0_i32_2 = arith.constant 0 : i32
    return %c0_i32, %c0_i32_0, %c0_i32_1 : i32, i32, i32
  }
  func.func @transform_6(%arg0: i32) -> (i32, i32, i32) {
    %c0_i32 = arith.constant 0 : i32
    %c0_i32_0 = arith.constant 0 : i32
    %c0_i32_1 = arith.constant 0 : i32
    %c0_i32_2 = arith.constant 0 : i32
    return %c0_i32, %c0_i32_0, %c0_i32_1 : i32, i32, i32
  }
  func.func @transform_7(%arg0: i32) -> (i32, i32, i32) {
    %c0_i32 = arith.constant 0 : i32
    %c0_i32_0 = arith.constant 0 : i32
    %c0_i32_1 = arith.constant 0 : i32
    %c0_i32_2 = arith.constant 0 : i32
    return %c0_i32, %c0_i32_0, %c0_i32_1 : i32, i32, i32
  }
  func.func @transform_8(%arg0: i32) -> (i32, i32, i32) {
    %c0_i32 = arith.constant 0 : i32
    %c0_i32_0 = arith.constant 0 : i32
    %c0_i32_1 = arith.constant 0 : i32
    %c0_i32_2 = arith.constant 0 : i32
    return %c0_i32, %c0_i32_0, %c0_i32_1 : i32, i32, i32
  }
  func.func @transform_9(%arg0: i32) -> (i32, i32, i32) {
    %c0_i32 = arith.constant 0 : i32
    %c0_i32_0 = arith.constant 0 : i32
    %c0_i32_1 = arith.constant 0 : i32
    %c0_i32_2 = arith.constant 0 : i32
    return %c0_i32, %c0_i32_0, %c0_i32_1 : i32, i32, i32
  }
  func.func @transform_10(%arg0: i32) -> (i32, i32, i32) {
    %c0_i32 = arith.constant 0 : i32
    %c0_i32_0 = arith.constant 0 : i32
    %c0_i32_1 = arith.constant 0 : i32
    %c0_i32_2 = arith.constant 0 : i32
    return %c0_i32, %c0_i32_0, %c0_i32_1 : i32, i32, i32
  }
  func.func @transform_11(%arg0: i32) -> (i32, i32, i32) {
    %c0_i32 = arith.constant 0 : i32
    %c0_i32_0 = arith.constant 0 : i32
    %c0_i32_1 = arith.constant 0 : i32
    %c0_i32_2 = arith.constant 0 : i32
    return %c0_i32, %c0_i32_0, %c0_i32_1 : i32, i32, i32
  }
  func.func @transform_12(%arg0: i32) -> (i32, i32, i32) {
    %c0_i32 = arith.constant 0 : i32
    %c0_i32_0 = arith.constant 0 : i32
    %c0_i32_1 = arith.constant 0 : i32
    %c0_i32_2 = arith.constant 0 : i32
    return %c0_i32, %c0_i32_0, %c0_i32_1 : i32, i32, i32
  }
  func.func @transform_13(%arg0: i32) -> (i32, i32, i32) {
    %c0_i32 = arith.constant 0 : i32
    %c0_i32_0 = arith.constant 0 : i32
    %c0_i32_1 = arith.constant 0 : i32
    %c0_i32_2 = arith.constant 0 : i32
    return %c0_i32, %c0_i32_0, %c0_i32_1 : i32, i32, i32
  }
  func.func @transform_14(%arg0: i32) -> (i32, i32, i32) {
    %c0_i32 = arith.constant 0 : i32
    %c0_i32_0 = arith.constant 0 : i32
    %c0_i32_1 = arith.constant 0 : i32
    %c0_i32_2 = arith.constant 0 : i32
    return %c0_i32, %c0_i32_0, %c0_i32_1 : i32, i32, i32
  }
  func.func @transform_15(%arg0: i32) -> (i32, i32, i32) {
    %c0_i32 = arith.constant 0 : i32
    %c0_i32_0 = arith.constant 0 : i32
    %c0_i32_1 = arith.constant 0 : i32
    %c0_i32_2 = arith.constant 0 : i32
    return %c0_i32, %c0_i32_0, %c0_i32_1 : i32, i32, i32
  }
  func.func @transform_16(%arg0: i32) -> (i32, i32, i32) {
    %c0_i32 = arith.constant 0 : i32
    %c0_i32_0 = arith.constant 0 : i32
    %c0_i32_1 = arith.constant 0 : i32
    %c0_i32_2 = arith.constant 0 : i32
    return %c0_i32, %c0_i32_0, %c0_i32_1 : i32, i32, i32
  }
  func.func @transform_17(%arg0: i32) -> (i32, i32, i32) {
    %c0_i32 = arith.constant 0 : i32
    %c0_i32_0 = arith.constant 0 : i32
    %c0_i32_1 = arith.constant 0 : i32
    %c0_i32_2 = arith.constant 0 : i32
    return %c0_i32, %c0_i32_0, %c0_i32_1 : i32, i32, i32
  }
  func.func @transform_18(%arg0: i32) -> (i32, i32, i32) {
    %c0_i32 = arith.constant 0 : i32
    %c0_i32_0 = arith.constant 0 : i32
    %c0_i32_1 = arith.constant 0 : i32
    %c0_i32_2 = arith.constant 0 : i32
    return %c0_i32, %c0_i32_0, %c0_i32_1 : i32, i32, i32
  }
  func.func @transform_19(%arg0: i32) -> (i32, i32, i32) {
    %c0_i32 = arith.constant 0 : i32
    %c0_i32_0 = arith.constant 0 : i32
    %c0_i32_1 = arith.constant 0 : i32
    %c0_i32_2 = arith.constant 0 : i32
    return %c0_i32, %c0_i32_0, %c0_i32_1 : i32, i32, i32
  }
  func.func @transform_20(%arg0: i32) -> (i32, i32, i32) {
    %c0_i32 = arith.constant 0 : i32
    %c0_i32_0 = arith.constant 0 : i32
    %c0_i32_1 = arith.constant 0 : i32
    %c0_i32_2 = arith.constant 0 : i32
    return %c0_i32, %c0_i32_0, %c0_i32_1 : i32, i32, i32
  }
  func.func @transform_21(%arg0: i32) -> (i32, i32, i32) {
    %c0_i32 = arith.constant 0 : i32
    %c0_i32_0 = arith.constant 0 : i32
    %c0_i32_1 = arith.constant 0 : i32
    %c0_i32_2 = arith.constant 0 : i32
    return %c0_i32, %c0_i32_0, %c0_i32_1 : i32, i32, i32
  }
  func.func @transform_22(%arg0: i32) -> (i32, i32, i32) {
    %c0_i32 = arith.constant 0 : i32
    %c0_i32_0 = arith.constant 0 : i32
    %c0_i32_1 = arith.constant 0 : i32
    %c0_i32_2 = arith.constant 0 : i32
    return %c0_i32, %c0_i32_0, %c0_i32_1 : i32, i32, i32
  }
  func.func @transform_23(%arg0: i32) -> (i32, i32, i32) {
    %c0_i32 = arith.constant 0 : i32
    %c0_i32_0 = arith.constant 0 : i32
    %c0_i32_1 = arith.constant 0 : i32
    %c0_i32_2 = arith.constant 0 : i32
    return %c0_i32, %c0_i32_0, %c0_i32_1 : i32, i32, i32
  }
  func.func @transform_24(%arg0: i32) -> (i32, i32, i32) {
    %c0_i32 = arith.constant 0 : i32
    %c0_i32_0 = arith.constant 0 : i32
    %c0_i32_1 = arith.constant 0 : i32
    %c0_i32_2 = arith.constant 0 : i32
    return %c0_i32, %c0_i32_0, %c0_i32_1 : i32, i32, i32
  }
  func.func @transform_25(%arg0: i32) -> (i32, i32, i32) {
    %c0_i32 = arith.constant 0 : i32
    %c0_i32_0 = arith.constant 0 : i32
    %c0_i32_1 = arith.constant 0 : i32
    %c0_i32_2 = arith.constant 0 : i32
    return %c0_i32, %c0_i32_0, %c0_i32_1 : i32, i32, i32
  }
  func.func @transform_26(%arg0: i32) -> (i32, i32, i32) {
    %c0_i32 = arith.constant 0 : i32
    %c0_i32_0 = arith.constant 0 : i32
    %c0_i32_1 = arith.constant 0 : i32
    %c0_i32_2 = arith.constant 0 : i32
    return %c0_i32, %c0_i32_0, %c0_i32_1 : i32, i32, i32
  }
  func.func @transform_27(%arg0: i32) -> (i32, i32, i32) {
    %c0_i32 = arith.constant 0 : i32
    %c0_i32_0 = arith.constant 0 : i32
    %c0_i32_1 = arith.constant 0 : i32
    %c0_i32_2 = arith.constant 0 : i32
    return %c0_i32, %c0_i32_0, %c0_i32_1 : i32, i32, i32
  }
  func.func @transform_28(%arg0: i32) -> (i32, i32, i32) {
    %c0_i32 = arith.constant 0 : i32
    %c0_i32_0 = arith.constant 0 : i32
    %c0_i32_1 = arith.constant 0 : i32
    %c0_i32_2 = arith.constant 0 : i32
    return %c0_i32, %c0_i32_0, %c0_i32_1 : i32, i32, i32
  }
  func.func @transform_29(%arg0: i32) -> (i32, i32, i32) {
    %c0_i32 = arith.constant 0 : i32
    %c0_i32_0 = arith.constant 0 : i32
    %c0_i32_1 = arith.constant 0 : i32
    %c0_i32_2 = arith.constant 0 : i32
    return %c0_i32, %c0_i32_0, %c0_i32_1 : i32, i32, i32
  }
  func.func @transform_30(%arg0: i32) -> (i32, i32, i32) {
    %c0_i32 = arith.constant 0 : i32
    %c0_i32_0 = arith.constant 0 : i32
    %c0_i32_1 = arith.constant 0 : i32
    %c0_i32_2 = arith.constant 0 : i32
    return %c0_i32, %c0_i32_0, %c0_i32_1 : i32, i32, i32
  }
  func.func @transform_31(%arg0: i32) -> (i32, i32, i32) {
    %c0_i32 = arith.constant 0 : i32
    %c0_i32_0 = arith.constant 0 : i32
    %c0_i32_1 = arith.constant 0 : i32
    %c0_i32_2 = arith.constant 0 : i32
    return %c0_i32, %c0_i32_0, %c0_i32_1 : i32, i32, i32
  }
  func.func @transform_32(%arg0: i32) -> (i32, i32, i32) {
    %c0_i32 = arith.constant 0 : i32
    %c0_i32_0 = arith.constant 0 : i32
    %c0_i32_1 = arith.constant 0 : i32
    %c0_i32_2 = arith.constant 0 : i32
    return %c0_i32, %c0_i32_0, %c0_i32_1 : i32, i32, i32
  }
  func.func @transform_33(%arg0: i32) -> (i32, i32, i32) {
    %c0_i32 = arith.constant 0 : i32
    %c0_i32_0 = arith.constant 0 : i32
    %c0_i32_1 = arith.constant 0 : i32
    %c0_i32_2 = arith.constant 0 : i32
    return %c0_i32, %c0_i32_0, %c0_i32_1 : i32, i32, i32
  }
  func.func @transform_34(%arg0: i32) -> (i32, i32, i32) {
    %c0_i32 = arith.constant 0 : i32
    %c0_i32_0 = arith.constant 0 : i32
    %c0_i32_1 = arith.constant 0 : i32
    %c0_i32_2 = arith.constant 0 : i32
    return %c0_i32, %c0_i32_0, %c0_i32_1 : i32, i32, i32
  }
  func.func @transform_35(%arg0: i32) -> (i32, i32, i32) {
    %c0_i32 = arith.constant 0 : i32
    %c0_i32_0 = arith.constant 0 : i32
    %c0_i32_1 = arith.constant 0 : i32
    %c0_i32_2 = arith.constant 0 : i32
    return %c0_i32, %c0_i32_0, %c0_i32_1 : i32, i32, i32
  }
  func.func @transform_36(%arg0: i32) -> (i32, i32) {
    %c0_i32 = arith.constant 0 : i32
    %c0_i32_0 = arith.constant 0 : i32
    %c0_i32_1 = arith.constant 0 : i32
    return %c0_i32, %c0_i32_0 : i32, i32
  }
  func.func @transform_37(%arg0: i32) -> (i32, i32) {
    %c0_i32 = arith.constant 0 : i32
    %c0_i32_0 = arith.constant 0 : i32
    %c0_i32_1 = arith.constant 0 : i32
    return %c0_i32, %c0_i32_0 : i32, i32
  }
  func.func @transform_38(%arg0: i32) -> (i32, i32) {
    %c0_i32 = arith.constant 0 : i32
    %c0_i32_0 = arith.constant 0 : i32
    %c0_i32_1 = arith.constant 0 : i32
    return %c0_i32, %c0_i32_0 : i32, i32
  }
  func.func @transform_39(%arg0: i32) -> (i32, i32) {
    %c0_i32 = arith.constant 0 : i32
    %c0_i32_0 = arith.constant 0 : i32
    %c0_i32_1 = arith.constant 0 : i32
    return %c0_i32, %c0_i32_0 : i32, i32
  }
  func.func @transform_40(%arg0: i32) -> (i32, i32, i32, i32) {
    %c0_i32 = arith.constant 0 : i32
    %c0_i32_0 = arith.constant 0 : i32
    %c0_i32_1 = arith.constant 0 : i32
    %c0_i32_2 = arith.constant 0 : i32
    %c0_i32_3 = arith.constant 0 : i32
    return %c0_i32, %c0_i32_0, %c0_i32_1, %c0_i32_2 : i32, i32, i32, i32
  }
  func.func @transform_41(%arg0: i32) -> (i32, i32, i32, i32) {
    %c0_i32 = arith.constant 0 : i32
    %c0_i32_0 = arith.constant 0 : i32
    %c0_i32_1 = arith.constant 0 : i32
    %c0_i32_2 = arith.constant 0 : i32
    %c0_i32_3 = arith.constant 0 : i32
    return %c0_i32, %c0_i32_0, %c0_i32_1, %c0_i32_2 : i32, i32, i32, i32
  }
}

</mosaic_0001>

<llo_original>
// kernel: transformer_forward.1
$region0: #{transformer_forward.1}
  #allocation0 [shape = 'u32[]', space=smem, size = 0x4, offset = 0x4, fixed_abs, tag = 'smem constant byte address 0x4 - core index']
  #allocation1 [shape = 'u32[72,128]{1,0:T(1,128)}', space=vmem, size = 0x9000, scoped, tag = 'internal scratch']
  %s0 = inlined_call_operand.smem [shape: u32[42], index: -1, kind: input, shape index: {}]
  %s1 = sld [smem:[%s0]]
  %s2 = scalar_lea.smem %s0, 1
  %s3 = sld [smem:[%s2]]
  %s4 = scalar_lea.smem %s0, 2
  %s5 = sld [smem:[%s4]]
  %s6 = scalar_lea.smem %s0, 3
  %s7 = sld [smem:[%s6]]
  %s8 = scalar_lea.smem %s0, 4
  %s9 = sld [smem:[%s8]]
  %s10 = scalar_lea.smem %s0, 5
  %s11 = sld [smem:[%s10]]
  %s12 = scalar_lea.smem %s0, 6
  %s13 = sld [smem:[%s12]]
  %s14 = scalar_lea.smem %s0, 7
  %s15 = sld [smem:[%s14]]
  %s16 = scalar_lea.smem %s0, 8
  %s17 = sld [smem:[%s16]]
  %s18 = scalar_lea.smem %s0, 9
  %s19 = sld [smem:[%s18]]
  %s20 = scalar_lea.smem %s0, 10
  %s21 = sld [smem:[%s20]]
  %s22 = scalar_lea.smem %s0, 11
  %s23 = sld [smem:[%s22]]
  %s24 = scalar_lea.smem %s0, 12
  %s25 = sld [smem:[%s24]]
  %s26 = scalar_lea.smem %s0, 13
  %s27 = sld [smem:[%s26]]
  %s28 = scalar_lea.smem %s0, 14
  %s29 = sld [smem:[%s28]]
  %s30 = scalar_lea.smem %s0, 15
  %s31 = sld [smem:[%s30]]
  %s32 = scalar_lea.smem %s0, 16
  %s33 = sld [smem:[%s32]]
  %s34 = scalar_lea.smem %s0, 17
  %s35 = sld [smem:[%s34]]
  %s36 = scalar_lea.smem %s0, 18
  %s37 = sld [smem:[%s36]]
  %s38 = scalar_lea.smem %s0, 19
  %s39 = sld [smem:[%s38]]
  %s40 = scalar_lea.smem %s0, 20
  %s41 = sld [smem:[%s40]]
  %s42 = scalar_lea.smem %s0, 21
  %s43 = sld [smem:[%s42]]
  %s44 = scalar_lea.smem %s0, 22
  %s45 = sld [smem:[%s44]]
  %s46 = scalar_lea.smem %s0, 23
  %s47 = sld [smem:[%s46]]
  %s48 = scalar_lea.smem %s0, 24
  %s49 = sld [smem:[%s48]]
  %s50 = scalar_lea.smem %s0, 25
  %s51 = sld [smem:[%s50]]
  %s52 = scalar_lea.smem %s0, 26
  %s53 = sld [smem:[%s52]]
  %s54 = scalar_lea.smem %s0, 27
  %s55 = sld [smem:[%s54]]
  %s56 = scalar_lea.smem %s0, 28
  %s57 = sld [smem:[%s56]]
  %s58 = scalar_lea.smem %s0, 29
  %s59 = sld [smem:[%s58]]
  %s60 = scalar_lea.smem %s0, 30
  %s61 = sld [smem:[%s60]]
  %s62 = scalar_lea.smem %s0, 31
  %s63 = sld [smem:[%s62]]
  %s64 = scalar_lea.smem %s0, 32
  %s65 = sld [smem:[%s64]]
  %s66 = scalar_lea.smem %s0, 33
  %s67 = sld [smem:[%s66]]
  %s68 = scalar_lea.smem %s0, 34
  %s69 = sld [smem:[%s68]]
  %s70 = scalar_lea.smem %s0, 35
  %s71 = sld [smem:[%s70]]
  %s72 = scalar_lea.smem %s0, 36
  %s73 = sld [smem:[%s72]]
  %s74 = scalar_lea.smem %s0, 37
  %s75 = sld [smem:[%s74]]
  %s76 = scalar_lea.smem %s0, 38
  %s77 = sld [smem:[%s76]]
  %s78 = scalar_lea.smem %s0, 39
  %s79 = sld [smem:[%s78]]
  %s80 = scalar_lea.smem %s0, 40
  %s81 = sld [smem:[%s80]]
  %s82 = scalar_lea.smem %s0, 41
  %s83 = sld [smem:[%s82]]
  %84 = xla_tuple %s77, %s79, %s81, %s83
  %s85 = sld [smem:[#allocation0]]
  $region186: #{transformer_forward.1} parent=0
    _
  %s87 = ssub.s32 1, %s85
  %s88 = scalar_select 0, %s87, %s85
  $region1: #{transformer_forward.1} parent=0
    #allocation2 [shape = 'u8[8192]{0}', space=vmem, size = 0x2000, scoped, tag = 'output window, operand 0, single buffered']
    #allocation3 [shape = 's32[1]{0}', space=sflag, size = 0x4, scoped, tag = 'scoped memory for transformer_forward.1']
    #allocation4 [shape = 'u8[8192]{0}', space=vmem, size = 0x2000, scoped, tag = 'output window, operand 1, single buffered']
    #allocation5 [shape = 's32[1]{0}', space=sflag, size = 0x4, scoped, tag = 'scoped memory for transformer_forward.1']
    %89 = vsyncpa [#allocation3], 0
    %90 = vsyncpa [#allocation5], 0
    // Predicated region
    $region2: #{transformer_forward.1} parent=1 // pred_check
      _
    $region3: #{transformer_forward.1} parent=1 // pred_check_branch
      %92 = sbr.rel (0) target = $region5
    $region4: #{transformer_forward.1} parent=1 // pred_region
      _
    $region5: #{transformer_forward.1} parent=1 // pred_fallthru
      _
    // Predicated region
    $region6: #{transformer_forward.1} parent=1 // pred_check
      _
    $region7: #{transformer_forward.1} parent=1 // pred_check_branch
      %94 = sbr.rel (0) target = $region9
    $region8: #{transformer_forward.1} parent=1 // pred_region
      _
    $region9: #{transformer_forward.1} parent=1 // pred_fallthru
      _
    // Predicated region
    $region10: #{transformer_forward.1} parent=1 // pred_check
      _
    $region11: #{transformer_forward.1} parent=1 // pred_check_branch
      %96 = sbr.rel (0) target = $region13
    $region12: #{transformer_forward.1} parent=1 // pred_region
      _
    $region13: #{transformer_forward.1} parent=1 // pred_fallthru
      _
    // Predicated region
    $region14: #{transformer_forward.1} parent=1 // pred_check
      _
    $region15: #{transformer_forward.1} parent=1 // pred_check_branch
      %98 = sbr.rel (0) target = $region17
    $region16: #{transformer_forward.1} parent=1 // pred_region
      _
    $region17: #{transformer_forward.1} parent=1 // pred_fallthru
      _
    // Predicated region
    $region18: #{transformer_forward.1} parent=1 // pred_check
      _
    $region19: #{transformer_forward.1} parent=1 // pred_check_branch
      %100 = sbr.rel (0) target = $region21
    $region20: #{transformer_forward.1} parent=1 // pred_region
      _
    $region21: #{transformer_forward.1} parent=1 // pred_fallthru
      _
    // Predicated region
    $region22: #{transformer_forward.1} parent=1 // pred_check
      _
    $region23: #{transformer_forward.1} parent=1 // pred_check_branch
      %102 = sbr.rel (0) target = $region25
    $region24: #{transformer_forward.1} parent=1 // pred_region
      _
    $region25: #{transformer_forward.1} parent=1 // pred_fallthru
      _
    // Predicated region
    $region26: #{transformer_forward.1} parent=1 // pred_check
      _
    $region27: #{transformer_forward.1} parent=1 // pred_check_branch
      %104 = sbr.rel (0) target = $region29
    $region28: #{transformer_forward.1} parent=1 // pred_region
      _
    $region29: #{transformer_forward.1} parent=1 // pred_fallthru
      _
    // Predicated region
    $region30: #{transformer_forward.1} parent=1 // pred_check
      _
    $region31: #{transformer_forward.1} parent=1 // pred_check_branch
      %106 = sbr.rel (0) target = $region33
    $region32: #{transformer_forward.1} parent=1 // pred_region
      _
    $region33: #{transformer_forward.1} parent=1 // pred_fallthru
      _
    // Predicated region
    $region34: #{transformer_forward.1} parent=1 // pred_check
      _
    $region35: #{transformer_forward.1} parent=1 // pred_check_branch
      %108 = sbr.rel (0) target = $region37
    $region36: #{transformer_forward.1} parent=1 // pred_region
      _
    $region37: #{transformer_forward.1} parent=1 // pred_fallthru
      _
    // Predicated region
    $region38: #{transformer_forward.1} parent=1 // pred_check
      _
    $region39: #{transformer_forward.1} parent=1 // pred_check_branch
      %110 = sbr.rel (0) target = $region41
    $region40: #{transformer_forward.1} parent=1 // pred_region
      _
    $region41: #{transformer_forward.1} parent=1 // pred_fallthru
      _
    // Predicated region
    $region42: #{transformer_forward.1} parent=1 // pred_check
      _
    $region43: #{transformer_forward.1} parent=1 // pred_check_branch
      %112 = sbr.rel (0) target = $region45
    $region44: #{transformer_forward.1} parent=1 // pred_region
      _
    $region45: #{transformer_forward.1} parent=1 // pred_fallthru
      _
    // Predicated region
    $region46: #{transformer_forward.1} parent=1 // pred_check
      _
    $region47: #{transformer_forward.1} parent=1 // pred_check_branch
      %114 = sbr.rel (0) target = $region49
    $region48: #{transformer_forward.1} parent=1 // pred_region
      _
    $region49: #{transformer_forward.1} parent=1 // pred_fallthru
      _
    // Predicated region
    $region50: #{transformer_forward.1} parent=1 // pred_check
      _
    $region51: #{transformer_forward.1} parent=1 // pred_check_branch
      %116 = sbr.rel (0) target = $region53
    $region52: #{transformer_forward.1} parent=1 // pred_region
      _
    $region53: #{transformer_forward.1} parent=1 // pred_fallthru
      _
    // Predicated region
    $region54: #{transformer_forward.1} parent=1 // pred_check
      _
    $region55: #{transformer_forward.1} parent=1 // pred_check_branch
      %118 = sbr.rel (0) target = $region57
    $region56: #{transformer_forward.1} parent=1 // pred_region
      _
    $region57: #{transformer_forward.1} parent=1 // pred_fallthru
      _
    // Predicated region
    $region58: #{transformer_forward.1} parent=1 // pred_check
      _
    $region59: #{transformer_forward.1} parent=1 // pred_check_branch
      %120 = sbr.rel (0) target = $region61
    $region60: #{transformer_forward.1} parent=1 // pred_region
      _
    $region61: #{transformer_forward.1} parent=1 // pred_fallthru
      _
    // Predicated region
    $region62: #{transformer_forward.1} parent=1 // pred_check
      _
    $region63: #{transformer_forward.1} parent=1 // pred_check_branch
      %122 = sbr.rel (0) target = $region65
    $region64: #{transformer_forward.1} parent=1 // pred_region
      _
    $region65: #{transformer_forward.1} parent=1 // pred_fallthru
      _
    // Predicated region
    $region66: #{transformer_forward.1} parent=1 // pred_check
      _
    $region67: #{transformer_forward.1} parent=1 // pred_check_branch
      %124 = sbr.rel (0) target = $region69
    $region68: #{transformer_forward.1} parent=1 // pred_region
      _
    $region69: #{transformer_forward.1} parent=1 // pred_fallthru
      _
    // Predicated region
    $region70: #{transformer_forward.1} parent=1 // pred_check
      _
    $region71: #{transformer_forward.1} parent=1 // pred_check_branch
      %126 = sbr.rel (0) target = $region73
    $region72: #{transformer_forward.1} parent=1 // pred_region
      _
    $region73: #{transformer_forward.1} parent=1 // pred_fallthru
      _
    // Predicated region
    $region74: #{transformer_forward.1} parent=1 // pred_check
      _
    $region75: #{transformer_forward.1} parent=1 // pred_check_branch
      %128 = sbr.rel (0) target = $region77
    $region76: #{transformer_forward.1} parent=1 // pred_region
      _
    $region77: #{transformer_forward.1} parent=1 // pred_fallthru
      _
    // Predicated region
    $region78: #{transformer_forward.1} parent=1 // pred_check
      _
    $region79: #{transformer_forward.1} parent=1 // pred_check_branch
      %130 = sbr.rel (0) target = $region81
    $region80: #{transformer_forward.1} parent=1 // pred_region
      _
    $region81: #{transformer_forward.1} parent=1 // pred_fallthru
      _
    // Predicated region
    $region82: #{transformer_forward.1} parent=1 // pred_check
      _
    $region83: #{transformer_forward.1} parent=1 // pred_check_branch
      %132 = sbr.rel (0) target = $region85
    $region84: #{transformer_forward.1} parent=1 // pred_region
      _
    $region85: #{transformer_forward.1} parent=1 // pred_fallthru
      _
    // Predicated region
    $region86: #{transformer_forward.1} parent=1 // pred_check
      _
    $region87: #{transformer_forward.1} parent=1 // pred_check_branch
      %134 = sbr.rel (0) target = $region89
    $region88: #{transformer_forward.1} parent=1 // pred_region
      _
    $region89: #{transformer_forward.1} parent=1 // pred_fallthru
      _
    // Predicated region
    $region90: #{transformer_forward.1} parent=1 // pred_check
      _
    $region91: #{transformer_forward.1} parent=1 // pred_check_branch
      %136 = sbr.rel (0) target = $region93
    $region92: #{transformer_forward.1} parent=1 // pred_region
      _
    $region93: #{transformer_forward.1} parent=1 // pred_fallthru
      _
    // Predicated region
    $region94: #{transformer_forward.1} parent=1 // pred_check
      _
    $region95: #{transformer_forward.1} parent=1 // pred_check_branch
      %138 = sbr.rel (0) target = $region97
    $region96: #{transformer_forward.1} parent=1 // pred_region
      _
    $region97: #{transformer_forward.1} parent=1 // pred_fallthru
      _
    // Predicated region
    $region98: #{transformer_forward.1} parent=1 // pred_check
      _
    $region99: #{transformer_forward.1} parent=1 // pred_check_branch
      %140 = sbr.rel (0) target = $region101
    $region100: #{transformer_forward.1} parent=1 // pred_region
      _
    $region101: #{transformer_forward.1} parent=1 // pred_fallthru
      _
    // Predicated region
    $region102: #{transformer_forward.1} parent=1 // pred_check
      _
    $region103: #{transformer_forward.1} parent=1 // pred_check_branch
      %142 = sbr.rel (0) target = $region105
    $region104: #{transformer_forward.1} parent=1 // pred_region
      _
    $region105: #{transformer_forward.1} parent=1 // pred_fallthru
      _
    // Predicated region
    $region106: #{transformer_forward.1} parent=1 // pred_check
      _
    $region107: #{transformer_forward.1} parent=1 // pred_check_branch
      %144 = sbr.rel (0) target = $region109
    $region108: #{transformer_forward.1} parent=1 // pred_region
      _
    $region109: #{transformer_forward.1} parent=1 // pred_fallthru
      _
    // Predicated region
    $region110: #{transformer_forward.1} parent=1 // pred_check
      _
    $region111: #{transformer_forward.1} parent=1 // pred_check_branch
      %146 = sbr.rel (0) target = $region113
    $region112: #{transformer_forward.1} parent=1 // pred_region
      _
    $region113: #{transformer_forward.1} parent=1 // pred_fallthru
      _
    // Predicated region
    $region114: #{transformer_forward.1} parent=1 // pred_check
      _
    $region115: #{transformer_forward.1} parent=1 // pred_check_branch
      %148 = sbr.rel (0) target = $region117
    $region116: #{transformer_forward.1} parent=1 // pred_region
      _
    $region117: #{transformer_forward.1} parent=1 // pred_fallthru
      _
    // Predicated region
    $region118: #{transformer_forward.1} parent=1 // pred_check
      _
    $region119: #{transformer_forward.1} parent=1 // pred_check_branch
      %150 = sbr.rel (0) target = $region121
    $region120: #{transformer_forward.1} parent=1 // pred_region
      _
    $region121: #{transformer_forward.1} parent=1 // pred_fallthru
      _
    // Predicated region
    $region122: #{transformer_forward.1} parent=1 // pred_check
      _
    $region123: #{transformer_forward.1} parent=1 // pred_check_branch
      %152 = sbr.rel (0) target = $region125
    $region124: #{transformer_forward.1} parent=1 // pred_region
      _
    $region125: #{transformer_forward.1} parent=1 // pred_fallthru
      _
    // Predicated region
    $region126: #{transformer_forward.1} parent=1 // pred_check
      _
    $region127: #{transformer_forward.1} parent=1 // pred_check_branch
      %154 = sbr.rel (0) target = $region129
    $region128: #{transformer_forward.1} parent=1 // pred_region
      _
    $region129: #{transformer_forward.1} parent=1 // pred_fallthru
      _
    // Predicated region
    $region130: #{transformer_forward.1} parent=1 // pred_check
      _
    $region131: #{transformer_forward.1} parent=1 // pred_check_branch
      %156 = sbr.rel (0) target = $region133
    $region132: #{transformer_forward.1} parent=1 // pred_region
      _
    $region133: #{transformer_forward.1} parent=1 // pred_fallthru
      _
    // Predicated region
    $region134: #{transformer_forward.1} parent=1 // pred_check
      _
    $region135: #{transformer_forward.1} parent=1 // pred_check_branch
      %158 = sbr.rel (0) target = $region137
    $region136: #{transformer_forward.1} parent=1 // pred_region
      _
    $region137: #{transformer_forward.1} parent=1 // pred_fallthru
      _
    // Predicated region
    $region138: #{transformer_forward.1} parent=1 // pred_check
      _
    $region139: #{transformer_forward.1} parent=1 // pred_check_branch
      %160 = sbr.rel (0) target = $region141
    $region140: #{transformer_forward.1} parent=1 // pred_region
      _
    $region141: #{transformer_forward.1} parent=1 // pred_fallthru
      _
    // Predicated region
    $region142: #{transformer_forward.1} parent=1 // pred_check
      _
    $region143: #{transformer_forward.1} parent=1 // pred_check_branch
      %162 = sbr.rel (0) target = $region145
    $region144: #{transformer_forward.1} parent=1 // pred_region
      _
    $region145: #{transformer_forward.1} parent=1 // pred_fallthru
      _
    // Predicated region
    $region146: #{transformer_forward.1} parent=1 // pred_check
      _
    $region147: #{transformer_forward.1} parent=1 // pred_check_branch
      %164 = sbr.rel (0) target = $region149
    $region148: #{transformer_forward.1} parent=1 // pred_region
      _
    $region149: #{transformer_forward.1} parent=1 // pred_fallthru
      _
    // Predicated region
    $region150: #{transformer_forward.1} parent=1 // pred_check
      _
    $region151: #{transformer_forward.1} parent=1 // pred_check_branch
      %166 = sbr.rel (0) target = $region153
    $region152: #{transformer_forward.1} parent=1 // pred_region
      _
    $region153: #{transformer_forward.1} parent=1 // pred_fallthru
      _
    %v168 = vld [vmem:[%s5] sm:$0x3]
    %v169 = vld [vmem:[%s7] sm:$0x3]
    %v170 = vlaneseq
    %v171 = vshrl.u32 %v170, 7
    %v172 = vlaneseq
    %v173 = vand.u32 %v172, 127
    %vm174 = vcmp.gt.s32.totalorder %v173, %v171
    %v175 = vsel %vm174, -1e+09, 0.0
    %v176 = vld [vmem:[%s1] sm:$0xff]
    %v177 = vld [vmem:[%s1 + $0x8] sm:$0xff]
    %v178 = vld [vmem:[%s9] sm:$0xff]
    %v179 = vld [vmem:[%s9 + $0x8] sm:$0xff]
    %v180 = vld [vmem:[%s9 + $0x10] sm:$0xff]
    %v181 = vld [vmem:[%s9 + $0x18] sm:$0xff]
    %v182 = vpack.c.bf16 %v177, %v176
    %v183 = vpack.c.bf16 %v179, %v178
    %v184 = vpack.c.bf16 %v181, %v180
    %v185 = vld [vmem:[%s11] sm:$0x1]
    %v187 = vperm.slane %v185, 0
    %vm189 = vcmask 261120
    %v191 = vsel %vm189, %v182, 0
    %193 = vmatpush.bf16.msra.mxu0 0
    %194 = vmatpush.bf16.msra.mxu0 0
    %195 = vmatpush.bf16.msra.mxu0 0
    %196 = vmatpush.bf16.msra.mxu0 0
    %197 = vmatpush.bf16.msra.mxu0 0
    %198 = vmatpush.bf16.msra.mxu0 0
    %199 = vmatpush.bf16.msra.mxu0 %v184
    %200 = vmatpush.bf16.msra.mxu0 %v183
    %201 = vmatmul.bf16.gmra.mxu0 %v191
    %v202 = vpop.f32.mrf.mxu0
    %v203 = vadd.f32 %v187, %v202
    %v204 = vpop.f32.mrf.mxu0
    %v205 = vadd.f32 %v187, %v204
    %206 = vdwg.mxu0
    %v207 = vmul.f32 %v203, 0.35355338
    %v208 = vmul.f32 %v205, 0.35355338
    %210 = vrot.lane.b32.xlu0 %v203, 96
    %v211 = vpop.permute.xlu0 %210
    %213 = vxpose.xlu0.b32.start [1/16] %v211, 128
    %214 = vxpose.xlu0.b32.cont [2/16] 0.0, 128
    %215 = vxpose.xlu0.b32.cont [3/16] 0.0, 128
    %216 = vxpose.xlu0.b32.cont [4/16] 0.0, 128
    %217 = vxpose.xlu0.b32.cont [5/16] 0.0, 128
    %218 = vxpose.xlu0.b32.cont [6/16] 0.0, 128
    %219 = vxpose.xlu0.b32.cont [7/16] 0.0, 128
    %220 = vxpose.xlu0.b32.cont [8/16] 0.0, 128
    %221 = vxpose.xlu0.b32.cont [9/16] 0.0, 128
    %222 = vxpose.xlu0.b32.cont [10/16] 0.0, 128
    %223 = vxpose.xlu0.b32.cont [11/16] 0.0, 128
    %224 = vxpose.xlu0.b32.cont [12/16] 0.0, 128
    %225 = vxpose.xlu0.b32.cont [13/16] 0.0, 128
    %226 = vxpose.xlu0.b32.cont [14/16] 0.0, 128
    %227 = vxpose.xlu0.b32.cont [15/16] 0.0, 128
    %228 = vxpose.xlu0.b32.end [16/16] 0.0, 128
    %v229 = vpop.trf.xlu0
    %v230 = vpop.trf.xlu0
    %v231 = vpop.trf.xlu0
    %v232 = vpop.trf.xlu0
    %v233 = vpop.trf.xlu0
    %v234 = vpop.trf.xlu0
    %v235 = vpop.trf.xlu0
    %v236 = vpop.trf.xlu0
    %v237 = vpop.trf.xlu0
    %v238 = vpop.trf.xlu0
    %v239 = vpop.trf.xlu0
    %v240 = vpop.trf.xlu0
    %v241 = vpop.trf.xlu0
    %v242 = vpop.trf.xlu0
    %v243 = vpop.trf.xlu0
    %v244 = vpop.trf.xlu0
    %v245 = vpack.c.bf16 %v207, %v207
    %v246 = vpack.c.bf16 %v229, %v229
    %v247 = vperm.slane %v168, 0
    %vm248 = vcmask 64512
    %v250 = vsel %vm248, %v245, 0
    %vm252 = vcmask 1043456
    %v254 = vsel %vm252, %v246, 0
    %256 = vmatpush.bf16.msra.mxu0 0
    %257 = vmatpush.bf16.msra.mxu0 0
    %258 = vmatpush.bf16.msra.mxu0 0
    %259 = vmatpush.bf16.msra.mxu0 0
    %260 = vmatpush.bf16.msra.mxu0 0
    %261 = vmatpush.bf16.msra.mxu0 0
    %262 = vmatpush.bf16.msra.mxu0 0
    %263 = vmatpush.bf16.msra.mxu0 %v254
    %264 = vmatmul.bf16.gmra.mxu0 %v250
    %v265 = vpop.f32.mrf.mxu0
    %v266 = vadd.f32 %v247, %v265
    %v267 = vpop.f32.mrf.mxu0
    %268 = vdwg.mxu0
    %v269 = vsel %vm248, %v266, -inf
    %270 = vmax.xlane.f32.xlu0 %v269
    %v271 = vpop.xlane.xlu0 %270
    %v272 = vsub.f32 %v266, %v271
    %v273 = vmul.f32 %v272, 1.442695
    %v274 = vpow.pop %v273
    %v275 = vsel %vm248, %v274, 0.0
    %276 = vadd.xlane.f32.xlu0 %v275
    %v277 = vpop.xlane.xlu0 %276
    %v278 = vrcp.pop %v277
    %v279 = vmul.f32 %v274, %v278
    %v280 = vpack.c.bf16 %v279, %v279
    %v281 = vpack.c.bf16 %v203, %v203
    %283 = vrot.lane.b32.xlu0 %v281, 64
    %v284 = vpop.permute.xlu0 %283
    %v286 = vsel %vm248, %v280, 0
    %v289 = vsel %vm252, %v284, 0
    %291 = vmatpush.bf16.msra.mxu0 0
    %292 = vmatpush.bf16.msra.mxu0 0
    %293 = vmatpush.bf16.msra.mxu0 0
    %294 = vmatpush.bf16.msra.mxu0 0
    %295 = vmatpush.bf16.msra.mxu0 0
    %296 = vmatpush.bf16.msra.mxu0 0
    %297 = vmatpush.bf16.msra.mxu0 0
    %298 = vmatpush.bf16.msra.mxu0 %v289
    %299 = vmatmul.bf16.gmra.mxu0 %v286
    %v300 = vpop.f32.mrf.mxu0
    %v301 = vadd.f32 0.0, %v300
    %v302 = vpop.f32.mrf.mxu0
    %303 = vdwg.mxu0
    %304 = vrot.lane.b32.xlu0 %v203, 88
    %v305 = vpop.permute.xlu0 %304
    %307 = vxpose.xlu0.b32.start [1/16] %v305, 128
    %308 = vxpose.xlu0.b32.cont [2/16] 0.0, 128
    %309 = vxpose.xlu0.b32.cont [3/16] 0.0, 128
    %310 = vxpose.xlu0.b32.cont [4/16] 0.0, 128
    %311 = vxpose.xlu0.b32.cont [5/16] 0.0, 128
    %312 = vxpose.xlu0.b32.cont [6/16] 0.0, 128
    %313 = vxpose.xlu0.b32.cont [7/16] 0.0, 128
    %314 = vxpose.xlu0.b32.cont [8/16] 0.0, 128
    %315 = vxpose.xlu0.b32.cont [9/16] 0.0, 128
    %316 = vxpose.xlu0.b32.cont [10/16] 0.0, 128
    %317 = vxpose.xlu0.b32.cont [11/16] 0.0, 128
    %318 = vxpose.xlu0.b32.cont [12/16] 0.0, 128
    %319 = vxpose.xlu0.b32.cont [13/16] 0.0, 128
    %320 = vxpose.xlu0.b32.cont [14/16] 0.0, 128
    %321 = vxpose.xlu0.b32.cont [15/16] 0.0, 128
    %322 = vxpose.xlu0.b32.end [16/16] 0.0, 128
    %v323 = vpop.trf.xlu0
    %v324 = vpop.trf.xlu0
    %v325 = vpop.trf.xlu0
    %v326 = vpop.trf.xlu0
    %v327 = vpop.trf.xlu0
    %v328 = vpop.trf.xlu0
    %v329 = vpop.trf.xlu0
    %v330 = vpop.trf.xlu0
    %v331 = vpop.trf.xlu0
    %v332 = vpop.trf.xlu0
    %v333 = vpop.trf.xlu0
    %v334 = vpop.trf.xlu0
    %v335 = vpop.trf.xlu0
    %v336 = vpop.trf.xlu0
    %v337 = vpop.trf.xlu0
    %v338 = vpop.trf.xlu0
    %v339 = vpack.c.bf16 %v323, %v323
    %341 = vrot.lane.b32.xlu0 %v245, 120
    %v342 = vpop.permute.xlu0 %341
    %v344 = vsel %vm248, %v342, 0
    %v347 = vsel %vm252, %v339, 0
    %349 = vmatpush.bf16.msra.mxu0 0
    %350 = vmatpush.bf16.msra.mxu0 0
    %351 = vmatpush.bf16.msra.mxu0 0
    %352 = vmatpush.bf16.msra.mxu0 0
    %353 = vmatpush.bf16.msra.mxu0 0
    %354 = vmatpush.bf16.msra.mxu0 0
    %355 = vmatpush.bf16.msra.mxu0 0
    %356 = vmatpush.bf16.msra.mxu0 %v347
    %357 = vmatmul.bf16.gmra.mxu0 %v344
    %v358 = vpop.f32.mrf.mxu0
    %v359 = vadd.f32 %v247, %v358
    %v360 = vpop.f32.mrf.mxu0
    %361 = vdwg.mxu0
    %v362 = vsel %vm248, %v359, -inf
    %363 = vmax.xlane.f32.xlu0 %v362
    %v364 = vpop.xlane.xlu0 %363
    %v365 = vsub.f32 %v359, %v364
    %v366 = vmul.f32 %v365, 1.442695
    %v367 = vpow.pop %v366
    %v368 = vsel %vm248, %v367, 0.0
    %369 = vadd.xlane.f32.xlu0 %v368
    %v370 = vpop.xlane.xlu0 %369
    %v371 = vrcp.pop %v370
    %v372 = vmul.f32 %v367, %v371
    %v373 = vpack.c.bf16 %v372, %v372
    %374 = vrot.lane.b32.xlu0 %v281, 56
    %v375 = vpop.permute.xlu0 %374
    %v377 = vsel %vm248, %v373, 0
    %v380 = vsel %vm252, %v375, 0
    %382 = vmatpush.bf16.msra.mxu0 0
    %383 = vmatpush.bf16.msra.mxu0 0
    %384 = vmatpush.bf16.msra.mxu0 0
    %385 = vmatpush.bf16.msra.mxu0 0
    %386 = vmatpush.bf16.msra.mxu0 0
    %387 = vmatpush.bf16.msra.mxu0 0
    %388 = vmatpush.bf16.msra.mxu0 0
    %389 = vmatpush.bf16.msra.mxu0 %v380
    %390 = vmatmul.bf16.gmra.mxu0 %v377
    %v391 = vpop.f32.mrf.mxu0
    %v392 = vadd.f32 0.0, %v391
    %v393 = vpop.f32.mrf.mxu0
    %394 = vdwg.mxu0
    %395 = vrot.lane.b32.xlu0 %v203, 80
    %v396 = vpop.permute.xlu0 %395
    %398 = vxpose.xlu0.b32.start [1/16] %v396, 128
    %399 = vxpose.xlu0.b32.cont [2/16] 0.0, 128
    %400 = vxpose.xlu0.b32.cont [3/16] 0.0, 128
    %401 = vxpose.xlu0.b32.cont [4/16] 0.0, 128
    %402 = vxpose.xlu0.b32.cont [5/16] 0.0, 128
    %403 = vxpose.xlu0.b32.cont [6/16] 0.0, 128
    %404 = vxpose.xlu0.b32.cont [7/16] 0.0, 128
    %405 = vxpose.xlu0.b32.cont [8/16] 0.0, 128
    %406 = vxpose.xlu0.b32.cont [9/16] 0.0, 128
    %407 = vxpose.xlu0.b32.cont [10/16] 0.0, 128
    %408 = vxpose.xlu0.b32.cont [11/16] 0.0, 128
    %409 = vxpose.xlu0.b32.cont [12/16] 0.0, 128
    %410 = vxpose.xlu0.b32.cont [13/16] 0.0, 128
    %411 = vxpose.xlu0.b32.cont [14/16] 0.0, 128
    %412 = vxpose.xlu0.b32.cont [15/16] 0.0, 128
    %413 = vxpose.xlu0.b32.end [16/16] 0.0, 128
    %v414 = vpop.trf.xlu0
    %v415 = vpop.trf.xlu0
    %v416 = vpop.trf.xlu0
    %v417 = vpop.trf.xlu0
    %v418 = vpop.trf.xlu0
    %v419 = vpop.trf.xlu0
    %v420 = vpop.trf.xlu0
    %v421 = vpop.trf.xlu0
    %v422 = vpop.trf.xlu0
    %v423 = vpop.trf.xlu0
    %v424 = vpop.trf.xlu0
    %v425 = vpop.trf.xlu0
    %v426 = vpop.trf.xlu0
    %v427 = vpop.trf.xlu0
    %v428 = vpop.trf.xlu0
    %v429 = vpop.trf.xlu0
    %v430 = vpack.c.bf16 %v414, %v414
    %431 = vrot.lane.b32.xlu0 %v245, 112
    %v432 = vpop.permute.xlu0 %431
    %v434 = vsel %vm248, %v432, 0
    %v437 = vsel %vm252, %v430, 0
    %439 = vmatpush.bf16.msra.mxu0 0
    %440 = vmatpush.bf16.msra.mxu0 0
    %441 = vmatpush.bf16.msra.mxu0 0
    %442 = vmatpush.bf16.msra.mxu0 0
    %443 = vmatpush.bf16.msra.mxu0 0
    %444 = vmatpush.bf16.msra.mxu0 0
    %445 = vmatpush.bf16.msra.mxu0 0
    %446 = vmatpush.bf16.msra.mxu0 %v437
    %447 = vmatmul.bf16.gmra.mxu0 %v434
    %v448 = vpop.f32.mrf.mxu0
    %v449 = vadd.f32 %v247, %v448
    %v450 = vpop.f32.mrf.mxu0
    %451 = vdwg.mxu0
    %v452 = vsel %vm248, %v449, -inf
    %453 = vmax.xlane.f32.xlu0 %v452
    %v454 = vpop.xlane.xlu0 %453
    %v455 = vsub.f32 %v449, %v454
    %v456 = vmul.f32 %v455, 1.442695
    %v457 = vpow.pop %v456
    %v458 = vsel %vm248, %v457, 0.0
    %459 = vadd.xlane.f32.xlu0 %v458
    %v460 = vpop.xlane.xlu0 %459
    %v461 = vrcp.pop %v460
    %v462 = vmul.f32 %v457, %v461
    %v463 = vpack.c.bf16 %v462, %v462
    %464 = vrot.lane.b32.xlu0 %v281, 48
    %v465 = vpop.permute.xlu0 %464
    %v467 = vsel %vm248, %v463, 0
    %v470 = vsel %vm252, %v465, 0
    %472 = vmatpush.bf16.msra.mxu0 0
    %473 = vmatpush.bf16.msra.mxu0 0
    %474 = vmatpush.bf16.msra.mxu0 0
    %475 = vmatpush.bf16.msra.mxu0 0
    %476 = vmatpush.bf16.msra.mxu0 0
    %477 = vmatpush.bf16.msra.mxu0 0
    %478 = vmatpush.bf16.msra.mxu0 0
    %479 = vmatpush.bf16.msra.mxu0 %v470
    %480 = vmatmul.bf16.gmra.mxu0 %v467
    %v481 = vpop.f32.mrf.mxu0
    %v482 = vadd.f32 0.0, %v481
    %v483 = vpop.f32.mrf.mxu0
    %484 = vdwg.mxu0
    %485 = vrot.lane.b32.xlu0 %v203, 72
    %v486 = vpop.permute.xlu0 %485
    %488 = vxpose.xlu0.b32.start [1/16] %v486, 128
    %489 = vxpose.xlu0.b32.cont [2/16] 0.0, 128
    %490 = vxpose.xlu0.b32.cont [3/16] 0.0, 128
    %491 = vxpose.xlu0.b32.cont [4/16] 0.0, 128
    %492 = vxpose.xlu0.b32.cont [5/16] 0.0, 128
    %493 = vxpose.xlu0.b32.cont [6/16] 0.0, 128
    %494 = vxpose.xlu0.b32.cont [7/16] 0.0, 128
    %495 = vxpose.xlu0.b32.cont [8/16] 0.0, 128
    %496 = vxpose.xlu0.b32.cont [9/16] 0.0, 128
    %497 = vxpose.xlu0.b32.cont [10/16] 0.0, 128
    %498 = vxpose.xlu0.b32.cont [11/16] 0.0, 128
    %499 = vxpose.xlu0.b32.cont [12/16] 0.0, 128
    %500 = vxpose.xlu0.b32.cont [13/16] 0.0, 128
    %501 = vxpose.xlu0.b32.cont [14/16] 0.0, 128
    %502 = vxpose.xlu0.b32.cont [15/16] 0.0, 128
    %503 = vxpose.xlu0.b32.end [16/16] 0.0, 128
    %v504 = vpop.trf.xlu0
    %v505 = vpop.trf.xlu0
    %v506 = vpop.trf.xlu0
    %v507 = vpop.trf.xlu0
    %v508 = vpop.trf.xlu0
    %v509 = vpop.trf.xlu0
    %v510 = vpop.trf.xlu0
    %v511 = vpop.trf.xlu0
    %v512 = vpop.trf.xlu0
    %v513 = vpop.trf.xlu0
    %v514 = vpop.trf.xlu0
    %v515 = vpop.trf.xlu0
    %v516 = vpop.trf.xlu0
    %v517 = vpop.trf.xlu0
    %v518 = vpop.trf.xlu0
    %v519 = vpop.trf.xlu0
    %v520 = vpack.c.bf16 %v504, %v504
    %521 = vrot.lane.b32.xlu0 %v245, 104
    %v522 = vpop.permute.xlu0 %521
    %v524 = vsel %vm248, %v522, 0
    %v527 = vsel %vm252, %v520, 0
    %529 = vmatpush.bf16.msra.mxu0 0
    %530 = vmatpush.bf16.msra.mxu0 0
    %531 = vmatpush.bf16.msra.mxu0 0
    %532 = vmatpush.bf16.msra.mxu0 0
    %533 = vmatpush.bf16.msra.mxu0 0
    %534 = vmatpush.bf16.msra.mxu0 0
    %535 = vmatpush.bf16.msra.mxu0 0
    %536 = vmatpush.bf16.msra.mxu0 %v527
    %537 = vmatmul.bf16.gmra.mxu0 %v524
    %v538 = vpop.f32.mrf.mxu0
    %v539 = vadd.f32 %v247, %v538
    %v540 = vpop.f32.mrf.mxu0
    %541 = vdwg.mxu0
    %v542 = vsel %vm248, %v539, -inf
    %543 = vmax.xlane.f32.xlu0 %v542
    %v544 = vpop.xlane.xlu0 %543
    %v545 = vsub.f32 %v539, %v544
    %v546 = vmul.f32 %v545, 1.442695
    %v547 = vpow.pop %v546
    %v548 = vsel %vm248, %v547, 0.0
    %549 = vadd.xlane.f32.xlu0 %v548
    %v550 = vpop.xlane.xlu0 %549
    %v551 = vrcp.pop %v550
    %v552 = vmul.f32 %v547, %v551
    %v553 = vpack.c.bf16 %v552, %v552
    %554 = vrot.lane.b32.xlu0 %v281, 40
    %v555 = vpop.permute.xlu0 %554
    %v557 = vsel %vm248, %v553, 0
    %v560 = vsel %vm252, %v555, 0
    %562 = vmatpush.bf16.msra.mxu0 0
    %563 = vmatpush.bf16.msra.mxu0 0
    %564 = vmatpush.bf16.msra.mxu0 0
    %565 = vmatpush.bf16.msra.mxu0 0
    %566 = vmatpush.bf16.msra.mxu0 0
    %567 = vmatpush.bf16.msra.mxu0 0
    %568 = vmatpush.bf16.msra.mxu0 0
    %569 = vmatpush.bf16.msra.mxu0 %v560
    %570 = vmatmul.bf16.gmra.mxu0 %v557
    %v571 = vpop.f32.mrf.mxu0
    %v572 = vadd.f32 0.0, %v571
    %v573 = vpop.f32.mrf.mxu0
    %574 = vdwg.mxu0
    %576 = vrot.lane.b32.xlu0 %v392, 8
    %v577 = vpop.permute.xlu0 %576
    %580 = vrot.lane.b32.xlu0 %v482, 16
    %v581 = vpop.permute.xlu0 %580
    %584 = vrot.lane.b32.xlu0 %v572, 24
    %v585 = vpop.permute.xlu0 %584
    %v587 = vsel %vm248, %v301, %v577
    %vm588 = vcmask 130048
    %v589 = vsel %vm588, %v587, %v581
    %vm590 = vcmask 195584
    %v591 = vsel %vm590, %v589, %v585
    %593 = vrot.lane.b32.xlu0 %v205, 96
    %v594 = vpop.permute.xlu0 %593
    %596 = vxpose.xlu0.b32.start [1/16] %v594, 128
    %597 = vxpose.xlu0.b32.cont [2/16] 0.0, 128
    %598 = vxpose.xlu0.b32.cont [3/16] 0.0, 128
    %599 = vxpose.xlu0.b32.cont [4/16] 0.0, 128
    %600 = vxpose.xlu0.b32.cont [5/16] 0.0, 128
    %601 = vxpose.xlu0.b32.cont [6/16] 0.0, 128
    %602 = vxpose.xlu0.b32.cont [7/16] 0.0, 128
    %603 = vxpose.xlu0.b32.cont [8/16] 0.0, 128
    %604 = vxpose.xlu0.b32.cont [9/16] 0.0, 128
    %605 = vxpose.xlu0.b32.cont [10/16] 0.0, 128
    %606 = vxpose.xlu0.b32.cont [11/16] 0.0, 128
    %607 = vxpose.xlu0.b32.cont [12/16] 0.0, 128
    %608 = vxpose.xlu0.b32.cont [13/16] 0.0, 128
    %609 = vxpose.xlu0.b32.cont [14/16] 0.0, 128
    %610 = vxpose.xlu0.b32.cont [15/16] 0.0, 128
    %611 = vxpose.xlu0.b32.end [16/16] 0.0, 128
    %v612 = vpop.trf.xlu0
    %v613 = vpop.trf.xlu0
    %v614 = vpop.trf.xlu0
    %v615 = vpop.trf.xlu0
    %v616 = vpop.trf.xlu0
    %v617 = vpop.trf.xlu0
    %v618 = vpop.trf.xlu0
    %v619 = vpop.trf.xlu0
    %v620 = vpop.trf.xlu0
    %v621 = vpop.trf.xlu0
    %v622 = vpop.trf.xlu0
    %v623 = vpop.trf.xlu0
    %v624 = vpop.trf.xlu0
    %v625 = vpop.trf.xlu0
    %v626 = vpop.trf.xlu0
    %v627 = vpop.trf.xlu0
    %v628 = vpack.c.bf16 %v208, %v208
    %v629 = vpack.c.bf16 %v612, %v612
    %v630 = vperm.slane %v168, 1
    %v632 = vsel %vm248, %v628, 0
    %v635 = vsel %vm252, %v629, 0
    %637 = vmatpush.bf16.msra.mxu0 0
    %638 = vmatpush.bf16.msra.mxu0 0
    %639 = vmatpush.bf16.msra.mxu0 0
    %640 = vmatpush.bf16.msra.mxu0 0
    %641 = vmatpush.bf16.msra.mxu0 0
    %642 = vmatpush.bf16.msra.mxu0 0
    %643 = vmatpush.bf16.msra.mxu0 0
    %644 = vmatpush.bf16.msra.mxu0 %v635
    %645 = vmatmul.bf16.gmra.mxu0 %v632
    %v646 = vpop.f32.mrf.mxu0
    %v647 = vadd.f32 %v630, %v646
    %v648 = vpop.f32.mrf.mxu0
    %649 = vdwg.mxu0
    %v650 = vsel %vm248, %v647, -inf
    %651 = vmax.xlane.f32.xlu0 %v650
    %v652 = vpop.xlane.xlu0 %651
    %v653 = vsub.f32 %v647, %v652
    %v654 = vmul.f32 %v653, 1.442695
    %v655 = vpow.pop %v654
    %v656 = vsel %vm248, %v655, 0.0
    %657 = vadd.xlane.f32.xlu0 %v656
    %v658 = vpop.xlane.xlu0 %657
    %v659 = vrcp.pop %v658
    %v660 = vmul.f32 %v655, %v659
    %v661 = vpack.c.bf16 %v660, %v660
    %v662 = vpack.c.bf16 %v205, %v205
    %664 = vrot.lane.b32.xlu0 %v662, 64
    %v665 = vpop.permute.xlu0 %664
    %v667 = vsel %vm248, %v661, 0
    %v670 = vsel %vm252, %v665, 0
    %672 = vmatpush.bf16.msra.mxu0 0
    %673 = vmatpush.bf16.msra.mxu0 0
    %674 = vmatpush.bf16.msra.mxu0 0
    %675 = vmatpush.bf16.msra.mxu0 0
    %676 = vmatpush.bf16.msra.mxu0 0
    %677 = vmatpush.bf16.msra.mxu0 0
    %678 = vmatpush.bf16.msra.mxu0 0
    %679 = vmatpush.bf16.msra.mxu0 %v670
    %680 = vmatmul.bf16.gmra.mxu0 %v667
    %v681 = vpop.f32.mrf.mxu0
    %v682 = vadd.f32 0.0, %v681
    %v683 = vpop.f32.mrf.mxu0
    %684 = vdwg.mxu0
    %685 = vrot.lane.b32.xlu0 %v205, 88
    %v686 = vpop.permute.xlu0 %685
    %688 = vxpose.xlu0.b32.start [1/16] %v686, 128
    %689 = vxpose.xlu0.b32.cont [2/16] 0.0, 128
    %690 = vxpose.xlu0.b32.cont [3/16] 0.0, 128
    %691 = vxpose.xlu0.b32.cont [4/16] 0.0, 128
    %692 = vxpose.xlu0.b32.cont [5/16] 0.0, 128
    %693 = vxpose.xlu0.b32.cont [6/16] 0.0, 128
    %694 = vxpose.xlu0.b32.cont [7/16] 0.0, 128
    %695 = vxpose.xlu0.b32.cont [8/16] 0.0, 128
    %696 = vxpose.xlu0.b32.cont [9/16] 0.0, 128
    %697 = vxpose.xlu0.b32.cont [10/16] 0.0, 128
    %698 = vxpose.xlu0.b32.cont [11/16] 0.0, 128
    %699 = vxpose.xlu0.b32.cont [12/16] 0.0, 128
    %700 = vxpose.xlu0.b32.cont [13/16] 0.0, 128
    %701 = vxpose.xlu0.b32.cont [14/16] 0.0, 128
    %702 = vxpose.xlu0.b32.cont [15/16] 0.0, 128
    %703 = vxpose.xlu0.b32.end [16/16] 0.0, 128
    %v704 = vpop.trf.xlu0
    %v705 = vpop.trf.xlu0
    %v706 = vpop.trf.xlu0
    %v707 = vpop.trf.xlu0
    %v708 = vpop.trf.xlu0
    %v709 = vpop.trf.xlu0
    %v710 = vpop.trf.xlu0
    %v711 = vpop.trf.xlu0
    %v712 = vpop.trf.xlu0
    %v713 = vpop.trf.xlu0
    %v714 = vpop.trf.xlu0
    %v715 = vpop.trf.xlu0
    %v716 = vpop.trf.xlu0
    %v717 = vpop.trf.xlu0
    %v718 = vpop.trf.xlu0
    %v719 = vpop.trf.xlu0
    %v720 = vpack.c.bf16 %v704, %v704
    %722 = vrot.lane.b32.xlu0 %v628, 120
    %v723 = vpop.permute.xlu0 %722
    %v725 = vsel %vm248, %v723, 0
    %v728 = vsel %vm252, %v720, 0
    %730 = vmatpush.bf16.msra.mxu0 0
    %731 = vmatpush.bf16.msra.mxu0 0
    %732 = vmatpush.bf16.msra.mxu0 0
    %733 = vmatpush.bf16.msra.mxu0 0
    %734 = vmatpush.bf16.msra.mxu0 0
    %735 = vmatpush.bf16.msra.mxu0 0
    %736 = vmatpush.bf16.msra.mxu0 0
    %737 = vmatpush.bf16.msra.mxu0 %v728
    %738 = vmatmul.bf16.gmra.mxu0 %v725
    %v739 = vpop.f32.mrf.mxu0
    %v740 = vadd.f32 %v630, %v739
    %v741 = vpop.f32.mrf.mxu0
    %742 = vdwg.mxu0
    %v743 = vsel %vm248, %v740, -inf
    %744 = vmax.xlane.f32.xlu0 %v743
    %v745 = vpop.xlane.xlu0 %744
    %v746 = vsub.f32 %v740, %v745
    %v747 = vmul.f32 %v746, 1.442695
    %v748 = vpow.pop %v747
    %v749 = vsel %vm248, %v748, 0.0
    %750 = vadd.xlane.f32.xlu0 %v749
    %v751 = vpop.xlane.xlu0 %750
    %v752 = vrcp.pop %v751
    %v753 = vmul.f32 %v748, %v752
    %v754 = vpack.c.bf16 %v753, %v753
    %755 = vrot.lane.b32.xlu0 %v662, 56
    %v756 = vpop.permute.xlu0 %755
    %v758 = vsel %vm248, %v754, 0
    %v761 = vsel %vm252, %v756, 0
    %763 = vmatpush.bf16.msra.mxu0 0
    %764 = vmatpush.bf16.msra.mxu0 0
    %765 = vmatpush.bf16.msra.mxu0 0
    %766 = vmatpush.bf16.msra.mxu0 0
    %767 = vmatpush.bf16.msra.mxu0 0
    %768 = vmatpush.bf16.msra.mxu0 0
    %769 = vmatpush.bf16.msra.mxu0 0
    %770 = vmatpush.bf16.msra.mxu0 %v761
    %771 = vmatmul.bf16.gmra.mxu0 %v758
    %v772 = vpop.f32.mrf.mxu0
    %v773 = vadd.f32 0.0, %v772
    %v774 = vpop.f32.mrf.mxu0
    %775 = vdwg.mxu0
    %776 = vrot.lane.b32.xlu0 %v205, 80
    %v777 = vpop.permute.xlu0 %776
    %779 = vxpose.xlu0.b32.start [1/16] %v777, 128
    %780 = vxpose.xlu0.b32.cont [2/16] 0.0, 128
    %781 = vxpose.xlu0.b32.cont [3/16] 0.0, 128
    %782 = vxpose.xlu0.b32.cont [4/16] 0.0, 128
    %783 = vxpose.xlu0.b32.cont [5/16] 0.0, 128
    %784 = vxpose.xlu0.b32.cont [6/16] 0.0, 128
    %785 = vxpose.xlu0.b32.cont [7/16] 0.0, 128
    %786 = vxpose.xlu0.b32.cont [8/16] 0.0, 128
    %787 = vxpose.xlu0.b32.cont [9/16] 0.0, 128
    %788 = vxpose.xlu0.b32.cont [10/16] 0.0, 128
    %789 = vxpose.xlu0.b32.cont [11/16] 0.0, 128
    %790 = vxpose.xlu0.b32.cont [12/16] 0.0, 128
    %791 = vxpose.xlu0.b32.cont [13/16] 0.0, 128
    %792 = vxpose.xlu0.b32.cont [14/16] 0.0, 128
    %793 = vxpose.xlu0.b32.cont [15/16] 0.0, 128
    %794 = vxpose.xlu0.b32.end [16/16] 0.0, 128
    %v795 = vpop.trf.xlu0
    %v796 = vpop.trf.xlu0
    %v797 = vpop.trf.xlu0
    %v798 = vpop.trf.xlu0
    %v799 = vpop.trf.xlu0
    %v800 = vpop.trf.xlu0
    %v801 = vpop.trf.xlu0
    %v802 = vpop.trf.xlu0
    %v803 = vpop.trf.xlu0
    %v804 = vpop.trf.xlu0
    %v805 = vpop.trf.xlu0
    %v806 = vpop.trf.xlu0
    %v807 = vpop.trf.xlu0
    %v808 = vpop.trf.xlu0
    %v809 = vpop.trf.xlu0
    %v810 = vpop.trf.xlu0
    %v811 = vpack.c.bf16 %v795, %v795
    %812 = vrot.lane.b32.xlu0 %v628, 112
    %v813 = vpop.permute.xlu0 %812
    %v815 = vsel %vm248, %v813, 0
    %v818 = vsel %vm252, %v811, 0
    %820 = vmatpush.bf16.msra.mxu0 0
    %821 = vmatpush.bf16.msra.mxu0 0
    %822 = vmatpush.bf16.msra.mxu0 0
    %823 = vmatpush.bf16.msra.mxu0 0
    %824 = vmatpush.bf16.msra.mxu0 0
    %825 = vmatpush.bf16.msra.mxu0 0
    %826 = vmatpush.bf16.msra.mxu0 0
    %827 = vmatpush.bf16.msra.mxu0 %v818
    %828 = vmatmul.bf16.gmra.mxu0 %v815
    %v829 = vpop.f32.mrf.mxu0
    %v830 = vadd.f32 %v630, %v829
    %v831 = vpop.f32.mrf.mxu0
    %832 = vdwg.mxu0
    %v833 = vsel %vm248, %v830, -inf
    %834 = vmax.xlane.f32.xlu0 %v833
    %v835 = vpop.xlane.xlu0 %834
    %v836 = vsub.f32 %v830, %v835
    %v837 = vmul.f32 %v836, 1.442695
    %v838 = vpow.pop %v837
    %v839 = vsel %vm248, %v838, 0.0
    %840 = vadd.xlane.f32.xlu0 %v839
    %v841 = vpop.xlane.xlu0 %840
    %v842 = vrcp.pop %v841
    %v843 = vmul.f32 %v838, %v842
    %v844 = vpack.c.bf16 %v843, %v843
    %845 = vrot.lane.b32.xlu0 %v662, 48
    %v846 = vpop.permute.xlu0 %845
    %v848 = vsel %vm248, %v844, 0
    %v851 = vsel %vm252, %v846, 0
    %853 = vmatpush.bf16.msra.mxu0 0
    %854 = vmatpush.bf16.msra.mxu0 0
    %855 = vmatpush.bf16.msra.mxu0 0
    %856 = vmatpush.bf16.msra.mxu0 0
    %857 = vmatpush.bf16.msra.mxu0 0
    %858 = vmatpush.bf16.msra.mxu0 0
    %859 = vmatpush.bf16.msra.mxu0 0
    %860 = vmatpush.bf16.msra.mxu0 %v851
    %861 = vmatmul.bf16.gmra.mxu0 %v848
    %v862 = vpop.f32.mrf.mxu0
    %v863 = vadd.f32 0.0, %v862
    %v864 = vpop.f32.mrf.mxu0
    %865 = vdwg.mxu0
    %866 = vrot.lane.b32.xlu0 %v205, 72
    %v867 = vpop.permute.xlu0 %866
    %869 = vxpose.xlu0.b32.start [1/16] %v867, 128
    %870 = vxpose.xlu0.b32.cont [2/16] 0.0, 128
    %871 = vxpose.xlu0.b32.cont [3/16] 0.0, 128
    %872 = vxpose.xlu0.b32.cont [4/16] 0.0, 128
    %873 = vxpose.xlu0.b32.cont [5/16] 0.0, 128
    %874 = vxpose.xlu0.b32.cont [6/16] 0.0, 128
    %875 = vxpose.xlu0.b32.cont [7/16] 0.0, 128
    %876 = vxpose.xlu0.b32.cont [8/16] 0.0, 128
    %877 = vxpose.xlu0.b32.cont [9/16] 0.0, 128
    %878 = vxpose.xlu0.b32.cont [10/16] 0.0, 128
    %879 = vxpose.xlu0.b32.cont [11/16] 0.0, 128
    %880 = vxpose.xlu0.b32.cont [12/16] 0.0, 128
    %881 = vxpose.xlu0.b32.cont [13/16] 0.0, 128
    %882 = vxpose.xlu0.b32.cont [14/16] 0.0, 128
    %883 = vxpose.xlu0.b32.cont [15/16] 0.0, 128
    %884 = vxpose.xlu0.b32.end [16/16] 0.0, 128
    %v885 = vpop.trf.xlu0
    %v886 = vpop.trf.xlu0
    %v887 = vpop.trf.xlu0
    %v888 = vpop.trf.xlu0
    %v889 = vpop.trf.xlu0
    %v890 = vpop.trf.xlu0
    %v891 = vpop.trf.xlu0
    %v892 = vpop.trf.xlu0
    %v893 = vpop.trf.xlu0
    %v894 = vpop.trf.xlu0
    %v895 = vpop.trf.xlu0
    %v896 = vpop.trf.xlu0
    %v897 = vpop.trf.xlu0
    %v898 = vpop.trf.xlu0
    %v899 = vpop.trf.xlu0
    %v900 = vpop.trf.xlu0
    %v901 = vpack.c.bf16 %v885, %v885
    %902 = vrot.lane.b32.xlu0 %v628, 104
    %v903 = vpop.permute.xlu0 %902
    %v905 = vsel %vm248, %v903, 0
    %v908 = vsel %vm252, %v901, 0
    %910 = vmatpush.bf16.msra.mxu0 0
    %911 = vmatpush.bf16.msra.mxu0 0
    %912 = vmatpush.bf16.msra.mxu0 0
    %913 = vmatpush.bf16.msra.mxu0 0
    %914 = vmatpush.bf16.msra.mxu0 0
    %915 = vmatpush.bf16.msra.mxu0 0
    %916 = vmatpush.bf16.msra.mxu0 0
    %917 = vmatpush.bf16.msra.mxu0 %v908
    %918 = vmatmul.bf16.gmra.mxu0 %v905
    %v919 = vpop.f32.mrf.mxu0
    %v920 = vadd.f32 %v630, %v919
    %v921 = vpop.f32.mrf.mxu0
    %922 = vdwg.mxu0
    %v923 = vsel %vm248, %v920, -inf
    %924 = vmax.xlane.f32.xlu0 %v923
    %v925 = vpop.xlane.xlu0 %924
    %v926 = vsub.f32 %v920, %v925
    %v927 = vmul.f32 %v926, 1.442695
    %v928 = vpow.pop %v927
    %v929 = vsel %vm248, %v928, 0.0
    %930 = vadd.xlane.f32.xlu0 %v929
    %v931 = vpop.xlane.xlu0 %930
    %v932 = vrcp.pop %v931
    %v933 = vmul.f32 %v928, %v932
    %v934 = vpack.c.bf16 %v933, %v933
    %935 = vrot.lane.b32.xlu0 %v662, 40
    %v936 = vpop.permute.xlu0 %935
    %v938 = vsel %vm248, %v934, 0
    %v941 = vsel %vm252, %v936, 0
    %943 = vmatpush.bf16.msra.mxu0 0
    %944 = vmatpush.bf16.msra.mxu0 0
    %945 = vmatpush.bf16.msra.mxu0 0
    %946 = vmatpush.bf16.msra.mxu0 0
    %947 = vmatpush.bf16.msra.mxu0 0
    %948 = vmatpush.bf16.msra.mxu0 0
    %949 = vmatpush.bf16.msra.mxu0 0
    %950 = vmatpush.bf16.msra.mxu0 %v941
    %951 = vmatmul.bf16.gmra.mxu0 %v938
    %v952 = vpop.f32.mrf.mxu0
    %v953 = vadd.f32 0.0, %v952
    %v954 = vpop.f32.mrf.mxu0
    %955 = vdwg.mxu0
    %957 = vrot.lane.b32.xlu0 %v773, 8
    %v958 = vpop.permute.xlu0 %957
    %961 = vrot.lane.b32.xlu0 %v863, 16
    %v962 = vpop.permute.xlu0 %961
    %965 = vrot.lane.b32.xlu0 %v953, 24
    %v966 = vpop.permute.xlu0 %965
    %v968 = vsel %vm248, %v682, %v958
    %v969 = vsel %vm588, %v968, %v962
    %v970 = vsel %vm590, %v969, %v966
    %v971 = vld [vmem:[%s13] sm:$0xff]
    %v972 = vld [vmem:[%s13 + $0x8] sm:$0xff]
    %v973 = vld [vmem:[%s13 + $0x10] sm:$0xff]
    %v974 = vld [vmem:[%s13 + $0x18] sm:$0xff]
    %v975 = vpack.c.bf16 %v970, %v591
    %v976 = vpack.c.bf16 %v972, %v971
    %v977 = vpack.c.bf16 %v974, %v973
    %v978 = vld [vmem:[%s15] sm:$0x1]
    %v980 = vperm.slane %v978, 0
    %v983 = vsel %vm189, %v975, 0
    %985 = vmatpush.bf16.msra.mxu0 0
    %986 = vmatpush.bf16.msra.mxu0 0
    %987 = vmatpush.bf16.msra.mxu0 0
    %988 = vmatpush.bf16.msra.mxu0 0
    %989 = vmatpush.bf16.msra.mxu0 0
    %990 = vmatpush.bf16.msra.mxu0 0
    %991 = vmatpush.bf16.msra.mxu0 %v977
    %992 = vmatpush.bf16.msra.mxu0 %v976
    %993 = vmatmul.bf16.gmra.mxu0 %v983
    %v994 = vpop.f32.mrf.mxu0
    %v995 = vadd.f32 %v980, %v994
    %v996 = vpop.f32.mrf.mxu0
    %v997 = vadd.f32 %v980, %v996
    %998 = vdwg.mxu0
    %v999 = vadd.f32 %v176, %v995
    %v1000 = vadd.f32 %v177, %v997
    %v1001 = vld [vmem:[%s25] sm:$0x1]
    %v1002 = vld [vmem:[%s27] sm:$0x1]
    %v1003 = vsel %vm189, %v999, 0.0
    %1004 = vadd.xlane.f32.xlu0 %v1003
    %v1005 = vpop.xlane.xlu0 %1004
    %v1006 = vsel %vm189, %v1000, 0.0
    %1007 = vadd.xlane.f32.xlu0 %v1006
    %v1008 = vpop.xlane.xlu0 %1007
    %v1009 = vrcp.pop 32.0
    %v1010 = vmul.f32 32.0, %v1009
    %v1011 = vsub.f32 1.0, %v1010
    %v1012 = vmul.f32 %v1009, %v1011
    %v1013 = vadd.f32 %v1009, %v1012
    %vm1014 = vweird.f32 %v1009
    %v1015 = vsel %vm1014, %v1009, %v1013
    %v1016 = vmul.f32 %v1005, %v1015
    %v1017 = vmul.f32 %v1008, %v1015
    %v1018 = vsub.f32 %v999, %v1016
    %v1019 = vsub.f32 %v1000, %v1017
    %v1020 = vmul.f32 %v1018, %v1018
    %v1021 = vmul.f32 %v1019, %v1019
    %v1022 = vsel %vm189, %v1020, 0.0
    %1023 = vadd.xlane.f32.xlu0 %v1022
    %v1024 = vpop.xlane.xlu0 %1023
    %v1025 = vsel %vm189, %v1021, 0.0
    %1026 = vadd.xlane.f32.xlu0 %v1025
    %v1027 = vpop.xlane.xlu0 %1026
    %v1028 = vmul.f32 %v1024, %v1015
    %v1029 = vmul.f32 %v1027, %v1015
    %v1030 = vadd.f32 %v1028, 1e-05
    %v1031 = vadd.f32 %v1029, 1e-05
    %v1032 = vrsqrt.pop %v1030
    %v1033 = vmul.f32 %v1032, %v1030
    %v1034 = vmul.f32 %v1033, %v1032
    %v1035 = vmul.f32 0.5, %v1034
    %v1036 = vsub.f32 1.5, %v1035
    %v1037 = vmul.f32 %v1032, %v1036
    %vm1038 = vweird.f32 %v1030
    %vm1039 = vweird.f32 %v1032
    %vm1040 = vmor %vm1038, %vm1039
    %v1041 = vsel %vm1040, %v1032, %v1037
    %v1042 = vrsqrt.pop %v1031
    %v1043 = vmul.f32 %v1042, %v1031
    %v1044 = vmul.f32 %v1043, %v1042
    %v1045 = vmul.f32 0.5, %v1044
    %v1046 = vsub.f32 1.5, %v1045
    %v1047 = vmul.f32 %v1042, %v1046
    %vm1048 = vweird.f32 %v1031
    %vm1049 = vweird.f32 %v1042
    %vm1050 = vmor %vm1048, %vm1049
    %v1051 = vsel %vm1050, %v1042, %v1047
    %v1052 = vmul.f32 %v1018, %v1041
    %v1053 = vmul.f32 %v1019, %v1051
    %v1055 = vperm.slane %v1001, 0
    %v1057 = vmul.f32 %v1052, %v1055
    %v1058 = vmul.f32 %v1053, %v1055
    %v1060 = vperm.slane %v1002, 0
    %v1062 = vadd.f32 %v1057, %v1060
    %v1063 = vadd.f32 %v1058, %v1060
    %v1064 = vld [vmem:[%s17] sm:$0xff]
    %v1065 = vld [vmem:[%s17 + $0x8] sm:$0xff]
    %v1066 = vld [vmem:[%s17 + $0x10] sm:$0xff]
    %v1067 = vld [vmem:[%s17 + $0x18] sm:$0xff]
    %v1068 = vpack.c.bf16 %v1063, %v1062
    %v1069 = vpack.c.bf16 %v1065, %v1064
    %v1070 = vpack.c.bf16 %v1067, %v1066
    %v1071 = vld [vmem:[%s19] sm:$0x1]
    %v1073 = vperm.slane %v1071, 0
    %v1076 = vsel %vm189, %v1068, 0
    %1078 = vmatpush.bf16.msra.mxu0 0
    %1079 = vmatpush.bf16.msra.mxu0 0
    %1080 = vmatpush.bf16.msra.mxu0 0
    %1081 = vmatpush.bf16.msra.mxu0 0
    %1082 = vmatpush.bf16.msra.mxu0 0
    %1083 = vmatpush.bf16.msra.mxu0 0
    %1084 = vmatpush.bf16.msra.mxu0 %v1070
    %1085 = vmatpush.bf16.msra.mxu0 %v1069
    %1086 = vmatmul.bf16.gmra.mxu0 %v1076
    %v1087 = vpop.f32.mrf.mxu0
    %v1088 = vadd.f32 %v1073, %v1087
    %v1089 = vpop.f32.mrf.mxu0
    %v1090 = vadd.f32 %v1073, %v1089
    %1091 = vdwg.mxu0
    %v1092 = vmax.f32 %v1088, 0.0
    %v1093 = vmax.f32 %v1090, 0.0
    %v1094 = vld [vmem:[%s21] sm:$0xff]
    %v1095 = vld [vmem:[%s21 + $0x8] sm:$0xff]
    %v1096 = vld [vmem:[%s21 + $0x10] sm:$0xff]
    %v1097 = vld [vmem:[%s21 + $0x18] sm:$0xff]
    %v1098 = vld [vmem:[%s21 + $0x20] sm:$0xff]
    %v1099 = vld [vmem:[%s21 + $0x28] sm:$0xff]
    %v1100 = vld [vmem:[%s21 + $0x30] sm:$0xff]
    %v1101 = vld [vmem:[%s21 + $0x38] sm:$0xff]
    %v1102 = vpack.c.bf16 %v1093, %v1092
    %v1103 = vpack.c.bf16 %v1095, %v1094
    %v1104 = vpack.c.bf16 %v1097, %v1096
    %v1105 = vpack.c.bf16 %v1099, %v1098
    %v1106 = vpack.c.bf16 %v1101, %v1100
    %v1107 = vld [vmem:[%s23] sm:$0x1]
    %v1109 = vperm.slane %v1107, 0
    %vm1111 = vcmask 523264
    %v1113 = vsel %vm1111, %v1102, 0
    %1115 = vmatpush.bf16.msra.mxu0 0
    %1116 = vmatpush.bf16.msra.mxu0 0
    %1117 = vmatpush.bf16.msra.mxu0 0
    %1118 = vmatpush.bf16.msra.mxu0 0
    %1119 = vmatpush.bf16.msra.mxu0 %v1106
    %1120 = vmatpush.bf16.msra.mxu0 %v1105
    %1121 = vmatpush.bf16.msra.mxu0 %v1104
    %1122 = vmatpush.bf16.msra.mxu0 %v1103
    %1123 = vmatmul.bf16.gmra.mxu0 %v1113
    %v1124 = vpop.f32.mrf.mxu0
    %v1125 = vadd.f32 %v1109, %v1124
    %v1126 = vpop.f32.mrf.mxu0
    %v1127 = vadd.f32 %v1109, %v1126
    %1128 = vdwg.mxu0
    %v1129 = vadd.f32 %v1062, %v1125
    %v1130 = vadd.f32 %v1063, %v1127
    %v1131 = vld [vmem:[%s29] sm:$0x1]
    %v1132 = vld [vmem:[%s31] sm:$0x1]
    %v1133 = vsel %vm189, %v1129, 0.0
    %1134 = vadd.xlane.f32.xlu0 %v1133
    %v1135 = vpop.xlane.xlu0 %1134
    %v1136 = vsel %vm189, %v1130, 0.0
    %1137 = vadd.xlane.f32.xlu0 %v1136
    %v1138 = vpop.xlane.xlu0 %1137
    %v1139 = vmul.f32 %v1135, %v1015
    %v1140 = vmul.f32 %v1138, %v1015
    %v1141 = vsub.f32 %v1129, %v1139
    %v1142 = vsub.f32 %v1130, %v1140
    %v1143 = vmul.f32 %v1141, %v1141
    %v1144 = vmul.f32 %v1142, %v1142
    %v1145 = vsel %vm189, %v1143, 0.0
    %1146 = vadd.xlane.f32.xlu0 %v1145
    %v1147 = vpop.xlane.xlu0 %1146
    %v1148 = vsel %vm189, %v1144, 0.0
    %1149 = vadd.xlane.f32.xlu0 %v1148
    %v1150 = vpop.xlane.xlu0 %1149
    %v1151 = vmul.f32 %v1147, %v1015
    %v1152 = vmul.f32 %v1150, %v1015
    %v1153 = vadd.f32 %v1151, 1e-05
    %v1154 = vadd.f32 %v1152, 1e-05
    %v1155 = vrsqrt.pop %v1153
    %v1156 = vmul.f32 %v1155, %v1153
    %v1157 = vmul.f32 %v1156, %v1155
    %v1158 = vmul.f32 0.5, %v1157
    %v1159 = vsub.f32 1.5, %v1158
    %v1160 = vmul.f32 %v1155, %v1159
    %vm1161 = vweird.f32 %v1153
    %vm1162 = vweird.f32 %v1155
    %vm1163 = vmor %vm1161, %vm1162
    %v1164 = vsel %vm1163, %v1155, %v1160
    %v1165 = vrsqrt.pop %v1154
    %v1166 = vmul.f32 %v1165, %v1154
    %v1167 = vmul.f32 %v1166, %v1165
    %v1168 = vmul.f32 0.5, %v1167
    %v1169 = vsub.f32 1.5, %v1168
    %v1170 = vmul.f32 %v1165, %v1169
    %vm1171 = vweird.f32 %v1154
    %vm1172 = vweird.f32 %v1165
    %vm1173 = vmor %vm1171, %vm1172
    %v1174 = vsel %vm1173, %v1165, %v1170
    %v1175 = vmul.f32 %v1141, %v1164
    %v1176 = vmul.f32 %v1142, %v1174
    %v1178 = vperm.slane %v1131, 0
    %v1180 = vmul.f32 %v1175, %v1178
    %v1181 = vmul.f32 %v1176, %v1178
    %v1183 = vperm.slane %v1132, 0
    %v1185 = vadd.f32 %v1180, %v1183
    %v1186 = vadd.f32 %v1181, %v1183
    %s1187 = scalar_lea.vmem %s9, 32
    %v1188 = vld [vmem:[%s1187] sm:$0xff]
    %v1189 = vld [vmem:[%s1187 + $0x8] sm:$0xff]
    %v1190 = vld [vmem:[%s1187 + $0x10] sm:$0xff]
    %v1191 = vld [vmem:[%s1187 + $0x18] sm:$0xff]
    %v1192 = vpack.c.bf16 %v1186, %v1185
    %v1193 = vpack.c.bf16 %v1189, %v1188
    %v1194 = vpack.c.bf16 %v1191, %v1190
    %s1195 = scalar_lea.vmem %s11, 1
    %v1196 = vld [vmem:[%s1195] sm:$0x1]
    %v1198 = vperm.slane %v1196, 0
    %v1201 = vsel %vm189, %v1192, 0
    %1203 = vmatpush.bf16.msra.mxu0 0
    %1204 = vmatpush.bf16.msra.mxu0 0
    %1205 = vmatpush.bf16.msra.mxu0 0
    %1206 = vmatpush.bf16.msra.mxu0 0
    %1207 = vmatpush.bf16.msra.mxu0 0
    %1208 = vmatpush.bf16.msra.mxu0 0
    %1209 = vmatpush.bf16.msra.mxu0 %v1194
    %1210 = vmatpush.bf16.msra.mxu0 %v1193
    %1211 = vmatmul.bf16.gmra.mxu0 %v1201
    %v1212 = vpop.f32.mrf.mxu0
    %v1213 = vadd.f32 %v1198, %v1212
    %v1214 = vpop.f32.mrf.mxu0
    %v1215 = vadd.f32 %v1198, %v1214
    %1216 = vdwg.mxu0
    %v1217 = vmul.f32 %v1213, 0.35355338
    %v1218 = vmul.f32 %v1215, 0.35355338
    %1220 = vrot.lane.b32.xlu0 %v1213, 96
    %v1221 = vpop.permute.xlu0 %1220
    %1223 = vxpose.xlu0.b32.start [1/16] %v1221, 128
    %1224 = vxpose.xlu0.b32.cont [2/16] 0.0, 128
    %1225 = vxpose.xlu0.b32.cont [3/16] 0.0, 128
    %1226 = vxpose.xlu0.b32.cont [4/16] 0.0, 128
    %1227 = vxpose.xlu0.b32.cont [5/16] 0.0, 128
    %1228 = vxpose.xlu0.b32.cont [6/16] 0.0, 128
    %1229 = vxpose.xlu0.b32.cont [7/16] 0.0, 128
    %1230 = vxpose.xlu0.b32.cont [8/16] 0.0, 128
    %1231 = vxpose.xlu0.b32.cont [9/16] 0.0, 128
    %1232 = vxpose.xlu0.b32.cont [10/16] 0.0, 128
    %1233 = vxpose.xlu0.b32.cont [11/16] 0.0, 128
    %1234 = vxpose.xlu0.b32.cont [12/16] 0.0, 128
    %1235 = vxpose.xlu0.b32.cont [13/16] 0.0, 128
    %1236 = vxpose.xlu0.b32.cont [14/16] 0.0, 128
    %1237 = vxpose.xlu0.b32.cont [15/16] 0.0, 128
    %1238 = vxpose.xlu0.b32.end [16/16] 0.0, 128
    %v1239 = vpop.trf.xlu0
    %v1240 = vpop.trf.xlu0
    %v1241 = vpop.trf.xlu0
    %v1242 = vpop.trf.xlu0
    %v1243 = vpop.trf.xlu0
    %v1244 = vpop.trf.xlu0
    %v1245 = vpop.trf.xlu0
    %v1246 = vpop.trf.xlu0
    %v1247 = vpop.trf.xlu0
    %v1248 = vpop.trf.xlu0
    %v1249 = vpop.trf.xlu0
    %v1250 = vpop.trf.xlu0
    %v1251 = vpop.trf.xlu0
    %v1252 = vpop.trf.xlu0
    %v1253 = vpop.trf.xlu0
    %v1254 = vpop.trf.xlu0
    %v1255 = vpack.c.bf16 %v1217, %v1217
    %v1256 = vpack.c.bf16 %v1239, %v1239
    %v1258 = vsel %vm248, %v1255, 0
    %v1261 = vsel %vm252, %v1256, 0
    %1263 = vmatpush.bf16.msra.mxu0 0
    %1264 = vmatpush.bf16.msra.mxu0 0
    %1265 = vmatpush.bf16.msra.mxu0 0
    %1266 = vmatpush.bf16.msra.mxu0 0
    %1267 = vmatpush.bf16.msra.mxu0 0
    %1268 = vmatpush.bf16.msra.mxu0 0
    %1269 = vmatpush.bf16.msra.mxu0 0
    %1270 = vmatpush.bf16.msra.mxu0 %v1261
    %1271 = vmatmul.bf16.gmra.mxu0 %v1258
    %v1272 = vpop.f32.mrf.mxu0
    %v1273 = vadd.f32 %v247, %v1272
    %v1274 = vpop.f32.mrf.mxu0
    %1275 = vdwg.mxu0
    %v1276 = vsel %vm248, %v1273, -inf
    %1277 = vmax.xlane.f32.xlu0 %v1276
    %v1278 = vpop.xlane.xlu0 %1277
    %v1279 = vsub.f32 %v1273, %v1278
    %v1280 = vmul.f32 %v1279, 1.442695
    %v1281 = vpow.pop %v1280
    %v1282 = vsel %vm248, %v1281, 0.0
    %1283 = vadd.xlane.f32.xlu0 %v1282
    %v1284 = vpop.xlane.xlu0 %1283
    %v1285 = vrcp.pop %v1284
    %v1286 = vmul.f32 %v1281, %v1285
    %v1287 = vpack.c.bf16 %v1286, %v1286
    %v1288 = vpack.c.bf16 %v1213, %v1213
    %1290 = vrot.lane.b32.xlu0 %v1288, 64
    %v1291 = vpop.permute.xlu0 %1290
    %v1293 = vsel %vm248, %v1287, 0
    %v1296 = vsel %vm252, %v1291, 0
    %1298 = vmatpush.bf16.msra.mxu0 0
    %1299 = vmatpush.bf16.msra.mxu0 0
    %1300 = vmatpush.bf16.msra.mxu0 0
    %1301 = vmatpush.bf16.msra.mxu0 0
    %1302 = vmatpush.bf16.msra.mxu0 0
    %1303 = vmatpush.bf16.msra.mxu0 0
    %1304 = vmatpush.bf16.msra.mxu0 0
    %1305 = vmatpush.bf16.msra.mxu0 %v1296
    %1306 = vmatmul.bf16.gmra.mxu0 %v1293
    %v1307 = vpop.f32.mrf.mxu0
    %v1308 = vadd.f32 0.0, %v1307
    %v1309 = vpop.f32.mrf.mxu0
    %1310 = vdwg.mxu0
    %1311 = vrot.lane.b32.xlu0 %v1213, 88
    %v1312 = vpop.permute.xlu0 %1311
    %1314 = vxpose.xlu0.b32.start [1/16] %v1312, 128
    %1315 = vxpose.xlu0.b32.cont [2/16] 0.0, 128
    %1316 = vxpose.xlu0.b32.cont [3/16] 0.0, 128
    %1317 = vxpose.xlu0.b32.cont [4/16] 0.0, 128
    %1318 = vxpose.xlu0.b32.cont [5/16] 0.0, 128
    %1319 = vxpose.xlu0.b32.cont [6/16] 0.0, 128
    %1320 = vxpose.xlu0.b32.cont [7/16] 0.0, 128
    %1321 = vxpose.xlu0.b32.cont [8/16] 0.0, 128
    %1322 = vxpose.xlu0.b32.cont [9/16] 0.0, 128
    %1323 = vxpose.xlu0.b32.cont [10/16] 0.0, 128
    %1324 = vxpose.xlu0.b32.cont [11/16] 0.0, 128
    %1325 = vxpose.xlu0.b32.cont [12/16] 0.0, 128
    %1326 = vxpose.xlu0.b32.cont [13/16] 0.0, 128
    %1327 = vxpose.xlu0.b32.cont [14/16] 0.0, 128
    %1328 = vxpose.xlu0.b32.cont [15/16] 0.0, 128
    %1329 = vxpose.xlu0.b32.end [16/16] 0.0, 128
    %v1330 = vpop.trf.xlu0
    %v1331 = vpop.trf.xlu0
    %v1332 = vpop.trf.xlu0
    %v1333 = vpop.trf.xlu0
    %v1334 = vpop.trf.xlu0
    %v1335 = vpop.trf.xlu0
    %v1336 = vpop.trf.xlu0
    %v1337 = vpop.trf.xlu0
    %v1338 = vpop.trf.xlu0
    %v1339 = vpop.trf.xlu0
    %v1340 = vpop.trf.xlu0
    %v1341 = vpop.trf.xlu0
    %v1342 = vpop.trf.xlu0
    %v1343 = vpop.trf.xlu0
    %v1344 = vpop.trf.xlu0
    %v1345 = vpop.trf.xlu0
    %v1346 = vpack.c.bf16 %v1330, %v1330
    %1348 = vrot.lane.b32.xlu0 %v1255, 120
    %v1349 = vpop.permute.xlu0 %1348
    %v1351 = vsel %vm248, %v1349, 0
    %v1354 = vsel %vm252, %v1346, 0
    %1356 = vmatpush.bf16.msra.mxu0 0
    %1357 = vmatpush.bf16.msra.mxu0 0
    %1358 = vmatpush.bf16.msra.mxu0 0
    %1359 = vmatpush.bf16.msra.mxu0 0
    %1360 = vmatpush.bf16.msra.mxu0 0
    %1361 = vmatpush.bf16.msra.mxu0 0
    %1362 = vmatpush.bf16.msra.mxu0 0
    %1363 = vmatpush.bf16.msra.mxu0 %v1354
    %1364 = vmatmul.bf16.gmra.mxu0 %v1351
    %v1365 = vpop.f32.mrf.mxu0
    %v1366 = vadd.f32 %v247, %v1365
    %v1367 = vpop.f32.mrf.mxu0
    %1368 = vdwg.mxu0
    %v1369 = vsel %vm248, %v1366, -inf
    %1370 = vmax.xlane.f32.xlu0 %v1369
    %v1371 = vpop.xlane.xlu0 %1370
    %v1372 = vsub.f32 %v1366, %v1371
    %v1373 = vmul.f32 %v1372, 1.442695
    %v1374 = vpow.pop %v1373
    %v1375 = vsel %vm248, %v1374, 0.0
    %1376 = vadd.xlane.f32.xlu0 %v1375
    %v1377 = vpop.xlane.xlu0 %1376
    %v1378 = vrcp.pop %v1377
    %v1379 = vmul.f32 %v1374, %v1378
    %v1380 = vpack.c.bf16 %v1379, %v1379
    %1381 = vrot.lane.b32.xlu0 %v1288, 56
    %v1382 = vpop.permute.xlu0 %1381
    %v1384 = vsel %vm248, %v1380, 0
    %v1387 = vsel %vm252, %v1382, 0
    %1389 = vmatpush.bf16.msra.mxu0 0
    %1390 = vmatpush.bf16.msra.mxu0 0
    %1391 = vmatpush.bf16.msra.mxu0 0
    %1392 = vmatpush.bf16.msra.mxu0 0
    %1393 = vmatpush.bf16.msra.mxu0 0
    %1394 = vmatpush.bf16.msra.mxu0 0
    %1395 = vmatpush.bf16.msra.mxu0 0
    %1396 = vmatpush.bf16.msra.mxu0 %v1387
    %1397 = vmatmul.bf16.gmra.mxu0 %v1384
    %v1398 = vpop.f32.mrf.mxu0
    %v1399 = vadd.f32 0.0, %v1398
    %v1400 = vpop.f32.mrf.mxu0
    %1401 = vdwg.mxu0
    %1402 = vrot.lane.b32.xlu0 %v1213, 80
    %v1403 = vpop.permute.xlu0 %1402
    %1405 = vxpose.xlu0.b32.start [1/16] %v1403, 128
    %1406 = vxpose.xlu0.b32.cont [2/16] 0.0, 128
    %1407 = vxpose.xlu0.b32.cont [3/16] 0.0, 128
    %1408 = vxpose.xlu0.b32.cont [4/16] 0.0, 128
    %1409 = vxpose.xlu0.b32.cont [5/16] 0.0, 128
    %1410 = vxpose.xlu0.b32.cont [6/16] 0.0, 128
    %1411 = vxpose.xlu0.b32.cont [7/16] 0.0, 128
    %1412 = vxpose.xlu0.b32.cont [8/16] 0.0, 128
    %1413 = vxpose.xlu0.b32.cont [9/16] 0.0, 128
    %1414 = vxpose.xlu0.b32.cont [10/16] 0.0, 128
    %1415 = vxpose.xlu0.b32.cont [11/16] 0.0, 128
    %1416 = vxpose.xlu0.b32.cont [12/16] 0.0, 128
    %1417 = vxpose.xlu0.b32.cont [13/16] 0.0, 128
    %1418 = vxpose.xlu0.b32.cont [14/16] 0.0, 128
    %1419 = vxpose.xlu0.b32.cont [15/16] 0.0, 128
    %1420 = vxpose.xlu0.b32.end [16/16] 0.0, 128
    %v1421 = vpop.trf.xlu0
    %v1422 = vpop.trf.xlu0
    %v1423 = vpop.trf.xlu0
    %v1424 = vpop.trf.xlu0
    %v1425 = vpop.trf.xlu0
    %v1426 = vpop.trf.xlu0
    %v1427 = vpop.trf.xlu0
    %v1428 = vpop.trf.xlu0
    %v1429 = vpop.trf.xlu0
    %v1430 = vpop.trf.xlu0
    %v1431 = vpop.trf.xlu0
    %v1432 = vpop.trf.xlu0
    %v1433 = vpop.trf.xlu0
    %v1434 = vpop.trf.xlu0
    %v1435 = vpop.trf.xlu0
    %v1436 = vpop.trf.xlu0
    %v1437 = vpack.c.bf16 %v1421, %v1421
    %1438 = vrot.lane.b32.xlu0 %v1255, 112
    %v1439 = vpop.permute.xlu0 %1438
    %v1441 = vsel %vm248, %v1439, 0
    %v1444 = vsel %vm252, %v1437, 0
    %1446 = vmatpush.bf16.msra.mxu0 0
    %1447 = vmatpush.bf16.msra.mxu0 0
    %1448 = vmatpush.bf16.msra.mxu0 0
    %1449 = vmatpush.bf16.msra.mxu0 0
    %1450 = vmatpush.bf16.msra.mxu0 0
    %1451 = vmatpush.bf16.msra.mxu0 0
    %1452 = vmatpush.bf16.msra.mxu0 0
    %1453 = vmatpush.bf16.msra.mxu0 %v1444
    %1454 = vmatmul.bf16.gmra.mxu0 %v1441
    %v1455 = vpop.f32.mrf.mxu0
    %v1456 = vadd.f32 %v247, %v1455
    %v1457 = vpop.f32.mrf.mxu0
    %1458 = vdwg.mxu0
    %v1459 = vsel %vm248, %v1456, -inf
    %1460 = vmax.xlane.f32.xlu0 %v1459
    %v1461 = vpop.xlane.xlu0 %1460
    %v1462 = vsub.f32 %v1456, %v1461
    %v1463 = vmul.f32 %v1462, 1.442695
    %v1464 = vpow.pop %v1463
    %v1465 = vsel %vm248, %v1464, 0.0
    %1466 = vadd.xlane.f32.xlu0 %v1465
    %v1467 = vpop.xlane.xlu0 %1466
    %v1468 = vrcp.pop %v1467
    %v1469 = vmul.f32 %v1464, %v1468
    %v1470 = vpack.c.bf16 %v1469, %v1469
    %1471 = vrot.lane.b32.xlu0 %v1288, 48
    %v1472 = vpop.permute.xlu0 %1471
    %v1474 = vsel %vm248, %v1470, 0
    %v1477 = vsel %vm252, %v1472, 0
    %1479 = vmatpush.bf16.msra.mxu0 0
    %1480 = vmatpush.bf16.msra.mxu0 0
    %1481 = vmatpush.bf16.msra.mxu0 0
    %1482 = vmatpush.bf16.msra.mxu0 0
    %1483 = vmatpush.bf16.msra.mxu0 0
    %1484 = vmatpush.bf16.msra.mxu0 0
    %1485 = vmatpush.bf16.msra.mxu0 0
    %1486 = vmatpush.bf16.msra.mxu0 %v1477
    %1487 = vmatmul.bf16.gmra.mxu0 %v1474
    %v1488 = vpop.f32.mrf.mxu0
    %v1489 = vadd.f32 0.0, %v1488
    %v1490 = vpop.f32.mrf.mxu0
    %1491 = vdwg.mxu0
    %1492 = vrot.lane.b32.xlu0 %v1213, 72
    %v1493 = vpop.permute.xlu0 %1492
    %1495 = vxpose.xlu0.b32.start [1/16] %v1493, 128
    %1496 = vxpose.xlu0.b32.cont [2/16] 0.0, 128
    %1497 = vxpose.xlu0.b32.cont [3/16] 0.0, 128
    %1498 = vxpose.xlu0.b32.cont [4/16] 0.0, 128
    %1499 = vxpose.xlu0.b32.cont [5/16] 0.0, 128
    %1500 = vxpose.xlu0.b32.cont [6/16] 0.0, 128
    %1501 = vxpose.xlu0.b32.cont [7/16] 0.0, 128
    %1502 = vxpose.xlu0.b32.cont [8/16] 0.0, 128
    %1503 = vxpose.xlu0.b32.cont [9/16] 0.0, 128
    %1504 = vxpose.xlu0.b32.cont [10/16] 0.0, 128
    %1505 = vxpose.xlu0.b32.cont [11/16] 0.0, 128
    %1506 = vxpose.xlu0.b32.cont [12/16] 0.0, 128
    %1507 = vxpose.xlu0.b32.cont [13/16] 0.0, 128
    %1508 = vxpose.xlu0.b32.cont [14/16] 0.0, 128
    %1509 = vxpose.xlu0.b32.cont [15/16] 0.0, 128
    %1510 = vxpose.xlu0.b32.end [16/16] 0.0, 128
    %v1511 = vpop.trf.xlu0
    %v1512 = vpop.trf.xlu0
    %v1513 = vpop.trf.xlu0
    %v1514 = vpop.trf.xlu0
    %v1515 = vpop.trf.xlu0
    %v1516 = vpop.trf.xlu0
    %v1517 = vpop.trf.xlu0
    %v1518 = vpop.trf.xlu0
    %v1519 = vpop.trf.xlu0
    %v1520 = vpop.trf.xlu0
    %v1521 = vpop.trf.xlu0
    %v1522 = vpop.trf.xlu0
    %v1523 = vpop.trf.xlu0
    %v1524 = vpop.trf.xlu0
    %v1525 = vpop.trf.xlu0
    %v1526 = vpop.trf.xlu0
    %v1527 = vpack.c.bf16 %v1511, %v1511
    %1528 = vrot.lane.b32.xlu0 %v1255, 104
    %v1529 = vpop.permute.xlu0 %1528
    %v1531 = vsel %vm248, %v1529, 0
    %v1534 = vsel %vm252, %v1527, 0
    %1536 = vmatpush.bf16.msra.mxu0 0
    %1537 = vmatpush.bf16.msra.mxu0 0
    %1538 = vmatpush.bf16.msra.mxu0 0
    %1539 = vmatpush.bf16.msra.mxu0 0
    %1540 = vmatpush.bf16.msra.mxu0 0
    %1541 = vmatpush.bf16.msra.mxu0 0
    %1542 = vmatpush.bf16.msra.mxu0 0
    %1543 = vmatpush.bf16.msra.mxu0 %v1534
    %1544 = vmatmul.bf16.gmra.mxu0 %v1531
    %v1545 = vpop.f32.mrf.mxu0
    %v1546 = vadd.f32 %v247, %v1545
    %v1547 = vpop.f32.mrf.mxu0
    %1548 = vdwg.mxu0
    %v1549 = vsel %vm248, %v1546, -inf
    %1550 = vmax.xlane.f32.xlu0 %v1549
    %v1551 = vpop.xlane.xlu0 %1550
    %v1552 = vsub.f32 %v1546, %v1551
    %v1553 = vmul.f32 %v1552, 1.442695
    %v1554 = vpow.pop %v1553
    %v1555 = vsel %vm248, %v1554, 0.0
    %1556 = vadd.xlane.f32.xlu0 %v1555
    %v1557 = vpop.xlane.xlu0 %1556
    %v1558 = vrcp.pop %v1557
    %v1559 = vmul.f32 %v1554, %v1558
    %v1560 = vpack.c.bf16 %v1559, %v1559
    %1561 = vrot.lane.b32.xlu0 %v1288, 40
    %v1562 = vpop.permute.xlu0 %1561
    %v1564 = vsel %vm248, %v1560, 0
    %v1567 = vsel %vm252, %v1562, 0
    %1569 = vmatpush.bf16.msra.mxu0 0
    %1570 = vmatpush.bf16.msra.mxu0 0
    %1571 = vmatpush.bf16.msra.mxu0 0
    %1572 = vmatpush.bf16.msra.mxu0 0
    %1573 = vmatpush.bf16.msra.mxu0 0
    %1574 = vmatpush.bf16.msra.mxu0 0
    %1575 = vmatpush.bf16.msra.mxu0 0
    %1576 = vmatpush.bf16.msra.mxu0 %v1567
    %1577 = vmatmul.bf16.gmra.mxu0 %v1564
    %v1578 = vpop.f32.mrf.mxu0
    %v1579 = vadd.f32 0.0, %v1578
    %v1580 = vpop.f32.mrf.mxu0
    %1581 = vdwg.mxu0
    %1583 = vrot.lane.b32.xlu0 %v1399, 8
    %v1584 = vpop.permute.xlu0 %1583
    %1587 = vrot.lane.b32.xlu0 %v1489, 16
    %v1588 = vpop.permute.xlu0 %1587
    %1591 = vrot.lane.b32.xlu0 %v1579, 24
    %v1592 = vpop.permute.xlu0 %1591
    %v1594 = vsel %vm248, %v1308, %v1584
    %v1595 = vsel %vm588, %v1594, %v1588
    %v1596 = vsel %vm590, %v1595, %v1592
    %1598 = vrot.lane.b32.xlu0 %v1215, 96
    %v1599 = vpop.permute.xlu0 %1598
    %1601 = vxpose.xlu0.b32.start [1/16] %v1599, 128
    %1602 = vxpose.xlu0.b32.cont [2/16] 0.0, 128
    %1603 = vxpose.xlu0.b32.cont [3/16] 0.0, 128
    %1604 = vxpose.xlu0.b32.cont [4/16] 0.0, 128
    %1605 = vxpose.xlu0.b32.cont [5/16] 0.0, 128
    %1606 = vxpose.xlu0.b32.cont [6/16] 0.0, 128
    %1607 = vxpose.xlu0.b32.cont [7/16] 0.0, 128
    %1608 = vxpose.xlu0.b32.cont [8/16] 0.0, 128
    %1609 = vxpose.xlu0.b32.cont [9/16] 0.0, 128
    %1610 = vxpose.xlu0.b32.cont [10/16] 0.0, 128
    %1611 = vxpose.xlu0.b32.cont [11/16] 0.0, 128
    %1612 = vxpose.xlu0.b32.cont [12/16] 0.0, 128
    %1613 = vxpose.xlu0.b32.cont [13/16] 0.0, 128
    %1614 = vxpose.xlu0.b32.cont [14/16] 0.0, 128
    %1615 = vxpose.xlu0.b32.cont [15/16] 0.0, 128
    %1616 = vxpose.xlu0.b32.end [16/16] 0.0, 128
    %v1617 = vpop.trf.xlu0
    %v1618 = vpop.trf.xlu0
    %v1619 = vpop.trf.xlu0
    %v1620 = vpop.trf.xlu0
    %v1621 = vpop.trf.xlu0
    %v1622 = vpop.trf.xlu0
    %v1623 = vpop.trf.xlu0
    %v1624 = vpop.trf.xlu0
    %v1625 = vpop.trf.xlu0
    %v1626 = vpop.trf.xlu0
    %v1627 = vpop.trf.xlu0
    %v1628 = vpop.trf.xlu0
    %v1629 = vpop.trf.xlu0
    %v1630 = vpop.trf.xlu0
    %v1631 = vpop.trf.xlu0
    %v1632 = vpop.trf.xlu0
    %v1633 = vpack.c.bf16 %v1218, %v1218
    %v1634 = vpack.c.bf16 %v1617, %v1617
    %v1636 = vsel %vm248, %v1633, 0
    %v1639 = vsel %vm252, %v1634, 0
    %1641 = vmatpush.bf16.msra.mxu0 0
    %1642 = vmatpush.bf16.msra.mxu0 0
    %1643 = vmatpush.bf16.msra.mxu0 0
    %1644 = vmatpush.bf16.msra.mxu0 0
    %1645 = vmatpush.bf16.msra.mxu0 0
    %1646 = vmatpush.bf16.msra.mxu0 0
    %1647 = vmatpush.bf16.msra.mxu0 0
    %1648 = vmatpush.bf16.msra.mxu0 %v1639
    %1649 = vmatmul.bf16.gmra.mxu0 %v1636
    %v1650 = vpop.f32.mrf.mxu0
    %v1651 = vadd.f32 %v630, %v1650
    %v1652 = vpop.f32.mrf.mxu0
    %1653 = vdwg.mxu0
    %v1654 = vsel %vm248, %v1651, -inf
    %1655 = vmax.xlane.f32.xlu0 %v1654
    %v1656 = vpop.xlane.xlu0 %1655
    %v1657 = vsub.f32 %v1651, %v1656
    %v1658 = vmul.f32 %v1657, 1.442695
    %v1659 = vpow.pop %v1658
    %v1660 = vsel %vm248, %v1659, 0.0
    %1661 = vadd.xlane.f32.xlu0 %v1660
    %v1662 = vpop.xlane.xlu0 %1661
    %v1663 = vrcp.pop %v1662
    %v1664 = vmul.f32 %v1659, %v1663
    %v1665 = vpack.c.bf16 %v1664, %v1664
    %v1666 = vpack.c.bf16 %v1215, %v1215
    %1668 = vrot.lane.b32.xlu0 %v1666, 64
    %v1669 = vpop.permute.xlu0 %1668
    %v1671 = vsel %vm248, %v1665, 0
    %v1674 = vsel %vm252, %v1669, 0
    %1676 = vmatpush.bf16.msra.mxu0 0
    %1677 = vmatpush.bf16.msra.mxu0 0
    %1678 = vmatpush.bf16.msra.mxu0 0
    %1679 = vmatpush.bf16.msra.mxu0 0
    %1680 = vmatpush.bf16.msra.mxu0 0
    %1681 = vmatpush.bf16.msra.mxu0 0
    %1682 = vmatpush.bf16.msra.mxu0 0
    %1683 = vmatpush.bf16.msra.mxu0 %v1674
    %1684 = vmatmul.bf16.gmra.mxu0 %v1671
    %v1685 = vpop.f32.mrf.mxu0
    %v1686 = vadd.f32 0.0, %v1685
    %v1687 = vpop.f32.mrf.mxu0
    %1688 = vdwg.mxu0
    %1689 = vrot.lane.b32.xlu0 %v1215, 88
    %v1690 = vpop.permute.xlu0 %1689
    %1692 = vxpose.xlu0.b32.start [1/16] %v1690, 128
    %1693 = vxpose.xlu0.b32.cont [2/16] 0.0, 128
    %1694 = vxpose.xlu0.b32.cont [3/16] 0.0, 128
    %1695 = vxpose.xlu0.b32.cont [4/16] 0.0, 128
    %1696 = vxpose.xlu0.b32.cont [5/16] 0.0, 128
    %1697 = vxpose.xlu0.b32.cont [6/16] 0.0, 128
    %1698 = vxpose.xlu0.b32.cont [7/16] 0.0, 128
    %1699 = vxpose.xlu0.b32.cont [8/16] 0.0, 128
    %1700 = vxpose.xlu0.b32.cont [9/16] 0.0, 128
    %1701 = vxpose.xlu0.b32.cont [10/16] 0.0, 128
    %1702 = vxpose.xlu0.b32.cont [11/16] 0.0, 128
    %1703 = vxpose.xlu0.b32.cont [12/16] 0.0, 128
    %1704 = vxpose.xlu0.b32.cont [13/16] 0.0, 128
    %1705 = vxpose.xlu0.b32.cont [14/16] 0.0, 128
    %1706 = vxpose.xlu0.b32.cont [15/16] 0.0, 128
    %1707 = vxpose.xlu0.b32.end [16/16] 0.0, 128
    %v1708 = vpop.trf.xlu0
    %v1709 = vpop.trf.xlu0
    %v1710 = vpop.trf.xlu0
    %v1711 = vpop.trf.xlu0
    %v1712 = vpop.trf.xlu0
    %v1713 = vpop.trf.xlu0
    %v1714 = vpop.trf.xlu0
    %v1715 = vpop.trf.xlu0
    %v1716 = vpop.trf.xlu0
    %v1717 = vpop.trf.xlu0
    %v1718 = vpop.trf.xlu0
    %v1719 = vpop.trf.xlu0
    %v1720 = vpop.trf.xlu0
    %v1721 = vpop.trf.xlu0
    %v1722 = vpop.trf.xlu0
    %v1723 = vpop.trf.xlu0
    %v1724 = vpack.c.bf16 %v1708, %v1708
    %1726 = vrot.lane.b32.xlu0 %v1633, 120
    %v1727 = vpop.permute.xlu0 %1726
    %v1729 = vsel %vm248, %v1727, 0
    %v1732 = vsel %vm252, %v1724, 0
    %1734 = vmatpush.bf16.msra.mxu0 0
    %1735 = vmatpush.bf16.msra.mxu0 0
    %1736 = vmatpush.bf16.msra.mxu0 0
    %1737 = vmatpush.bf16.msra.mxu0 0
    %1738 = vmatpush.bf16.msra.mxu0 0
    %1739 = vmatpush.bf16.msra.mxu0 0
    %1740 = vmatpush.bf16.msra.mxu0 0
    %1741 = vmatpush.bf16.msra.mxu0 %v1732
    %1742 = vmatmul.bf16.gmra.mxu0 %v1729
    %v1743 = vpop.f32.mrf.mxu0
    %v1744 = vadd.f32 %v630, %v1743
    %v1745 = vpop.f32.mrf.mxu0
    %1746 = vdwg.mxu0
    %v1747 = vsel %vm248, %v1744, -inf
    %1748 = vmax.xlane.f32.xlu0 %v1747
    %v1749 = vpop.xlane.xlu0 %1748
    %v1750 = vsub.f32 %v1744, %v1749
    %v1751 = vmul.f32 %v1750, 1.442695
    %v1752 = vpow.pop %v1751
    %v1753 = vsel %vm248, %v1752, 0.0
    %1754 = vadd.xlane.f32.xlu0 %v1753
    %v1755 = vpop.xlane.xlu0 %1754
    %v1756 = vrcp.pop %v1755
    %v1757 = vmul.f32 %v1752, %v1756
    %v1758 = vpack.c.bf16 %v1757, %v1757
    %1759 = vrot.lane.b32.xlu0 %v1666, 56
    %v1760 = vpop.permute.xlu0 %1759
    %v1762 = vsel %vm248, %v1758, 0
    %v1765 = vsel %vm252, %v1760, 0
    %1767 = vmatpush.bf16.msra.mxu0 0
    %1768 = vmatpush.bf16.msra.mxu0 0
    %1769 = vmatpush.bf16.msra.mxu0 0
    %1770 = vmatpush.bf16.msra.mxu0 0
    %1771 = vmatpush.bf16.msra.mxu0 0
    %1772 = vmatpush.bf16.msra.mxu0 0
    %1773 = vmatpush.bf16.msra.mxu0 0
    %1774 = vmatpush.bf16.msra.mxu0 %v1765
    %1775 = vmatmul.bf16.gmra.mxu0 %v1762
    %v1776 = vpop.f32.mrf.mxu0
    %v1777 = vadd.f32 0.0, %v1776
    %v1778 = vpop.f32.mrf.mxu0
    %1779 = vdwg.mxu0
    %1780 = vrot.lane.b32.xlu0 %v1215, 80
    %v1781 = vpop.permute.xlu0 %1780
    %1783 = vxpose.xlu0.b32.start [1/16] %v1781, 128
    %1784 = vxpose.xlu0.b32.cont [2/16] 0.0, 128
    %1785 = vxpose.xlu0.b32.cont [3/16] 0.0, 128
    %1786 = vxpose.xlu0.b32.cont [4/16] 0.0, 128
    %1787 = vxpose.xlu0.b32.cont [5/16] 0.0, 128
    %1788 = vxpose.xlu0.b32.cont [6/16] 0.0, 128
    %1789 = vxpose.xlu0.b32.cont [7/16] 0.0, 128
    %1790 = vxpose.xlu0.b32.cont [8/16] 0.0, 128
    %1791 = vxpose.xlu0.b32.cont [9/16] 0.0, 128
    %1792 = vxpose.xlu0.b32.cont [10/16] 0.0, 128
    %1793 = vxpose.xlu0.b32.cont [11/16] 0.0, 128
    %1794 = vxpose.xlu0.b32.cont [12/16] 0.0, 128
    %1795 = vxpose.xlu0.b32.cont [13/16] 0.0, 128
    %1796 = vxpose.xlu0.b32.cont [14/16] 0.0, 128
    %1797 = vxpose.xlu0.b32.cont [15/16] 0.0, 128
    %1798 = vxpose.xlu0.b32.end [16/16] 0.0, 128
    %v1799 = vpop.trf.xlu0
    %v1800 = vpop.trf.xlu0
    %v1801 = vpop.trf.xlu0
    %v1802 = vpop.trf.xlu0
    %v1803 = vpop.trf.xlu0
    %v1804 = vpop.trf.xlu0
    %v1805 = vpop.trf.xlu0
    %v1806 = vpop.trf.xlu0
    %v1807 = vpop.trf.xlu0
    %v1808 = vpop.trf.xlu0
    %v1809 = vpop.trf.xlu0
    %v1810 = vpop.trf.xlu0
    %v1811 = vpop.trf.xlu0
    %v1812 = vpop.trf.xlu0
    %v1813 = vpop.trf.xlu0
    %v1814 = vpop.trf.xlu0
    %v1815 = vpack.c.bf16 %v1799, %v1799
    %1816 = vrot.lane.b32.xlu0 %v1633, 112
    %v1817 = vpop.permute.xlu0 %1816
    %v1819 = vsel %vm248, %v1817, 0
    %v1822 = vsel %vm252, %v1815, 0
    %1824 = vmatpush.bf16.msra.mxu0 0
    %1825 = vmatpush.bf16.msra.mxu0 0
    %1826 = vmatpush.bf16.msra.mxu0 0
    %1827 = vmatpush.bf16.msra.mxu0 0
    %1828 = vmatpush.bf16.msra.mxu0 0
    %1829 = vmatpush.bf16.msra.mxu0 0
    %1830 = vmatpush.bf16.msra.mxu0 0
    %1831 = vmatpush.bf16.msra.mxu0 %v1822
    %1832 = vmatmul.bf16.gmra.mxu0 %v1819
    %v1833 = vpop.f32.mrf.mxu0
    %v1834 = vadd.f32 %v630, %v1833
    %v1835 = vpop.f32.mrf.mxu0
    %1836 = vdwg.mxu0
    %v1837 = vsel %vm248, %v1834, -inf
    %1838 = vmax.xlane.f32.xlu0 %v1837
    %v1839 = vpop.xlane.xlu0 %1838
    %v1840 = vsub.f32 %v1834, %v1839
    %v1841 = vmul.f32 %v1840, 1.442695
    %v1842 = vpow.pop %v1841
    %v1843 = vsel %vm248, %v1842, 0.0
    %1844 = vadd.xlane.f32.xlu0 %v1843
    %v1845 = vpop.xlane.xlu0 %1844
    %v1846 = vrcp.pop %v1845
    %v1847 = vmul.f32 %v1842, %v1846
    %v1848 = vpack.c.bf16 %v1847, %v1847
    %1849 = vrot.lane.b32.xlu0 %v1666, 48
    %v1850 = vpop.permute.xlu0 %1849
    %v1852 = vsel %vm248, %v1848, 0
    %v1855 = vsel %vm252, %v1850, 0
    %1857 = vmatpush.bf16.msra.mxu0 0
    %1858 = vmatpush.bf16.msra.mxu0 0
    %1859 = vmatpush.bf16.msra.mxu0 0
    %1860 = vmatpush.bf16.msra.mxu0 0
    %1861 = vmatpush.bf16.msra.mxu0 0
    %1862 = vmatpush.bf16.msra.mxu0 0
    %1863 = vmatpush.bf16.msra.mxu0 0
    %1864 = vmatpush.bf16.msra.mxu0 %v1855
    %1865 = vmatmul.bf16.gmra.mxu0 %v1852
    %v1866 = vpop.f32.mrf.mxu0
    %v1867 = vadd.f32 0.0, %v1866
    %v1868 = vpop.f32.mrf.mxu0
    %1869 = vdwg.mxu0
    %1870 = vrot.lane.b32.xlu0 %v1215, 72
    %v1871 = vpop.permute.xlu0 %1870
    %1873 = vxpose.xlu0.b32.start [1/16] %v1871, 128
    %1874 = vxpose.xlu0.b32.cont [2/16] 0.0, 128
    %1875 = vxpose.xlu0.b32.cont [3/16] 0.0, 128
    %1876 = vxpose.xlu0.b32.cont [4/16] 0.0, 128
    %1877 = vxpose.xlu0.b32.cont [5/16] 0.0, 128
    %1878 = vxpose.xlu0.b32.cont [6/16] 0.0, 128
    %1879 = vxpose.xlu0.b32.cont [7/16] 0.0, 128
    %1880 = vxpose.xlu0.b32.cont [8/16] 0.0, 128
    %1881 = vxpose.xlu0.b32.cont [9/16] 0.0, 128
    %1882 = vxpose.xlu0.b32.cont [10/16] 0.0, 128
    %1883 = vxpose.xlu0.b32.cont [11/16] 0.0, 128
    %1884 = vxpose.xlu0.b32.cont [12/16] 0.0, 128
    %1885 = vxpose.xlu0.b32.cont [13/16] 0.0, 128
    %1886 = vxpose.xlu0.b32.cont [14/16] 0.0, 128
    %1887 = vxpose.xlu0.b32.cont [15/16] 0.0, 128
    %1888 = vxpose.xlu0.b32.end [16/16] 0.0, 128
    %v1889 = vpop.trf.xlu0
    %v1890 = vpop.trf.xlu0
    %v1891 = vpop.trf.xlu0
    %v1892 = vpop.trf.xlu0
    %v1893 = vpop.trf.xlu0
    %v1894 = vpop.trf.xlu0
    %v1895 = vpop.trf.xlu0
    %v1896 = vpop.trf.xlu0
    %v1897 = vpop.trf.xlu0
    %v1898 = vpop.trf.xlu0
    %v1899 = vpop.trf.xlu0
    %v1900 = vpop.trf.xlu0
    %v1901 = vpop.trf.xlu0
    %v1902 = vpop.trf.xlu0
    %v1903 = vpop.trf.xlu0
    %v1904 = vpop.trf.xlu0
    %v1905 = vpack.c.bf16 %v1889, %v1889
    %1906 = vrot.lane.b32.xlu0 %v1633, 104
    %v1907 = vpop.permute.xlu0 %1906
    %v1909 = vsel %vm248, %v1907, 0
    %v1912 = vsel %vm252, %v1905, 0
    %1914 = vmatpush.bf16.msra.mxu0 0
    %1915 = vmatpush.bf16.msra.mxu0 0
    %1916 = vmatpush.bf16.msra.mxu0 0
    %1917 = vmatpush.bf16.msra.mxu0 0
    %1918 = vmatpush.bf16.msra.mxu0 0
    %1919 = vmatpush.bf16.msra.mxu0 0
    %1920 = vmatpush.bf16.msra.mxu0 0
    %1921 = vmatpush.bf16.msra.mxu0 %v1912
    %1922 = vmatmul.bf16.gmra.mxu0 %v1909
    %v1923 = vpop.f32.mrf.mxu0
    %v1924 = vadd.f32 %v630, %v1923
    %v1925 = vpop.f32.mrf.mxu0
    %1926 = vdwg.mxu0
    %v1927 = vsel %vm248, %v1924, -inf
    %1928 = vmax.xlane.f32.xlu0 %v1927
    %v1929 = vpop.xlane.xlu0 %1928
    %v1930 = vsub.f32 %v1924, %v1929
    %v1931 = vmul.f32 %v1930, 1.442695
    %v1932 = vpow.pop %v1931
    %v1933 = vsel %vm248, %v1932, 0.0
    %1934 = vadd.xlane.f32.xlu0 %v1933
    %v1935 = vpop.xlane.xlu0 %1934
    %v1936 = vrcp.pop %v1935
    %v1937 = vmul.f32 %v1932, %v1936
    %v1938 = vpack.c.bf16 %v1937, %v1937
    %1939 = vrot.lane.b32.xlu0 %v1666, 40
    %v1940 = vpop.permute.xlu0 %1939
    %v1942 = vsel %vm248, %v1938, 0
    %v1945 = vsel %vm252, %v1940, 0
    %1947 = vmatpush.bf16.msra.mxu0 0
    %1948 = vmatpush.bf16.msra.mxu0 0
    %1949 = vmatpush.bf16.msra.mxu0 0
    %1950 = vmatpush.bf16.msra.mxu0 0
    %1951 = vmatpush.bf16.msra.mxu0 0
    %1952 = vmatpush.bf16.msra.mxu0 0
    %1953 = vmatpush.bf16.msra.mxu0 0
    %1954 = vmatpush.bf16.msra.mxu0 %v1945
    %1955 = vmatmul.bf16.gmra.mxu0 %v1942
    %v1956 = vpop.f32.mrf.mxu0
    %v1957 = vadd.f32 0.0, %v1956
    %v1958 = vpop.f32.mrf.mxu0
    %1959 = vdwg.mxu0
    %1961 = vrot.lane.b32.xlu0 %v1777, 8
    %v1962 = vpop.permute.xlu0 %1961
    %1965 = vrot.lane.b32.xlu0 %v1867, 16
    %v1966 = vpop.permute.xlu0 %1965
    %1969 = vrot.lane.b32.xlu0 %v1957, 24
    %v1970 = vpop.permute.xlu0 %1969
    %v1972 = vsel %vm248, %v1686, %v1962
    %v1973 = vsel %vm588, %v1972, %v1966
    %v1974 = vsel %vm590, %v1973, %v1970
    %s1975 = scalar_lea.vmem %s13, 32
    %v1976 = vld [vmem:[%s1975] sm:$0xff]
    %v1977 = vld [vmem:[%s1975 + $0x8] sm:$0xff]
    %v1978 = vld [vmem:[%s1975 + $0x10] sm:$0xff]
    %v1979 = vld [vmem:[%s1975 + $0x18] sm:$0xff]
    %v1980 = vpack.c.bf16 %v1974, %v1596
    %v1981 = vpack.c.bf16 %v1977, %v1976
    %v1982 = vpack.c.bf16 %v1979, %v1978
    %s1983 = scalar_lea.vmem %s15, 1
    %v1984 = vld [vmem:[%s1983] sm:$0x1]
    %v1986 = vperm.slane %v1984, 0
    %v1989 = vsel %vm189, %v1980, 0
    %1991 = vmatpush.bf16.msra.mxu0 0
    %1992 = vmatpush.bf16.msra.mxu0 0
    %1993 = vmatpush.bf16.msra.mxu0 0
    %1994 = vmatpush.bf16.msra.mxu0 0
    %1995 = vmatpush.bf16.msra.mxu0 0
    %1996 = vmatpush.bf16.msra.mxu0 0
    %1997 = vmatpush.bf16.msra.mxu0 %v1982
    %1998 = vmatpush.bf16.msra.mxu0 %v1981
    %1999 = vmatmul.bf16.gmra.mxu0 %v1989
    %v2000 = vpop.f32.mrf.mxu0
    %v2001 = vadd.f32 %v1986, %v2000
    %v2002 = vpop.f32.mrf.mxu0
    %v2003 = vadd.f32 %v1986, %v2002
    %2004 = vdwg.mxu0
    %v2005 = vadd.f32 %v1185, %v2001
    %v2006 = vadd.f32 %v1186, %v2003
    %s2007 = scalar_lea.vmem %s25, 1
    %v2008 = vld [vmem:[%s2007] sm:$0x1]
    %s2009 = scalar_lea.vmem %s27, 1
    %v2010 = vld [vmem:[%s2009] sm:$0x1]
    %v2011 = vsel %vm189, %v2005, 0.0
    %2012 = vadd.xlane.f32.xlu0 %v2011
    %v2013 = vpop.xlane.xlu0 %2012
    %v2014 = vsel %vm189, %v2006, 0.0
    %2015 = vadd.xlane.f32.xlu0 %v2014
    %v2016 = vpop.xlane.xlu0 %2015
    %v2017 = vmul.f32 %v2013, %v1015
    %v2018 = vmul.f32 %v2016, %v1015
    %v2019 = vsub.f32 %v2005, %v2017
    %v2020 = vsub.f32 %v2006, %v2018
    %v2021 = vmul.f32 %v2019, %v2019
    %v2022 = vmul.f32 %v2020, %v2020
    %v2023 = vsel %vm189, %v2021, 0.0
    %2024 = vadd.xlane.f32.xlu0 %v2023
    %v2025 = vpop.xlane.xlu0 %2024
    %v2026 = vsel %vm189, %v2022, 0.0
    %2027 = vadd.xlane.f32.xlu0 %v2026
    %v2028 = vpop.xlane.xlu0 %2027
    %v2029 = vmul.f32 %v2025, %v1015
    %v2030 = vmul.f32 %v2028, %v1015
    %v2031 = vadd.f32 %v2029, 1e-05
    %v2032 = vadd.f32 %v2030, 1e-05
    %v2033 = vrsqrt.pop %v2031
    %v2034 = vmul.f32 %v2033, %v2031
    %v2035 = vmul.f32 %v2034, %v2033
    %v2036 = vmul.f32 0.5, %v2035
    %v2037 = vsub.f32 1.5, %v2036
    %v2038 = vmul.f32 %v2033, %v2037
    %vm2039 = vweird.f32 %v2031
    %vm2040 = vweird.f32 %v2033
    %vm2041 = vmor %vm2039, %vm2040
    %v2042 = vsel %vm2041, %v2033, %v2038
    %v2043 = vrsqrt.pop %v2032
    %v2044 = vmul.f32 %v2043, %v2032
    %v2045 = vmul.f32 %v2044, %v2043
    %v2046 = vmul.f32 0.5, %v2045
    %v2047 = vsub.f32 1.5, %v2046
    %v2048 = vmul.f32 %v2043, %v2047
    %vm2049 = vweird.f32 %v2032
    %vm2050 = vweird.f32 %v2043
    %vm2051 = vmor %vm2049, %vm2050
    %v2052 = vsel %vm2051, %v2043, %v2048
    %v2053 = vmul.f32 %v2019, %v2042
    %v2054 = vmul.f32 %v2020, %v2052
    %v2056 = vperm.slane %v2008, 0
    %v2058 = vmul.f32 %v2053, %v2056
    %v2059 = vmul.f32 %v2054, %v2056
    %v2061 = vperm.slane %v2010, 0
    %v2063 = vadd.f32 %v2058, %v2061
    %v2064 = vadd.f32 %v2059, %v2061
    %s2065 = scalar_lea.vmem %s17, 32
    %v2066 = vld [vmem:[%s2065] sm:$0xff]
    %v2067 = vld [vmem:[%s2065 + $0x8] sm:$0xff]
    %v2068 = vld [vmem:[%s2065 + $0x10] sm:$0xff]
    %v2069 = vld [vmem:[%s2065 + $0x18] sm:$0xff]
    %v2070 = vpack.c.bf16 %v2064, %v2063
    %v2071 = vpack.c.bf16 %v2067, %v2066
    %v2072 = vpack.c.bf16 %v2069, %v2068
    %s2073 = scalar_lea.vmem %s19, 1
    %v2074 = vld [vmem:[%s2073] sm:$0x1]
    %v2076 = vperm.slane %v2074, 0
    %v2079 = vsel %vm189, %v2070, 0
    %2081 = vmatpush.bf16.msra.mxu0 0
    %2082 = vmatpush.bf16.msra.mxu0 0
    %2083 = vmatpush.bf16.msra.mxu0 0
    %2084 = vmatpush.bf16.msra.mxu0 0
    %2085 = vmatpush.bf16.msra.mxu0 0
    %2086 = vmatpush.bf16.msra.mxu0 0
    %2087 = vmatpush.bf16.msra.mxu0 %v2072
    %2088 = vmatpush.bf16.msra.mxu0 %v2071
    %2089 = vmatmul.bf16.gmra.mxu0 %v2079
    %v2090 = vpop.f32.mrf.mxu0
    %v2091 = vadd.f32 %v2076, %v2090
    %v2092 = vpop.f32.mrf.mxu0
    %v2093 = vadd.f32 %v2076, %v2092
    %2094 = vdwg.mxu0
    %v2095 = vmax.f32 %v2091, 0.0
    %v2096 = vmax.f32 %v2093, 0.0
    %s2097 = scalar_lea.vmem %s21, 64
    %v2098 = vld [vmem:[%s2097] sm:$0xff]
    %v2099 = vld [vmem:[%s2097 + $0x8] sm:$0xff]
    %v2100 = vld [vmem:[%s2097 + $0x10] sm:$0xff]
    %v2101 = vld [vmem:[%s2097 + $0x18] sm:$0xff]
    %v2102 = vld [vmem:[%s2097 + $0x20] sm:$0xff]
    %v2103 = vld [vmem:[%s2097 + $0x28] sm:$0xff]
    %v2104 = vld [vmem:[%s2097 + $0x30] sm:$0xff]
    %v2105 = vld [vmem:[%s2097 + $0x38] sm:$0xff]
    %v2106 = vpack.c.bf16 %v2096, %v2095
    %v2107 = vpack.c.bf16 %v2099, %v2098
    %v2108 = vpack.c.bf16 %v2101, %v2100
    %v2109 = vpack.c.bf16 %v2103, %v2102
    %v2110 = vpack.c.bf16 %v2105, %v2104
    %s2111 = scalar_lea.vmem %s23, 1
    %v2112 = vld [vmem:[%s2111] sm:$0x1]
    %v2114 = vperm.slane %v2112, 0
    %v2117 = vsel %vm1111, %v2106, 0
    %2119 = vmatpush.bf16.msra.mxu0 0
    %2120 = vmatpush.bf16.msra.mxu0 0
    %2121 = vmatpush.bf16.msra.mxu0 0
    %2122 = vmatpush.bf16.msra.mxu0 0
    %2123 = vmatpush.bf16.msra.mxu0 %v2110
    %2124 = vmatpush.bf16.msra.mxu0 %v2109
    %2125 = vmatpush.bf16.msra.mxu0 %v2108
    %2126 = vmatpush.bf16.msra.mxu0 %v2107
    %2127 = vmatmul.bf16.gmra.mxu0 %v2117
    %v2128 = vpop.f32.mrf.mxu0
    %v2129 = vadd.f32 %v2114, %v2128
    %v2130 = vpop.f32.mrf.mxu0
    %v2131 = vadd.f32 %v2114, %v2130
    %2132 = vdwg.mxu0
    %v2133 = vadd.f32 %v2063, %v2129
    %v2134 = vadd.f32 %v2064, %v2131
    %s2135 = scalar_lea.vmem %s29, 1
    %v2136 = vld [vmem:[%s2135] sm:$0x1]
    %s2137 = scalar_lea.vmem %s31, 1
    %v2138 = vld [vmem:[%s2137] sm:$0x1]
    %v2139 = vsel %vm189, %v2133, 0.0
    %2140 = vadd.xlane.f32.xlu0 %v2139
    %v2141 = vpop.xlane.xlu0 %2140
    %v2142 = vsel %vm189, %v2134, 0.0
    %2143 = vadd.xlane.f32.xlu0 %v2142
    %v2144 = vpop.xlane.xlu0 %2143
    %v2145 = vmul.f32 %v2141, %v1015
    %v2146 = vmul.f32 %v2144, %v1015
    %v2147 = vsub.f32 %v2133, %v2145
    %v2148 = vsub.f32 %v2134, %v2146
    %v2149 = vmul.f32 %v2147, %v2147
    %v2150 = vmul.f32 %v2148, %v2148
    %v2151 = vsel %vm189, %v2149, 0.0
    %2152 = vadd.xlane.f32.xlu0 %v2151
    %v2153 = vpop.xlane.xlu0 %2152
    %v2154 = vsel %vm189, %v2150, 0.0
    %2155 = vadd.xlane.f32.xlu0 %v2154
    %v2156 = vpop.xlane.xlu0 %2155
    %v2157 = vmul.f32 %v2153, %v1015
    %v2158 = vmul.f32 %v2156, %v1015
    %v2159 = vadd.f32 %v2157, 1e-05
    %v2160 = vadd.f32 %v2158, 1e-05
    %v2161 = vrsqrt.pop %v2159
    %v2162 = vmul.f32 %v2161, %v2159
    %v2163 = vmul.f32 %v2162, %v2161
    %v2164 = vmul.f32 0.5, %v2163
    %v2165 = vsub.f32 1.5, %v2164
    %v2166 = vmul.f32 %v2161, %v2165
    %vm2167 = vweird.f32 %v2159
    %vm2168 = vweird.f32 %v2161
    %vm2169 = vmor %vm2167, %vm2168
    %v2170 = vsel %vm2169, %v2161, %v2166
    %v2171 = vrsqrt.pop %v2160
    %v2172 = vmul.f32 %v2171, %v2160
    %v2173 = vmul.f32 %v2172, %v2171
    %v2174 = vmul.f32 0.5, %v2173
    %v2175 = vsub.f32 1.5, %v2174
    %v2176 = vmul.f32 %v2171, %v2175
    %vm2177 = vweird.f32 %v2160
    %vm2178 = vweird.f32 %v2171
    %vm2179 = vmor %vm2177, %vm2178
    %v2180 = vsel %vm2179, %v2171, %v2176
    %v2181 = vmul.f32 %v2147, %v2170
    %v2182 = vmul.f32 %v2148, %v2180
    %v2184 = vperm.slane %v2136, 0
    %v2186 = vmul.f32 %v2181, %v2184
    %v2187 = vmul.f32 %v2182, %v2184
    %v2189 = vperm.slane %v2138, 0
    %v2191 = vadd.f32 %v2186, %v2189
    %v2192 = vadd.f32 %v2187, %v2189
    %2193 = vst.msk [vmem:[#allocation2] sm:$0xff] %vm189, %v2191
    %2194 = vst.msk [vmem:[#allocation2 + $0x8] sm:$0xff] %vm189, %v2192
    %v2195 = vld [vmem:[%s3] sm:$0xff]
    %v2196 = vld [vmem:[%s3 + $0x8] sm:$0xff]
    %v2197 = vld [vmem:[%s33] sm:$0xff]
    %v2198 = vld [vmem:[%s33 + $0x8] sm:$0xff]
    %v2199 = vld [vmem:[%s33 + $0x10] sm:$0xff]
    %v2200 = vld [vmem:[%s33 + $0x18] sm:$0xff]
    %v2201 = vpack.c.bf16 %v2196, %v2195
    %v2202 = vpack.c.bf16 %v2198, %v2197
    %v2203 = vpack.c.bf16 %v2200, %v2199
    %v2204 = vld [vmem:[%s35] sm:$0x1]
    %v2206 = vperm.slane %v2204, 0
    %v2209 = vsel %vm189, %v2201, 0
    %2211 = vmatpush.bf16.msra.mxu0 0
    %2212 = vmatpush.bf16.msra.mxu0 0
    %2213 = vmatpush.bf16.msra.mxu0 0
    %2214 = vmatpush.bf16.msra.mxu0 0
    %2215 = vmatpush.bf16.msra.mxu0 0
    %2216 = vmatpush.bf16.msra.mxu0 0
    %2217 = vmatpush.bf16.msra.mxu0 %v2203
    %2218 = vmatpush.bf16.msra.mxu0 %v2202
    %2219 = vmatmul.bf16.gmra.mxu0 %v2209
    %v2220 = vpop.f32.mrf.mxu0
    %v2221 = vadd.f32 %v2206, %v2220
    %v2222 = vpop.f32.mrf.mxu0
    %v2223 = vadd.f32 %v2206, %v2222
    %2224 = vdwg.mxu0
    %v2225 = vmul.f32 %v2221, 0.35355338
    %v2226 = vmul.f32 %v2223, 0.35355338
    %v2227 = vperm.slane %v169, 0
    %v2228 = vadd.f32 %v175, %v2227
    %2230 = vrot.lane.b32.xlu0 %v2221, 96
    %v2231 = vpop.permute.xlu0 %2230
    %2233 = vxpose.xlu0.b32.start [1/16] %v2231, 128
    %2234 = vxpose.xlu0.b32.cont [2/16] 0.0, 128
    %2235 = vxpose.xlu0.b32.cont [3/16] 0.0, 128
    %2236 = vxpose.xlu0.b32.cont [4/16] 0.0, 128
    %2237 = vxpose.xlu0.b32.cont [5/16] 0.0, 128
    %2238 = vxpose.xlu0.b32.cont [6/16] 0.0, 128
    %2239 = vxpose.xlu0.b32.cont [7/16] 0.0, 128
    %2240 = vxpose.xlu0.b32.cont [8/16] 0.0, 128
    %2241 = vxpose.xlu0.b32.cont [9/16] 0.0, 128
    %2242 = vxpose.xlu0.b32.cont [10/16] 0.0, 128
    %2243 = vxpose.xlu0.b32.cont [11/16] 0.0, 128
    %2244 = vxpose.xlu0.b32.cont [12/16] 0.0, 128
    %2245 = vxpose.xlu0.b32.cont [13/16] 0.0, 128
    %2246 = vxpose.xlu0.b32.cont [14/16] 0.0, 128
    %2247 = vxpose.xlu0.b32.cont [15/16] 0.0, 128
    %2248 = vxpose.xlu0.b32.end [16/16] 0.0, 128
    %v2249 = vpop.trf.xlu0
    %v2250 = vpop.trf.xlu0
    %v2251 = vpop.trf.xlu0
    %v2252 = vpop.trf.xlu0
    %v2253 = vpop.trf.xlu0
    %v2254 = vpop.trf.xlu0
    %v2255 = vpop.trf.xlu0
    %v2256 = vpop.trf.xlu0
    %v2257 = vpop.trf.xlu0
    %v2258 = vpop.trf.xlu0
    %v2259 = vpop.trf.xlu0
    %v2260 = vpop.trf.xlu0
    %v2261 = vpop.trf.xlu0
    %v2262 = vpop.trf.xlu0
    %v2263 = vpop.trf.xlu0
    %v2264 = vpop.trf.xlu0
    %v2265 = vpack.c.bf16 %v2225, %v2225
    %v2266 = vpack.c.bf16 %v2249, %v2249
    %v2268 = vsel %vm248, %v2265, 0
    %v2271 = vsel %vm252, %v2266, 0
    %2273 = vmatpush.bf16.msra.mxu0 0
    %2274 = vmatpush.bf16.msra.mxu0 0
    %2275 = vmatpush.bf16.msra.mxu0 0
    %2276 = vmatpush.bf16.msra.mxu0 0
    %2277 = vmatpush.bf16.msra.mxu0 0
    %2278 = vmatpush.bf16.msra.mxu0 0
    %2279 = vmatpush.bf16.msra.mxu0 0
    %2280 = vmatpush.bf16.msra.mxu0 %v2271
    %2281 = vmatmul.bf16.gmra.mxu0 %v2268
    %v2282 = vpop.f32.mrf.mxu0
    %v2283 = vadd.f32 %v2228, %v2282
    %v2284 = vpop.f32.mrf.mxu0
    %2285 = vdwg.mxu0
    %v2286 = vsel %vm248, %v2283, -inf
    %2287 = vmax.xlane.f32.xlu0 %v2286
    %v2288 = vpop.xlane.xlu0 %2287
    %v2289 = vsub.f32 %v2283, %v2288
    %v2290 = vmul.f32 %v2289, 1.442695
    %v2291 = vpow.pop %v2290
    %v2292 = vsel %vm248, %v2291, 0.0
    %2293 = vadd.xlane.f32.xlu0 %v2292
    %v2294 = vpop.xlane.xlu0 %2293
    %v2295 = vrcp.pop %v2294
    %v2296 = vmul.f32 %v2291, %v2295
    %v2297 = vpack.c.bf16 %v2296, %v2296
    %v2298 = vpack.c.bf16 %v2221, %v2221
    %2300 = vrot.lane.b32.xlu0 %v2298, 64
    %v2301 = vpop.permute.xlu0 %2300
    %v2303 = vsel %vm248, %v2297, 0
    %v2306 = vsel %vm252, %v2301, 0
    %2308 = vmatpush.bf16.msra.mxu0 0
    %2309 = vmatpush.bf16.msra.mxu0 0
    %2310 = vmatpush.bf16.msra.mxu0 0
    %2311 = vmatpush.bf16.msra.mxu0 0
    %2312 = vmatpush.bf16.msra.mxu0 0
    %2313 = vmatpush.bf16.msra.mxu0 0
    %2314 = vmatpush.bf16.msra.mxu0 0
    %2315 = vmatpush.bf16.msra.mxu0 %v2306
    %2316 = vmatmul.bf16.gmra.mxu0 %v2303
    %v2317 = vpop.f32.mrf.mxu0
    %v2318 = vadd.f32 0.0, %v2317
    %v2319 = vpop.f32.mrf.mxu0
    %2320 = vdwg.mxu0
    %2321 = vrot.lane.b32.xlu0 %v2221, 88
    %v2322 = vpop.permute.xlu0 %2321
    %2324 = vxpose.xlu0.b32.start [1/16] %v2322, 128
    %2325 = vxpose.xlu0.b32.cont [2/16] 0.0, 128
    %2326 = vxpose.xlu0.b32.cont [3/16] 0.0, 128
    %2327 = vxpose.xlu0.b32.cont [4/16] 0.0, 128
    %2328 = vxpose.xlu0.b32.cont [5/16] 0.0, 128
    %2329 = vxpose.xlu0.b32.cont [6/16] 0.0, 128
    %2330 = vxpose.xlu0.b32.cont [7/16] 0.0, 128
    %2331 = vxpose.xlu0.b32.cont [8/16] 0.0, 128
    %2332 = vxpose.xlu0.b32.cont [9/16] 0.0, 128
    %2333 = vxpose.xlu0.b32.cont [10/16] 0.0, 128
    %2334 = vxpose.xlu0.b32.cont [11/16] 0.0, 128
    %2335 = vxpose.xlu0.b32.cont [12/16] 0.0, 128
    %2336 = vxpose.xlu0.b32.cont [13/16] 0.0, 128
    %2337 = vxpose.xlu0.b32.cont [14/16] 0.0, 128
    %2338 = vxpose.xlu0.b32.cont [15/16] 0.0, 128
    %2339 = vxpose.xlu0.b32.end [16/16] 0.0, 128
    %v2340 = vpop.trf.xlu0
    %v2341 = vpop.trf.xlu0
    %v2342 = vpop.trf.xlu0
    %v2343 = vpop.trf.xlu0
    %v2344 = vpop.trf.xlu0
    %v2345 = vpop.trf.xlu0
    %v2346 = vpop.trf.xlu0
    %v2347 = vpop.trf.xlu0
    %v2348 = vpop.trf.xlu0
    %v2349 = vpop.trf.xlu0
    %v2350 = vpop.trf.xlu0
    %v2351 = vpop.trf.xlu0
    %v2352 = vpop.trf.xlu0
    %v2353 = vpop.trf.xlu0
    %v2354 = vpop.trf.xlu0
    %v2355 = vpop.trf.xlu0
    %v2356 = vpack.c.bf16 %v2340, %v2340
    %2358 = vrot.lane.b32.xlu0 %v2265, 120
    %v2359 = vpop.permute.xlu0 %2358
    %v2361 = vsel %vm248, %v2359, 0
    %v2364 = vsel %vm252, %v2356, 0
    %2366 = vmatpush.bf16.msra.mxu0 0
    %2367 = vmatpush.bf16.msra.mxu0 0
    %2368 = vmatpush.bf16.msra.mxu0 0
    %2369 = vmatpush.bf16.msra.mxu0 0
    %2370 = vmatpush.bf16.msra.mxu0 0
    %2371 = vmatpush.bf16.msra.mxu0 0
    %2372 = vmatpush.bf16.msra.mxu0 0
    %2373 = vmatpush.bf16.msra.mxu0 %v2364
    %2374 = vmatmul.bf16.gmra.mxu0 %v2361
    %v2375 = vpop.f32.mrf.mxu0
    %v2376 = vadd.f32 %v2228, %v2375
    %v2377 = vpop.f32.mrf.mxu0
    %2378 = vdwg.mxu0
    %v2379 = vsel %vm248, %v2376, -inf
    %2380 = vmax.xlane.f32.xlu0 %v2379
    %v2381 = vpop.xlane.xlu0 %2380
    %v2382 = vsub.f32 %v2376, %v2381
    %v2383 = vmul.f32 %v2382, 1.442695
    %v2384 = vpow.pop %v2383
    %v2385 = vsel %vm248, %v2384, 0.0
    %2386 = vadd.xlane.f32.xlu0 %v2385
    %v2387 = vpop.xlane.xlu0 %2386
    %v2388 = vrcp.pop %v2387
    %v2389 = vmul.f32 %v2384, %v2388
    %v2390 = vpack.c.bf16 %v2389, %v2389
    %2391 = vrot.lane.b32.xlu0 %v2298, 56
    %v2392 = vpop.permute.xlu0 %2391
    %v2394 = vsel %vm248, %v2390, 0
    %v2397 = vsel %vm252, %v2392, 0
    %2399 = vmatpush.bf16.msra.mxu0 0
    %2400 = vmatpush.bf16.msra.mxu0 0
    %2401 = vmatpush.bf16.msra.mxu0 0
    %2402 = vmatpush.bf16.msra.mxu0 0
    %2403 = vmatpush.bf16.msra.mxu0 0
    %2404 = vmatpush.bf16.msra.mxu0 0
    %2405 = vmatpush.bf16.msra.mxu0 0
    %2406 = vmatpush.bf16.msra.mxu0 %v2397
    %2407 = vmatmul.bf16.gmra.mxu0 %v2394
    %v2408 = vpop.f32.mrf.mxu0
    %v2409 = vadd.f32 0.0, %v2408
    %v2410 = vpop.f32.mrf.mxu0
    %2411 = vdwg.mxu0
    %2412 = vrot.lane.b32.xlu0 %v2221, 80
    %v2413 = vpop.permute.xlu0 %2412
    %2415 = vxpose.xlu0.b32.start [1/16] %v2413, 128
    %2416 = vxpose.xlu0.b32.cont [2/16] 0.0, 128
    %2417 = vxpose.xlu0.b32.cont [3/16] 0.0, 128
    %2418 = vxpose.xlu0.b32.cont [4/16] 0.0, 128
    %2419 = vxpose.xlu0.b32.cont [5/16] 0.0, 128
    %2420 = vxpose.xlu0.b32.cont [6/16] 0.0, 128
    %2421 = vxpose.xlu0.b32.cont [7/16] 0.0, 128
    %2422 = vxpose.xlu0.b32.cont [8/16] 0.0, 128
    %2423 = vxpose.xlu0.b32.cont [9/16] 0.0, 128
    %2424 = vxpose.xlu0.b32.cont [10/16] 0.0, 128
    %2425 = vxpose.xlu0.b32.cont [11/16] 0.0, 128
    %2426 = vxpose.xlu0.b32.cont [12/16] 0.0, 128
    %2427 = vxpose.xlu0.b32.cont [13/16] 0.0, 128
    %2428 = vxpose.xlu0.b32.cont [14/16] 0.0, 128
    %2429 = vxpose.xlu0.b32.cont [15/16] 0.0, 128
    %2430 = vxpose.xlu0.b32.end [16/16] 0.0, 128
    %v2431 = vpop.trf.xlu0
    %v2432 = vpop.trf.xlu0
    %v2433 = vpop.trf.xlu0
    %v2434 = vpop.trf.xlu0
    %v2435 = vpop.trf.xlu0
    %v2436 = vpop.trf.xlu0
    %v2437 = vpop.trf.xlu0
    %v2438 = vpop.trf.xlu0
    %v2439 = vpop.trf.xlu0
    %v2440 = vpop.trf.xlu0
    %v2441 = vpop.trf.xlu0
    %v2442 = vpop.trf.xlu0
    %v2443 = vpop.trf.xlu0
    %v2444 = vpop.trf.xlu0
    %v2445 = vpop.trf.xlu0
    %v2446 = vpop.trf.xlu0
    %v2447 = vpack.c.bf16 %v2431, %v2431
    %2448 = vrot.lane.b32.xlu0 %v2265, 112
    %v2449 = vpop.permute.xlu0 %2448
    %v2451 = vsel %vm248, %v2449, 0
    %v2454 = vsel %vm252, %v2447, 0
    %2456 = vmatpush.bf16.msra.mxu0 0
    %2457 = vmatpush.bf16.msra.mxu0 0
    %2458 = vmatpush.bf16.msra.mxu0 0
    %2459 = vmatpush.bf16.msra.mxu0 0
    %2460 = vmatpush.bf16.msra.mxu0 0
    %2461 = vmatpush.bf16.msra.mxu0 0
    %2462 = vmatpush.bf16.msra.mxu0 0
    %2463 = vmatpush.bf16.msra.mxu0 %v2454
    %2464 = vmatmul.bf16.gmra.mxu0 %v2451
    %v2465 = vpop.f32.mrf.mxu0
    %v2466 = vadd.f32 %v2228, %v2465
    %v2467 = vpop.f32.mrf.mxu0
    %2468 = vdwg.mxu0
    %v2469 = vsel %vm248, %v2466, -inf
    %2470 = vmax.xlane.f32.xlu0 %v2469
    %v2471 = vpop.xlane.xlu0 %2470
    %v2472 = vsub.f32 %v2466, %v2471
    %v2473 = vmul.f32 %v2472, 1.442695
    %v2474 = vpow.pop %v2473
    %v2475 = vsel %vm248, %v2474, 0.0
    %2476 = vadd.xlane.f32.xlu0 %v2475
    %v2477 = vpop.xlane.xlu0 %2476
    %v2478 = vrcp.pop %v2477
    %v2479 = vmul.f32 %v2474, %v2478
    %v2480 = vpack.c.bf16 %v2479, %v2479
    %2481 = vrot.lane.b32.xlu0 %v2298, 48
    %v2482 = vpop.permute.xlu0 %2481
    %v2484 = vsel %vm248, %v2480, 0
    %v2487 = vsel %vm252, %v2482, 0
    %2489 = vmatpush.bf16.msra.mxu0 0
    %2490 = vmatpush.bf16.msra.mxu0 0
    %2491 = vmatpush.bf16.msra.mxu0 0
    %2492 = vmatpush.bf16.msra.mxu0 0
    %2493 = vmatpush.bf16.msra.mxu0 0
    %2494 = vmatpush.bf16.msra.mxu0 0
    %2495 = vmatpush.bf16.msra.mxu0 0
    %2496 = vmatpush.bf16.msra.mxu0 %v2487
    %2497 = vmatmul.bf16.gmra.mxu0 %v2484
    %v2498 = vpop.f32.mrf.mxu0
    %v2499 = vadd.f32 0.0, %v2498
    %v2500 = vpop.f32.mrf.mxu0
    %2501 = vdwg.mxu0
    %2502 = vrot.lane.b32.xlu0 %v2221, 72
    %v2503 = vpop.permute.xlu0 %2502
    %2505 = vxpose.xlu0.b32.start [1/16] %v2503, 128
    %2506 = vxpose.xlu0.b32.cont [2/16] 0.0, 128
    %2507 = vxpose.xlu0.b32.cont [3/16] 0.0, 128
    %2508 = vxpose.xlu0.b32.cont [4/16] 0.0, 128
    %2509 = vxpose.xlu0.b32.cont [5/16] 0.0, 128
    %2510 = vxpose.xlu0.b32.cont [6/16] 0.0, 128
    %2511 = vxpose.xlu0.b32.cont [7/16] 0.0, 128
    %2512 = vxpose.xlu0.b32.cont [8/16] 0.0, 128
    %2513 = vxpose.xlu0.b32.cont [9/16] 0.0, 128
    %2514 = vxpose.xlu0.b32.cont [10/16] 0.0, 128
    %2515 = vxpose.xlu0.b32.cont [11/16] 0.0, 128
    %2516 = vxpose.xlu0.b32.cont [12/16] 0.0, 128
    %2517 = vxpose.xlu0.b32.cont [13/16] 0.0, 128
    %2518 = vxpose.xlu0.b32.cont [14/16] 0.0, 128
    %2519 = vxpose.xlu0.b32.cont [15/16] 0.0, 128
    %2520 = vxpose.xlu0.b32.end [16/16] 0.0, 128
    %v2521 = vpop.trf.xlu0
    %v2522 = vpop.trf.xlu0
    %v2523 = vpop.trf.xlu0
    %v2524 = vpop.trf.xlu0
    %v2525 = vpop.trf.xlu0
    %v2526 = vpop.trf.xlu0
    %v2527 = vpop.trf.xlu0
    %v2528 = vpop.trf.xlu0
    %v2529 = vpop.trf.xlu0
    %v2530 = vpop.trf.xlu0
    %v2531 = vpop.trf.xlu0
    %v2532 = vpop.trf.xlu0
    %v2533 = vpop.trf.xlu0
    %v2534 = vpop.trf.xlu0
    %v2535 = vpop.trf.xlu0
    %v2536 = vpop.trf.xlu0
    %v2537 = vpack.c.bf16 %v2521, %v2521
    %2538 = vrot.lane.b32.xlu0 %v2265, 104
    %v2539 = vpop.permute.xlu0 %2538
    %v2541 = vsel %vm248, %v2539, 0
    %v2544 = vsel %vm252, %v2537, 0
    %2546 = vmatpush.bf16.msra.mxu0 0
    %2547 = vmatpush.bf16.msra.mxu0 0
    %2548 = vmatpush.bf16.msra.mxu0 0
    %2549 = vmatpush.bf16.msra.mxu0 0
    %2550 = vmatpush.bf16.msra.mxu0 0
    %2551 = vmatpush.bf16.msra.mxu0 0
    %2552 = vmatpush.bf16.msra.mxu0 0
    %2553 = vmatpush.bf16.msra.mxu0 %v2544
    %2554 = vmatmul.bf16.gmra.mxu0 %v2541
    %v2555 = vpop.f32.mrf.mxu0
    %v2556 = vadd.f32 %v2228, %v2555
    %v2557 = vpop.f32.mrf.mxu0
    %2558 = vdwg.mxu0
    %v2559 = vsel %vm248, %v2556, -inf
    %2560 = vmax.xlane.f32.xlu0 %v2559
    %v2561 = vpop.xlane.xlu0 %2560
    %v2562 = vsub.f32 %v2556, %v2561
    %v2563 = vmul.f32 %v2562, 1.442695
    %v2564 = vpow.pop %v2563
    %v2565 = vsel %vm248, %v2564, 0.0
    %2566 = vadd.xlane.f32.xlu0 %v2565
    %v2567 = vpop.xlane.xlu0 %2566
    %v2568 = vrcp.pop %v2567
    %v2569 = vmul.f32 %v2564, %v2568
    %v2570 = vpack.c.bf16 %v2569, %v2569
    %2571 = vrot.lane.b32.xlu0 %v2298, 40
    %v2572 = vpop.permute.xlu0 %2571
    %v2574 = vsel %vm248, %v2570, 0
    %v2577 = vsel %vm252, %v2572, 0
    %2579 = vmatpush.bf16.msra.mxu0 0
    %2580 = vmatpush.bf16.msra.mxu0 0
    %2581 = vmatpush.bf16.msra.mxu0 0
    %2582 = vmatpush.bf16.msra.mxu0 0
    %2583 = vmatpush.bf16.msra.mxu0 0
    %2584 = vmatpush.bf16.msra.mxu0 0
    %2585 = vmatpush.bf16.msra.mxu0 0
    %2586 = vmatpush.bf16.msra.mxu0 %v2577
    %2587 = vmatmul.bf16.gmra.mxu0 %v2574
    %v2588 = vpop.f32.mrf.mxu0
    %v2589 = vadd.f32 0.0, %v2588
    %v2590 = vpop.f32.mrf.mxu0
    %2591 = vdwg.mxu0
    %2593 = vrot.lane.b32.xlu0 %v2409, 8
    %v2594 = vpop.permute.xlu0 %2593
    %2597 = vrot.lane.b32.xlu0 %v2499, 16
    %v2598 = vpop.permute.xlu0 %2597
    %2601 = vrot.lane.b32.xlu0 %v2589, 24
    %v2602 = vpop.permute.xlu0 %2601
    %v2604 = vsel %vm248, %v2318, %v2594
    %v2605 = vsel %vm588, %v2604, %v2598
    %v2606 = vsel %vm590, %v2605, %v2602
    %2608 = vrot.lane.b32.xlu0 %v2389, 8
    %v2609 = vpop.permute.xlu0 %2608
    %2612 = vrot.lane.b32.xlu0 %v2479, 16
    %v2613 = vpop.permute.xlu0 %2612
    %2616 = vrot.lane.b32.xlu0 %v2569, 24
    %v2617 = vpop.permute.xlu0 %2616
    %v2619 = vsel %vm248, %v2296, %v2609
    %v2620 = vsel %vm588, %v2619, %v2613
    %v2621 = vsel %vm590, %v2620, %v2617
    %2622 = vst.msk [vmem:[%s81] sm:$0xff] %vm189, %v2621
    %v2623 = vperm.slane %v169, 1
    %v2624 = vadd.f32 %v175, %v2623
    %2626 = vrot.lane.b32.xlu0 %v2223, 96
    %v2627 = vpop.permute.xlu0 %2626
    %2629 = vxpose.xlu0.b32.start [1/16] %v2627, 128
    %2630 = vxpose.xlu0.b32.cont [2/16] 0.0, 128
    %2631 = vxpose.xlu0.b32.cont [3/16] 0.0, 128
    %2632 = vxpose.xlu0.b32.cont [4/16] 0.0, 128
    %2633 = vxpose.xlu0.b32.cont [5/16] 0.0, 128
    %2634 = vxpose.xlu0.b32.cont [6/16] 0.0, 128
    %2635 = vxpose.xlu0.b32.cont [7/16] 0.0, 128
    %2636 = vxpose.xlu0.b32.cont [8/16] 0.0, 128
    %2637 = vxpose.xlu0.b32.cont [9/16] 0.0, 128
    %2638 = vxpose.xlu0.b32.cont [10/16] 0.0, 128
    %2639 = vxpose.xlu0.b32.cont [11/16] 0.0, 128
    %2640 = vxpose.xlu0.b32.cont [12/16] 0.0, 128
    %2641 = vxpose.xlu0.b32.cont [13/16] 0.0, 128
    %2642 = vxpose.xlu0.b32.cont [14/16] 0.0, 128
    %2643 = vxpose.xlu0.b32.cont [15/16] 0.0, 128
    %2644 = vxpose.xlu0.b32.end [16/16] 0.0, 128
    %v2645 = vpop.trf.xlu0
    %v2646 = vpop.trf.xlu0
    %v2647 = vpop.trf.xlu0
    %v2648 = vpop.trf.xlu0
    %v2649 = vpop.trf.xlu0
    %v2650 = vpop.trf.xlu0
    %v2651 = vpop.trf.xlu0
    %v2652 = vpop.trf.xlu0
    %v2653 = vpop.trf.xlu0
    %v2654 = vpop.trf.xlu0
    %v2655 = vpop.trf.xlu0
    %v2656 = vpop.trf.xlu0
    %v2657 = vpop.trf.xlu0
    %v2658 = vpop.trf.xlu0
    %v2659 = vpop.trf.xlu0
    %v2660 = vpop.trf.xlu0
    %v2661 = vpack.c.bf16 %v2226, %v2226
    %v2662 = vpack.c.bf16 %v2645, %v2645
    %v2664 = vsel %vm248, %v2661, 0
    %v2667 = vsel %vm252, %v2662, 0
    %2669 = vmatpush.bf16.msra.mxu0 0
    %2670 = vmatpush.bf16.msra.mxu0 0
    %2671 = vmatpush.bf16.msra.mxu0 0
    %2672 = vmatpush.bf16.msra.mxu0 0
    %2673 = vmatpush.bf16.msra.mxu0 0
    %2674 = vmatpush.bf16.msra.mxu0 0
    %2675 = vmatpush.bf16.msra.mxu0 0
    %2676 = vmatpush.bf16.msra.mxu0 %v2667
    %2677 = vmatmul.bf16.gmra.mxu0 %v2664
    %v2678 = vpop.f32.mrf.mxu0
    %v2679 = vadd.f32 %v2624, %v2678
    %v2680 = vpop.f32.mrf.mxu0
    %2681 = vdwg.mxu0
    %v2682 = vsel %vm248, %v2679, -inf
    %2683 = vmax.xlane.f32.xlu0 %v2682
    %v2684 = vpop.xlane.xlu0 %2683
    %v2685 = vsub.f32 %v2679, %v2684
    %v2686 = vmul.f32 %v2685, 1.442695
    %v2687 = vpow.pop %v2686
    %v2688 = vsel %vm248, %v2687, 0.0
    %2689 = vadd.xlane.f32.xlu0 %v2688
    %v2690 = vpop.xlane.xlu0 %2689
    %v2691 = vrcp.pop %v2690
    %v2692 = vmul.f32 %v2687, %v2691
    %v2693 = vpack.c.bf16 %v2692, %v2692
    %v2694 = vpack.c.bf16 %v2223, %v2223
    %2696 = vrot.lane.b32.xlu0 %v2694, 64
    %v2697 = vpop.permute.xlu0 %2696
    %v2699 = vsel %vm248, %v2693, 0
    %v2702 = vsel %vm252, %v2697, 0
    %2704 = vmatpush.bf16.msra.mxu0 0
    %2705 = vmatpush.bf16.msra.mxu0 0
    %2706 = vmatpush.bf16.msra.mxu0 0
    %2707 = vmatpush.bf16.msra.mxu0 0
    %2708 = vmatpush.bf16.msra.mxu0 0
    %2709 = vmatpush.bf16.msra.mxu0 0
    %2710 = vmatpush.bf16.msra.mxu0 0
    %2711 = vmatpush.bf16.msra.mxu0 %v2702
    %2712 = vmatmul.bf16.gmra.mxu0 %v2699
    %v2713 = vpop.f32.mrf.mxu0
    %v2714 = vadd.f32 0.0, %v2713
    %v2715 = vpop.f32.mrf.mxu0
    %2716 = vdwg.mxu0
    %2717 = vrot.lane.b32.xlu0 %v2223, 88
    %v2718 = vpop.permute.xlu0 %2717
    %2720 = vxpose.xlu0.b32.start [1/16] %v2718, 128
    %2721 = vxpose.xlu0.b32.cont [2/16] 0.0, 128
    %2722 = vxpose.xlu0.b32.cont [3/16] 0.0, 128
    %2723 = vxpose.xlu0.b32.cont [4/16] 0.0, 128
    %2724 = vxpose.xlu0.b32.cont [5/16] 0.0, 128
    %2725 = vxpose.xlu0.b32.cont [6/16] 0.0, 128
    %2726 = vxpose.xlu0.b32.cont [7/16] 0.0, 128
    %2727 = vxpose.xlu0.b32.cont [8/16] 0.0, 128
    %2728 = vxpose.xlu0.b32.cont [9/16] 0.0, 128
    %2729 = vxpose.xlu0.b32.cont [10/16] 0.0, 128
    %2730 = vxpose.xlu0.b32.cont [11/16] 0.0, 128
    %2731 = vxpose.xlu0.b32.cont [12/16] 0.0, 128
    %2732 = vxpose.xlu0.b32.cont [13/16] 0.0, 128
    %2733 = vxpose.xlu0.b32.cont [14/16] 0.0, 128
    %2734 = vxpose.xlu0.b32.cont [15/16] 0.0, 128
    %2735 = vxpose.xlu0.b32.end [16/16] 0.0, 128
    %v2736 = vpop.trf.xlu0
    %v2737 = vpop.trf.xlu0
    %v2738 = vpop.trf.xlu0
    %v2739 = vpop.trf.xlu0
    %v2740 = vpop.trf.xlu0
    %v2741 = vpop.trf.xlu0
    %v2742 = vpop.trf.xlu0
    %v2743 = vpop.trf.xlu0
    %v2744 = vpop.trf.xlu0
    %v2745 = vpop.trf.xlu0
    %v2746 = vpop.trf.xlu0
    %v2747 = vpop.trf.xlu0
    %v2748 = vpop.trf.xlu0
    %v2749 = vpop.trf.xlu0
    %v2750 = vpop.trf.xlu0
    %v2751 = vpop.trf.xlu0
    %v2752 = vpack.c.bf16 %v2736, %v2736
    %2754 = vrot.lane.b32.xlu0 %v2661, 120
    %v2755 = vpop.permute.xlu0 %2754
    %v2757 = vsel %vm248, %v2755, 0
    %v2760 = vsel %vm252, %v2752, 0
    %2762 = vmatpush.bf16.msra.mxu0 0
    %2763 = vmatpush.bf16.msra.mxu0 0
    %2764 = vmatpush.bf16.msra.mxu0 0
    %2765 = vmatpush.bf16.msra.mxu0 0
    %2766 = vmatpush.bf16.msra.mxu0 0
    %2767 = vmatpush.bf16.msra.mxu0 0
    %2768 = vmatpush.bf16.msra.mxu0 0
    %2769 = vmatpush.bf16.msra.mxu0 %v2760
    %2770 = vmatmul.bf16.gmra.mxu0 %v2757
    %v2771 = vpop.f32.mrf.mxu0
    %v2772 = vadd.f32 %v2624, %v2771
    %v2773 = vpop.f32.mrf.mxu0
    %2774 = vdwg.mxu0
    %v2775 = vsel %vm248, %v2772, -inf
    %2776 = vmax.xlane.f32.xlu0 %v2775
    %v2777 = vpop.xlane.xlu0 %2776
    %v2778 = vsub.f32 %v2772, %v2777
    %v2779 = vmul.f32 %v2778, 1.442695
    %v2780 = vpow.pop %v2779
    %v2781 = vsel %vm248, %v2780, 0.0
    %2782 = vadd.xlane.f32.xlu0 %v2781
    %v2783 = vpop.xlane.xlu0 %2782
    %v2784 = vrcp.pop %v2783
    %v2785 = vmul.f32 %v2780, %v2784
    %v2786 = vpack.c.bf16 %v2785, %v2785
    %2787 = vrot.lane.b32.xlu0 %v2694, 56
    %v2788 = vpop.permute.xlu0 %2787
    %v2790 = vsel %vm248, %v2786, 0
    %v2793 = vsel %vm252, %v2788, 0
    %2795 = vmatpush.bf16.msra.mxu0 0
    %2796 = vmatpush.bf16.msra.mxu0 0
    %2797 = vmatpush.bf16.msra.mxu0 0
    %2798 = vmatpush.bf16.msra.mxu0 0
    %2799 = vmatpush.bf16.msra.mxu0 0
    %2800 = vmatpush.bf16.msra.mxu0 0
    %2801 = vmatpush.bf16.msra.mxu0 0
    %2802 = vmatpush.bf16.msra.mxu0 %v2793
    %2803 = vmatmul.bf16.gmra.mxu0 %v2790
    %v2804 = vpop.f32.mrf.mxu0
    %v2805 = vadd.f32 0.0, %v2804
    %v2806 = vpop.f32.mrf.mxu0
    %2807 = vdwg.mxu0
    %2808 = vrot.lane.b32.xlu0 %v2223, 80
    %v2809 = vpop.permute.xlu0 %2808
    %2811 = vxpose.xlu0.b32.start [1/16] %v2809, 128
    %2812 = vxpose.xlu0.b32.cont [2/16] 0.0, 128
    %2813 = vxpose.xlu0.b32.cont [3/16] 0.0, 128
    %2814 = vxpose.xlu0.b32.cont [4/16] 0.0, 128
    %2815 = vxpose.xlu0.b32.cont [5/16] 0.0, 128
    %2816 = vxpose.xlu0.b32.cont [6/16] 0.0, 128
    %2817 = vxpose.xlu0.b32.cont [7/16] 0.0, 128
    %2818 = vxpose.xlu0.b32.cont [8/16] 0.0, 128
    %2819 = vxpose.xlu0.b32.cont [9/16] 0.0, 128
    %2820 = vxpose.xlu0.b32.cont [10/16] 0.0, 128
    %2821 = vxpose.xlu0.b32.cont [11/16] 0.0, 128
    %2822 = vxpose.xlu0.b32.cont [12/16] 0.0, 128
    %2823 = vxpose.xlu0.b32.cont [13/16] 0.0, 128
    %2824 = vxpose.xlu0.b32.cont [14/16] 0.0, 128
    %2825 = vxpose.xlu0.b32.cont [15/16] 0.0, 128
    %2826 = vxpose.xlu0.b32.end [16/16] 0.0, 128
    %v2827 = vpop.trf.xlu0
    %v2828 = vpop.trf.xlu0
    %v2829 = vpop.trf.xlu0
    %v2830 = vpop.trf.xlu0
    %v2831 = vpop.trf.xlu0
    %v2832 = vpop.trf.xlu0
    %v2833 = vpop.trf.xlu0
    %v2834 = vpop.trf.xlu0
    %v2835 = vpop.trf.xlu0
    %v2836 = vpop.trf.xlu0
    %v2837 = vpop.trf.xlu0
    %v2838 = vpop.trf.xlu0
    %v2839 = vpop.trf.xlu0
    %v2840 = vpop.trf.xlu0
    %v2841 = vpop.trf.xlu0
    %v2842 = vpop.trf.xlu0
    %v2843 = vpack.c.bf16 %v2827, %v2827
    %2844 = vrot.lane.b32.xlu0 %v2661, 112
    %v2845 = vpop.permute.xlu0 %2844
    %v2847 = vsel %vm248, %v2845, 0
    %v2850 = vsel %vm252, %v2843, 0
    %2852 = vmatpush.bf16.msra.mxu0 0
    %2853 = vmatpush.bf16.msra.mxu0 0
    %2854 = vmatpush.bf16.msra.mxu0 0
    %2855 = vmatpush.bf16.msra.mxu0 0
    %2856 = vmatpush.bf16.msra.mxu0 0
    %2857 = vmatpush.bf16.msra.mxu0 0
    %2858 = vmatpush.bf16.msra.mxu0 0
    %2859 = vmatpush.bf16.msra.mxu0 %v2850
    %2860 = vmatmul.bf16.gmra.mxu0 %v2847
    %v2861 = vpop.f32.mrf.mxu0
    %v2862 = vadd.f32 %v2624, %v2861
    %v2863 = vpop.f32.mrf.mxu0
    %2864 = vdwg.mxu0
    %v2865 = vsel %vm248, %v2862, -inf
    %2866 = vmax.xlane.f32.xlu0 %v2865
    %v2867 = vpop.xlane.xlu0 %2866
    %v2868 = vsub.f32 %v2862, %v2867
    %v2869 = vmul.f32 %v2868, 1.442695
    %v2870 = vpow.pop %v2869
    %v2871 = vsel %vm248, %v2870, 0.0
    %2872 = vadd.xlane.f32.xlu0 %v2871
    %v2873 = vpop.xlane.xlu0 %2872
    %v2874 = vrcp.pop %v2873
    %v2875 = vmul.f32 %v2870, %v2874
    %v2876 = vpack.c.bf16 %v2875, %v2875
    %2877 = vrot.lane.b32.xlu0 %v2694, 48
    %v2878 = vpop.permute.xlu0 %2877
    %v2880 = vsel %vm248, %v2876, 0
    %v2883 = vsel %vm252, %v2878, 0
    %2885 = vmatpush.bf16.msra.mxu0 0
    %2886 = vmatpush.bf16.msra.mxu0 0
    %2887 = vmatpush.bf16.msra.mxu0 0
    %2888 = vmatpush.bf16.msra.mxu0 0
    %2889 = vmatpush.bf16.msra.mxu0 0
    %2890 = vmatpush.bf16.msra.mxu0 0
    %2891 = vmatpush.bf16.msra.mxu0 0
    %2892 = vmatpush.bf16.msra.mxu0 %v2883
    %2893 = vmatmul.bf16.gmra.mxu0 %v2880
    %v2894 = vpop.f32.mrf.mxu0
    %v2895 = vadd.f32 0.0, %v2894
    %v2896 = vpop.f32.mrf.mxu0
    %2897 = vdwg.mxu0
    %2898 = vrot.lane.b32.xlu0 %v2223, 72
    %v2899 = vpop.permute.xlu0 %2898
    %2901 = vxpose.xlu0.b32.start [1/16] %v2899, 128
    %2902 = vxpose.xlu0.b32.cont [2/16] 0.0, 128
    %2903 = vxpose.xlu0.b32.cont [3/16] 0.0, 128
    %2904 = vxpose.xlu0.b32.cont [4/16] 0.0, 128
    %2905 = vxpose.xlu0.b32.cont [5/16] 0.0, 128
    %2906 = vxpose.xlu0.b32.cont [6/16] 0.0, 128
    %2907 = vxpose.xlu0.b32.cont [7/16] 0.0, 128
    %2908 = vxpose.xlu0.b32.cont [8/16] 0.0, 128
    %2909 = vxpose.xlu0.b32.cont [9/16] 0.0, 128
    %2910 = vxpose.xlu0.b32.cont [10/16] 0.0, 128
    %2911 = vxpose.xlu0.b32.cont [11/16] 0.0, 128
    %2912 = vxpose.xlu0.b32.cont [12/16] 0.0, 128
    %2913 = vxpose.xlu0.b32.cont [13/16] 0.0, 128
    %2914 = vxpose.xlu0.b32.cont [14/16] 0.0, 128
    %2915 = vxpose.xlu0.b32.cont [15/16] 0.0, 128
    %2916 = vxpose.xlu0.b32.end [16/16] 0.0, 128
    %v2917 = vpop.trf.xlu0
    %v2918 = vpop.trf.xlu0
    %v2919 = vpop.trf.xlu0
    %v2920 = vpop.trf.xlu0
    %v2921 = vpop.trf.xlu0
    %v2922 = vpop.trf.xlu0
    %v2923 = vpop.trf.xlu0
    %v2924 = vpop.trf.xlu0
    %v2925 = vpop.trf.xlu0
    %v2926 = vpop.trf.xlu0
    %v2927 = vpop.trf.xlu0
    %v2928 = vpop.trf.xlu0
    %v2929 = vpop.trf.xlu0
    %v2930 = vpop.trf.xlu0
    %v2931 = vpop.trf.xlu0
    %v2932 = vpop.trf.xlu0
    %v2933 = vpack.c.bf16 %v2917, %v2917
    %2934 = vrot.lane.b32.xlu0 %v2661, 104
    %v2935 = vpop.permute.xlu0 %2934
    %v2937 = vsel %vm248, %v2935, 0
    %v2940 = vsel %vm252, %v2933, 0
    %2942 = vmatpush.bf16.msra.mxu0 0
    %2943 = vmatpush.bf16.msra.mxu0 0
    %2944 = vmatpush.bf16.msra.mxu0 0
    %2945 = vmatpush.bf16.msra.mxu0 0
    %2946 = vmatpush.bf16.msra.mxu0 0
    %2947 = vmatpush.bf16.msra.mxu0 0
    %2948 = vmatpush.bf16.msra.mxu0 0
    %2949 = vmatpush.bf16.msra.mxu0 %v2940
    %2950 = vmatmul.bf16.gmra.mxu0 %v2937
    %v2951 = vpop.f32.mrf.mxu0
    %v2952 = vadd.f32 %v2624, %v2951
    %v2953 = vpop.f32.mrf.mxu0
    %2954 = vdwg.mxu0
    %v2955 = vsel %vm248, %v2952, -inf
    %2956 = vmax.xlane.f32.xlu0 %v2955
    %v2957 = vpop.xlane.xlu0 %2956
    %v2958 = vsub.f32 %v2952, %v2957
    %v2959 = vmul.f32 %v2958, 1.442695
    %v2960 = vpow.pop %v2959
    %v2961 = vsel %vm248, %v2960, 0.0
    %2962 = vadd.xlane.f32.xlu0 %v2961
    %v2963 = vpop.xlane.xlu0 %2962
    %v2964 = vrcp.pop %v2963
    %v2965 = vmul.f32 %v2960, %v2964
    %v2966 = vpack.c.bf16 %v2965, %v2965
    %2967 = vrot.lane.b32.xlu0 %v2694, 40
    %v2968 = vpop.permute.xlu0 %2967
    %v2970 = vsel %vm248, %v2966, 0
    %v2973 = vsel %vm252, %v2968, 0
    %2975 = vmatpush.bf16.msra.mxu0 0
    %2976 = vmatpush.bf16.msra.mxu0 0
    %2977 = vmatpush.bf16.msra.mxu0 0
    %2978 = vmatpush.bf16.msra.mxu0 0
    %2979 = vmatpush.bf16.msra.mxu0 0
    %2980 = vmatpush.bf16.msra.mxu0 0
    %2981 = vmatpush.bf16.msra.mxu0 0
    %2982 = vmatpush.bf16.msra.mxu0 %v2973
    %2983 = vmatmul.bf16.gmra.mxu0 %v2970
    %v2984 = vpop.f32.mrf.mxu0
    %v2985 = vadd.f32 0.0, %v2984
    %v2986 = vpop.f32.mrf.mxu0
    %2987 = vdwg.mxu0
    %2989 = vrot.lane.b32.xlu0 %v2805, 8
    %v2990 = vpop.permute.xlu0 %2989
    %2993 = vrot.lane.b32.xlu0 %v2895, 16
    %v2994 = vpop.permute.xlu0 %2993
    %2997 = vrot.lane.b32.xlu0 %v2985, 24
    %v2998 = vpop.permute.xlu0 %2997
    %v3000 = vsel %vm248, %v2714, %v2990
    %v3001 = vsel %vm588, %v3000, %v2994
    %v3002 = vsel %vm590, %v3001, %v2998
    %3004 = vrot.lane.b32.xlu0 %v2785, 8
    %v3005 = vpop.permute.xlu0 %3004
    %3008 = vrot.lane.b32.xlu0 %v2875, 16
    %v3009 = vpop.permute.xlu0 %3008
    %3012 = vrot.lane.b32.xlu0 %v2965, 24
    %v3013 = vpop.permute.xlu0 %3012
    %v3015 = vsel %vm248, %v2692, %v3005
    %v3016 = vsel %vm588, %v3015, %v3009
    %v3017 = vsel %vm590, %v3016, %v3013
    %s3018 = scalar_lea.vmem %s81, 8
    %3019 = vst.msk [vmem:[%s3018] sm:$0xff] %vm189, %v3017
    %v3020 = vld [vmem:[%s37] sm:$0xff]
    %v3021 = vld [vmem:[%s37 + $0x8] sm:$0xff]
    %v3022 = vld [vmem:[%s37 + $0x10] sm:$0xff]
    %v3023 = vld [vmem:[%s37 + $0x18] sm:$0xff]
    %v3024 = vpack.c.bf16 %v3002, %v2606
    %v3025 = vpack.c.bf16 %v3021, %v3020
    %v3026 = vpack.c.bf16 %v3023, %v3022
    %v3027 = vld [vmem:[%s39] sm:$0x1]
    %v3029 = vperm.slane %v3027, 0
    %v3032 = vsel %vm189, %v3024, 0
    %3034 = vmatpush.bf16.msra.mxu0 0
    %3035 = vmatpush.bf16.msra.mxu0 0
    %3036 = vmatpush.bf16.msra.mxu0 0
    %3037 = vmatpush.bf16.msra.mxu0 0
    %3038 = vmatpush.bf16.msra.mxu0 0
    %3039 = vmatpush.bf16.msra.mxu0 0
    %3040 = vmatpush.bf16.msra.mxu0 %v3026
    %3041 = vmatpush.bf16.msra.mxu0 %v3025
    %3042 = vmatmul.bf16.gmra.mxu0 %v3032
    %v3043 = vpop.f32.mrf.mxu0
    %v3044 = vadd.f32 %v3029, %v3043
    %v3045 = vpop.f32.mrf.mxu0
    %v3046 = vadd.f32 %v3029, %v3045
    %3047 = vdwg.mxu0
    %v3048 = vadd.f32 %v2195, %v3044
    %v3049 = vadd.f32 %v2196, %v3046
    %v3050 = vld [vmem:[%s61] sm:$0x1]
    %v3051 = vld [vmem:[%s63] sm:$0x1]
    %v3052 = vsel %vm189, %v3048, 0.0
    %3053 = vadd.xlane.f32.xlu0 %v3052
    %v3054 = vpop.xlane.xlu0 %3053
    %v3055 = vsel %vm189, %v3049, 0.0
    %3056 = vadd.xlane.f32.xlu0 %v3055
    %v3057 = vpop.xlane.xlu0 %3056
    %v3058 = vmul.f32 %v3054, %v1015
    %v3059 = vmul.f32 %v3057, %v1015
    %v3060 = vsub.f32 %v3048, %v3058
    %v3061 = vsub.f32 %v3049, %v3059
    %v3062 = vmul.f32 %v3060, %v3060
    %v3063 = vmul.f32 %v3061, %v3061
    %v3064 = vsel %vm189, %v3062, 0.0
    %3065 = vadd.xlane.f32.xlu0 %v3064
    %v3066 = vpop.xlane.xlu0 %3065
    %v3067 = vsel %vm189, %v3063, 0.0
    %3068 = vadd.xlane.f32.xlu0 %v3067
    %v3069 = vpop.xlane.xlu0 %3068
    %v3070 = vmul.f32 %v3066, %v1015
    %v3071 = vmul.f32 %v3069, %v1015
    %v3072 = vadd.f32 %v3070, 1e-05
    %v3073 = vadd.f32 %v3071, 1e-05
    %v3074 = vrsqrt.pop %v3072
    %v3075 = vmul.f32 %v3074, %v3072
    %v3076 = vmul.f32 %v3075, %v3074
    %v3077 = vmul.f32 0.5, %v3076
    %v3078 = vsub.f32 1.5, %v3077
    %v3079 = vmul.f32 %v3074, %v3078
    %vm3080 = vweird.f32 %v3072
    %vm3081 = vweird.f32 %v3074
    %vm3082 = vmor %vm3080, %vm3081
    %v3083 = vsel %vm3082, %v3074, %v3079
    %v3084 = vrsqrt.pop %v3073
    %v3085 = vmul.f32 %v3084, %v3073
    %v3086 = vmul.f32 %v3085, %v3084
    %v3087 = vmul.f32 0.5, %v3086
    %v3088 = vsub.f32 1.5, %v3087
    %v3089 = vmul.f32 %v3084, %v3088
    %vm3090 = vweird.f32 %v3073
    %vm3091 = vweird.f32 %v3084
    %vm3092 = vmor %vm3090, %vm3091
    %v3093 = vsel %vm3092, %v3084, %v3089
    %v3094 = vmul.f32 %v3060, %v3083
    %v3095 = vmul.f32 %v3061, %v3093
    %v3097 = vperm.slane %v3050, 0
    %v3099 = vmul.f32 %v3094, %v3097
    %v3100 = vmul.f32 %v3095, %v3097
    %v3102 = vperm.slane %v3051, 0
    %v3104 = vadd.f32 %v3099, %v3102
    %v3105 = vadd.f32 %v3100, %v3102
    %v3106 = vld [vmem:[%s41] sm:$0xff]
    %v3107 = vld [vmem:[%s41 + $0x8] sm:$0xff]
    %v3108 = vld [vmem:[%s41 + $0x10] sm:$0xff]
    %v3109 = vld [vmem:[%s41 + $0x18] sm:$0xff]
    %v3110 = vpack.c.bf16 %v3105, %v3104
    %v3111 = vpack.c.bf16 %v3107, %v3106
    %v3112 = vpack.c.bf16 %v3109, %v3108
    %v3113 = vld [vmem:[%s43] sm:$0x1]
    %v3115 = vperm.slane %v3113, 0
    %v3118 = vsel %vm189, %v3110, 0
    %3120 = vmatpush.bf16.msra.mxu0 0
    %3121 = vmatpush.bf16.msra.mxu0 0
    %3122 = vmatpush.bf16.msra.mxu0 0
    %3123 = vmatpush.bf16.msra.mxu0 0
    %3124 = vmatpush.bf16.msra.mxu0 0
    %3125 = vmatpush.bf16.msra.mxu0 0
    %3126 = vmatpush.bf16.msra.mxu0 %v3112
    %3127 = vmatpush.bf16.msra.mxu0 %v3111
    %3128 = vmatmul.bf16.gmra.mxu0 %v3118
    %v3129 = vpop.f32.mrf.mxu0
    %v3130 = vadd.f32 %v3115, %v3129
    %v3131 = vpop.f32.mrf.mxu0
    %v3132 = vadd.f32 %v3115, %v3131
    %3133 = vdwg.mxu0
    %v3134 = vmul.f32 %v3130, 0.35355338
    %v3135 = vmul.f32 %v3132, 0.35355338
    %v3136 = vld [vmem:[%s45] sm:$0xff]
    %v3137 = vld [vmem:[%s45 + $0x8] sm:$0xff]
    %v3138 = vld [vmem:[%s45 + $0x10] sm:$0xff]
    %v3139 = vld [vmem:[%s45 + $0x18] sm:$0xff]
    %v3140 = vpack.c.bf16 %v2192, %v2191
    %v3141 = vpack.c.bf16 %v3137, %v3136
    %v3142 = vpack.c.bf16 %v3139, %v3138
    %v3143 = vld [vmem:[%s47] sm:$0x1]
    %v3145 = vperm.slane %v3143, 0
    %v3148 = vsel %vm189, %v3140, 0
    %3150 = vmatpush.bf16.msra.mxu0 0
    %3151 = vmatpush.bf16.msra.mxu0 0
    %3152 = vmatpush.bf16.msra.mxu0 0
    %3153 = vmatpush.bf16.msra.mxu0 0
    %3154 = vmatpush.bf16.msra.mxu0 0
    %3155 = vmatpush.bf16.msra.mxu0 0
    %3156 = vmatpush.bf16.msra.mxu0 %v3142
    %3157 = vmatpush.bf16.msra.mxu0 %v3141
    %3158 = vmatmul.bf16.gmra.mxu0 %v3148
    %v3159 = vpop.f32.mrf.mxu0
    %v3160 = vadd.f32 %v3145, %v3159
    %v3161 = vpop.f32.mrf.mxu0
    %v3162 = vadd.f32 %v3145, %v3161
    %3163 = vdwg.mxu0
    %3164 = vxpose.xlu0.b32.start [1/16] %v3160, 128
    %3165 = vxpose.xlu0.b32.cont [2/16] 0.0, 128
    %3166 = vxpose.xlu0.b32.cont [3/16] 0.0, 128
    %3167 = vxpose.xlu0.b32.cont [4/16] 0.0, 128
    %3168 = vxpose.xlu0.b32.cont [5/16] 0.0, 128
    %3169 = vxpose.xlu0.b32.cont [6/16] 0.0, 128
    %3170 = vxpose.xlu0.b32.cont [7/16] 0.0, 128
    %3171 = vxpose.xlu0.b32.cont [8/16] 0.0, 128
    %3172 = vxpose.xlu0.b32.cont [9/16] 0.0, 128
    %3173 = vxpose.xlu0.b32.cont [10/16] 0.0, 128
    %3174 = vxpose.xlu0.b32.cont [11/16] 0.0, 128
    %3175 = vxpose.xlu0.b32.cont [12/16] 0.0, 128
    %3176 = vxpose.xlu0.b32.cont [13/16] 0.0, 128
    %3177 = vxpose.xlu0.b32.cont [14/16] 0.0, 128
    %3178 = vxpose.xlu0.b32.cont [15/16] 0.0, 128
    %3179 = vxpose.xlu0.b32.end [16/16] 0.0, 128
    %v3180 = vpop.trf.xlu0
    %v3181 = vpop.trf.xlu0
    %v3182 = vpop.trf.xlu0
    %v3183 = vpop.trf.xlu0
    %v3184 = vpop.trf.xlu0
    %v3185 = vpop.trf.xlu0
    %v3186 = vpop.trf.xlu0
    %v3187 = vpop.trf.xlu0
    %v3188 = vpop.trf.xlu0
    %v3189 = vpop.trf.xlu0
    %v3190 = vpop.trf.xlu0
    %v3191 = vpop.trf.xlu0
    %v3192 = vpop.trf.xlu0
    %v3193 = vpop.trf.xlu0
    %v3194 = vpop.trf.xlu0
    %v3195 = vpop.trf.xlu0
    %v3196 = vpack.c.bf16 %v3134, %v3134
    %v3197 = vpack.c.bf16 %v3180, %v3180
    %v3199 = vsel %vm248, %v3196, 0
    %v3202 = vsel %vm252, %v3197, 0
    %3204 = vmatpush.bf16.msra.mxu0 0
    %3205 = vmatpush.bf16.msra.mxu0 0
    %3206 = vmatpush.bf16.msra.mxu0 0
    %3207 = vmatpush.bf16.msra.mxu0 0
    %3208 = vmatpush.bf16.msra.mxu0 0
    %3209 = vmatpush.bf16.msra.mxu0 0
    %3210 = vmatpush.bf16.msra.mxu0 0
    %3211 = vmatpush.bf16.msra.mxu0 %v3202
    %3212 = vmatmul.bf16.gmra.mxu0 %v3199
    %v3213 = vpop.f32.mrf.mxu0
    %v3214 = vadd.f32 %v247, %v3213
    %v3215 = vpop.f32.mrf.mxu0
    %3216 = vdwg.mxu0
    %v3217 = vsel %vm248, %v3214, -inf
    %3218 = vmax.xlane.f32.xlu0 %v3217
    %v3219 = vpop.xlane.xlu0 %3218
    %v3220 = vsub.f32 %v3214, %v3219
    %v3221 = vmul.f32 %v3220, 1.442695
    %v3222 = vpow.pop %v3221
    %v3223 = vsel %vm248, %v3222, 0.0
    %3224 = vadd.xlane.f32.xlu0 %v3223
    %v3225 = vpop.xlane.xlu0 %3224
    %v3226 = vrcp.pop %v3225
    %v3227 = vmul.f32 %v3222, %v3226
    %v3228 = vpack.c.bf16 %v3227, %v3227
    %v3229 = vpack.c.bf16 %v3160, %v3160
    %3231 = vrot.lane.b32.xlu0 %v3229, 96
    %v3232 = vpop.permute.xlu0 %3231
    %v3234 = vsel %vm248, %v3228, 0
    %v3237 = vsel %vm252, %v3232, 0
    %3239 = vmatpush.bf16.msra.mxu0 0
    %3240 = vmatpush.bf16.msra.mxu0 0
    %3241 = vmatpush.bf16.msra.mxu0 0
    %3242 = vmatpush.bf16.msra.mxu0 0
    %3243 = vmatpush.bf16.msra.mxu0 0
    %3244 = vmatpush.bf16.msra.mxu0 0
    %3245 = vmatpush.bf16.msra.mxu0 0
    %3246 = vmatpush.bf16.msra.mxu0 %v3237
    %3247 = vmatmul.bf16.gmra.mxu0 %v3234
    %v3248 = vpop.f32.mrf.mxu0
    %v3249 = vadd.f32 0.0, %v3248
    %v3250 = vpop.f32.mrf.mxu0
    %3251 = vdwg.mxu0
    %3253 = vrot.lane.b32.xlu0 %v3160, 120
    %v3254 = vpop.permute.xlu0 %3253
    %3256 = vxpose.xlu0.b32.start [1/16] %v3254, 128
    %3257 = vxpose.xlu0.b32.cont [2/16] 0.0, 128
    %3258 = vxpose.xlu0.b32.cont [3/16] 0.0, 128
    %3259 = vxpose.xlu0.b32.cont [4/16] 0.0, 128
    %3260 = vxpose.xlu0.b32.cont [5/16] 0.0, 128
    %3261 = vxpose.xlu0.b32.cont [6/16] 0.0, 128
    %3262 = vxpose.xlu0.b32.cont [7/16] 0.0, 128
    %3263 = vxpose.xlu0.b32.cont [8/16] 0.0, 128
    %3264 = vxpose.xlu0.b32.cont [9/16] 0.0, 128
    %3265 = vxpose.xlu0.b32.cont [10/16] 0.0, 128
    %3266 = vxpose.xlu0.b32.cont [11/16] 0.0, 128
    %3267 = vxpose.xlu0.b32.cont [12/16] 0.0, 128
    %3268 = vxpose.xlu0.b32.cont [13/16] 0.0, 128
    %3269 = vxpose.xlu0.b32.cont [14/16] 0.0, 128
    %3270 = vxpose.xlu0.b32.cont [15/16] 0.0, 128
    %3271 = vxpose.xlu0.b32.end [16/16] 0.0, 128
    %v3272 = vpop.trf.xlu0
    %v3273 = vpop.trf.xlu0
    %v3274 = vpop.trf.xlu0
    %v3275 = vpop.trf.xlu0
    %v3276 = vpop.trf.xlu0
    %v3277 = vpop.trf.xlu0
    %v3278 = vpop.trf.xlu0
    %v3279 = vpop.trf.xlu0
    %v3280 = vpop.trf.xlu0
    %v3281 = vpop.trf.xlu0
    %v3282 = vpop.trf.xlu0
    %v3283 = vpop.trf.xlu0
    %v3284 = vpop.trf.xlu0
    %v3285 = vpop.trf.xlu0
    %v3286 = vpop.trf.xlu0
    %v3287 = vpop.trf.xlu0
    %v3288 = vpack.c.bf16 %v3272, %v3272
    %3290 = vrot.lane.b32.xlu0 %v3196, 120
    %v3291 = vpop.permute.xlu0 %3290
    %v3293 = vsel %vm248, %v3291, 0
    %v3296 = vsel %vm252, %v3288, 0
    %3298 = vmatpush.bf16.msra.mxu0 0
    %3299 = vmatpush.bf16.msra.mxu0 0
    %3300 = vmatpush.bf16.msra.mxu0 0
    %3301 = vmatpush.bf16.msra.mxu0 0
    %3302 = vmatpush.bf16.msra.mxu0 0
    %3303 = vmatpush.bf16.msra.mxu0 0
    %3304 = vmatpush.bf16.msra.mxu0 0
    %3305 = vmatpush.bf16.msra.mxu0 %v3296
    %3306 = vmatmul.bf16.gmra.mxu0 %v3293
    %v3307 = vpop.f32.mrf.mxu0
    %v3308 = vadd.f32 %v247, %v3307
    %v3309 = vpop.f32.mrf.mxu0
    %3310 = vdwg.mxu0
    %v3311 = vsel %vm248, %v3308, -inf
    %3312 = vmax.xlane.f32.xlu0 %v3311
    %v3313 = vpop.xlane.xlu0 %3312
    %v3314 = vsub.f32 %v3308, %v3313
    %v3315 = vmul.f32 %v3314, 1.442695
    %v3316 = vpow.pop %v3315
    %v3317 = vsel %vm248, %v3316, 0.0
    %3318 = vadd.xlane.f32.xlu0 %v3317
    %v3319 = vpop.xlane.xlu0 %3318
    %v3320 = vrcp.pop %v3319
    %v3321 = vmul.f32 %v3316, %v3320
    %v3322 = vpack.c.bf16 %v3321, %v3321
    %3323 = vrot.lane.b32.xlu0 %v3229, 88
    %v3324 = vpop.permute.xlu0 %3323
    %v3326 = vsel %vm248, %v3322, 0
    %v3329 = vsel %vm252, %v3324, 0
    %3331 = vmatpush.bf16.msra.mxu0 0
    %3332 = vmatpush.bf16.msra.mxu0 0
    %3333 = vmatpush.bf16.msra.mxu0 0
    %3334 = vmatpush.bf16.msra.mxu0 0
    %3335 = vmatpush.bf16.msra.mxu0 0
    %3336 = vmatpush.bf16.msra.mxu0 0
    %3337 = vmatpush.bf16.msra.mxu0 0
    %3338 = vmatpush.bf16.msra.mxu0 %v3329
    %3339 = vmatmul.bf16.gmra.mxu0 %v3326
    %v3340 = vpop.f32.mrf.mxu0
    %v3341 = vadd.f32 0.0, %v3340
    %v3342 = vpop.f32.mrf.mxu0
    %3343 = vdwg.mxu0
    %3344 = vrot.lane.b32.xlu0 %v3160, 112
    %v3345 = vpop.permute.xlu0 %3344
    %3347 = vxpose.xlu0.b32.start [1/16] %v3345, 128
    %3348 = vxpose.xlu0.b32.cont [2/16] 0.0, 128
    %3349 = vxpose.xlu0.b32.cont [3/16] 0.0, 128
    %3350 = vxpose.xlu0.b32.cont [4/16] 0.0, 128
    %3351 = vxpose.xlu0.b32.cont [5/16] 0.0, 128
    %3352 = vxpose.xlu0.b32.cont [6/16] 0.0, 128
    %3353 = vxpose.xlu0.b32.cont [7/16] 0.0, 128
    %3354 = vxpose.xlu0.b32.cont [8/16] 0.0, 128
    %3355 = vxpose.xlu0.b32.cont [9/16] 0.0, 128
    %3356 = vxpose.xlu0.b32.cont [10/16] 0.0, 128
    %3357 = vxpose.xlu0.b32.cont [11/16] 0.0, 128
    %3358 = vxpose.xlu0.b32.cont [12/16] 0.0, 128
    %3359 = vxpose.xlu0.b32.cont [13/16] 0.0, 128
    %3360 = vxpose.xlu0.b32.cont [14/16] 0.0, 128
    %3361 = vxpose.xlu0.b32.cont [15/16] 0.0, 128
    %3362 = vxpose.xlu0.b32.end [16/16] 0.0, 128
    %v3363 = vpop.trf.xlu0
    %v3364 = vpop.trf.xlu0
    %v3365 = vpop.trf.xlu0
    %v3366 = vpop.trf.xlu0
    %v3367 = vpop.trf.xlu0
    %v3368 = vpop.trf.xlu0
    %v3369 = vpop.trf.xlu0
    %v3370 = vpop.trf.xlu0
    %v3371 = vpop.trf.xlu0
    %v3372 = vpop.trf.xlu0
    %v3373 = vpop.trf.xlu0
    %v3374 = vpop.trf.xlu0
    %v3375 = vpop.trf.xlu0
    %v3376 = vpop.trf.xlu0
    %v3377 = vpop.trf.xlu0
    %v3378 = vpop.trf.xlu0
    %v3379 = vpack.c.bf16 %v3363, %v3363
    %3380 = vrot.lane.b32.xlu0 %v3196, 112
    %v3381 = vpop.permute.xlu0 %3380
    %v3383 = vsel %vm248, %v3381, 0
    %v3386 = vsel %vm252, %v3379, 0
    %3388 = vmatpush.bf16.msra.mxu0 0
    %3389 = vmatpush.bf16.msra.mxu0 0
    %3390 = vmatpush.bf16.msra.mxu0 0
    %3391 = vmatpush.bf16.msra.mxu0 0
    %3392 = vmatpush.bf16.msra.mxu0 0
    %3393 = vmatpush.bf16.msra.mxu0 0
    %3394 = vmatpush.bf16.msra.mxu0 0
    %3395 = vmatpush.bf16.msra.mxu0 %v3386
    %3396 = vmatmul.bf16.gmra.mxu0 %v3383
    %v3397 = vpop.f32.mrf.mxu0
    %v3398 = vadd.f32 %v247, %v3397
    %v3399 = vpop.f32.mrf.mxu0
    %3400 = vdwg.mxu0
    %v3401 = vsel %vm248, %v3398, -inf
    %3402 = vmax.xlane.f32.xlu0 %v3401
    %v3403 = vpop.xlane.xlu0 %3402
    %v3404 = vsub.f32 %v3398, %v3403
    %v3405 = vmul.f32 %v3404, 1.442695
    %v3406 = vpow.pop %v3405
    %v3407 = vsel %vm248, %v3406, 0.0
    %3408 = vadd.xlane.f32.xlu0 %v3407
    %v3409 = vpop.xlane.xlu0 %3408
    %v3410 = vrcp.pop %v3409
    %v3411 = vmul.f32 %v3406, %v3410
    %v3412 = vpack.c.bf16 %v3411, %v3411
    %3413 = vrot.lane.b32.xlu0 %v3229, 80
    %v3414 = vpop.permute.xlu0 %3413
    %v3416 = vsel %vm248, %v3412, 0
    %v3419 = vsel %vm252, %v3414, 0
    %3421 = vmatpush.bf16.msra.mxu0 0
    %3422 = vmatpush.bf16.msra.mxu0 0
    %3423 = vmatpush.bf16.msra.mxu0 0
    %3424 = vmatpush.bf16.msra.mxu0 0
    %3425 = vmatpush.bf16.msra.mxu0 0
    %3426 = vmatpush.bf16.msra.mxu0 0
    %3427 = vmatpush.bf16.msra.mxu0 0
    %3428 = vmatpush.bf16.msra.mxu0 %v3419
    %3429 = vmatmul.bf16.gmra.mxu0 %v3416
    %v3430 = vpop.f32.mrf.mxu0
    %v3431 = vadd.f32 0.0, %v3430
    %v3432 = vpop.f32.mrf.mxu0
    %3433 = vdwg.mxu0
    %3434 = vrot.lane.b32.xlu0 %v3160, 104
    %v3435 = vpop.permute.xlu0 %3434
    %3437 = vxpose.xlu0.b32.start [1/16] %v3435, 128
    %3438 = vxpose.xlu0.b32.cont [2/16] 0.0, 128
    %3439 = vxpose.xlu0.b32.cont [3/16] 0.0, 128
    %3440 = vxpose.xlu0.b32.cont [4/16] 0.0, 128
    %3441 = vxpose.xlu0.b32.cont [5/16] 0.0, 128
    %3442 = vxpose.xlu0.b32.cont [6/16] 0.0, 128
    %3443 = vxpose.xlu0.b32.cont [7/16] 0.0, 128
    %3444 = vxpose.xlu0.b32.cont [8/16] 0.0, 128
    %3445 = vxpose.xlu0.b32.cont [9/16] 0.0, 128
    %3446 = vxpose.xlu0.b32.cont [10/16] 0.0, 128
    %3447 = vxpose.xlu0.b32.cont [11/16] 0.0, 128
    %3448 = vxpose.xlu0.b32.cont [12/16] 0.0, 128
    %3449 = vxpose.xlu0.b32.cont [13/16] 0.0, 128
    %3450 = vxpose.xlu0.b32.cont [14/16] 0.0, 128
    %3451 = vxpose.xlu0.b32.cont [15/16] 0.0, 128
    %3452 = vxpose.xlu0.b32.end [16/16] 0.0, 128
    %v3453 = vpop.trf.xlu0
    %v3454 = vpop.trf.xlu0
    %v3455 = vpop.trf.xlu0
    %v3456 = vpop.trf.xlu0
    %v3457 = vpop.trf.xlu0
    %v3458 = vpop.trf.xlu0
    %v3459 = vpop.trf.xlu0
    %v3460 = vpop.trf.xlu0
    %v3461 = vpop.trf.xlu0
    %v3462 = vpop.trf.xlu0
    %v3463 = vpop.trf.xlu0
    %v3464 = vpop.trf.xlu0
    %v3465 = vpop.trf.xlu0
    %v3466 = vpop.trf.xlu0
    %v3467 = vpop.trf.xlu0
    %v3468 = vpop.trf.xlu0
    %v3469 = vpack.c.bf16 %v3453, %v3453
    %3470 = vrot.lane.b32.xlu0 %v3196, 104
    %v3471 = vpop.permute.xlu0 %3470
    %v3473 = vsel %vm248, %v3471, 0
    %v3476 = vsel %vm252, %v3469, 0
    %3478 = vmatpush.bf16.msra.mxu0 0
    %3479 = vmatpush.bf16.msra.mxu0 0
    %3480 = vmatpush.bf16.msra.mxu0 0
    %3481 = vmatpush.bf16.msra.mxu0 0
    %3482 = vmatpush.bf16.msra.mxu0 0
    %3483 = vmatpush.bf16.msra.mxu0 0
    %3484 = vmatpush.bf16.msra.mxu0 0
    %3485 = vmatpush.bf16.msra.mxu0 %v3476
    %3486 = vmatmul.bf16.gmra.mxu0 %v3473
    %v3487 = vpop.f32.mrf.mxu0
    %v3488 = vadd.f32 %v247, %v3487
    %v3489 = vpop.f32.mrf.mxu0
    %3490 = vdwg.mxu0
    %v3491 = vsel %vm248, %v3488, -inf
    %3492 = vmax.xlane.f32.xlu0 %v3491
    %v3493 = vpop.xlane.xlu0 %3492
    %v3494 = vsub.f32 %v3488, %v3493
    %v3495 = vmul.f32 %v3494, 1.442695
    %v3496 = vpow.pop %v3495
    %v3497 = vsel %vm248, %v3496, 0.0
    %3498 = vadd.xlane.f32.xlu0 %v3497
    %v3499 = vpop.xlane.xlu0 %3498
    %v3500 = vrcp.pop %v3499
    %v3501 = vmul.f32 %v3496, %v3500
    %v3502 = vpack.c.bf16 %v3501, %v3501
    %3503 = vrot.lane.b32.xlu0 %v3229, 72
    %v3504 = vpop.permute.xlu0 %3503
    %v3506 = vsel %vm248, %v3502, 0
    %v3509 = vsel %vm252, %v3504, 0
    %3511 = vmatpush.bf16.msra.mxu0 0
    %3512 = vmatpush.bf16.msra.mxu0 0
    %3513 = vmatpush.bf16.msra.mxu0 0
    %3514 = vmatpush.bf16.msra.mxu0 0
    %3515 = vmatpush.bf16.msra.mxu0 0
    %3516 = vmatpush.bf16.msra.mxu0 0
    %3517 = vmatpush.bf16.msra.mxu0 0
    %3518 = vmatpush.bf16.msra.mxu0 %v3509
    %3519 = vmatmul.bf16.gmra.mxu0 %v3506
    %v3520 = vpop.f32.mrf.mxu0
    %v3521 = vadd.f32 0.0, %v3520
    %v3522 = vpop.f32.mrf.mxu0
    %3523 = vdwg.mxu0
    %3525 = vrot.lane.b32.xlu0 %v3341, 8
    %v3526 = vpop.permute.xlu0 %3525
    %3529 = vrot.lane.b32.xlu0 %v3431, 16
    %v3530 = vpop.permute.xlu0 %3529
    %3533 = vrot.lane.b32.xlu0 %v3521, 24
    %v3534 = vpop.permute.xlu0 %3533
    %v3536 = vsel %vm248, %v3249, %v3526
    %v3537 = vsel %vm588, %v3536, %v3530
    %v3538 = vsel %vm590, %v3537, %v3534
    %3540 = vrot.lane.b32.xlu0 %v3321, 8
    %v3541 = vpop.permute.xlu0 %3540
    %3544 = vrot.lane.b32.xlu0 %v3411, 16
    %v3545 = vpop.permute.xlu0 %3544
    %3548 = vrot.lane.b32.xlu0 %v3501, 24
    %v3549 = vpop.permute.xlu0 %3548
    %v3551 = vsel %vm248, %v3227, %v3541
    %v3552 = vsel %vm588, %v3551, %v3545
    %v3553 = vsel %vm590, %v3552, %v3549
    %3554 = vst.msk [vmem:[%s83] sm:$0xff] %vm189, %v3553
    %3555 = vxpose.xlu0.b32.start [1/16] %v3162, 128
    %3556 = vxpose.xlu0.b32.cont [2/16] 0.0, 128
    %3557 = vxpose.xlu0.b32.cont [3/16] 0.0, 128
    %3558 = vxpose.xlu0.b32.cont [4/16] 0.0, 128
    %3559 = vxpose.xlu0.b32.cont [5/16] 0.0, 128
    %3560 = vxpose.xlu0.b32.cont [6/16] 0.0, 128
    %3561 = vxpose.xlu0.b32.cont [7/16] 0.0, 128
    %3562 = vxpose.xlu0.b32.cont [8/16] 0.0, 128
    %3563 = vxpose.xlu0.b32.cont [9/16] 0.0, 128
    %3564 = vxpose.xlu0.b32.cont [10/16] 0.0, 128
    %3565 = vxpose.xlu0.b32.cont [11/16] 0.0, 128
    %3566 = vxpose.xlu0.b32.cont [12/16] 0.0, 128
    %3567 = vxpose.xlu0.b32.cont [13/16] 0.0, 128
    %3568 = vxpose.xlu0.b32.cont [14/16] 0.0, 128
    %3569 = vxpose.xlu0.b32.cont [15/16] 0.0, 128
    %3570 = vxpose.xlu0.b32.end [16/16] 0.0, 128
    %v3571 = vpop.trf.xlu0
    %v3572 = vpop.trf.xlu0
    %v3573 = vpop.trf.xlu0
    %v3574 = vpop.trf.xlu0
    %v3575 = vpop.trf.xlu0
    %v3576 = vpop.trf.xlu0
    %v3577 = vpop.trf.xlu0
    %v3578 = vpop.trf.xlu0
    %v3579 = vpop.trf.xlu0
    %v3580 = vpop.trf.xlu0
    %v3581 = vpop.trf.xlu0
    %v3582 = vpop.trf.xlu0
    %v3583 = vpop.trf.xlu0
    %v3584 = vpop.trf.xlu0
    %v3585 = vpop.trf.xlu0
    %v3586 = vpop.trf.xlu0
    %v3587 = vpack.c.bf16 %v3135, %v3135
    %v3588 = vpack.c.bf16 %v3571, %v3571
    %v3590 = vsel %vm248, %v3587, 0
    %v3593 = vsel %vm252, %v3588, 0
    %3595 = vmatpush.bf16.msra.mxu0 0
    %3596 = vmatpush.bf16.msra.mxu0 0
    %3597 = vmatpush.bf16.msra.mxu0 0
    %3598 = vmatpush.bf16.msra.mxu0 0
    %3599 = vmatpush.bf16.msra.mxu0 0
    %3600 = vmatpush.bf16.msra.mxu0 0
    %3601 = vmatpush.bf16.msra.mxu0 0
    %3602 = vmatpush.bf16.msra.mxu0 %v3593
    %3603 = vmatmul.bf16.gmra.mxu0 %v3590
    %v3604 = vpop.f32.mrf.mxu0
    %v3605 = vadd.f32 %v630, %v3604
    %v3606 = vpop.f32.mrf.mxu0
    %3607 = vdwg.mxu0
    %v3608 = vsel %vm248, %v3605, -inf
    %3609 = vmax.xlane.f32.xlu0 %v3608
    %v3610 = vpop.xlane.xlu0 %3609
    %v3611 = vsub.f32 %v3605, %v3610
    %v3612 = vmul.f32 %v3611, 1.442695
    %v3613 = vpow.pop %v3612
    %v3614 = vsel %vm248, %v3613, 0.0
    %3615 = vadd.xlane.f32.xlu0 %v3614
    %v3616 = vpop.xlane.xlu0 %3615
    %v3617 = vrcp.pop %v3616
    %v3618 = vmul.f32 %v3613, %v3617
    %v3619 = vpack.c.bf16 %v3618, %v3618
    %v3620 = vpack.c.bf16 %v3162, %v3162
    %3622 = vrot.lane.b32.xlu0 %v3620, 96
    %v3623 = vpop.permute.xlu0 %3622
    %v3625 = vsel %vm248, %v3619, 0
    %v3628 = vsel %vm252, %v3623, 0
    %3630 = vmatpush.bf16.msra.mxu0 0
    %3631 = vmatpush.bf16.msra.mxu0 0
    %3632 = vmatpush.bf16.msra.mxu0 0
    %3633 = vmatpush.bf16.msra.mxu0 0
    %3634 = vmatpush.bf16.msra.mxu0 0
    %3635 = vmatpush.bf16.msra.mxu0 0
    %3636 = vmatpush.bf16.msra.mxu0 0
    %3637 = vmatpush.bf16.msra.mxu0 %v3628
    %3638 = vmatmul.bf16.gmra.mxu0 %v3625
    %v3639 = vpop.f32.mrf.mxu0
    %v3640 = vadd.f32 0.0, %v3639
    %v3641 = vpop.f32.mrf.mxu0
    %3642 = vdwg.mxu0
    %3644 = vrot.lane.b32.xlu0 %v3162, 120
    %v3645 = vpop.permute.xlu0 %3644
    %3647 = vxpose.xlu0.b32.start [1/16] %v3645, 128
    %3648 = vxpose.xlu0.b32.cont [2/16] 0.0, 128
    %3649 = vxpose.xlu0.b32.cont [3/16] 0.0, 128
    %3650 = vxpose.xlu0.b32.cont [4/16] 0.0, 128
    %3651 = vxpose.xlu0.b32.cont [5/16] 0.0, 128
    %3652 = vxpose.xlu0.b32.cont [6/16] 0.0, 128
    %3653 = vxpose.xlu0.b32.cont [7/16] 0.0, 128
    %3654 = vxpose.xlu0.b32.cont [8/16] 0.0, 128
    %3655 = vxpose.xlu0.b32.cont [9/16] 0.0, 128
    %3656 = vxpose.xlu0.b32.cont [10/16] 0.0, 128
    %3657 = vxpose.xlu0.b32.cont [11/16] 0.0, 128
    %3658 = vxpose.xlu0.b32.cont [12/16] 0.0, 128
    %3659 = vxpose.xlu0.b32.cont [13/16] 0.0, 128
    %3660 = vxpose.xlu0.b32.cont [14/16] 0.0, 128
    %3661 = vxpose.xlu0.b32.cont [15/16] 0.0, 128
    %3662 = vxpose.xlu0.b32.end [16/16] 0.0, 128
    %v3663 = vpop.trf.xlu0
    %v3664 = vpop.trf.xlu0
    %v3665 = vpop.trf.xlu0
    %v3666 = vpop.trf.xlu0
    %v3667 = vpop.trf.xlu0
    %v3668 = vpop.trf.xlu0
    %v3669 = vpop.trf.xlu0
    %v3670 = vpop.trf.xlu0
    %v3671 = vpop.trf.xlu0
    %v3672 = vpop.trf.xlu0
    %v3673 = vpop.trf.xlu0
    %v3674 = vpop.trf.xlu0
    %v3675 = vpop.trf.xlu0
    %v3676 = vpop.trf.xlu0
    %v3677 = vpop.trf.xlu0
    %v3678 = vpop.trf.xlu0
    %v3679 = vpack.c.bf16 %v3663, %v3663
    %3681 = vrot.lane.b32.xlu0 %v3587, 120
    %v3682 = vpop.permute.xlu0 %3681
    %v3684 = vsel %vm248, %v3682, 0
    %v3687 = vsel %vm252, %v3679, 0
    %3689 = vmatpush.bf16.msra.mxu0 0
    %3690 = vmatpush.bf16.msra.mxu0 0
    %3691 = vmatpush.bf16.msra.mxu0 0
    %3692 = vmatpush.bf16.msra.mxu0 0
    %3693 = vmatpush.bf16.msra.mxu0 0
    %3694 = vmatpush.bf16.msra.mxu0 0
    %3695 = vmatpush.bf16.msra.mxu0 0
    %3696 = vmatpush.bf16.msra.mxu0 %v3687
    %3697 = vmatmul.bf16.gmra.mxu0 %v3684
    %v3698 = vpop.f32.mrf.mxu0
    %v3699 = vadd.f32 %v630, %v3698
    %v3700 = vpop.f32.mrf.mxu0
    %3701 = vdwg.mxu0
    %v3702 = vsel %vm248, %v3699, -inf
    %3703 = vmax.xlane.f32.xlu0 %v3702
    %v3704 = vpop.xlane.xlu0 %3703
    %v3705 = vsub.f32 %v3699, %v3704
    %v3706 = vmul.f32 %v3705, 1.442695
    %v3707 = vpow.pop %v3706
    %v3708 = vsel %vm248, %v3707, 0.0
    %3709 = vadd.xlane.f32.xlu0 %v3708
    %v3710 = vpop.xlane.xlu0 %3709
    %v3711 = vrcp.pop %v3710
    %v3712 = vmul.f32 %v3707, %v3711
    %v3713 = vpack.c.bf16 %v3712, %v3712
    %3714 = vrot.lane.b32.xlu0 %v3620, 88
    %v3715 = vpop.permute.xlu0 %3714
    %v3717 = vsel %vm248, %v3713, 0
    %v3720 = vsel %vm252, %v3715, 0
    %3722 = vmatpush.bf16.msra.mxu0 0
    %3723 = vmatpush.bf16.msra.mxu0 0
    %3724 = vmatpush.bf16.msra.mxu0 0
    %3725 = vmatpush.bf16.msra.mxu0 0
    %3726 = vmatpush.bf16.msra.mxu0 0
    %3727 = vmatpush.bf16.msra.mxu0 0
    %3728 = vmatpush.bf16.msra.mxu0 0
    %3729 = vmatpush.bf16.msra.mxu0 %v3720
    %3730 = vmatmul.bf16.gmra.mxu0 %v3717
    %v3731 = vpop.f32.mrf.mxu0
    %v3732 = vadd.f32 0.0, %v3731
    %v3733 = vpop.f32.mrf.mxu0
    %3734 = vdwg.mxu0
    %3735 = vrot.lane.b32.xlu0 %v3162, 112
    %v3736 = vpop.permute.xlu0 %3735
    %3738 = vxpose.xlu0.b32.start [1/16] %v3736, 128
    %3739 = vxpose.xlu0.b32.cont [2/16] 0.0, 128
    %3740 = vxpose.xlu0.b32.cont [3/16] 0.0, 128
    %3741 = vxpose.xlu0.b32.cont [4/16] 0.0, 128
    %3742 = vxpose.xlu0.b32.cont [5/16] 0.0, 128
    %3743 = vxpose.xlu0.b32.cont [6/16] 0.0, 128
    %3744 = vxpose.xlu0.b32.cont [7/16] 0.0, 128
    %3745 = vxpose.xlu0.b32.cont [8/16] 0.0, 128
    %3746 = vxpose.xlu0.b32.cont [9/16] 0.0, 128
    %3747 = vxpose.xlu0.b32.cont [10/16] 0.0, 128
    %3748 = vxpose.xlu0.b32.cont [11/16] 0.0, 128
    %3749 = vxpose.xlu0.b32.cont [12/16] 0.0, 128
    %3750 = vxpose.xlu0.b32.cont [13/16] 0.0, 128
    %3751 = vxpose.xlu0.b32.cont [14/16] 0.0, 128
    %3752 = vxpose.xlu0.b32.cont [15/16] 0.0, 128
    %3753 = vxpose.xlu0.b32.end [16/16] 0.0, 128
    %v3754 = vpop.trf.xlu0
    %v3755 = vpop.trf.xlu0
    %v3756 = vpop.trf.xlu0
    %v3757 = vpop.trf.xlu0
    %v3758 = vpop.trf.xlu0
    %v3759 = vpop.trf.xlu0
    %v3760 = vpop.trf.xlu0
    %v3761 = vpop.trf.xlu0
    %v3762 = vpop.trf.xlu0
    %v3763 = vpop.trf.xlu0
    %v3764 = vpop.trf.xlu0
    %v3765 = vpop.trf.xlu0
    %v3766 = vpop.trf.xlu0
    %v3767 = vpop.trf.xlu0
    %v3768 = vpop.trf.xlu0
    %v3769 = vpop.trf.xlu0
    %v3770 = vpack.c.bf16 %v3754, %v3754
    %3771 = vrot.lane.b32.xlu0 %v3587, 112
    %v3772 = vpop.permute.xlu0 %3771
    %v3774 = vsel %vm248, %v3772, 0
    %v3777 = vsel %vm252, %v3770, 0
    %3779 = vmatpush.bf16.msra.mxu0 0
    %3780 = vmatpush.bf16.msra.mxu0 0
    %3781 = vmatpush.bf16.msra.mxu0 0
    %3782 = vmatpush.bf16.msra.mxu0 0
    %3783 = vmatpush.bf16.msra.mxu0 0
    %3784 = vmatpush.bf16.msra.mxu0 0
    %3785 = vmatpush.bf16.msra.mxu0 0
    %3786 = vmatpush.bf16.msra.mxu0 %v3777
    %3787 = vmatmul.bf16.gmra.mxu0 %v3774
    %v3788 = vpop.f32.mrf.mxu0
    %v3789 = vadd.f32 %v630, %v3788
    %v3790 = vpop.f32.mrf.mxu0
    %3791 = vdwg.mxu0
    %v3792 = vsel %vm248, %v3789, -inf
    %3793 = vmax.xlane.f32.xlu0 %v3792
    %v3794 = vpop.xlane.xlu0 %3793
    %v3795 = vsub.f32 %v3789, %v3794
    %v3796 = vmul.f32 %v3795, 1.442695
    %v3797 = vpow.pop %v3796
    %v3798 = vsel %vm248, %v3797, 0.0
    %3799 = vadd.xlane.f32.xlu0 %v3798
    %v3800 = vpop.xlane.xlu0 %3799
    %v3801 = vrcp.pop %v3800
    %v3802 = vmul.f32 %v3797, %v3801
    %v3803 = vpack.c.bf16 %v3802, %v3802
    %3804 = vrot.lane.b32.xlu0 %v3620, 80
    %v3805 = vpop.permute.xlu0 %3804
    %v3807 = vsel %vm248, %v3803, 0
    %v3810 = vsel %vm252, %v3805, 0
    %3812 = vmatpush.bf16.msra.mxu0 0
    %3813 = vmatpush.bf16.msra.mxu0 0
    %3814 = vmatpush.bf16.msra.mxu0 0
    %3815 = vmatpush.bf16.msra.mxu0 0
    %3816 = vmatpush.bf16.msra.mxu0 0
    %3817 = vmatpush.bf16.msra.mxu0 0
    %3818 = vmatpush.bf16.msra.mxu0 0
    %3819 = vmatpush.bf16.msra.mxu0 %v3810
    %3820 = vmatmul.bf16.gmra.mxu0 %v3807
    %v3821 = vpop.f32.mrf.mxu0
    %v3822 = vadd.f32 0.0, %v3821
    %v3823 = vpop.f32.mrf.mxu0
    %3824 = vdwg.mxu0
    %3825 = vrot.lane.b32.xlu0 %v3162, 104
    %v3826 = vpop.permute.xlu0 %3825
    %3828 = vxpose.xlu0.b32.start [1/16] %v3826, 128
    %3829 = vxpose.xlu0.b32.cont [2/16] 0.0, 128
    %3830 = vxpose.xlu0.b32.cont [3/16] 0.0, 128
    %3831 = vxpose.xlu0.b32.cont [4/16] 0.0, 128
    %3832 = vxpose.xlu0.b32.cont [5/16] 0.0, 128
    %3833 = vxpose.xlu0.b32.cont [6/16] 0.0, 128
    %3834 = vxpose.xlu0.b32.cont [7/16] 0.0, 128
    %3835 = vxpose.xlu0.b32.cont [8/16] 0.0, 128
    %3836 = vxpose.xlu0.b32.cont [9/16] 0.0, 128
    %3837 = vxpose.xlu0.b32.cont [10/16] 0.0, 128
    %3838 = vxpose.xlu0.b32.cont [11/16] 0.0, 128
    %3839 = vxpose.xlu0.b32.cont [12/16] 0.0, 128
    %3840 = vxpose.xlu0.b32.cont [13/16] 0.0, 128
    %3841 = vxpose.xlu0.b32.cont [14/16] 0.0, 128
    %3842 = vxpose.xlu0.b32.cont [15/16] 0.0, 128
    %3843 = vxpose.xlu0.b32.end [16/16] 0.0, 128
    %v3844 = vpop.trf.xlu0
    %v3845 = vpop.trf.xlu0
    %v3846 = vpop.trf.xlu0
    %v3847 = vpop.trf.xlu0
    %v3848 = vpop.trf.xlu0
    %v3849 = vpop.trf.xlu0
    %v3850 = vpop.trf.xlu0
    %v3851 = vpop.trf.xlu0
    %v3852 = vpop.trf.xlu0
    %v3853 = vpop.trf.xlu0
    %v3854 = vpop.trf.xlu0
    %v3855 = vpop.trf.xlu0
    %v3856 = vpop.trf.xlu0
    %v3857 = vpop.trf.xlu0
    %v3858 = vpop.trf.xlu0
    %v3859 = vpop.trf.xlu0
    %v3860 = vpack.c.bf16 %v3844, %v3844
    %3861 = vrot.lane.b32.xlu0 %v3587, 104
    %v3862 = vpop.permute.xlu0 %3861
    %v3864 = vsel %vm248, %v3862, 0
    %v3867 = vsel %vm252, %v3860, 0
    %3869 = vmatpush.bf16.msra.mxu0 0
    %3870 = vmatpush.bf16.msra.mxu0 0
    %3871 = vmatpush.bf16.msra.mxu0 0
    %3872 = vmatpush.bf16.msra.mxu0 0
    %3873 = vmatpush.bf16.msra.mxu0 0
    %3874 = vmatpush.bf16.msra.mxu0 0
    %3875 = vmatpush.bf16.msra.mxu0 0
    %3876 = vmatpush.bf16.msra.mxu0 %v3867
    %3877 = vmatmul.bf16.gmra.mxu0 %v3864
    %v3878 = vpop.f32.mrf.mxu0
    %v3879 = vadd.f32 %v630, %v3878
    %v3880 = vpop.f32.mrf.mxu0
    %3881 = vdwg.mxu0
    %v3882 = vsel %vm248, %v3879, -inf
    %3883 = vmax.xlane.f32.xlu0 %v3882
    %v3884 = vpop.xlane.xlu0 %3883
    %v3885 = vsub.f32 %v3879, %v3884
    %v3886 = vmul.f32 %v3885, 1.442695
    %v3887 = vpow.pop %v3886
    %v3888 = vsel %vm248, %v3887, 0.0
    %3889 = vadd.xlane.f32.xlu0 %v3888
    %v3890 = vpop.xlane.xlu0 %3889
    %v3891 = vrcp.pop %v3890
    %v3892 = vmul.f32 %v3887, %v3891
    %v3893 = vpack.c.bf16 %v3892, %v3892
    %3894 = vrot.lane.b32.xlu0 %v3620, 72
    %v3895 = vpop.permute.xlu0 %3894
    %v3897 = vsel %vm248, %v3893, 0
    %v3900 = vsel %vm252, %v3895, 0
    %3902 = vmatpush.bf16.msra.mxu0 0
    %3903 = vmatpush.bf16.msra.mxu0 0
    %3904 = vmatpush.bf16.msra.mxu0 0
    %3905 = vmatpush.bf16.msra.mxu0 0
    %3906 = vmatpush.bf16.msra.mxu0 0
    %3907 = vmatpush.bf16.msra.mxu0 0
    %3908 = vmatpush.bf16.msra.mxu0 0
    %3909 = vmatpush.bf16.msra.mxu0 %v3900
    %3910 = vmatmul.bf16.gmra.mxu0 %v3897
    %v3911 = vpop.f32.mrf.mxu0
    %v3912 = vadd.f32 0.0, %v3911
    %v3913 = vpop.f32.mrf.mxu0
    %3914 = vdwg.mxu0
    %3916 = vrot.lane.b32.xlu0 %v3732, 8
    %v3917 = vpop.permute.xlu0 %3916
    %3920 = vrot.lane.b32.xlu0 %v3822, 16
    %v3921 = vpop.permute.xlu0 %3920
    %3924 = vrot.lane.b32.xlu0 %v3912, 24
    %v3925 = vpop.permute.xlu0 %3924
    %v3927 = vsel %vm248, %v3640, %v3917
    %v3928 = vsel %vm588, %v3927, %v3921
    %v3929 = vsel %vm590, %v3928, %v3925
    %3931 = vrot.lane.b32.xlu0 %v3712, 8
    %v3932 = vpop.permute.xlu0 %3931
    %3935 = vrot.lane.b32.xlu0 %v3802, 16
    %v3936 = vpop.permute.xlu0 %3935
    %3939 = vrot.lane.b32.xlu0 %v3892, 24
    %v3940 = vpop.permute.xlu0 %3939
    %v3942 = vsel %vm248, %v3618, %v3932
    %v3943 = vsel %vm588, %v3942, %v3936
    %v3944 = vsel %vm590, %v3943, %v3940
    %s3945 = scalar_lea.vmem %s83, 8
    %3946 = vst.msk [vmem:[%s3945] sm:$0xff] %vm189, %v3944
    %v3947 = vld [vmem:[%s49] sm:$0xff]
    %v3948 = vld [vmem:[%s49 + $0x8] sm:$0xff]
    %v3949 = vld [vmem:[%s49 + $0x10] sm:$0xff]
    %v3950 = vld [vmem:[%s49 + $0x18] sm:$0xff]
    %v3951 = vpack.c.bf16 %v3929, %v3538
    %v3952 = vpack.c.bf16 %v3948, %v3947
    %v3953 = vpack.c.bf16 %v3950, %v3949
    %v3954 = vld [vmem:[%s51] sm:$0x1]
    %v3956 = vperm.slane %v3954, 0
    %v3959 = vsel %vm189, %v3951, 0
    %3961 = vmatpush.bf16.msra.mxu0 0
    %3962 = vmatpush.bf16.msra.mxu0 0
    %3963 = vmatpush.bf16.msra.mxu0 0
    %3964 = vmatpush.bf16.msra.mxu0 0
    %3965 = vmatpush.bf16.msra.mxu0 0
    %3966 = vmatpush.bf16.msra.mxu0 0
    %3967 = vmatpush.bf16.msra.mxu0 %v3953
    %3968 = vmatpush.bf16.msra.mxu0 %v3952
    %3969 = vmatmul.bf16.gmra.mxu0 %v3959
    %v3970 = vpop.f32.mrf.mxu0
    %v3971 = vadd.f32 %v3956, %v3970
    %v3972 = vpop.f32.mrf.mxu0
    %v3973 = vadd.f32 %v3956, %v3972
    %3974 = vdwg.mxu0
    %v3975 = vadd.f32 %v3104, %v3971
    %v3976 = vadd.f32 %v3105, %v3973
    %v3977 = vld [vmem:[%s65] sm:$0x1]
    %v3978 = vld [vmem:[%s67] sm:$0x1]
    %v3979 = vsel %vm189, %v3975, 0.0
    %3980 = vadd.xlane.f32.xlu0 %v3979
    %v3981 = vpop.xlane.xlu0 %3980
    %v3982 = vsel %vm189, %v3976, 0.0
    %3983 = vadd.xlane.f32.xlu0 %v3982
    %v3984 = vpop.xlane.xlu0 %3983
    %v3985 = vmul.f32 %v3981, %v1015
    %v3986 = vmul.f32 %v3984, %v1015
    %v3987 = vsub.f32 %v3975, %v3985
    %v3988 = vsub.f32 %v3976, %v3986
    %v3989 = vmul.f32 %v3987, %v3987
    %v3990 = vmul.f32 %v3988, %v3988
    %v3991 = vsel %vm189, %v3989, 0.0
    %3992 = vadd.xlane.f32.xlu0 %v3991
    %v3993 = vpop.xlane.xlu0 %3992
    %v3994 = vsel %vm189, %v3990, 0.0
    %3995 = vadd.xlane.f32.xlu0 %v3994
    %v3996 = vpop.xlane.xlu0 %3995
    %v3997 = vmul.f32 %v3993, %v1015
    %v3998 = vmul.f32 %v3996, %v1015
    %v3999 = vadd.f32 %v3997, 1e-05
    %v4000 = vadd.f32 %v3998, 1e-05
    %v4001 = vrsqrt.pop %v3999
    %v4002 = vmul.f32 %v4001, %v3999
    %v4003 = vmul.f32 %v4002, %v4001
    %v4004 = vmul.f32 0.5, %v4003
    %v4005 = vsub.f32 1.5, %v4004
    %v4006 = vmul.f32 %v4001, %v4005
    %vm4007 = vweird.f32 %v3999
    %vm4008 = vweird.f32 %v4001
    %vm4009 = vmor %vm4007, %vm4008
    %v4010 = vsel %vm4009, %v4001, %v4006
    %v4011 = vrsqrt.pop %v4000
    %v4012 = vmul.f32 %v4011, %v4000
    %v4013 = vmul.f32 %v4012, %v4011
    %v4014 = vmul.f32 0.5, %v4013
    %v4015 = vsub.f32 1.5, %v4014
    %v4016 = vmul.f32 %v4011, %v4015
    %vm4017 = vweird.f32 %v4000
    %vm4018 = vweird.f32 %v4011
    %vm4019 = vmor %vm4017, %vm4018
    %v4020 = vsel %vm4019, %v4011, %v4016
    %v4021 = vmul.f32 %v3987, %v4010
    %v4022 = vmul.f32 %v3988, %v4020
    %v4024 = vperm.slane %v3977, 0
    %v4026 = vmul.f32 %v4021, %v4024
    %v4027 = vmul.f32 %v4022, %v4024
    %v4029 = vperm.slane %v3978, 0
    %v4031 = vadd.f32 %v4026, %v4029
    %v4032 = vadd.f32 %v4027, %v4029
    %v4033 = vld [vmem:[%s53] sm:$0xff]
    %v4034 = vld [vmem:[%s53 + $0x8] sm:$0xff]
    %v4035 = vld [vmem:[%s53 + $0x10] sm:$0xff]
    %v4036 = vld [vmem:[%s53 + $0x18] sm:$0xff]
    %v4037 = vpack.c.bf16 %v4032, %v4031
    %v4038 = vpack.c.bf16 %v4034, %v4033
    %v4039 = vpack.c.bf16 %v4036, %v4035
    %v4040 = vld [vmem:[%s55] sm:$0x1]
    %v4042 = vperm.slane %v4040, 0
    %v4045 = vsel %vm189, %v4037, 0
    %4047 = vmatpush.bf16.msra.mxu0 0
    %4048 = vmatpush.bf16.msra.mxu0 0
    %4049 = vmatpush.bf16.msra.mxu0 0
    %4050 = vmatpush.bf16.msra.mxu0 0
    %4051 = vmatpush.bf16.msra.mxu0 0
    %4052 = vmatpush.bf16.msra.mxu0 0
    %4053 = vmatpush.bf16.msra.mxu0 %v4039
    %4054 = vmatpush.bf16.msra.mxu0 %v4038
    %4055 = vmatmul.bf16.gmra.mxu0 %v4045
    %v4056 = vpop.f32.mrf.mxu0
    %v4057 = vadd.f32 %v4042, %v4056
    %v4058 = vpop.f32.mrf.mxu0
    %v4059 = vadd.f32 %v4042, %v4058
    %4060 = vdwg.mxu0
    %v4061 = vmax.f32 %v4057, 0.0
    %v4062 = vmax.f32 %v4059, 0.0
    %v4063 = vld [vmem:[%s57] sm:$0xff]
    %v4064 = vld [vmem:[%s57 + $0x8] sm:$0xff]
    %v4065 = vld [vmem:[%s57 + $0x10] sm:$0xff]
    %v4066 = vld [vmem:[%s57 + $0x18] sm:$0xff]
    %v4067 = vld [vmem:[%s57 + $0x20] sm:$0xff]
    %v4068 = vld [vmem:[%s57 + $0x28] sm:$0xff]
    %v4069 = vld [vmem:[%s57 + $0x30] sm:$0xff]
    %v4070 = vld [vmem:[%s57 + $0x38] sm:$0xff]
    %v4071 = vpack.c.bf16 %v4062, %v4061
    %v4072 = vpack.c.bf16 %v4064, %v4063
    %v4073 = vpack.c.bf16 %v4066, %v4065
    %v4074 = vpack.c.bf16 %v4068, %v4067
    %v4075 = vpack.c.bf16 %v4070, %v4069
    %v4076 = vld [vmem:[%s59] sm:$0x1]
    %v4078 = vperm.slane %v4076, 0
    %v4081 = vsel %vm1111, %v4071, 0
    %4083 = vmatpush.bf16.msra.mxu0 0
    %4084 = vmatpush.bf16.msra.mxu0 0
    %4085 = vmatpush.bf16.msra.mxu0 0
    %4086 = vmatpush.bf16.msra.mxu0 0
    %4087 = vmatpush.bf16.msra.mxu0 %v4075
    %4088 = vmatpush.bf16.msra.mxu0 %v4074
    %4089 = vmatpush.bf16.msra.mxu0 %v4073
    %4090 = vmatpush.bf16.msra.mxu0 %v4072
    %4091 = vmatmul.bf16.gmra.mxu0 %v4081
    %v4092 = vpop.f32.mrf.mxu0
    %v4093 = vadd.f32 %v4078, %v4092
    %v4094 = vpop.f32.mrf.mxu0
    %v4095 = vadd.f32 %v4078, %v4094
    %4096 = vdwg.mxu0
    %v4097 = vadd.f32 %v4031, %v4093
    %v4098 = vadd.f32 %v4032, %v4095
    %v4099 = vld [vmem:[%s69] sm:$0x1]
    %v4100 = vld [vmem:[%s71] sm:$0x1]
    %v4101 = vsel %vm189, %v4097, 0.0
    %4102 = vadd.xlane.f32.xlu0 %v4101
    %v4103 = vpop.xlane.xlu0 %4102
    %v4104 = vsel %vm189, %v4098, 0.0
    %4105 = vadd.xlane.f32.xlu0 %v4104
    %v4106 = vpop.xlane.xlu0 %4105
    %v4107 = vmul.f32 %v4103, %v1015
    %v4108 = vmul.f32 %v4106, %v1015
    %v4109 = vsub.f32 %v4097, %v4107
    %v4110 = vsub.f32 %v4098, %v4108
    %v4111 = vmul.f32 %v4109, %v4109
    %v4112 = vmul.f32 %v4110, %v4110
    %v4113 = vsel %vm189, %v4111, 0.0
    %4114 = vadd.xlane.f32.xlu0 %v4113
    %v4115 = vpop.xlane.xlu0 %4114
    %v4116 = vsel %vm189, %v4112, 0.0
    %4117 = vadd.xlane.f32.xlu0 %v4116
    %v4118 = vpop.xlane.xlu0 %4117
    %v4119 = vmul.f32 %v4115, %v1015
    %v4120 = vmul.f32 %v4118, %v1015
    %v4121 = vadd.f32 %v4119, 1e-05
    %v4122 = vadd.f32 %v4120, 1e-05
    %v4123 = vrsqrt.pop %v4121
    %v4124 = vmul.f32 %v4123, %v4121
    %v4125 = vmul.f32 %v4124, %v4123
    %v4126 = vmul.f32 0.5, %v4125
    %v4127 = vsub.f32 1.5, %v4126
    %v4128 = vmul.f32 %v4123, %v4127
    %vm4129 = vweird.f32 %v4121
    %vm4130 = vweird.f32 %v4123
    %vm4131 = vmor %vm4129, %vm4130
    %v4132 = vsel %vm4131, %v4123, %v4128
    %v4133 = vrsqrt.pop %v4122
    %v4134 = vmul.f32 %v4133, %v4122
    %v4135 = vmul.f32 %v4134, %v4133
    %v4136 = vmul.f32 0.5, %v4135
    %v4137 = vsub.f32 1.5, %v4136
    %v4138 = vmul.f32 %v4133, %v4137
    %vm4139 = vweird.f32 %v4122
    %vm4140 = vweird.f32 %v4133
    %vm4141 = vmor %vm4139, %vm4140
    %v4142 = vsel %vm4141, %v4133, %v4138
    %v4143 = vmul.f32 %v4109, %v4132
    %v4144 = vmul.f32 %v4110, %v4142
    %v4146 = vperm.slane %v4099, 0
    %v4148 = vmul.f32 %v4143, %v4146
    %v4149 = vmul.f32 %v4144, %v4146
    %v4151 = vperm.slane %v4100, 0
    %v4153 = vadd.f32 %v4148, %v4151
    %v4154 = vadd.f32 %v4149, %v4151
    %s4155 = scalar_lea.vmem %s33, 32
    %v4156 = vld [vmem:[%s4155] sm:$0xff]
    %v4157 = vld [vmem:[%s4155 + $0x8] sm:$0xff]
    %v4158 = vld [vmem:[%s4155 + $0x10] sm:$0xff]
    %v4159 = vld [vmem:[%s4155 + $0x18] sm:$0xff]
    %v4160 = vpack.c.bf16 %v4154, %v4153
    %v4161 = vpack.c.bf16 %v4157, %v4156
    %v4162 = vpack.c.bf16 %v4159, %v4158
    %s4163 = scalar_lea.vmem %s35, 1
    %v4164 = vld [vmem:[%s4163] sm:$0x1]
    %v4166 = vperm.slane %v4164, 0
    %v4169 = vsel %vm189, %v4160, 0
    %4171 = vmatpush.bf16.msra.mxu0 0
    %4172 = vmatpush.bf16.msra.mxu0 0
    %4173 = vmatpush.bf16.msra.mxu0 0
    %4174 = vmatpush.bf16.msra.mxu0 0
    %4175 = vmatpush.bf16.msra.mxu0 0
    %4176 = vmatpush.bf16.msra.mxu0 0
    %4177 = vmatpush.bf16.msra.mxu0 %v4162
    %4178 = vmatpush.bf16.msra.mxu0 %v4161
    %4179 = vmatmul.bf16.gmra.mxu0 %v4169
    %v4180 = vpop.f32.mrf.mxu0
    %v4181 = vadd.f32 %v4166, %v4180
    %v4182 = vpop.f32.mrf.mxu0
    %v4183 = vadd.f32 %v4166, %v4182
    %4184 = vdwg.mxu0
    %v4185 = vmul.f32 %v4181, 0.35355338
    %v4186 = vmul.f32 %v4183, 0.35355338
    %4188 = vrot.lane.b32.xlu0 %v4181, 96
    %v4189 = vpop.permute.xlu0 %4188
    %4191 = vxpose.xlu0.b32.start [1/16] %v4189, 128
    %4192 = vxpose.xlu0.b32.cont [2/16] 0.0, 128
    %4193 = vxpose.xlu0.b32.cont [3/16] 0.0, 128
    %4194 = vxpose.xlu0.b32.cont [4/16] 0.0, 128
    %4195 = vxpose.xlu0.b32.cont [5/16] 0.0, 128
    %4196 = vxpose.xlu0.b32.cont [6/16] 0.0, 128
    %4197 = vxpose.xlu0.b32.cont [7/16] 0.0, 128
    %4198 = vxpose.xlu0.b32.cont [8/16] 0.0, 128
    %4199 = vxpose.xlu0.b32.cont [9/16] 0.0, 128
    %4200 = vxpose.xlu0.b32.cont [10/16] 0.0, 128
    %4201 = vxpose.xlu0.b32.cont [11/16] 0.0, 128
    %4202 = vxpose.xlu0.b32.cont [12/16] 0.0, 128
    %4203 = vxpose.xlu0.b32.cont [13/16] 0.0, 128
    %4204 = vxpose.xlu0.b32.cont [14/16] 0.0, 128
    %4205 = vxpose.xlu0.b32.cont [15/16] 0.0, 128
    %4206 = vxpose.xlu0.b32.end [16/16] 0.0, 128
    %v4207 = vpop.trf.xlu0
    %v4208 = vpop.trf.xlu0
    %v4209 = vpop.trf.xlu0
    %v4210 = vpop.trf.xlu0
    %v4211 = vpop.trf.xlu0
    %v4212 = vpop.trf.xlu0
    %v4213 = vpop.trf.xlu0
    %v4214 = vpop.trf.xlu0
    %v4215 = vpop.trf.xlu0
    %v4216 = vpop.trf.xlu0
    %v4217 = vpop.trf.xlu0
    %v4218 = vpop.trf.xlu0
    %v4219 = vpop.trf.xlu0
    %v4220 = vpop.trf.xlu0
    %v4221 = vpop.trf.xlu0
    %v4222 = vpop.trf.xlu0
    %v4223 = vpack.c.bf16 %v4185, %v4185
    %v4224 = vpack.c.bf16 %v4207, %v4207
    %v4226 = vsel %vm248, %v4223, 0
    %v4229 = vsel %vm252, %v4224, 0
    %4231 = vmatpush.bf16.msra.mxu0 0
    %4232 = vmatpush.bf16.msra.mxu0 0
    %4233 = vmatpush.bf16.msra.mxu0 0
    %4234 = vmatpush.bf16.msra.mxu0 0
    %4235 = vmatpush.bf16.msra.mxu0 0
    %4236 = vmatpush.bf16.msra.mxu0 0
    %4237 = vmatpush.bf16.msra.mxu0 0
    %4238 = vmatpush.bf16.msra.mxu0 %v4229
    %4239 = vmatmul.bf16.gmra.mxu0 %v4226
    %v4240 = vpop.f32.mrf.mxu0
    %v4241 = vadd.f32 %v2228, %v4240
    %v4242 = vpop.f32.mrf.mxu0
    %4243 = vdwg.mxu0
    %v4244 = vsel %vm248, %v4241, -inf
    %4245 = vmax.xlane.f32.xlu0 %v4244
    %v4246 = vpop.xlane.xlu0 %4245
    %v4247 = vsub.f32 %v4241, %v4246
    %v4248 = vmul.f32 %v4247, 1.442695
    %v4249 = vpow.pop %v4248
    %v4250 = vsel %vm248, %v4249, 0.0
    %4251 = vadd.xlane.f32.xlu0 %v4250
    %v4252 = vpop.xlane.xlu0 %4251
    %v4253 = vrcp.pop %v4252
    %v4254 = vmul.f32 %v4249, %v4253
    %v4255 = vpack.c.bf16 %v4254, %v4254
    %v4256 = vpack.c.bf16 %v4181, %v4181
    %4258 = vrot.lane.b32.xlu0 %v4256, 64
    %v4259 = vpop.permute.xlu0 %4258
    %v4261 = vsel %vm248, %v4255, 0
    %v4264 = vsel %vm252, %v4259, 0
    %4266 = vmatpush.bf16.msra.mxu0 0
    %4267 = vmatpush.bf16.msra.mxu0 0
    %4268 = vmatpush.bf16.msra.mxu0 0
    %4269 = vmatpush.bf16.msra.mxu0 0
    %4270 = vmatpush.bf16.msra.mxu0 0
    %4271 = vmatpush.bf16.msra.mxu0 0
    %4272 = vmatpush.bf16.msra.mxu0 0
    %4273 = vmatpush.bf16.msra.mxu0 %v4264
    %4274 = vmatmul.bf16.gmra.mxu0 %v4261
    %v4275 = vpop.f32.mrf.mxu0
    %v4276 = vadd.f32 0.0, %v4275
    %v4277 = vpop.f32.mrf.mxu0
    %4278 = vdwg.mxu0
    %4279 = vrot.lane.b32.xlu0 %v4181, 88
    %v4280 = vpop.permute.xlu0 %4279
    %4282 = vxpose.xlu0.b32.start [1/16] %v4280, 128
    %4283 = vxpose.xlu0.b32.cont [2/16] 0.0, 128
    %4284 = vxpose.xlu0.b32.cont [3/16] 0.0, 128
    %4285 = vxpose.xlu0.b32.cont [4/16] 0.0, 128
    %4286 = vxpose.xlu0.b32.cont [5/16] 0.0, 128
    %4287 = vxpose.xlu0.b32.cont [6/16] 0.0, 128
    %4288 = vxpose.xlu0.b32.cont [7/16] 0.0, 128
    %4289 = vxpose.xlu0.b32.cont [8/16] 0.0, 128
    %4290 = vxpose.xlu0.b32.cont [9/16] 0.0, 128
    %4291 = vxpose.xlu0.b32.cont [10/16] 0.0, 128
    %4292 = vxpose.xlu0.b32.cont [11/16] 0.0, 128
    %4293 = vxpose.xlu0.b32.cont [12/16] 0.0, 128
    %4294 = vxpose.xlu0.b32.cont [13/16] 0.0, 128
    %4295 = vxpose.xlu0.b32.cont [14/16] 0.0, 128
    %4296 = vxpose.xlu0.b32.cont [15/16] 0.0, 128
    %4297 = vxpose.xlu0.b32.end [16/16] 0.0, 128
    %v4298 = vpop.trf.xlu0
    %v4299 = vpop.trf.xlu0
    %v4300 = vpop.trf.xlu0
    %v4301 = vpop.trf.xlu0
    %v4302 = vpop.trf.xlu0
    %v4303 = vpop.trf.xlu0
    %v4304 = vpop.trf.xlu0
    %v4305 = vpop.trf.xlu0
    %v4306 = vpop.trf.xlu0
    %v4307 = vpop.trf.xlu0
    %v4308 = vpop.trf.xlu0
    %v4309 = vpop.trf.xlu0
    %v4310 = vpop.trf.xlu0
    %v4311 = vpop.trf.xlu0
    %v4312 = vpop.trf.xlu0
    %v4313 = vpop.trf.xlu0
    %v4314 = vpack.c.bf16 %v4298, %v4298
    %4316 = vrot.lane.b32.xlu0 %v4223, 120
    %v4317 = vpop.permute.xlu0 %4316
    %v4319 = vsel %vm248, %v4317, 0
    %v4322 = vsel %vm252, %v4314, 0
    %4324 = vmatpush.bf16.msra.mxu0 0
    %4325 = vmatpush.bf16.msra.mxu0 0
    %4326 = vmatpush.bf16.msra.mxu0 0
    %4327 = vmatpush.bf16.msra.mxu0 0
    %4328 = vmatpush.bf16.msra.mxu0 0
    %4329 = vmatpush.bf16.msra.mxu0 0
    %4330 = vmatpush.bf16.msra.mxu0 0
    %4331 = vmatpush.bf16.msra.mxu0 %v4322
    %4332 = vmatmul.bf16.gmra.mxu0 %v4319
    %v4333 = vpop.f32.mrf.mxu0
    %v4334 = vadd.f32 %v2228, %v4333
    %v4335 = vpop.f32.mrf.mxu0
    %4336 = vdwg.mxu0
    %v4337 = vsel %vm248, %v4334, -inf
    %4338 = vmax.xlane.f32.xlu0 %v4337
    %v4339 = vpop.xlane.xlu0 %4338
    %v4340 = vsub.f32 %v4334, %v4339
    %v4341 = vmul.f32 %v4340, 1.442695
    %v4342 = vpow.pop %v4341
    %v4343 = vsel %vm248, %v4342, 0.0
    %4344 = vadd.xlane.f32.xlu0 %v4343
    %v4345 = vpop.xlane.xlu0 %4344
    %v4346 = vrcp.pop %v4345
    %v4347 = vmul.f32 %v4342, %v4346
    %v4348 = vpack.c.bf16 %v4347, %v4347
    %4349 = vrot.lane.b32.xlu0 %v4256, 56
    %v4350 = vpop.permute.xlu0 %4349
    %v4352 = vsel %vm248, %v4348, 0
    %v4355 = vsel %vm252, %v4350, 0
    %4357 = vmatpush.bf16.msra.mxu0 0
    %4358 = vmatpush.bf16.msra.mxu0 0
    %4359 = vmatpush.bf16.msra.mxu0 0
    %4360 = vmatpush.bf16.msra.mxu0 0
    %4361 = vmatpush.bf16.msra.mxu0 0
    %4362 = vmatpush.bf16.msra.mxu0 0
    %4363 = vmatpush.bf16.msra.mxu0 0
    %4364 = vmatpush.bf16.msra.mxu0 %v4355
    %4365 = vmatmul.bf16.gmra.mxu0 %v4352
    %v4366 = vpop.f32.mrf.mxu0
    %v4367 = vadd.f32 0.0, %v4366
    %v4368 = vpop.f32.mrf.mxu0
    %4369 = vdwg.mxu0
    %4370 = vrot.lane.b32.xlu0 %v4181, 80
    %v4371 = vpop.permute.xlu0 %4370
    %4373 = vxpose.xlu0.b32.start [1/16] %v4371, 128
    %4374 = vxpose.xlu0.b32.cont [2/16] 0.0, 128
    %4375 = vxpose.xlu0.b32.cont [3/16] 0.0, 128
    %4376 = vxpose.xlu0.b32.cont [4/16] 0.0, 128
    %4377 = vxpose.xlu0.b32.cont [5/16] 0.0, 128
    %4378 = vxpose.xlu0.b32.cont [6/16] 0.0, 128
    %4379 = vxpose.xlu0.b32.cont [7/16] 0.0, 128
    %4380 = vxpose.xlu0.b32.cont [8/16] 0.0, 128
    %4381 = vxpose.xlu0.b32.cont [9/16] 0.0, 128
    %4382 = vxpose.xlu0.b32.cont [10/16] 0.0, 128
    %4383 = vxpose.xlu0.b32.cont [11/16] 0.0, 128
    %4384 = vxpose.xlu0.b32.cont [12/16] 0.0, 128
    %4385 = vxpose.xlu0.b32.cont [13/16] 0.0, 128
    %4386 = vxpose.xlu0.b32.cont [14/16] 0.0, 128
    %4387 = vxpose.xlu0.b32.cont [15/16] 0.0, 128
    %4388 = vxpose.xlu0.b32.end [16/16] 0.0, 128
    %v4389 = vpop.trf.xlu0
    %v4390 = vpop.trf.xlu0
    %v4391 = vpop.trf.xlu0
    %v4392 = vpop.trf.xlu0
    %v4393 = vpop.trf.xlu0
    %v4394 = vpop.trf.xlu0
    %v4395 = vpop.trf.xlu0
    %v4396 = vpop.trf.xlu0
    %v4397 = vpop.trf.xlu0
    %v4398 = vpop.trf.xlu0
    %v4399 = vpop.trf.xlu0
    %v4400 = vpop.trf.xlu0
    %v4401 = vpop.trf.xlu0
    %v4402 = vpop.trf.xlu0
    %v4403 = vpop.trf.xlu0
    %v4404 = vpop.trf.xlu0
    %v4405 = vpack.c.bf16 %v4389, %v4389
    %4406 = vrot.lane.b32.xlu0 %v4223, 112
    %v4407 = vpop.permute.xlu0 %4406
    %v4409 = vsel %vm248, %v4407, 0
    %v4412 = vsel %vm252, %v4405, 0
    %4414 = vmatpush.bf16.msra.mxu0 0
    %4415 = vmatpush.bf16.msra.mxu0 0
    %4416 = vmatpush.bf16.msra.mxu0 0
    %4417 = vmatpush.bf16.msra.mxu0 0
    %4418 = vmatpush.bf16.msra.mxu0 0
    %4419 = vmatpush.bf16.msra.mxu0 0
    %4420 = vmatpush.bf16.msra.mxu0 0
    %4421 = vmatpush.bf16.msra.mxu0 %v4412
    %4422 = vmatmul.bf16.gmra.mxu0 %v4409
    %v4423 = vpop.f32.mrf.mxu0
    %v4424 = vadd.f32 %v2228, %v4423
    %v4425 = vpop.f32.mrf.mxu0
    %4426 = vdwg.mxu0
    %v4427 = vsel %vm248, %v4424, -inf
    %4428 = vmax.xlane.f32.xlu0 %v4427
    %v4429 = vpop.xlane.xlu0 %4428
    %v4430 = vsub.f32 %v4424, %v4429
    %v4431 = vmul.f32 %v4430, 1.442695
    %v4432 = vpow.pop %v4431
    %v4433 = vsel %vm248, %v4432, 0.0
    %4434 = vadd.xlane.f32.xlu0 %v4433
    %v4435 = vpop.xlane.xlu0 %4434
    %v4436 = vrcp.pop %v4435
    %v4437 = vmul.f32 %v4432, %v4436
    %v4438 = vpack.c.bf16 %v4437, %v4437
    %4439 = vrot.lane.b32.xlu0 %v4256, 48
    %v4440 = vpop.permute.xlu0 %4439
    %v4442 = vsel %vm248, %v4438, 0
    %v4445 = vsel %vm252, %v4440, 0
    %4447 = vmatpush.bf16.msra.mxu0 0
    %4448 = vmatpush.bf16.msra.mxu0 0
    %4449 = vmatpush.bf16.msra.mxu0 0
    %4450 = vmatpush.bf16.msra.mxu0 0
    %4451 = vmatpush.bf16.msra.mxu0 0
    %4452 = vmatpush.bf16.msra.mxu0 0
    %4453 = vmatpush.bf16.msra.mxu0 0
    %4454 = vmatpush.bf16.msra.mxu0 %v4445
    %4455 = vmatmul.bf16.gmra.mxu0 %v4442
    %v4456 = vpop.f32.mrf.mxu0
    %v4457 = vadd.f32 0.0, %v4456
    %v4458 = vpop.f32.mrf.mxu0
    %4459 = vdwg.mxu0
    %4460 = vrot.lane.b32.xlu0 %v4181, 72
    %v4461 = vpop.permute.xlu0 %4460
    %4463 = vxpose.xlu0.b32.start [1/16] %v4461, 128
    %4464 = vxpose.xlu0.b32.cont [2/16] 0.0, 128
    %4465 = vxpose.xlu0.b32.cont [3/16] 0.0, 128
    %4466 = vxpose.xlu0.b32.cont [4/16] 0.0, 128
    %4467 = vxpose.xlu0.b32.cont [5/16] 0.0, 128
    %4468 = vxpose.xlu0.b32.cont [6/16] 0.0, 128
    %4469 = vxpose.xlu0.b32.cont [7/16] 0.0, 128
    %4470 = vxpose.xlu0.b32.cont [8/16] 0.0, 128
    %4471 = vxpose.xlu0.b32.cont [9/16] 0.0, 128
    %4472 = vxpose.xlu0.b32.cont [10/16] 0.0, 128
    %4473 = vxpose.xlu0.b32.cont [11/16] 0.0, 128
    %4474 = vxpose.xlu0.b32.cont [12/16] 0.0, 128
    %4475 = vxpose.xlu0.b32.cont [13/16] 0.0, 128
    %4476 = vxpose.xlu0.b32.cont [14/16] 0.0, 128
    %4477 = vxpose.xlu0.b32.cont [15/16] 0.0, 128
    %4478 = vxpose.xlu0.b32.end [16/16] 0.0, 128
    %v4479 = vpop.trf.xlu0
    %v4480 = vpop.trf.xlu0
    %v4481 = vpop.trf.xlu0
    %v4482 = vpop.trf.xlu0
    %v4483 = vpop.trf.xlu0
    %v4484 = vpop.trf.xlu0
    %v4485 = vpop.trf.xlu0
    %v4486 = vpop.trf.xlu0
    %v4487 = vpop.trf.xlu0
    %v4488 = vpop.trf.xlu0
    %v4489 = vpop.trf.xlu0
    %v4490 = vpop.trf.xlu0
    %v4491 = vpop.trf.xlu0
    %v4492 = vpop.trf.xlu0
    %v4493 = vpop.trf.xlu0
    %v4494 = vpop.trf.xlu0
    %v4495 = vpack.c.bf16 %v4479, %v4479
    %4496 = vrot.lane.b32.xlu0 %v4223, 104
    %v4497 = vpop.permute.xlu0 %4496
    %v4499 = vsel %vm248, %v4497, 0
    %v4502 = vsel %vm252, %v4495, 0
    %4504 = vmatpush.bf16.msra.mxu0 0
    %4505 = vmatpush.bf16.msra.mxu0 0
    %4506 = vmatpush.bf16.msra.mxu0 0
    %4507 = vmatpush.bf16.msra.mxu0 0
    %4508 = vmatpush.bf16.msra.mxu0 0
    %4509 = vmatpush.bf16.msra.mxu0 0
    %4510 = vmatpush.bf16.msra.mxu0 0
    %4511 = vmatpush.bf16.msra.mxu0 %v4502
    %4512 = vmatmul.bf16.gmra.mxu0 %v4499
    %v4513 = vpop.f32.mrf.mxu0
    %v4514 = vadd.f32 %v2228, %v4513
    %v4515 = vpop.f32.mrf.mxu0
    %4516 = vdwg.mxu0
    %v4517 = vsel %vm248, %v4514, -inf
    %4518 = vmax.xlane.f32.xlu0 %v4517
    %v4519 = vpop.xlane.xlu0 %4518
    %v4520 = vsub.f32 %v4514, %v4519
    %v4521 = vmul.f32 %v4520, 1.442695
    %v4522 = vpow.pop %v4521
    %v4523 = vsel %vm248, %v4522, 0.0
    %4524 = vadd.xlane.f32.xlu0 %v4523
    %v4525 = vpop.xlane.xlu0 %4524
    %v4526 = vrcp.pop %v4525
    %v4527 = vmul.f32 %v4522, %v4526
    %v4528 = vpack.c.bf16 %v4527, %v4527
    %4529 = vrot.lane.b32.xlu0 %v4256, 40
    %v4530 = vpop.permute.xlu0 %4529
    %v4532 = vsel %vm248, %v4528, 0
    %v4535 = vsel %vm252, %v4530, 0
    %4537 = vmatpush.bf16.msra.mxu0 0
    %4538 = vmatpush.bf16.msra.mxu0 0
    %4539 = vmatpush.bf16.msra.mxu0 0
    %4540 = vmatpush.bf16.msra.mxu0 0
    %4541 = vmatpush.bf16.msra.mxu0 0
    %4542 = vmatpush.bf16.msra.mxu0 0
    %4543 = vmatpush.bf16.msra.mxu0 0
    %4544 = vmatpush.bf16.msra.mxu0 %v4535
    %4545 = vmatmul.bf16.gmra.mxu0 %v4532
    %v4546 = vpop.f32.mrf.mxu0
    %v4547 = vadd.f32 0.0, %v4546
    %v4548 = vpop.f32.mrf.mxu0
    %4549 = vdwg.mxu0
    %4551 = vrot.lane.b32.xlu0 %v4367, 8
    %v4552 = vpop.permute.xlu0 %4551
    %4555 = vrot.lane.b32.xlu0 %v4457, 16
    %v4556 = vpop.permute.xlu0 %4555
    %4559 = vrot.lane.b32.xlu0 %v4547, 24
    %v4560 = vpop.permute.xlu0 %4559
    %v4562 = vsel %vm248, %v4276, %v4552
    %v4563 = vsel %vm588, %v4562, %v4556
    %v4564 = vsel %vm590, %v4563, %v4560
    %4566 = vrot.lane.b32.xlu0 %v4347, 8
    %v4567 = vpop.permute.xlu0 %4566
    %4570 = vrot.lane.b32.xlu0 %v4437, 16
    %v4571 = vpop.permute.xlu0 %4570
    %4574 = vrot.lane.b32.xlu0 %v4527, 24
    %v4575 = vpop.permute.xlu0 %4574
    %v4577 = vsel %vm248, %v4254, %v4567
    %v4578 = vsel %vm588, %v4577, %v4571
    %v4579 = vsel %vm590, %v4578, %v4575
    %s4580 = scalar_lea.vmem %s81, 16
    %4581 = vst.msk [vmem:[%s4580] sm:$0xff] %vm189, %v4579
    %4583 = vrot.lane.b32.xlu0 %v4183, 96
    %v4584 = vpop.permute.xlu0 %4583
    %4586 = vxpose.xlu0.b32.start [1/16] %v4584, 128
    %4587 = vxpose.xlu0.b32.cont [2/16] 0.0, 128
    %4588 = vxpose.xlu0.b32.cont [3/16] 0.0, 128
    %4589 = vxpose.xlu0.b32.cont [4/16] 0.0, 128
    %4590 = vxpose.xlu0.b32.cont [5/16] 0.0, 128
    %4591 = vxpose.xlu0.b32.cont [6/16] 0.0, 128
    %4592 = vxpose.xlu0.b32.cont [7/16] 0.0, 128
    %4593 = vxpose.xlu0.b32.cont [8/16] 0.0, 128
    %4594 = vxpose.xlu0.b32.cont [9/16] 0.0, 128
    %4595 = vxpose.xlu0.b32.cont [10/16] 0.0, 128
    %4596 = vxpose.xlu0.b32.cont [11/16] 0.0, 128
    %4597 = vxpose.xlu0.b32.cont [12/16] 0.0, 128
    %4598 = vxpose.xlu0.b32.cont [13/16] 0.0, 128
    %4599 = vxpose.xlu0.b32.cont [14/16] 0.0, 128
    %4600 = vxpose.xlu0.b32.cont [15/16] 0.0, 128
    %4601 = vxpose.xlu0.b32.end [16/16] 0.0, 128
    %v4602 = vpop.trf.xlu0
    %v4603 = vpop.trf.xlu0
    %v4604 = vpop.trf.xlu0
    %v4605 = vpop.trf.xlu0
    %v4606 = vpop.trf.xlu0
    %v4607 = vpop.trf.xlu0
    %v4608 = vpop.trf.xlu0
    %v4609 = vpop.trf.xlu0
    %v4610 = vpop.trf.xlu0
    %v4611 = vpop.trf.xlu0
    %v4612 = vpop.trf.xlu0
    %v4613 = vpop.trf.xlu0
    %v4614 = vpop.trf.xlu0
    %v4615 = vpop.trf.xlu0
    %v4616 = vpop.trf.xlu0
    %v4617 = vpop.trf.xlu0
    %v4618 = vpack.c.bf16 %v4186, %v4186
    %v4619 = vpack.c.bf16 %v4602, %v4602
    %v4621 = vsel %vm248, %v4618, 0
    %v4624 = vsel %vm252, %v4619, 0
    %4626 = vmatpush.bf16.msra.mxu0 0
    %4627 = vmatpush.bf16.msra.mxu0 0
    %4628 = vmatpush.bf16.msra.mxu0 0
    %4629 = vmatpush.bf16.msra.mxu0 0
    %4630 = vmatpush.bf16.msra.mxu0 0
    %4631 = vmatpush.bf16.msra.mxu0 0
    %4632 = vmatpush.bf16.msra.mxu0 0
    %4633 = vmatpush.bf16.msra.mxu0 %v4624
    %4634 = vmatmul.bf16.gmra.mxu0 %v4621
    %v4635 = vpop.f32.mrf.mxu0
    %v4636 = vadd.f32 %v2624, %v4635
    %v4637 = vpop.f32.mrf.mxu0
    %4638 = vdwg.mxu0
    %v4639 = vsel %vm248, %v4636, -inf
    %4640 = vmax.xlane.f32.xlu0 %v4639
    %v4641 = vpop.xlane.xlu0 %4640
    %v4642 = vsub.f32 %v4636, %v4641
    %v4643 = vmul.f32 %v4642, 1.442695
    %v4644 = vpow.pop %v4643
    %v4645 = vsel %vm248, %v4644, 0.0
    %4646 = vadd.xlane.f32.xlu0 %v4645
    %v4647 = vpop.xlane.xlu0 %4646
    %v4648 = vrcp.pop %v4647
    %v4649 = vmul.f32 %v4644, %v4648
    %v4650 = vpack.c.bf16 %v4649, %v4649
    %v4651 = vpack.c.bf16 %v4183, %v4183
    %4653 = vrot.lane.b32.xlu0 %v4651, 64
    %v4654 = vpop.permute.xlu0 %4653
    %v4656 = vsel %vm248, %v4650, 0
    %v4659 = vsel %vm252, %v4654, 0
    %4661 = vmatpush.bf16.msra.mxu0 0
    %4662 = vmatpush.bf16.msra.mxu0 0
    %4663 = vmatpush.bf16.msra.mxu0 0
    %4664 = vmatpush.bf16.msra.mxu0 0
    %4665 = vmatpush.bf16.msra.mxu0 0
    %4666 = vmatpush.bf16.msra.mxu0 0
    %4667 = vmatpush.bf16.msra.mxu0 0
    %4668 = vmatpush.bf16.msra.mxu0 %v4659
    %4669 = vmatmul.bf16.gmra.mxu0 %v4656
    %v4670 = vpop.f32.mrf.mxu0
    %v4671 = vadd.f32 0.0, %v4670
    %v4672 = vpop.f32.mrf.mxu0
    %4673 = vdwg.mxu0
    %4674 = vrot.lane.b32.xlu0 %v4183, 88
    %v4675 = vpop.permute.xlu0 %4674
    %4677 = vxpose.xlu0.b32.start [1/16] %v4675, 128
    %4678 = vxpose.xlu0.b32.cont [2/16] 0.0, 128
    %4679 = vxpose.xlu0.b32.cont [3/16] 0.0, 128
    %4680 = vxpose.xlu0.b32.cont [4/16] 0.0, 128
    %4681 = vxpose.xlu0.b32.cont [5/16] 0.0, 128
    %4682 = vxpose.xlu0.b32.cont [6/16] 0.0, 128
    %4683 = vxpose.xlu0.b32.cont [7/16] 0.0, 128
    %4684 = vxpose.xlu0.b32.cont [8/16] 0.0, 128
    %4685 = vxpose.xlu0.b32.cont [9/16] 0.0, 128
    %4686 = vxpose.xlu0.b32.cont [10/16] 0.0, 128
    %4687 = vxpose.xlu0.b32.cont [11/16] 0.0, 128
    %4688 = vxpose.xlu0.b32.cont [12/16] 0.0, 128
    %4689 = vxpose.xlu0.b32.cont [13/16] 0.0, 128
    %4690 = vxpose.xlu0.b32.cont [14/16] 0.0, 128
    %4691 = vxpose.xlu0.b32.cont [15/16] 0.0, 128
    %4692 = vxpose.xlu0.b32.end [16/16] 0.0, 128
    %v4693 = vpop.trf.xlu0
    %v4694 = vpop.trf.xlu0
    %v4695 = vpop.trf.xlu0
    %v4696 = vpop.trf.xlu0
    %v4697 = vpop.trf.xlu0
    %v4698 = vpop.trf.xlu0
    %v4699 = vpop.trf.xlu0
    %v4700 = vpop.trf.xlu0
    %v4701 = vpop.trf.xlu0
    %v4702 = vpop.trf.xlu0
    %v4703 = vpop.trf.xlu0
    %v4704 = vpop.trf.xlu0
    %v4705 = vpop.trf.xlu0
    %v4706 = vpop.trf.xlu0
    %v4707 = vpop.trf.xlu0
    %v4708 = vpop.trf.xlu0
    %v4709 = vpack.c.bf16 %v4693, %v4693
    %4711 = vrot.lane.b32.xlu0 %v4618, 120
    %v4712 = vpop.permute.xlu0 %4711
    %v4714 = vsel %vm248, %v4712, 0
    %v4717 = vsel %vm252, %v4709, 0
    %4719 = vmatpush.bf16.msra.mxu0 0
    %4720 = vmatpush.bf16.msra.mxu0 0
    %4721 = vmatpush.bf16.msra.mxu0 0
    %4722 = vmatpush.bf16.msra.mxu0 0
    %4723 = vmatpush.bf16.msra.mxu0 0
    %4724 = vmatpush.bf16.msra.mxu0 0
    %4725 = vmatpush.bf16.msra.mxu0 0
    %4726 = vmatpush.bf16.msra.mxu0 %v4717
    %4727 = vmatmul.bf16.gmra.mxu0 %v4714
    %v4728 = vpop.f32.mrf.mxu0
    %v4729 = vadd.f32 %v2624, %v4728
    %v4730 = vpop.f32.mrf.mxu0
    %4731 = vdwg.mxu0
    %v4732 = vsel %vm248, %v4729, -inf
    %4733 = vmax.xlane.f32.xlu0 %v4732
    %v4734 = vpop.xlane.xlu0 %4733
    %v4735 = vsub.f32 %v4729, %v4734
    %v4736 = vmul.f32 %v4735, 1.442695
    %v4737 = vpow.pop %v4736
    %v4738 = vsel %vm248, %v4737, 0.0
    %4739 = vadd.xlane.f32.xlu0 %v4738
    %v4740 = vpop.xlane.xlu0 %4739
    %v4741 = vrcp.pop %v4740
    %v4742 = vmul.f32 %v4737, %v4741
    %v4743 = vpack.c.bf16 %v4742, %v4742
    %4744 = vrot.lane.b32.xlu0 %v4651, 56
    %v4745 = vpop.permute.xlu0 %4744
    %v4747 = vsel %vm248, %v4743, 0
    %v4750 = vsel %vm252, %v4745, 0
    %4752 = vmatpush.bf16.msra.mxu0 0
    %4753 = vmatpush.bf16.msra.mxu0 0
    %4754 = vmatpush.bf16.msra.mxu0 0
    %4755 = vmatpush.bf16.msra.mxu0 0
    %4756 = vmatpush.bf16.msra.mxu0 0
    %4757 = vmatpush.bf16.msra.mxu0 0
    %4758 = vmatpush.bf16.msra.mxu0 0
    %4759 = vmatpush.bf16.msra.mxu0 %v4750
    %4760 = vmatmul.bf16.gmra.mxu0 %v4747
    %v4761 = vpop.f32.mrf.mxu0
    %v4762 = vadd.f32 0.0, %v4761
    %v4763 = vpop.f32.mrf.mxu0
    %4764 = vdwg.mxu0
    %4765 = vrot.lane.b32.xlu0 %v4183, 80
    %v4766 = vpop.permute.xlu0 %4765
    %4768 = vxpose.xlu0.b32.start [1/16] %v4766, 128
    %4769 = vxpose.xlu0.b32.cont [2/16] 0.0, 128
    %4770 = vxpose.xlu0.b32.cont [3/16] 0.0, 128
    %4771 = vxpose.xlu0.b32.cont [4/16] 0.0, 128
    %4772 = vxpose.xlu0.b32.cont [5/16] 0.0, 128
    %4773 = vxpose.xlu0.b32.cont [6/16] 0.0, 128
    %4774 = vxpose.xlu0.b32.cont [7/16] 0.0, 128
    %4775 = vxpose.xlu0.b32.cont [8/16] 0.0, 128
    %4776 = vxpose.xlu0.b32.cont [9/16] 0.0, 128
    %4777 = vxpose.xlu0.b32.cont [10/16] 0.0, 128
    %4778 = vxpose.xlu0.b32.cont [11/16] 0.0, 128
    %4779 = vxpose.xlu0.b32.cont [12/16] 0.0, 128
    %4780 = vxpose.xlu0.b32.cont [13/16] 0.0, 128
    %4781 = vxpose.xlu0.b32.cont [14/16] 0.0, 128
    %4782 = vxpose.xlu0.b32.cont [15/16] 0.0, 128
    %4783 = vxpose.xlu0.b32.end [16/16] 0.0, 128
    %v4784 = vpop.trf.xlu0
    %v4785 = vpop.trf.xlu0
    %v4786 = vpop.trf.xlu0
    %v4787 = vpop.trf.xlu0
    %v4788 = vpop.trf.xlu0
    %v4789 = vpop.trf.xlu0
    %v4790 = vpop.trf.xlu0
    %v4791 = vpop.trf.xlu0
    %v4792 = vpop.trf.xlu0
    %v4793 = vpop.trf.xlu0
    %v4794 = vpop.trf.xlu0
    %v4795 = vpop.trf.xlu0
    %v4796 = vpop.trf.xlu0
    %v4797 = vpop.trf.xlu0
    %v4798 = vpop.trf.xlu0
    %v4799 = vpop.trf.xlu0
    %v4800 = vpack.c.bf16 %v4784, %v4784
    %4801 = vrot.lane.b32.xlu0 %v4618, 112
    %v4802 = vpop.permute.xlu0 %4801
    %v4804 = vsel %vm248, %v4802, 0
    %v4807 = vsel %vm252, %v4800, 0
    %4809 = vmatpush.bf16.msra.mxu0 0
    %4810 = vmatpush.bf16.msra.mxu0 0
    %4811 = vmatpush.bf16.msra.mxu0 0
    %4812 = vmatpush.bf16.msra.mxu0 0
    %4813 = vmatpush.bf16.msra.mxu0 0
    %4814 = vmatpush.bf16.msra.mxu0 0
    %4815 = vmatpush.bf16.msra.mxu0 0
    %4816 = vmatpush.bf16.msra.mxu0 %v4807
    %4817 = vmatmul.bf16.gmra.mxu0 %v4804
    %v4818 = vpop.f32.mrf.mxu0
    %v4819 = vadd.f32 %v2624, %v4818
    %v4820 = vpop.f32.mrf.mxu0
    %4821 = vdwg.mxu0
    %v4822 = vsel %vm248, %v4819, -inf
    %4823 = vmax.xlane.f32.xlu0 %v4822
    %v4824 = vpop.xlane.xlu0 %4823
    %v4825 = vsub.f32 %v4819, %v4824
    %v4826 = vmul.f32 %v4825, 1.442695
    %v4827 = vpow.pop %v4826
    %v4828 = vsel %vm248, %v4827, 0.0
    %4829 = vadd.xlane.f32.xlu0 %v4828
    %v4830 = vpop.xlane.xlu0 %4829
    %v4831 = vrcp.pop %v4830
    %v4832 = vmul.f32 %v4827, %v4831
    %v4833 = vpack.c.bf16 %v4832, %v4832
    %4834 = vrot.lane.b32.xlu0 %v4651, 48
    %v4835 = vpop.permute.xlu0 %4834
    %v4837 = vsel %vm248, %v4833, 0
    %v4840 = vsel %vm252, %v4835, 0
    %4842 = vmatpush.bf16.msra.mxu0 0
    %4843 = vmatpush.bf16.msra.mxu0 0
    %4844 = vmatpush.bf16.msra.mxu0 0
    %4845 = vmatpush.bf16.msra.mxu0 0
    %4846 = vmatpush.bf16.msra.mxu0 0
    %4847 = vmatpush.bf16.msra.mxu0 0
    %4848 = vmatpush.bf16.msra.mxu0 0
    %4849 = vmatpush.bf16.msra.mxu0 %v4840
    %4850 = vmatmul.bf16.gmra.mxu0 %v4837
    %v4851 = vpop.f32.mrf.mxu0
    %v4852 = vadd.f32 0.0, %v4851
    %v4853 = vpop.f32.mrf.mxu0
    %4854 = vdwg.mxu0
    %4855 = vrot.lane.b32.xlu0 %v4183, 72
    %v4856 = vpop.permute.xlu0 %4855
    %4858 = vxpose.xlu0.b32.start [1/16] %v4856, 128
    %4859 = vxpose.xlu0.b32.cont [2/16] 0.0, 128
    %4860 = vxpose.xlu0.b32.cont [3/16] 0.0, 128
    %4861 = vxpose.xlu0.b32.cont [4/16] 0.0, 128
    %4862 = vxpose.xlu0.b32.cont [5/16] 0.0, 128
    %4863 = vxpose.xlu0.b32.cont [6/16] 0.0, 128
    %4864 = vxpose.xlu0.b32.cont [7/16] 0.0, 128
    %4865 = vxpose.xlu0.b32.cont [8/16] 0.0, 128
    %4866 = vxpose.xlu0.b32.cont [9/16] 0.0, 128
    %4867 = vxpose.xlu0.b32.cont [10/16] 0.0, 128
    %4868 = vxpose.xlu0.b32.cont [11/16] 0.0, 128
    %4869 = vxpose.xlu0.b32.cont [12/16] 0.0, 128
    %4870 = vxpose.xlu0.b32.cont [13/16] 0.0, 128
    %4871 = vxpose.xlu0.b32.cont [14/16] 0.0, 128
    %4872 = vxpose.xlu0.b32.cont [15/16] 0.0, 128
    %4873 = vxpose.xlu0.b32.end [16/16] 0.0, 128
    %v4874 = vpop.trf.xlu0
    %v4875 = vpop.trf.xlu0
    %v4876 = vpop.trf.xlu0
    %v4877 = vpop.trf.xlu0
    %v4878 = vpop.trf.xlu0
    %v4879 = vpop.trf.xlu0
    %v4880 = vpop.trf.xlu0
    %v4881 = vpop.trf.xlu0
    %v4882 = vpop.trf.xlu0
    %v4883 = vpop.trf.xlu0
    %v4884 = vpop.trf.xlu0
    %v4885 = vpop.trf.xlu0
    %v4886 = vpop.trf.xlu0
    %v4887 = vpop.trf.xlu0
    %v4888 = vpop.trf.xlu0
    %v4889 = vpop.trf.xlu0
    %v4890 = vpack.c.bf16 %v4874, %v4874
    %4891 = vrot.lane.b32.xlu0 %v4618, 104
    %v4892 = vpop.permute.xlu0 %4891
    %v4894 = vsel %vm248, %v4892, 0
    %v4897 = vsel %vm252, %v4890, 0
    %4899 = vmatpush.bf16.msra.mxu0 0
    %4900 = vmatpush.bf16.msra.mxu0 0
    %4901 = vmatpush.bf16.msra.mxu0 0
    %4902 = vmatpush.bf16.msra.mxu0 0
    %4903 = vmatpush.bf16.msra.mxu0 0
    %4904 = vmatpush.bf16.msra.mxu0 0
    %4905 = vmatpush.bf16.msra.mxu0 0
    %4906 = vmatpush.bf16.msra.mxu0 %v4897
    %4907 = vmatmul.bf16.gmra.mxu0 %v4894
    %v4908 = vpop.f32.mrf.mxu0
    %v4909 = vadd.f32 %v2624, %v4908
    %v4910 = vpop.f32.mrf.mxu0
    %4911 = vdwg.mxu0
    %v4912 = vsel %vm248, %v4909, -inf
    %4913 = vmax.xlane.f32.xlu0 %v4912
    %v4914 = vpop.xlane.xlu0 %4913
    %v4915 = vsub.f32 %v4909, %v4914
    %v4916 = vmul.f32 %v4915, 1.442695
    %v4917 = vpow.pop %v4916
    %v4918 = vsel %vm248, %v4917, 0.0
    %4919 = vadd.xlane.f32.xlu0 %v4918
    %v4920 = vpop.xlane.xlu0 %4919
    %v4921 = vrcp.pop %v4920
    %v4922 = vmul.f32 %v4917, %v4921
    %v4923 = vpack.c.bf16 %v4922, %v4922
    %4924 = vrot.lane.b32.xlu0 %v4651, 40
    %v4925 = vpop.permute.xlu0 %4924
    %v4927 = vsel %vm248, %v4923, 0
    %v4930 = vsel %vm252, %v4925, 0
    %4932 = vmatpush.bf16.msra.mxu0 0
    %4933 = vmatpush.bf16.msra.mxu0 0
    %4934 = vmatpush.bf16.msra.mxu0 0
    %4935 = vmatpush.bf16.msra.mxu0 0
    %4936 = vmatpush.bf16.msra.mxu0 0
    %4937 = vmatpush.bf16.msra.mxu0 0
    %4938 = vmatpush.bf16.msra.mxu0 0
    %4939 = vmatpush.bf16.msra.mxu0 %v4930
    %4940 = vmatmul.bf16.gmra.mxu0 %v4927
    %v4941 = vpop.f32.mrf.mxu0
    %v4942 = vadd.f32 0.0, %v4941
    %v4943 = vpop.f32.mrf.mxu0
    %4944 = vdwg.mxu0
    %4946 = vrot.lane.b32.xlu0 %v4762, 8
    %v4947 = vpop.permute.xlu0 %4946
    %4950 = vrot.lane.b32.xlu0 %v4852, 16
    %v4951 = vpop.permute.xlu0 %4950
    %4954 = vrot.lane.b32.xlu0 %v4942, 24
    %v4955 = vpop.permute.xlu0 %4954
    %v4957 = vsel %vm248, %v4671, %v4947
    %v4958 = vsel %vm588, %v4957, %v4951
    %v4959 = vsel %vm590, %v4958, %v4955
    %4961 = vrot.lane.b32.xlu0 %v4742, 8
    %v4962 = vpop.permute.xlu0 %4961
    %4965 = vrot.lane.b32.xlu0 %v4832, 16
    %v4966 = vpop.permute.xlu0 %4965
    %4969 = vrot.lane.b32.xlu0 %v4922, 24
    %v4970 = vpop.permute.xlu0 %4969
    %v4972 = vsel %vm248, %v4649, %v4962
    %v4973 = vsel %vm588, %v4972, %v4966
    %v4974 = vsel %vm590, %v4973, %v4970
    %s4975 = scalar_lea.vmem %s81, 24
    %4976 = vst.msk [vmem:[%s4975] sm:$0xff] %vm189, %v4974
    %s4977 = scalar_lea.vmem %s37, 32
    %v4978 = vld [vmem:[%s4977] sm:$0xff]
    %v4979 = vld [vmem:[%s4977 + $0x8] sm:$0xff]
    %v4980 = vld [vmem:[%s4977 + $0x10] sm:$0xff]
    %v4981 = vld [vmem:[%s4977 + $0x18] sm:$0xff]
    %v4982 = vpack.c.bf16 %v4959, %v4564
    %v4983 = vpack.c.bf16 %v4979, %v4978
    %v4984 = vpack.c.bf16 %v4981, %v4980
    %s4985 = scalar_lea.vmem %s39, 1
    %v4986 = vld [vmem:[%s4985] sm:$0x1]
    %v4988 = vperm.slane %v4986, 0
    %v4991 = vsel %vm189, %v4982, 0
    %4993 = vmatpush.bf16.msra.mxu0 0
    %4994 = vmatpush.bf16.msra.mxu0 0
    %4995 = vmatpush.bf16.msra.mxu0 0
    %4996 = vmatpush.bf16.msra.mxu0 0
    %4997 = vmatpush.bf16.msra.mxu0 0
    %4998 = vmatpush.bf16.msra.mxu0 0
    %4999 = vmatpush.bf16.msra.mxu0 %v4984
    %5000 = vmatpush.bf16.msra.mxu0 %v4983
    %5001 = vmatmul.bf16.gmra.mxu0 %v4991
    %v5002 = vpop.f32.mrf.mxu0
    %v5003 = vadd.f32 %v4988, %v5002
    %v5004 = vpop.f32.mrf.mxu0
    %v5005 = vadd.f32 %v4988, %v5004
    %5006 = vdwg.mxu0
    %v5007 = vadd.f32 %v4153, %v5003
    %v5008 = vadd.f32 %v4154, %v5005
    %s5009 = scalar_lea.vmem %s61, 1
    %v5010 = vld [vmem:[%s5009] sm:$0x1]
    %s5011 = scalar_lea.vmem %s63, 1
    %v5012 = vld [vmem:[%s5011] sm:$0x1]
    %v5013 = vsel %vm189, %v5007, 0.0
    %5014 = vadd.xlane.f32.xlu0 %v5013
    %v5015 = vpop.xlane.xlu0 %5014
    %v5016 = vsel %vm189, %v5008, 0.0
    %5017 = vadd.xlane.f32.xlu0 %v5016
    %v5018 = vpop.xlane.xlu0 %5017
    %v5019 = vmul.f32 %v5015, %v1015
    %v5020 = vmul.f32 %v5018, %v1015
    %v5021 = vsub.f32 %v5007, %v5019
    %v5022 = vsub.f32 %v5008, %v5020
    %v5023 = vmul.f32 %v5021, %v5021
    %v5024 = vmul.f32 %v5022, %v5022
    %v5025 = vsel %vm189, %v5023, 0.0
    %5026 = vadd.xlane.f32.xlu0 %v5025
    %v5027 = vpop.xlane.xlu0 %5026
    %v5028 = vsel %vm189, %v5024, 0.0
    %5029 = vadd.xlane.f32.xlu0 %v5028
    %v5030 = vpop.xlane.xlu0 %5029
    %v5031 = vmul.f32 %v5027, %v1015
    %v5032 = vmul.f32 %v5030, %v1015
    %v5033 = vadd.f32 %v5031, 1e-05
    %v5034 = vadd.f32 %v5032, 1e-05
    %v5035 = vrsqrt.pop %v5033
    %v5036 = vmul.f32 %v5035, %v5033
    %v5037 = vmul.f32 %v5036, %v5035
    %v5038 = vmul.f32 0.5, %v5037
    %v5039 = vsub.f32 1.5, %v5038
    %v5040 = vmul.f32 %v5035, %v5039
    %vm5041 = vweird.f32 %v5033
    %vm5042 = vweird.f32 %v5035
    %vm5043 = vmor %vm5041, %vm5042
    %v5044 = vsel %vm5043, %v5035, %v5040
    %v5045 = vrsqrt.pop %v5034
    %v5046 = vmul.f32 %v5045, %v5034
    %v5047 = vmul.f32 %v5046, %v5045
    %v5048 = vmul.f32 0.5, %v5047
    %v5049 = vsub.f32 1.5, %v5048
    %v5050 = vmul.f32 %v5045, %v5049
    %vm5051 = vweird.f32 %v5034
    %vm5052 = vweird.f32 %v5045
    %vm5053 = vmor %vm5051, %vm5052
    %v5054 = vsel %vm5053, %v5045, %v5050
    %v5055 = vmul.f32 %v5021, %v5044
    %v5056 = vmul.f32 %v5022, %v5054
    %v5058 = vperm.slane %v5010, 0
    %v5060 = vmul.f32 %v5055, %v5058
    %v5061 = vmul.f32 %v5056, %v5058
    %v5063 = vperm.slane %v5012, 0
    %v5065 = vadd.f32 %v5060, %v5063
    %v5066 = vadd.f32 %v5061, %v5063
    %s5067 = scalar_lea.vmem %s41, 32
    %v5068 = vld [vmem:[%s5067] sm:$0xff]
    %v5069 = vld [vmem:[%s5067 + $0x8] sm:$0xff]
    %v5070 = vld [vmem:[%s5067 + $0x10] sm:$0xff]
    %v5071 = vld [vmem:[%s5067 + $0x18] sm:$0xff]
    %v5072 = vpack.c.bf16 %v5066, %v5065
    %v5073 = vpack.c.bf16 %v5069, %v5068
    %v5074 = vpack.c.bf16 %v5071, %v5070
    %s5075 = scalar_lea.vmem %s43, 1
    %v5076 = vld [vmem:[%s5075] sm:$0x1]
    %v5078 = vperm.slane %v5076, 0
    %v5081 = vsel %vm189, %v5072, 0
    %5083 = vmatpush.bf16.msra.mxu0 0
    %5084 = vmatpush.bf16.msra.mxu0 0
    %5085 = vmatpush.bf16.msra.mxu0 0
    %5086 = vmatpush.bf16.msra.mxu0 0
    %5087 = vmatpush.bf16.msra.mxu0 0
    %5088 = vmatpush.bf16.msra.mxu0 0
    %5089 = vmatpush.bf16.msra.mxu0 %v5074
    %5090 = vmatpush.bf16.msra.mxu0 %v5073
    %5091 = vmatmul.bf16.gmra.mxu0 %v5081
    %v5092 = vpop.f32.mrf.mxu0
    %v5093 = vadd.f32 %v5078, %v5092
    %v5094 = vpop.f32.mrf.mxu0
    %v5095 = vadd.f32 %v5078, %v5094
    %5096 = vdwg.mxu0
    %v5097 = vmul.f32 %v5093, 0.35355338
    %v5098 = vmul.f32 %v5095, 0.35355338
    %s5099 = scalar_lea.vmem %s45, 32
    %v5100 = vld [vmem:[%s5099] sm:$0xff]
    %v5101 = vld [vmem:[%s5099 + $0x8] sm:$0xff]
    %v5102 = vld [vmem:[%s5099 + $0x10] sm:$0xff]
    %v5103 = vld [vmem:[%s5099 + $0x18] sm:$0xff]
    %v5104 = vpack.c.bf16 %v5101, %v5100
    %v5105 = vpack.c.bf16 %v5103, %v5102
    %s5106 = scalar_lea.vmem %s47, 1
    %v5107 = vld [vmem:[%s5106] sm:$0x1]
    %v5109 = vperm.slane %v5107, 0
    %5111 = vmatpush.bf16.msra.mxu0 0
    %5112 = vmatpush.bf16.msra.mxu0 0
    %5113 = vmatpush.bf16.msra.mxu0 0
    %5114 = vmatpush.bf16.msra.mxu0 0
    %5115 = vmatpush.bf16.msra.mxu0 0
    %5116 = vmatpush.bf16.msra.mxu0 0
    %5117 = vmatpush.bf16.msra.mxu0 %v5105
    %5118 = vmatpush.bf16.msra.mxu0 %v5104
    %5119 = vmatmul.bf16.gmra.mxu0 %v3148
    %v5120 = vpop.f32.mrf.mxu0
    %v5121 = vadd.f32 %v5109, %v5120
    %v5122 = vpop.f32.mrf.mxu0
    %v5123 = vadd.f32 %v5109, %v5122
    %5124 = vdwg.mxu0
    %5125 = vxpose.xlu0.b32.start [1/16] %v5121, 128
    %5126 = vxpose.xlu0.b32.cont [2/16] 0.0, 128
    %5127 = vxpose.xlu0.b32.cont [3/16] 0.0, 128
    %5128 = vxpose.xlu0.b32.cont [4/16] 0.0, 128
    %5129 = vxpose.xlu0.b32.cont [5/16] 0.0, 128
    %5130 = vxpose.xlu0.b32.cont [6/16] 0.0, 128
    %5131 = vxpose.xlu0.b32.cont [7/16] 0.0, 128
    %5132 = vxpose.xlu0.b32.cont [8/16] 0.0, 128
    %5133 = vxpose.xlu0.b32.cont [9/16] 0.0, 128
    %5134 = vxpose.xlu0.b32.cont [10/16] 0.0, 128
    %5135 = vxpose.xlu0.b32.cont [11/16] 0.0, 128
    %5136 = vxpose.xlu0.b32.cont [12/16] 0.0, 128
    %5137 = vxpose.xlu0.b32.cont [13/16] 0.0, 128
    %5138 = vxpose.xlu0.b32.cont [14/16] 0.0, 128
    %5139 = vxpose.xlu0.b32.cont [15/16] 0.0, 128
    %5140 = vxpose.xlu0.b32.end [16/16] 0.0, 128
    %v5141 = vpop.trf.xlu0
    %v5142 = vpop.trf.xlu0
    %v5143 = vpop.trf.xlu0
    %v5144 = vpop.trf.xlu0
    %v5145 = vpop.trf.xlu0
    %v5146 = vpop.trf.xlu0
    %v5147 = vpop.trf.xlu0
    %v5148 = vpop.trf.xlu0
    %v5149 = vpop.trf.xlu0
    %v5150 = vpop.trf.xlu0
    %v5151 = vpop.trf.xlu0
    %v5152 = vpop.trf.xlu0
    %v5153 = vpop.trf.xlu0
    %v5154 = vpop.trf.xlu0
    %v5155 = vpop.trf.xlu0
    %v5156 = vpop.trf.xlu0
    %v5157 = vpack.c.bf16 %v5097, %v5097
    %v5158 = vpack.c.bf16 %v5141, %v5141
    %v5160 = vsel %vm248, %v5157, 0
    %v5163 = vsel %vm252, %v5158, 0
    %5165 = vmatpush.bf16.msra.mxu0 0
    %5166 = vmatpush.bf16.msra.mxu0 0
    %5167 = vmatpush.bf16.msra.mxu0 0
    %5168 = vmatpush.bf16.msra.mxu0 0
    %5169 = vmatpush.bf16.msra.mxu0 0
    %5170 = vmatpush.bf16.msra.mxu0 0
    %5171 = vmatpush.bf16.msra.mxu0 0
    %5172 = vmatpush.bf16.msra.mxu0 %v5163
    %5173 = vmatmul.bf16.gmra.mxu0 %v5160
    %v5174 = vpop.f32.mrf.mxu0
    %v5175 = vadd.f32 %v247, %v5174
    %v5176 = vpop.f32.mrf.mxu0
    %5177 = vdwg.mxu0
    %v5178 = vsel %vm248, %v5175, -inf
    %5179 = vmax.xlane.f32.xlu0 %v5178
    %v5180 = vpop.xlane.xlu0 %5179
    %v5181 = vsub.f32 %v5175, %v5180
    %v5182 = vmul.f32 %v5181, 1.442695
    %v5183 = vpow.pop %v5182
    %v5184 = vsel %vm248, %v5183, 0.0
    %5185 = vadd.xlane.f32.xlu0 %v5184
    %v5186 = vpop.xlane.xlu0 %5185
    %v5187 = vrcp.pop %v5186
    %v5188 = vmul.f32 %v5183, %v5187
    %v5189 = vpack.c.bf16 %v5188, %v5188
    %v5190 = vpack.c.bf16 %v5121, %v5121
    %5192 = vrot.lane.b32.xlu0 %v5190, 96
    %v5193 = vpop.permute.xlu0 %5192
    %v5195 = vsel %vm248, %v5189, 0
    %v5198 = vsel %vm252, %v5193, 0
    %5200 = vmatpush.bf16.msra.mxu0 0
    %5201 = vmatpush.bf16.msra.mxu0 0
    %5202 = vmatpush.bf16.msra.mxu0 0
    %5203 = vmatpush.bf16.msra.mxu0 0
    %5204 = vmatpush.bf16.msra.mxu0 0
    %5205 = vmatpush.bf16.msra.mxu0 0
    %5206 = vmatpush.bf16.msra.mxu0 0
    %5207 = vmatpush.bf16.msra.mxu0 %v5198
    %5208 = vmatmul.bf16.gmra.mxu0 %v5195
    %v5209 = vpop.f32.mrf.mxu0
    %v5210 = vadd.f32 0.0, %v5209
    %v5211 = vpop.f32.mrf.mxu0
    %5212 = vdwg.mxu0
    %5214 = vrot.lane.b32.xlu0 %v5121, 120
    %v5215 = vpop.permute.xlu0 %5214
    %5217 = vxpose.xlu0.b32.start [1/16] %v5215, 128
    %5218 = vxpose.xlu0.b32.cont [2/16] 0.0, 128
    %5219 = vxpose.xlu0.b32.cont [3/16] 0.0, 128
    %5220 = vxpose.xlu0.b32.cont [4/16] 0.0, 128
    %5221 = vxpose.xlu0.b32.cont [5/16] 0.0, 128
    %5222 = vxpose.xlu0.b32.cont [6/16] 0.0, 128
    %5223 = vxpose.xlu0.b32.cont [7/16] 0.0, 128
    %5224 = vxpose.xlu0.b32.cont [8/16] 0.0, 128
    %5225 = vxpose.xlu0.b32.cont [9/16] 0.0, 128
    %5226 = vxpose.xlu0.b32.cont [10/16] 0.0, 128
    %5227 = vxpose.xlu0.b32.cont [11/16] 0.0, 128
    %5228 = vxpose.xlu0.b32.cont [12/16] 0.0, 128
    %5229 = vxpose.xlu0.b32.cont [13/16] 0.0, 128
    %5230 = vxpose.xlu0.b32.cont [14/16] 0.0, 128
    %5231 = vxpose.xlu0.b32.cont [15/16] 0.0, 128
    %5232 = vxpose.xlu0.b32.end [16/16] 0.0, 128
    %v5233 = vpop.trf.xlu0
    %v5234 = vpop.trf.xlu0
    %v5235 = vpop.trf.xlu0
    %v5236 = vpop.trf.xlu0
    %v5237 = vpop.trf.xlu0
    %v5238 = vpop.trf.xlu0
    %v5239 = vpop.trf.xlu0
    %v5240 = vpop.trf.xlu0
    %v5241 = vpop.trf.xlu0
    %v5242 = vpop.trf.xlu0
    %v5243 = vpop.trf.xlu0
    %v5244 = vpop.trf.xlu0
    %v5245 = vpop.trf.xlu0
    %v5246 = vpop.trf.xlu0
    %v5247 = vpop.trf.xlu0
    %v5248 = vpop.trf.xlu0
    %v5249 = vpack.c.bf16 %v5233, %v5233
    %5251 = vrot.lane.b32.xlu0 %v5157, 120
    %v5252 = vpop.permute.xlu0 %5251
    %v5254 = vsel %vm248, %v5252, 0
    %v5257 = vsel %vm252, %v5249, 0
    %5259 = vmatpush.bf16.msra.mxu0 0
    %5260 = vmatpush.bf16.msra.mxu0 0
    %5261 = vmatpush.bf16.msra.mxu0 0
    %5262 = vmatpush.bf16.msra.mxu0 0
    %5263 = vmatpush.bf16.msra.mxu0 0
    %5264 = vmatpush.bf16.msra.mxu0 0
    %5265 = vmatpush.bf16.msra.mxu0 0
    %5266 = vmatpush.bf16.msra.mxu0 %v5257
    %5267 = vmatmul.bf16.gmra.mxu0 %v5254
    %v5268 = vpop.f32.mrf.mxu0
    %v5269 = vadd.f32 %v247, %v5268
    %v5270 = vpop.f32.mrf.mxu0
    %5271 = vdwg.mxu0
    %v5272 = vsel %vm248, %v5269, -inf
    %5273 = vmax.xlane.f32.xlu0 %v5272
    %v5274 = vpop.xlane.xlu0 %5273
    %v5275 = vsub.f32 %v5269, %v5274
    %v5276 = vmul.f32 %v5275, 1.442695
    %v5277 = vpow.pop %v5276
    %v5278 = vsel %vm248, %v5277, 0.0
    %5279 = vadd.xlane.f32.xlu0 %v5278
    %v5280 = vpop.xlane.xlu0 %5279
    %v5281 = vrcp.pop %v5280
    %v5282 = vmul.f32 %v5277, %v5281
    %v5283 = vpack.c.bf16 %v5282, %v5282
    %5284 = vrot.lane.b32.xlu0 %v5190, 88
    %v5285 = vpop.permute.xlu0 %5284
    %v5287 = vsel %vm248, %v5283, 0
    %v5290 = vsel %vm252, %v5285, 0
    %5292 = vmatpush.bf16.msra.mxu0 0
    %5293 = vmatpush.bf16.msra.mxu0 0
    %5294 = vmatpush.bf16.msra.mxu0 0
    %5295 = vmatpush.bf16.msra.mxu0 0
    %5296 = vmatpush.bf16.msra.mxu0 0
    %5297 = vmatpush.bf16.msra.mxu0 0
    %5298 = vmatpush.bf16.msra.mxu0 0
    %5299 = vmatpush.bf16.msra.mxu0 %v5290
    %5300 = vmatmul.bf16.gmra.mxu0 %v5287
    %v5301 = vpop.f32.mrf.mxu0
    %v5302 = vadd.f32 0.0, %v5301
    %v5303 = vpop.f32.mrf.mxu0
    %5304 = vdwg.mxu0
    %5305 = vrot.lane.b32.xlu0 %v5121, 112
    %v5306 = vpop.permute.xlu0 %5305
    %5308 = vxpose.xlu0.b32.start [1/16] %v5306, 128
    %5309 = vxpose.xlu0.b32.cont [2/16] 0.0, 128
    %5310 = vxpose.xlu0.b32.cont [3/16] 0.0, 128
    %5311 = vxpose.xlu0.b32.cont [4/16] 0.0, 128
    %5312 = vxpose.xlu0.b32.cont [5/16] 0.0, 128
    %5313 = vxpose.xlu0.b32.cont [6/16] 0.0, 128
    %5314 = vxpose.xlu0.b32.cont [7/16] 0.0, 128
    %5315 = vxpose.xlu0.b32.cont [8/16] 0.0, 128
    %5316 = vxpose.xlu0.b32.cont [9/16] 0.0, 128
    %5317 = vxpose.xlu0.b32.cont [10/16] 0.0, 128
    %5318 = vxpose.xlu0.b32.cont [11/16] 0.0, 128
    %5319 = vxpose.xlu0.b32.cont [12/16] 0.0, 128
    %5320 = vxpose.xlu0.b32.cont [13/16] 0.0, 128
    %5321 = vxpose.xlu0.b32.cont [14/16] 0.0, 128
    %5322 = vxpose.xlu0.b32.cont [15/16] 0.0, 128
    %5323 = vxpose.xlu0.b32.end [16/16] 0.0, 128
    %v5324 = vpop.trf.xlu0
    %v5325 = vpop.trf.xlu0
    %v5326 = vpop.trf.xlu0
    %v5327 = vpop.trf.xlu0
    %v5328 = vpop.trf.xlu0
    %v5329 = vpop.trf.xlu0
    %v5330 = vpop.trf.xlu0
    %v5331 = vpop.trf.xlu0
    %v5332 = vpop.trf.xlu0
    %v5333 = vpop.trf.xlu0
    %v5334 = vpop.trf.xlu0
    %v5335 = vpop.trf.xlu0
    %v5336 = vpop.trf.xlu0
    %v5337 = vpop.trf.xlu0
    %v5338 = vpop.trf.xlu0
    %v5339 = vpop.trf.xlu0
    %v5340 = vpack.c.bf16 %v5324, %v5324
    %5341 = vrot.lane.b32.xlu0 %v5157, 112
    %v5342 = vpop.permute.xlu0 %5341
    %v5344 = vsel %vm248, %v5342, 0
    %v5347 = vsel %vm252, %v5340, 0
    %5349 = vmatpush.bf16.msra.mxu0 0
    %5350 = vmatpush.bf16.msra.mxu0 0
    %5351 = vmatpush.bf16.msra.mxu0 0
    %5352 = vmatpush.bf16.msra.mxu0 0
    %5353 = vmatpush.bf16.msra.mxu0 0
    %5354 = vmatpush.bf16.msra.mxu0 0
    %5355 = vmatpush.bf16.msra.mxu0 0
    %5356 = vmatpush.bf16.msra.mxu0 %v5347
    %5357 = vmatmul.bf16.gmra.mxu0 %v5344
    %v5358 = vpop.f32.mrf.mxu0
    %v5359 = vadd.f32 %v247, %v5358
    %v5360 = vpop.f32.mrf.mxu0
    %5361 = vdwg.mxu0
    %v5362 = vsel %vm248, %v5359, -inf
    %5363 = vmax.xlane.f32.xlu0 %v5362
    %v5364 = vpop.xlane.xlu0 %5363
    %v5365 = vsub.f32 %v5359, %v5364
    %v5366 = vmul.f32 %v5365, 1.442695
    %v5367 = vpow.pop %v5366
    %v5368 = vsel %vm248, %v5367, 0.0
    %5369 = vadd.xlane.f32.xlu0 %v5368
    %v5370 = vpop.xlane.xlu0 %5369
    %v5371 = vrcp.pop %v5370
    %v5372 = vmul.f32 %v5367, %v5371
    %v5373 = vpack.c.bf16 %v5372, %v5372
    %5374 = vrot.lane.b32.xlu0 %v5190, 80
    %v5375 = vpop.permute.xlu0 %5374
    %v5377 = vsel %vm248, %v5373, 0
    %v5380 = vsel %vm252, %v5375, 0
    %5382 = vmatpush.bf16.msra.mxu0 0
    %5383 = vmatpush.bf16.msra.mxu0 0
    %5384 = vmatpush.bf16.msra.mxu0 0
    %5385 = vmatpush.bf16.msra.mxu0 0
    %5386 = vmatpush.bf16.msra.mxu0 0
    %5387 = vmatpush.bf16.msra.mxu0 0
    %5388 = vmatpush.bf16.msra.mxu0 0
    %5389 = vmatpush.bf16.msra.mxu0 %v5380
    %5390 = vmatmul.bf16.gmra.mxu0 %v5377
    %v5391 = vpop.f32.mrf.mxu0
    %v5392 = vadd.f32 0.0, %v5391
    %v5393 = vpop.f32.mrf.mxu0
    %5394 = vdwg.mxu0
    %5395 = vrot.lane.b32.xlu0 %v5121, 104
    %v5396 = vpop.permute.xlu0 %5395
    %5398 = vxpose.xlu0.b32.start [1/16] %v5396, 128
    %5399 = vxpose.xlu0.b32.cont [2/16] 0.0, 128
    %5400 = vxpose.xlu0.b32.cont [3/16] 0.0, 128
    %5401 = vxpose.xlu0.b32.cont [4/16] 0.0, 128
    %5402 = vxpose.xlu0.b32.cont [5/16] 0.0, 128
    %5403 = vxpose.xlu0.b32.cont [6/16] 0.0, 128
    %5404 = vxpose.xlu0.b32.cont [7/16] 0.0, 128
    %5405 = vxpose.xlu0.b32.cont [8/16] 0.0, 128
    %5406 = vxpose.xlu0.b32.cont [9/16] 0.0, 128
    %5407 = vxpose.xlu0.b32.cont [10/16] 0.0, 128
    %5408 = vxpose.xlu0.b32.cont [11/16] 0.0, 128
    %5409 = vxpose.xlu0.b32.cont [12/16] 0.0, 128
    %5410 = vxpose.xlu0.b32.cont [13/16] 0.0, 128
    %5411 = vxpose.xlu0.b32.cont [14/16] 0.0, 128
    %5412 = vxpose.xlu0.b32.cont [15/16] 0.0, 128
    %5413 = vxpose.xlu0.b32.end [16/16] 0.0, 128
    %v5414 = vpop.trf.xlu0
    %v5415 = vpop.trf.xlu0
    %v5416 = vpop.trf.xlu0
    %v5417 = vpop.trf.xlu0
    %v5418 = vpop.trf.xlu0
    %v5419 = vpop.trf.xlu0
    %v5420 = vpop.trf.xlu0
    %v5421 = vpop.trf.xlu0
    %v5422 = vpop.trf.xlu0
    %v5423 = vpop.trf.xlu0
    %v5424 = vpop.trf.xlu0
    %v5425 = vpop.trf.xlu0
    %v5426 = vpop.trf.xlu0
    %v5427 = vpop.trf.xlu0
    %v5428 = vpop.trf.xlu0
    %v5429 = vpop.trf.xlu0
    %v5430 = vpack.c.bf16 %v5414, %v5414
    %5431 = vrot.lane.b32.xlu0 %v5157, 104
    %v5432 = vpop.permute.xlu0 %5431
    %v5434 = vsel %vm248, %v5432, 0
    %v5437 = vsel %vm252, %v5430, 0
    %5439 = vmatpush.bf16.msra.mxu0 0
    %5440 = vmatpush.bf16.msra.mxu0 0
    %5441 = vmatpush.bf16.msra.mxu0 0
    %5442 = vmatpush.bf16.msra.mxu0 0
    %5443 = vmatpush.bf16.msra.mxu0 0
    %5444 = vmatpush.bf16.msra.mxu0 0
    %5445 = vmatpush.bf16.msra.mxu0 0
    %5446 = vmatpush.bf16.msra.mxu0 %v5437
    %5447 = vmatmul.bf16.gmra.mxu0 %v5434
    %v5448 = vpop.f32.mrf.mxu0
    %v5449 = vadd.f32 %v247, %v5448
    %v5450 = vpop.f32.mrf.mxu0
    %5451 = vdwg.mxu0
    %v5452 = vsel %vm248, %v5449, -inf
    %5453 = vmax.xlane.f32.xlu0 %v5452
    %v5454 = vpop.xlane.xlu0 %5453
    %v5455 = vsub.f32 %v5449, %v5454
    %v5456 = vmul.f32 %v5455, 1.442695
    %v5457 = vpow.pop %v5456
    %v5458 = vsel %vm248, %v5457, 0.0
    %5459 = vadd.xlane.f32.xlu0 %v5458
    %v5460 = vpop.xlane.xlu0 %5459
    %v5461 = vrcp.pop %v5460
    %v5462 = vmul.f32 %v5457, %v5461
    %v5463 = vpack.c.bf16 %v5462, %v5462
    %5464 = vrot.lane.b32.xlu0 %v5190, 72
    %v5465 = vpop.permute.xlu0 %5464
    %v5467 = vsel %vm248, %v5463, 0
    %v5470 = vsel %vm252, %v5465, 0
    %5472 = vmatpush.bf16.msra.mxu0 0
    %5473 = vmatpush.bf16.msra.mxu0 0
    %5474 = vmatpush.bf16.msra.mxu0 0
    %5475 = vmatpush.bf16.msra.mxu0 0
    %5476 = vmatpush.bf16.msra.mxu0 0
    %5477 = vmatpush.bf16.msra.mxu0 0
    %5478 = vmatpush.bf16.msra.mxu0 0
    %5479 = vmatpush.bf16.msra.mxu0 %v5470
    %5480 = vmatmul.bf16.gmra.mxu0 %v5467
    %v5481 = vpop.f32.mrf.mxu0
    %v5482 = vadd.f32 0.0, %v5481
    %v5483 = vpop.f32.mrf.mxu0
    %5484 = vdwg.mxu0
    %5486 = vrot.lane.b32.xlu0 %v5302, 8
    %v5487 = vpop.permute.xlu0 %5486
    %5490 = vrot.lane.b32.xlu0 %v5392, 16
    %v5491 = vpop.permute.xlu0 %5490
    %5494 = vrot.lane.b32.xlu0 %v5482, 24
    %v5495 = vpop.permute.xlu0 %5494
    %v5497 = vsel %vm248, %v5210, %v5487
    %v5498 = vsel %vm588, %v5497, %v5491
    %v5499 = vsel %vm590, %v5498, %v5495
    %5501 = vrot.lane.b32.xlu0 %v5282, 8
    %v5502 = vpop.permute.xlu0 %5501
    %5505 = vrot.lane.b32.xlu0 %v5372, 16
    %v5506 = vpop.permute.xlu0 %5505
    %5509 = vrot.lane.b32.xlu0 %v5462, 24
    %v5510 = vpop.permute.xlu0 %5509
    %v5512 = vsel %vm248, %v5188, %v5502
    %v5513 = vsel %vm588, %v5512, %v5506
    %v5514 = vsel %vm590, %v5513, %v5510
    %s5515 = scalar_lea.vmem %s83, 16
    %5516 = vst.msk [vmem:[%s5515] sm:$0xff] %vm189, %v5514
    %5517 = vxpose.xlu0.b32.start [1/16] %v5123, 128
    %5518 = vxpose.xlu0.b32.cont [2/16] 0.0, 128
    %5519 = vxpose.xlu0.b32.cont [3/16] 0.0, 128
    %5520 = vxpose.xlu0.b32.cont [4/16] 0.0, 128
    %5521 = vxpose.xlu0.b32.cont [5/16] 0.0, 128
    %5522 = vxpose.xlu0.b32.cont [6/16] 0.0, 128
    %5523 = vxpose.xlu0.b32.cont [7/16] 0.0, 128
    %5524 = vxpose.xlu0.b32.cont [8/16] 0.0, 128
    %5525 = vxpose.xlu0.b32.cont [9/16] 0.0, 128
    %5526 = vxpose.xlu0.b32.cont [10/16] 0.0, 128
    %5527 = vxpose.xlu0.b32.cont [11/16] 0.0, 128
    %5528 = vxpose.xlu0.b32.cont [12/16] 0.0, 128
    %5529 = vxpose.xlu0.b32.cont [13/16] 0.0, 128
    %5530 = vxpose.xlu0.b32.cont [14/16] 0.0, 128
    %5531 = vxpose.xlu0.b32.cont [15/16] 0.0, 128
    %5532 = vxpose.xlu0.b32.end [16/16] 0.0, 128
    %v5533 = vpop.trf.xlu0
    %v5534 = vpop.trf.xlu0
    %v5535 = vpop.trf.xlu0
    %v5536 = vpop.trf.xlu0
    %v5537 = vpop.trf.xlu0
    %v5538 = vpop.trf.xlu0
    %v5539 = vpop.trf.xlu0
    %v5540 = vpop.trf.xlu0
    %v5541 = vpop.trf.xlu0
    %v5542 = vpop.trf.xlu0
    %v5543 = vpop.trf.xlu0
    %v5544 = vpop.trf.xlu0
    %v5545 = vpop.trf.xlu0
    %v5546 = vpop.trf.xlu0
    %v5547 = vpop.trf.xlu0
    %v5548 = vpop.trf.xlu0
    %v5549 = vpack.c.bf16 %v5098, %v5098
    %v5550 = vpack.c.bf16 %v5533, %v5533
    %v5552 = vsel %vm248, %v5549, 0
    %v5555 = vsel %vm252, %v5550, 0
    %5557 = vmatpush.bf16.msra.mxu0 0
    %5558 = vmatpush.bf16.msra.mxu0 0
    %5559 = vmatpush.bf16.msra.mxu0 0
    %5560 = vmatpush.bf16.msra.mxu0 0
    %5561 = vmatpush.bf16.msra.mxu0 0
    %5562 = vmatpush.bf16.msra.mxu0 0
    %5563 = vmatpush.bf16.msra.mxu0 0
    %5564 = vmatpush.bf16.msra.mxu0 %v5555
    %5565 = vmatmul.bf16.gmra.mxu0 %v5552
    %v5566 = vpop.f32.mrf.mxu0
    %v5567 = vadd.f32 %v630, %v5566
    %v5568 = vpop.f32.mrf.mxu0
    %5569 = vdwg.mxu0
    %v5570 = vsel %vm248, %v5567, -inf
    %5571 = vmax.xlane.f32.xlu0 %v5570
    %v5572 = vpop.xlane.xlu0 %5571
    %v5573 = vsub.f32 %v5567, %v5572
    %v5574 = vmul.f32 %v5573, 1.442695
    %v5575 = vpow.pop %v5574
    %v5576 = vsel %vm248, %v5575, 0.0
    %5577 = vadd.xlane.f32.xlu0 %v5576
    %v5578 = vpop.xlane.xlu0 %5577
    %v5579 = vrcp.pop %v5578
    %v5580 = vmul.f32 %v5575, %v5579
    %v5581 = vpack.c.bf16 %v5580, %v5580
    %v5582 = vpack.c.bf16 %v5123, %v5123
    %5584 = vrot.lane.b32.xlu0 %v5582, 96
    %v5585 = vpop.permute.xlu0 %5584
    %v5587 = vsel %vm248, %v5581, 0
    %v5590 = vsel %vm252, %v5585, 0
    %5592 = vmatpush.bf16.msra.mxu0 0
    %5593 = vmatpush.bf16.msra.mxu0 0
    %5594 = vmatpush.bf16.msra.mxu0 0
    %5595 = vmatpush.bf16.msra.mxu0 0
    %5596 = vmatpush.bf16.msra.mxu0 0
    %5597 = vmatpush.bf16.msra.mxu0 0
    %5598 = vmatpush.bf16.msra.mxu0 0
    %5599 = vmatpush.bf16.msra.mxu0 %v5590
    %5600 = vmatmul.bf16.gmra.mxu0 %v5587
    %v5601 = vpop.f32.mrf.mxu0
    %v5602 = vadd.f32 0.0, %v5601
    %v5603 = vpop.f32.mrf.mxu0
    %5604 = vdwg.mxu0
    %5606 = vrot.lane.b32.xlu0 %v5123, 120
    %v5607 = vpop.permute.xlu0 %5606
    %5609 = vxpose.xlu0.b32.start [1/16] %v5607, 128
    %5610 = vxpose.xlu0.b32.cont [2/16] 0.0, 128
    %5611 = vxpose.xlu0.b32.cont [3/16] 0.0, 128
    %5612 = vxpose.xlu0.b32.cont [4/16] 0.0, 128
    %5613 = vxpose.xlu0.b32.cont [5/16] 0.0, 128
    %5614 = vxpose.xlu0.b32.cont [6/16] 0.0, 128
    %5615 = vxpose.xlu0.b32.cont [7/16] 0.0, 128
    %5616 = vxpose.xlu0.b32.cont [8/16] 0.0, 128
    %5617 = vxpose.xlu0.b32.cont [9/16] 0.0, 128
    %5618 = vxpose.xlu0.b32.cont [10/16] 0.0, 128
    %5619 = vxpose.xlu0.b32.cont [11/16] 0.0, 128
    %5620 = vxpose.xlu0.b32.cont [12/16] 0.0, 128
    %5621 = vxpose.xlu0.b32.cont [13/16] 0.0, 128
    %5622 = vxpose.xlu0.b32.cont [14/16] 0.0, 128
    %5623 = vxpose.xlu0.b32.cont [15/16] 0.0, 128
    %5624 = vxpose.xlu0.b32.end [16/16] 0.0, 128
    %v5625 = vpop.trf.xlu0
    %v5626 = vpop.trf.xlu0
    %v5627 = vpop.trf.xlu0
    %v5628 = vpop.trf.xlu0
    %v5629 = vpop.trf.xlu0
    %v5630 = vpop.trf.xlu0
    %v5631 = vpop.trf.xlu0
    %v5632 = vpop.trf.xlu0
    %v5633 = vpop.trf.xlu0
    %v5634 = vpop.trf.xlu0
    %v5635 = vpop.trf.xlu0
    %v5636 = vpop.trf.xlu0
    %v5637 = vpop.trf.xlu0
    %v5638 = vpop.trf.xlu0
    %v5639 = vpop.trf.xlu0
    %v5640 = vpop.trf.xlu0
    %v5641 = vpack.c.bf16 %v5625, %v5625
    %5643 = vrot.lane.b32.xlu0 %v5549, 120
    %v5644 = vpop.permute.xlu0 %5643
    %v5646 = vsel %vm248, %v5644, 0
    %v5649 = vsel %vm252, %v5641, 0
    %5651 = vmatpush.bf16.msra.mxu0 0
    %5652 = vmatpush.bf16.msra.mxu0 0
    %5653 = vmatpush.bf16.msra.mxu0 0
    %5654 = vmatpush.bf16.msra.mxu0 0
    %5655 = vmatpush.bf16.msra.mxu0 0
    %5656 = vmatpush.bf16.msra.mxu0 0
    %5657 = vmatpush.bf16.msra.mxu0 0
    %5658 = vmatpush.bf16.msra.mxu0 %v5649
    %5659 = vmatmul.bf16.gmra.mxu0 %v5646
    %v5660 = vpop.f32.mrf.mxu0
    %v5661 = vadd.f32 %v630, %v5660
    %v5662 = vpop.f32.mrf.mxu0
    %5663 = vdwg.mxu0
    %v5664 = vsel %vm248, %v5661, -inf
    %5665 = vmax.xlane.f32.xlu0 %v5664
    %v5666 = vpop.xlane.xlu0 %5665
    %v5667 = vsub.f32 %v5661, %v5666
    %v5668 = vmul.f32 %v5667, 1.442695
    %v5669 = vpow.pop %v5668
    %v5670 = vsel %vm248, %v5669, 0.0
    %5671 = vadd.xlane.f32.xlu0 %v5670
    %v5672 = vpop.xlane.xlu0 %5671
    %v5673 = vrcp.pop %v5672
    %v5674 = vmul.f32 %v5669, %v5673
    %v5675 = vpack.c.bf16 %v5674, %v5674
    %5676 = vrot.lane.b32.xlu0 %v5582, 88
    %v5677 = vpop.permute.xlu0 %5676
    %v5679 = vsel %vm248, %v5675, 0
    %v5682 = vsel %vm252, %v5677, 0
    %5684 = vmatpush.bf16.msra.mxu0 0
    %5685 = vmatpush.bf16.msra.mxu0 0
    %5686 = vmatpush.bf16.msra.mxu0 0
    %5687 = vmatpush.bf16.msra.mxu0 0
    %5688 = vmatpush.bf16.msra.mxu0 0
    %5689 = vmatpush.bf16.msra.mxu0 0
    %5690 = vmatpush.bf16.msra.mxu0 0
    %5691 = vmatpush.bf16.msra.mxu0 %v5682
    %5692 = vmatmul.bf16.gmra.mxu0 %v5679
    %v5693 = vpop.f32.mrf.mxu0
    %v5694 = vadd.f32 0.0, %v5693
    %v5695 = vpop.f32.mrf.mxu0
    %5696 = vdwg.mxu0
    %5697 = vrot.lane.b32.xlu0 %v5123, 112
    %v5698 = vpop.permute.xlu0 %5697
    %5700 = vxpose.xlu0.b32.start [1/16] %v5698, 128
    %5701 = vxpose.xlu0.b32.cont [2/16] 0.0, 128
    %5702 = vxpose.xlu0.b32.cont [3/16] 0.0, 128
    %5703 = vxpose.xlu0.b32.cont [4/16] 0.0, 128
    %5704 = vxpose.xlu0.b32.cont [5/16] 0.0, 128
    %5705 = vxpose.xlu0.b32.cont [6/16] 0.0, 128
    %5706 = vxpose.xlu0.b32.cont [7/16] 0.0, 128
    %5707 = vxpose.xlu0.b32.cont [8/16] 0.0, 128
    %5708 = vxpose.xlu0.b32.cont [9/16] 0.0, 128
    %5709 = vxpose.xlu0.b32.cont [10/16] 0.0, 128
    %5710 = vxpose.xlu0.b32.cont [11/16] 0.0, 128
    %5711 = vxpose.xlu0.b32.cont [12/16] 0.0, 128
    %5712 = vxpose.xlu0.b32.cont [13/16] 0.0, 128
    %5713 = vxpose.xlu0.b32.cont [14/16] 0.0, 128
    %5714 = vxpose.xlu0.b32.cont [15/16] 0.0, 128
    %5715 = vxpose.xlu0.b32.end [16/16] 0.0, 128
    %v5716 = vpop.trf.xlu0
    %v5717 = vpop.trf.xlu0
    %v5718 = vpop.trf.xlu0
    %v5719 = vpop.trf.xlu0
    %v5720 = vpop.trf.xlu0
    %v5721 = vpop.trf.xlu0
    %v5722 = vpop.trf.xlu0
    %v5723 = vpop.trf.xlu0
    %v5724 = vpop.trf.xlu0
    %v5725 = vpop.trf.xlu0
    %v5726 = vpop.trf.xlu0
    %v5727 = vpop.trf.xlu0
    %v5728 = vpop.trf.xlu0
    %v5729 = vpop.trf.xlu0
    %v5730 = vpop.trf.xlu0
    %v5731 = vpop.trf.xlu0
    %v5732 = vpack.c.bf16 %v5716, %v5716
    %5733 = vrot.lane.b32.xlu0 %v5549, 112
    %v5734 = vpop.permute.xlu0 %5733
    %v5736 = vsel %vm248, %v5734, 0
    %v5739 = vsel %vm252, %v5732, 0
    %5741 = vmatpush.bf16.msra.mxu0 0
    %5742 = vmatpush.bf16.msra.mxu0 0
    %5743 = vmatpush.bf16.msra.mxu0 0
    %5744 = vmatpush.bf16.msra.mxu0 0
    %5745 = vmatpush.bf16.msra.mxu0 0
    %5746 = vmatpush.bf16.msra.mxu0 0
    %5747 = vmatpush.bf16.msra.mxu0 0
    %5748 = vmatpush.bf16.msra.mxu0 %v5739
    %5749 = vmatmul.bf16.gmra.mxu0 %v5736
    %v5750 = vpop.f32.mrf.mxu0
    %v5751 = vadd.f32 %v630, %v5750
    %v5752 = vpop.f32.mrf.mxu0
    %5753 = vdwg.mxu0
    %v5754 = vsel %vm248, %v5751, -inf
    %5755 = vmax.xlane.f32.xlu0 %v5754
    %v5756 = vpop.xlane.xlu0 %5755
    %v5757 = vsub.f32 %v5751, %v5756
    %v5758 = vmul.f32 %v5757, 1.442695
    %v5759 = vpow.pop %v5758
    %v5760 = vsel %vm248, %v5759, 0.0
    %5761 = vadd.xlane.f32.xlu0 %v5760
    %v5762 = vpop.xlane.xlu0 %5761
    %v5763 = vrcp.pop %v5762
    %v5764 = vmul.f32 %v5759, %v5763
    %v5765 = vpack.c.bf16 %v5764, %v5764
    %5766 = vrot.lane.b32.xlu0 %v5582, 80
    %v5767 = vpop.permute.xlu0 %5766
    %v5769 = vsel %vm248, %v5765, 0
    %v5772 = vsel %vm252, %v5767, 0
    %5774 = vmatpush.bf16.msra.mxu0 0
    %5775 = vmatpush.bf16.msra.mxu0 0
    %5776 = vmatpush.bf16.msra.mxu0 0
    %5777 = vmatpush.bf16.msra.mxu0 0
    %5778 = vmatpush.bf16.msra.mxu0 0
    %5779 = vmatpush.bf16.msra.mxu0 0
    %5780 = vmatpush.bf16.msra.mxu0 0
    %5781 = vmatpush.bf16.msra.mxu0 %v5772
    %5782 = vmatmul.bf16.gmra.mxu0 %v5769
    %v5783 = vpop.f32.mrf.mxu0
    %v5784 = vadd.f32 0.0, %v5783
    %v5785 = vpop.f32.mrf.mxu0
    %5786 = vdwg.mxu0
    %5787 = vrot.lane.b32.xlu0 %v5123, 104
    %v5788 = vpop.permute.xlu0 %5787
    %5790 = vxpose.xlu0.b32.start [1/16] %v5788, 128
    %5791 = vxpose.xlu0.b32.cont [2/16] 0.0, 128
    %5792 = vxpose.xlu0.b32.cont [3/16] 0.0, 128
    %5793 = vxpose.xlu0.b32.cont [4/16] 0.0, 128
    %5794 = vxpose.xlu0.b32.cont [5/16] 0.0, 128
    %5795 = vxpose.xlu0.b32.cont [6/16] 0.0, 128
    %5796 = vxpose.xlu0.b32.cont [7/16] 0.0, 128
    %5797 = vxpose.xlu0.b32.cont [8/16] 0.0, 128
    %5798 = vxpose.xlu0.b32.cont [9/16] 0.0, 128
    %5799 = vxpose.xlu0.b32.cont [10/16] 0.0, 128
    %5800 = vxpose.xlu0.b32.cont [11/16] 0.0, 128
    %5801 = vxpose.xlu0.b32.cont [12/16] 0.0, 128
    %5802 = vxpose.xlu0.b32.cont [13/16] 0.0, 128
    %5803 = vxpose.xlu0.b32.cont [14/16] 0.0, 128
    %5804 = vxpose.xlu0.b32.cont [15/16] 0.0, 128
    %5805 = vxpose.xlu0.b32.end [16/16] 0.0, 128
    %v5806 = vpop.trf.xlu0
    %v5807 = vpop.trf.xlu0
    %v5808 = vpop.trf.xlu0
    %v5809 = vpop.trf.xlu0
    %v5810 = vpop.trf.xlu0
    %v5811 = vpop.trf.xlu0
    %v5812 = vpop.trf.xlu0
    %v5813 = vpop.trf.xlu0
    %v5814 = vpop.trf.xlu0
    %v5815 = vpop.trf.xlu0
    %v5816 = vpop.trf.xlu0
    %v5817 = vpop.trf.xlu0
    %v5818 = vpop.trf.xlu0
    %v5819 = vpop.trf.xlu0
    %v5820 = vpop.trf.xlu0
    %v5821 = vpop.trf.xlu0
    %v5822 = vpack.c.bf16 %v5806, %v5806
    %5823 = vrot.lane.b32.xlu0 %v5549, 104
    %v5824 = vpop.permute.xlu0 %5823
    %v5826 = vsel %vm248, %v5824, 0
    %v5829 = vsel %vm252, %v5822, 0
    %5831 = vmatpush.bf16.msra.mxu0 0
    %5832 = vmatpush.bf16.msra.mxu0 0
    %5833 = vmatpush.bf16.msra.mxu0 0
    %5834 = vmatpush.bf16.msra.mxu0 0
    %5835 = vmatpush.bf16.msra.mxu0 0
    %5836 = vmatpush.bf16.msra.mxu0 0
    %5837 = vmatpush.bf16.msra.mxu0 0
    %5838 = vmatpush.bf16.msra.mxu0 %v5829
    %5839 = vmatmul.bf16.gmra.mxu0 %v5826
    %v5840 = vpop.f32.mrf.mxu0
    %v5841 = vadd.f32 %v630, %v5840
    %v5842 = vpop.f32.mrf.mxu0
    %5843 = vdwg.mxu0
    %v5844 = vsel %vm248, %v5841, -inf
    %5845 = vmax.xlane.f32.xlu0 %v5844
    %v5846 = vpop.xlane.xlu0 %5845
    %v5847 = vsub.f32 %v5841, %v5846
    %v5848 = vmul.f32 %v5847, 1.442695
    %v5849 = vpow.pop %v5848
    %v5850 = vsel %vm248, %v5849, 0.0
    %5851 = vadd.xlane.f32.xlu0 %v5850
    %v5852 = vpop.xlane.xlu0 %5851
    %v5853 = vrcp.pop %v5852
    %v5854 = vmul.f32 %v5849, %v5853
    %v5855 = vpack.c.bf16 %v5854, %v5854
    %5856 = vrot.lane.b32.xlu0 %v5582, 72
    %v5857 = vpop.permute.xlu0 %5856
    %v5859 = vsel %vm248, %v5855, 0
    %v5862 = vsel %vm252, %v5857, 0
    %5864 = vmatpush.bf16.msra.mxu0 0
    %5865 = vmatpush.bf16.msra.mxu0 0
    %5866 = vmatpush.bf16.msra.mxu0 0
    %5867 = vmatpush.bf16.msra.mxu0 0
    %5868 = vmatpush.bf16.msra.mxu0 0
    %5869 = vmatpush.bf16.msra.mxu0 0
    %5870 = vmatpush.bf16.msra.mxu0 0
    %5871 = vmatpush.bf16.msra.mxu0 %v5862
    %5872 = vmatmul.bf16.gmra.mxu0 %v5859
    %v5873 = vpop.f32.mrf.mxu0
    %v5874 = vadd.f32 0.0, %v5873
    %v5875 = vpop.f32.mrf.mxu0
    %5876 = vdwg.mxu0
    %5878 = vrot.lane.b32.xlu0 %v5694, 8
    %v5879 = vpop.permute.xlu0 %5878
    %5882 = vrot.lane.b32.xlu0 %v5784, 16
    %v5883 = vpop.permute.xlu0 %5882
    %5886 = vrot.lane.b32.xlu0 %v5874, 24
    %v5887 = vpop.permute.xlu0 %5886
    %v5889 = vsel %vm248, %v5602, %v5879
    %v5890 = vsel %vm588, %v5889, %v5883
    %v5891 = vsel %vm590, %v5890, %v5887
    %5893 = vrot.lane.b32.xlu0 %v5674, 8
    %v5894 = vpop.permute.xlu0 %5893
    %5897 = vrot.lane.b32.xlu0 %v5764, 16
    %v5898 = vpop.permute.xlu0 %5897
    %5901 = vrot.lane.b32.xlu0 %v5854, 24
    %v5902 = vpop.permute.xlu0 %5901
    %v5904 = vsel %vm248, %v5580, %v5894
    %v5905 = vsel %vm588, %v5904, %v5898
    %v5906 = vsel %vm590, %v5905, %v5902
    %s5907 = scalar_lea.vmem %s83, 24
    %5908 = vst.msk [vmem:[%s5907] sm:$0xff] %vm189, %v5906
    %s5909 = scalar_lea.vmem %s49, 32
    %v5910 = vld [vmem:[%s5909] sm:$0xff]
    %v5911 = vld [vmem:[%s5909 + $0x8] sm:$0xff]
    %v5912 = vld [vmem:[%s5909 + $0x10] sm:$0xff]
    %v5913 = vld [vmem:[%s5909 + $0x18] sm:$0xff]
    %v5914 = vpack.c.bf16 %v5891, %v5499
    %v5915 = vpack.c.bf16 %v5911, %v5910
    %v5916 = vpack.c.bf16 %v5913, %v5912
    %s5917 = scalar_lea.vmem %s51, 1
    %v5918 = vld [vmem:[%s5917] sm:$0x1]
    %v5920 = vperm.slane %v5918, 0
    %v5923 = vsel %vm189, %v5914, 0
    %5925 = vmatpush.bf16.msra.mxu0 0
    %5926 = vmatpush.bf16.msra.mxu0 0
    %5927 = vmatpush.bf16.msra.mxu0 0
    %5928 = vmatpush.bf16.msra.mxu0 0
    %5929 = vmatpush.bf16.msra.mxu0 0
    %5930 = vmatpush.bf16.msra.mxu0 0
    %5931 = vmatpush.bf16.msra.mxu0 %v5916
    %5932 = vmatpush.bf16.msra.mxu0 %v5915
    %5933 = vmatmul.bf16.gmra.mxu0 %v5923
    %v5934 = vpop.f32.mrf.mxu0
    %v5935 = vadd.f32 %v5920, %v5934
    %v5936 = vpop.f32.mrf.mxu0
    %v5937 = vadd.f32 %v5920, %v5936
    %5938 = vdwg.mxu0
    %v5939 = vadd.f32 %v5065, %v5935
    %v5940 = vadd.f32 %v5066, %v5937
    %s5941 = scalar_lea.vmem %s65, 1
    %v5942 = vld [vmem:[%s5941] sm:$0x1]
    %s5943 = scalar_lea.vmem %s67, 1
    %v5944 = vld [vmem:[%s5943] sm:$0x1]
    %v5945 = vsel %vm189, %v5939, 0.0
    %5946 = vadd.xlane.f32.xlu0 %v5945
    %v5947 = vpop.xlane.xlu0 %5946
    %v5948 = vsel %vm189, %v5940, 0.0
    %5949 = vadd.xlane.f32.xlu0 %v5948
    %v5950 = vpop.xlane.xlu0 %5949
    %v5951 = vmul.f32 %v5947, %v1015
    %v5952 = vmul.f32 %v5950, %v1015
    %v5953 = vsub.f32 %v5939, %v5951
    %v5954 = vsub.f32 %v5940, %v5952
    %v5955 = vmul.f32 %v5953, %v5953
    %v5956 = vmul.f32 %v5954, %v5954
    %v5957 = vsel %vm189, %v5955, 0.0
    %5958 = vadd.xlane.f32.xlu0 %v5957
    %v5959 = vpop.xlane.xlu0 %5958
    %v5960 = vsel %vm189, %v5956, 0.0
    %5961 = vadd.xlane.f32.xlu0 %v5960
    %v5962 = vpop.xlane.xlu0 %5961
    %v5963 = vmul.f32 %v5959, %v1015
    %v5964 = vmul.f32 %v5962, %v1015
    %v5965 = vadd.f32 %v5963, 1e-05
    %v5966 = vadd.f32 %v5964, 1e-05
    %v5967 = vrsqrt.pop %v5965
    %v5968 = vmul.f32 %v5967, %v5965
    %v5969 = vmul.f32 %v5968, %v5967
    %v5970 = vmul.f32 0.5, %v5969
    %v5971 = vsub.f32 1.5, %v5970
    %v5972 = vmul.f32 %v5967, %v5971
    %vm5973 = vweird.f32 %v5965
    %vm5974 = vweird.f32 %v5967
    %vm5975 = vmor %vm5973, %vm5974
    %v5976 = vsel %vm5975, %v5967, %v5972
    %v5977 = vrsqrt.pop %v5966
    %v5978 = vmul.f32 %v5977, %v5966
    %v5979 = vmul.f32 %v5978, %v5977
    %v5980 = vmul.f32 0.5, %v5979
    %v5981 = vsub.f32 1.5, %v5980
    %v5982 = vmul.f32 %v5977, %v5981
    %vm5983 = vweird.f32 %v5966
    %vm5984 = vweird.f32 %v5977
    %vm5985 = vmor %vm5983, %vm5984
    %v5986 = vsel %vm5985, %v5977, %v5982
    %v5987 = vmul.f32 %v5953, %v5976
    %v5988 = vmul.f32 %v5954, %v5986
    %v5990 = vperm.slane %v5942, 0
    %v5992 = vmul.f32 %v5987, %v5990
    %v5993 = vmul.f32 %v5988, %v5990
    %v5995 = vperm.slane %v5944, 0
    %v5997 = vadd.f32 %v5992, %v5995
    %v5998 = vadd.f32 %v5993, %v5995
    %s5999 = scalar_lea.vmem %s53, 32
    %v6000 = vld [vmem:[%s5999] sm:$0xff]
    %v6001 = vld [vmem:[%s5999 + $0x8] sm:$0xff]
    %v6002 = vld [vmem:[%s5999 + $0x10] sm:$0xff]
    %v6003 = vld [vmem:[%s5999 + $0x18] sm:$0xff]
    %v6004 = vpack.c.bf16 %v5998, %v5997
    %v6005 = vpack.c.bf16 %v6001, %v6000
    %v6006 = vpack.c.bf16 %v6003, %v6002
    %s6007 = scalar_lea.vmem %s55, 1
    %v6008 = vld [vmem:[%s6007] sm:$0x1]
    %v6010 = vperm.slane %v6008, 0
    %v6013 = vsel %vm189, %v6004, 0
    %6015 = vmatpush.bf16.msra.mxu0 0
    %6016 = vmatpush.bf16.msra.mxu0 0
    %6017 = vmatpush.bf16.msra.mxu0 0
    %6018 = vmatpush.bf16.msra.mxu0 0
    %6019 = vmatpush.bf16.msra.mxu0 0
    %6020 = vmatpush.bf16.msra.mxu0 0
    %6021 = vmatpush.bf16.msra.mxu0 %v6006
    %6022 = vmatpush.bf16.msra.mxu0 %v6005
    %6023 = vmatmul.bf16.gmra.mxu0 %v6013
    %v6024 = vpop.f32.mrf.mxu0
    %v6025 = vadd.f32 %v6010, %v6024
    %v6026 = vpop.f32.mrf.mxu0
    %v6027 = vadd.f32 %v6010, %v6026
    %6028 = vdwg.mxu0
    %v6029 = vmax.f32 %v6025, 0.0
    %v6030 = vmax.f32 %v6027, 0.0
    %s6031 = scalar_lea.vmem %s57, 64
    %v6032 = vld [vmem:[%s6031] sm:$0xff]
    %v6033 = vld [vmem:[%s6031 + $0x8] sm:$0xff]
    %v6034 = vld [vmem:[%s6031 + $0x10] sm:$0xff]
    %v6035 = vld [vmem:[%s6031 + $0x18] sm:$0xff]
    %v6036 = vld [vmem:[%s6031 + $0x20] sm:$0xff]
    %v6037 = vld [vmem:[%s6031 + $0x28] sm:$0xff]
    %v6038 = vld [vmem:[%s6031 + $0x30] sm:$0xff]
    %v6039 = vld [vmem:[%s6031 + $0x38] sm:$0xff]
    %v6040 = vpack.c.bf16 %v6030, %v6029
    %v6041 = vpack.c.bf16 %v6033, %v6032
    %v6042 = vpack.c.bf16 %v6035, %v6034
    %v6043 = vpack.c.bf16 %v6037, %v6036
    %v6044 = vpack.c.bf16 %v6039, %v6038
    %s6045 = scalar_lea.vmem %s59, 1
    %v6046 = vld [vmem:[%s6045] sm:$0x1]
    %v6048 = vperm.slane %v6046, 0
    %v6051 = vsel %vm1111, %v6040, 0
    %6053 = vmatpush.bf16.msra.mxu0 0
    %6054 = vmatpush.bf16.msra.mxu0 0
    %6055 = vmatpush.bf16.msra.mxu0 0
    %6056 = vmatpush.bf16.msra.mxu0 0
    %6057 = vmatpush.bf16.msra.mxu0 %v6044
    %6058 = vmatpush.bf16.msra.mxu0 %v6043
    %6059 = vmatpush.bf16.msra.mxu0 %v6042
    %6060 = vmatpush.bf16.msra.mxu0 %v6041
    %6061 = vmatmul.bf16.gmra.mxu0 %v6051
    %v6062 = vpop.f32.mrf.mxu0
    %v6063 = vadd.f32 %v6048, %v6062
    %v6064 = vpop.f32.mrf.mxu0
    %v6065 = vadd.f32 %v6048, %v6064
    %6066 = vdwg.mxu0
    %v6067 = vadd.f32 %v5997, %v6063
    %v6068 = vadd.f32 %v5998, %v6065
    %s6069 = scalar_lea.vmem %s69, 1
    %v6070 = vld [vmem:[%s6069] sm:$0x1]
    %s6071 = scalar_lea.vmem %s71, 1
    %v6072 = vld [vmem:[%s6071] sm:$0x1]
    %v6073 = vsel %vm189, %v6067, 0.0
    %6074 = vadd.xlane.f32.xlu0 %v6073
    %v6075 = vpop.xlane.xlu0 %6074
    %v6076 = vsel %vm189, %v6068, 0.0
    %6077 = vadd.xlane.f32.xlu0 %v6076
    %v6078 = vpop.xlane.xlu0 %6077
    %v6079 = vmul.f32 %v6075, %v1015
    %v6080 = vmul.f32 %v6078, %v1015
    %v6081 = vsub.f32 %v6067, %v6079
    %v6082 = vsub.f32 %v6068, %v6080
    %v6083 = vmul.f32 %v6081, %v6081
    %v6084 = vmul.f32 %v6082, %v6082
    %v6085 = vsel %vm189, %v6083, 0.0
    %6086 = vadd.xlane.f32.xlu0 %v6085
    %v6087 = vpop.xlane.xlu0 %6086
    %v6088 = vsel %vm189, %v6084, 0.0
    %6089 = vadd.xlane.f32.xlu0 %v6088
    %v6090 = vpop.xlane.xlu0 %6089
    %v6091 = vmul.f32 %v6087, %v1015
    %v6092 = vmul.f32 %v6090, %v1015
    %v6093 = vadd.f32 %v6091, 1e-05
    %v6094 = vadd.f32 %v6092, 1e-05
    %v6095 = vrsqrt.pop %v6093
    %v6096 = vmul.f32 %v6095, %v6093
    %v6097 = vmul.f32 %v6096, %v6095
    %v6098 = vmul.f32 0.5, %v6097
    %v6099 = vsub.f32 1.5, %v6098
    %v6100 = vmul.f32 %v6095, %v6099
    %vm6101 = vweird.f32 %v6093
    %vm6102 = vweird.f32 %v6095
    %vm6103 = vmor %vm6101, %vm6102
    %v6104 = vsel %vm6103, %v6095, %v6100
    %v6105 = vrsqrt.pop %v6094
    %v6106 = vmul.f32 %v6105, %v6094
    %v6107 = vmul.f32 %v6106, %v6105
    %v6108 = vmul.f32 0.5, %v6107
    %v6109 = vsub.f32 1.5, %v6108
    %v6110 = vmul.f32 %v6105, %v6109
    %vm6111 = vweird.f32 %v6094
    %vm6112 = vweird.f32 %v6105
    %vm6113 = vmor %vm6111, %vm6112
    %v6114 = vsel %vm6113, %v6105, %v6110
    %v6115 = vmul.f32 %v6081, %v6104
    %v6116 = vmul.f32 %v6082, %v6114
    %v6118 = vperm.slane %v6070, 0
    %v6120 = vmul.f32 %v6115, %v6118
    %v6121 = vmul.f32 %v6116, %v6118
    %v6123 = vperm.slane %v6072, 0
    %v6125 = vadd.f32 %v6120, %v6123
    %v6126 = vadd.f32 %v6121, %v6123
    %v6127 = vld [vmem:[%s73] sm:$0xff]
    %v6128 = vld [vmem:[%s73 + $0x8] sm:$0xff]
    %v6129 = vld [vmem:[%s73 + $0x10] sm:$0xff]
    %v6130 = vld [vmem:[%s73 + $0x18] sm:$0xff]
    %v6131 = vpack.c.bf16 %v6126, %v6125
    %v6132 = vpack.c.bf16 %v6128, %v6127
    %v6133 = vpack.c.bf16 %v6130, %v6129
    %v6134 = vld [vmem:[%s75] sm:$0x1]
    %v6136 = vperm.slane %v6134, 0
    %v6139 = vsel %vm189, %v6131, 0
    %6141 = vmatpush.bf16.msra.mxu0 0
    %6142 = vmatpush.bf16.msra.mxu0 0
    %6143 = vmatpush.bf16.msra.mxu0 0
    %6144 = vmatpush.bf16.msra.mxu0 0
    %6145 = vmatpush.bf16.msra.mxu0 0
    %6146 = vmatpush.bf16.msra.mxu0 0
    %6147 = vmatpush.bf16.msra.mxu0 %v6133
    %6148 = vmatpush.bf16.msra.mxu0 %v6132
    %6149 = vmatmul.bf16.gmra.mxu0 %v6139
    %v6150 = vpop.f32.mrf.mxu0
    %v6151 = vadd.f32 %v6136, %v6150
    %v6152 = vpop.f32.mrf.mxu0
    %v6153 = vadd.f32 %v6136, %v6152
    %6154 = vdwg.mxu0
    %vm6155 = vcmask 490496
    %6156 = vst.msk [vmem:[#allocation4] sm:$0xff] %vm6155, %v6151
    %6157 = vst.msk [vmem:[#allocation4 + $0x8] sm:$0xff] %vm6155, %v6153
    // Predicated region
    $region154: #{transformer_forward.1} parent=1 // pred_check
      _
    $region155: #{transformer_forward.1} parent=1 // pred_check_branch
      %6159 = sbr.rel (0) target = $region157
    $region156: #{transformer_forward.1} parent=1 // pred_region
      %6161 = vsyncadd [#allocation3], 0
      %s6162 = sshll.u32 [#allocation2], 4
      %s6163 = int_to_ptr.vmem [resolvable:$true] %s6162
      %s6164 = sshll.u32 %s77, 4
      %s6165 = int_to_ptr.hbm [resolvable:$true] %s6164
      %6170 = dma.vmem_to_hbm [thread:$0]  %s6163, 256, %s6165, [#allocation3], 128, 128, 8
    $region157: #{transformer_forward.1} parent=1 // pred_fallthru
      _
    // Predicated region
    $region158: #{transformer_forward.1} parent=1 // pred_check
      _
    $region159: #{transformer_forward.1} parent=1 // pred_check_branch
      %6172 = sbr.rel (0) target = $region161
    $region160: #{transformer_forward.1} parent=1 // pred_region
      %6174 = vsyncadd [#allocation5], 0
      %s6175 = sshll.u32 [#allocation4], 4
      %s6176 = int_to_ptr.vmem [resolvable:$true] %s6175
      %s6177 = sshll.u32 %s79, 4
      %s6178 = int_to_ptr.hbm [resolvable:$true] %s6177
      %6183 = dma.vmem_to_hbm [thread:$0]  %s6176, 256, %s6178, [#allocation5], 128, 128, 8
    $region161: #{transformer_forward.1} parent=1 // pred_fallthru
      _
    // Predicated region
    $region162: #{transformer_forward.1} parent=1 // pred_check
      _
    $region163: #{transformer_forward.1} parent=1 // pred_check_branch
      %6185 = sbr.rel (0) target = $region165
    $region164: #{transformer_forward.1} parent=1 // pred_region
      _
    $region165: #{transformer_forward.1} parent=1 // pred_fallthru
      _
    // Predicated region
    $region166: #{transformer_forward.1} parent=1 // pred_check
      _
    $region167: #{transformer_forward.1} parent=1 // pred_check_branch
      %6187 = sbr.rel (0) target = $region169
    $region168: #{transformer_forward.1} parent=1 // pred_region
      _
    $region169: #{transformer_forward.1} parent=1 // pred_fallthru
      _
    // Predicated region
    $region170: #{transformer_forward.1} parent=1 // pred_check
      _
    $region171: #{transformer_forward.1} parent=1 // pred_check_branch
      %6189 = sbr.rel (0) target = $region173
    $region172: #{transformer_forward.1} parent=1 // pred_region
      %6191 = dma.done [#allocation3], 256
    $region173: #{transformer_forward.1} parent=1 // pred_fallthru
      _
    // Predicated region
    $region174: #{transformer_forward.1} parent=1 // pred_check
      _
    $region175: #{transformer_forward.1} parent=1 // pred_check_branch
      %6193 = sbr.rel (0) target = $region177
    $region176: #{transformer_forward.1} parent=1 // pred_region
      %6195 = dma.done [#allocation5], 256
    $region177: #{transformer_forward.1} parent=1 // pred_fallthru
      _
    // Predicated region
    $region178: #{transformer_forward.1} parent=1 // pred_check
      _
    $region179: #{transformer_forward.1} parent=1 // pred_check_branch
      %6197 = sbr.rel (0) target = $region181
    $region180: #{transformer_forward.1} parent=1 // pred_region
      _
    $region181: #{transformer_forward.1} parent=1 // pred_fallthru
      _
    // Predicated region
    $region182: #{transformer_forward.1} parent=1 // pred_check
      _
    $region183: #{transformer_forward.1} parent=1 // pred_check_branch
      %6199 = sbr.rel (0) target = $region185
    $region184: #{transformer_forward.1} parent=1 // pred_region
      _
    $region185: #{transformer_forward.1} parent=1 // pred_fallthru
      _
    %6200 = vsyncpa [#allocation3], 1
    %6201 = vsyncpa [#allocation5], 1

</llo_original>
